<compile_context>
chip_gen: v7x
topology: tpu7x:2x2x1
jax: 0.10.0
libtpu: 0.0.40
codegen_flags: <defaults>
</compile_context>

<pallas_src>
import functools

import jax
import jax.numpy as jnp
from jax.experimental import pallas as pl
from jax.experimental.pallas import tpu as pltpu


# ----------------------------------------------------------------------------
# In-kernel building blocks (operate on jnp values, called from the fused kernel)
# ----------------------------------------------------------------------------
def _edgeconv_block(x, gd, gs, scat, wcat, w23, b_row, *, hidden):
    """EdgeConv(ResidualMLP) on the edge list + scatter aggregation + outer ReLU.

    gd/gs : (E, N) one-hot gathers of destination / source node rows (bf16).
    scat  : (N, E) one-hot scatter-add (sum aggr) or 1/deg-scaled scatter (mean aggr) (bf16).
    wcat  : (in_dim/2, 4H) = [fc1_dst | sc_dst | fc1_src | sc_src]  (bf16, BN1 folded).
    w23   : (H, 2H)       = [fc2 | fc3]                             (bf16, BN2 folded).
    b_row : (1, 4H)       = [b1 | b_sc | b2 | b3]                   (f32).
    """
    f32, bf16 = jnp.float32, jnp.bfloat16
    H = hidden
    xb = x.astype(bf16)

    # single lane-dense node projection, then split dst-terms / src-terms
    t = jnp.dot(xb, wcat, preferred_element_type=f32)                  # (N, 4H)
    td = t[:, :2 * H].astype(bf16)                                     # [fc1_dst | sc_dst]
    ts = t[:, 2 * H:].astype(bf16)                                     # [fc1_src | sc_src]

    # per-edge pair terms via one-hot gather matmuls (MXU), replaces the dense (N,N,H) tensor
    te = (jnp.dot(gd, td, preferred_element_type=f32)
          + jnp.dot(gs, ts, preferred_element_type=f32))               # (E, 2H)

    b1 = b_row[:, 0:H]
    bsc = b_row[:, H:2 * H]
    b2 = b_row[:, 2 * H:3 * H]
    b3 = b_row[:, 3 * H:4 * H]

    h1 = jnp.maximum(te[:, :H] + b1, 0.0)                              # relu(bn1(fc1))  (E, H)
    sc = te[:, H:] + bsc                                               # shortcut        (E, H)
    # dropout = identity (inference)
    h2 = jnp.maximum(
        jnp.dot(h1.astype(bf16), w23[:, :H], preferred_element_type=f32) + b2, 0.0)
    msg = jnp.dot(h2.astype(bf16), w23[:, H:], preferred_element_type=f32) + b3 + sc

    # aggregation over incoming edges: scatter matmul ('mean' has 1/deg folded into scat)
    agg = jnp.dot(scat, msg.astype(bf16), preferred_element_type=f32)  # (N, H)
    return jnp.maximum(agg, 0.0)                                       # F.relu after each EdgeConv


def _gat_block(x, adj_sl, w, bias, *, heads, hd, concat, negative_slope=0.2):
    """PyG GATConv (shared lin, self loops, leaky_relu(0.2), masked softmax) + ELU.

    w : (in_dim, heads*hd + 2*heads) = [W | W@att_src | W@att_dst]  (bf16).
    """
    f32, bf16 = jnp.float32, jnp.bfloat16
    N = x.shape[0]
    HD = heads * hd
    xb = x.astype(bf16)

    proj = jnp.dot(xb, w, preferred_element_type=f32)                  # (N, HD + 2*heads)
    xlin = proj[:, :HD]
    a_src = proj[:, HD:HD + heads]                                     # (N, heads)
    a_dst = proj[:, HD + heads:HD + 2 * heads]                         # (N, heads)
    a_src_t = jnp.transpose(a_src)                                     # (heads, N)
    a_dst_t = jnp.transpose(a_dst)                                     # (heads, N)

    # all heads at once: s[h, i, j] = a_dst[i, h] + a_src[j, h]
    s = a_dst_t[:, :, None] + a_src_t[:, None, :]                      # (heads, N, N)
    s = jnp.where(s > 0, s, negative_slope * s)                        # leaky_relu
    # mask non-edges BEFORE the max so the row max always comes from a real edge / self loop
    s = jnp.where(adj_sl[None, :, :] > 0, s, -1e30)
    m = jnp.max(s, axis=-1, keepdims=True)
    p = jnp.exp(s - m)                                                 # masked entries underflow to 0
    denom = jnp.sum(p, axis=-1, keepdims=True)                         # self loop => denom >= ~1
    attn = p * pl.reciprocal(denom, approx=True)                       # EUP reciprocal (~1e-3 rel err)

    xlb = xlin.astype(bf16)
    ys = []
    for h in range(heads):                                             # per-head contraction: only
        a_h = attn[h].astype(bf16)                                     # the needed (N, hd) outputs
        v_h = xlb[:, h * hd:(h + 1) * hd]
        ys.append(jnp.dot(a_h, v_h, preferred_element_type=f32))       # (N, hd)

    if concat:
        z = jnp.concatenate(ys, axis=-1) + bias                        # (N, heads*hd)
    else:
        acc = ys[0]
        for y in ys[1:]:
            acc = acc + y
        z = acc * (1.0 / heads) + bias                                 # head mean  (N, hd)
    # F.elu after each GAT layer
    return jnp.where(z > 0, z, jnp.exp(jnp.minimum(z, 0.0)) - 1.0)


# ----------------------------------------------------------------------------
# Fused forward kernel (whole network, single gridless invocation)
# ----------------------------------------------------------------------------
def _fused_forward_kernel(x_ref, adjsl_ref, gd_ref, gs_ref, ssum_ref, smean_ref, bias_ref,
                          e1_wcat_ref, e1_w23_ref, e2_wcat_ref, e2_w23_ref,
                          g1_w_ref, g2_w_ref, cls_w_ref,
                          out_ref, *, hidden, heads):
    bias = bias_ref[...]
    gd = gd_ref[...]
    gs = gs_ref[...]
    HD = heads * hidden

    h = _edgeconv_block(x_ref[...], gd, gs, ssum_ref[...],
                        e1_wcat_ref[...], e1_w23_ref[...], bias[0:1, :],
                        hidden=hidden)                                  # aggr='sum'
    h = _edgeconv_block(h, gd, gs, smean_ref[...],
                        e2_wcat_ref[...], e2_w23_ref[...], bias[1:2, :],
                        hidden=hidden)                                  # aggr='mean'

    adj_sl = adjsl_ref[...]
    h = _gat_block(h, adj_sl, g1_w_ref[...], bias[2:3, 0:HD],
                   heads=heads, hd=hidden, concat=True)
    h = _gat_block(h, adj_sl, g2_w_ref[...], bias[3:4, 0:hidden],
                   heads=heads, hd=hidden, concat=False)

    n_cls = out_ref.shape[1]
    logits = jnp.dot(h.astype(jnp.bfloat16), cls_w_ref[...],
                     preferred_element_type=jnp.float32) + bias[4:5, 0:n_cls]
    out_ref[...] = logits.astype(out_ref.dtype)


# ----------------------------------------------------------------------------
# Parameter construction (deterministic, synthetic; BN folded for inference)
# ----------------------------------------------------------------------------
def _init_linear(key, in_dim, out_dim):
    k1, k2 = jax.random.split(key)
    w = jax.random.normal(k1, (in_dim, out_dim), jnp.float32) / jnp.sqrt(float(in_dim))
    b = 0.05 * jax.random.normal(k2, (1, out_dim), jnp.float32)
    return w, b


def _init_bn(key, dim):
    k1, k2, k3, k4 = jax.random.split(key, 4)
    gamma = 1.0 + 0.1 * jax.random.normal(k1, (dim,), jnp.float32)
    beta = 0.1 * jax.random.normal(k2, (dim,), jnp.float32)
    mean = 0.1 * jax.random.normal(k3, (dim,), jnp.float32)
    var = 0.5 + jax.random.uniform(k4, (dim,), jnp.float32)
    return gamma, beta, mean, var


def _fold_linear_bn(w, b, gamma, beta, mean, var, eps=1e-5):
    g = gamma / jnp.sqrt(var + eps)
    return w * g[None, :], (b - mean[None, :]) * g[None, :] + beta[None, :]


def _init_residual_mlp(key, in_dim, hidden, out_dim):
    ks = jax.random.split(key, 6)
    w1, b1 = _init_linear(ks[0], in_dim, hidden)
    bn1 = _init_bn(ks[1], hidden)
    w2, b2 = _init_linear(ks[2], hidden, hidden)
    bn2 = _init_bn(ks[3], hidden)
    w3, b3 = _init_linear(ks[4], hidden, out_dim)
    wsc, bsc = _init_linear(ks[5], in_dim, out_dim)       # shortcut (in_dim != out_dim)
    w1f, b1f = _fold_linear_bn(w1, b1, *bn1)              # fold fc1 + bn1 (eval mode)
    w2f, b2f = _fold_linear_bn(w2, b2, *bn2)              # fold fc2 + bn2 (eval mode)
    c = in_dim // 2
    bf16 = jnp.bfloat16
    # pair feature [x_i, x_j - x_i] (i = dst, j = src):
    #   fc1:      x_i @ (w1f[:c] - w1f[c:]) + x_j @ w1f[c:]
    #   shortcut: x_i @ (wsc[:c] - wsc[c:]) + x_j @ wsc[c:]
    wcat = jnp.concatenate([w1f[:c] - w1f[c:], wsc[:c] - wsc[c:],      # dst block
                            w1f[c:], wsc[c:]], axis=1)                 # src block   -> (c, 4*hidden)
    w23 = jnp.concatenate([w2f, w3], axis=1)                           # (hidden, 2*hidden)
    brow = jnp.concatenate([b1f, bsc, b2f, b3], axis=1)                # (1, 4*hidden)
    return dict(wcat=wcat.astype(bf16), w23=w23.astype(bf16), brow=brow)


def _init_gat(key, in_dim, out_dim, heads, concat):
    ks = jax.random.split(key, 4)
    w = jax.random.normal(ks[0], (in_dim, heads * out_dim), jnp.float32) / jnp.sqrt(float(in_dim))
    att_src = jax.random.normal(ks[1], (heads, out_dim), jnp.float32) / jnp.sqrt(float(out_dim))
    att_dst = jax.random.normal(ks[2], (heads, out_dim), jnp.float32) / jnp.sqrt(float(out_dim))
    # fold attention projections into the layer weight: alpha_src = x @ (W @ a_src) etc.
    w_r = w.reshape(in_dim, heads, out_dim)
    w_asrc = jnp.einsum('ihd,hd->ih', w_r, att_src)                    # (in_dim, heads)
    w_adst = jnp.einsum('ihd,hd->ih', w_r, att_dst)                    # (in_dim, heads)
    wfull = jnp.concatenate([w, w_asrc, w_adst], axis=1)               # (in_dim, heads*out + 2*heads)
    bias_dim = heads * out_dim if concat else out_dim
    bias = 0.05 * jax.random.normal(ks[3], (1, bias_dim), jnp.float32)
    return dict(w=wfull.astype(jnp.bfloat16), bias=bias)


def init_params(key, in_channels, hidden, out_channels, heads):
    ks = jax.random.split(key, 5)
    ec1 = _init_residual_mlp(ks[0], 2 * in_channels, hidden, hidden)
    ec2 = _init_residual_mlp(ks[1], 2 * hidden, hidden, hidden)
    g1 = _init_gat(ks[2], hidden, hidden, heads, concat=True)
    g2 = _init_gat(ks[3], hidden * heads, hidden, heads, concat=False)
    wc, bc = _init_linear(ks[4], hidden, out_channels)

    # pack every small bias vector into one (5, width) array -> one DMA, one VMEM tile
    width = max(4 * hidden, heads * hidden, out_channels)

    def pad(row):
        return jnp.pad(row, ((0, 0), (0, width - row.shape[1])))

    biases = jnp.concatenate([pad(ec1['brow']), pad(ec2['brow']),
                              pad(g1['bias']), pad(g2['bias']), pad(bc)], axis=0)

    return dict(ec1_wcat=ec1['wcat'], ec1_w23=ec1['w23'],
                ec2_wcat=ec2['wcat'], ec2_w23=ec2['w23'],
                g1_w=g1['w'], g2_w=g2['w'],
                cls_w=wc.astype(jnp.bfloat16),
                biases=biases.astype(jnp.float32))


# ----------------------------------------------------------------------------
# Graph constants (built ONCE for a static edge_index, outside the per-call path)
# ----------------------------------------------------------------------------
def build_graph_constants(edge_index, num_nodes):
    src, dst = edge_index[0], edge_index[1]
    E = src.shape[0]
    f32, bf16 = jnp.float32, jnp.bfloat16
    e_ar = jnp.arange(E)
    gd = jnp.zeros((E, num_nodes), f32).at[e_ar, dst].set(1.0)     # gathers x[dst[e]]
    gs = jnp.zeros((E, num_nodes), f32).at[e_ar, src].set(1.0)     # gathers x[src[e]]
    s_sum = gd.T                                                   # scatter-add messages to dst
    deg = jnp.sum(s_sum, axis=1, keepdims=True)
    s_mean = s_sum / jnp.maximum(deg, 1.0)                         # 'mean' aggregation folded in
    adj = jnp.zeros((num_nodes, num_nodes), f32).at[dst, src].set(1.0)
    diag = jnp.arange(num_nodes)
    adj_sl = adj.at[diag, diag].set(1.0)                           # GATConv: remove + add self loops
    return dict(gd=gd.astype(bf16), gs=gs.astype(bf16),
                s_sum=s_sum.astype(bf16), s_mean=s_mean.astype(bf16),
                adj_sl=adj_sl)


# ----------------------------------------------------------------------------
# Forward pass (matches GATEdgeConvHybrid.forward with dynamic_graph=False)
# ----------------------------------------------------------------------------
def gat_edgeconv_hybrid_forward(params, x, graph, *, hidden, heads):
    N = x.shape[0]
    n_classes = params['cls_w'].shape[1]
    args = [x, graph['adj_sl'], graph['gd'], graph['gs'], graph['s_sum'], graph['s_mean'],
            params['biases'],
            params['ec1_wcat'], params['ec1_w23'],
            params['ec2_wcat'], params['ec2_w23'],
            params['g1_w'], params['g2_w'], params['cls_w']]
    kern = functools.partial(_fused_forward_kernel, hidden=hidden, heads=heads)
    return pl.pallas_call(
        kern,
        out_shape=jax.ShapeDtypeStruct((N, n_classes), jnp.float32),
        compiler_params=pltpu.CompilerParams(vmem_limit_bytes=32 * 1024 * 1024),
    )(*args)


if __name__ == "__main__":
    N, C_IN, HIDDEN, N_CLASSES, HEADS, K = 64, 6, 32, 5, 4, 8

    key = jax.random.PRNGKey(0)
    kx, kp = jax.random.split(key)
    x = jax.random.normal(kx, (N, C_IN), jnp.float32)

    # deterministic k-NN-style graph: node i receives edges from sources i+1 .. i+K (mod N)
    dst = jnp.repeat(jnp.arange(N, dtype=jnp.int32), K)
    src = (dst + jnp.tile(jnp.arange(1, K + 1, dtype=jnp.int32), N)) % N
    edge_index = jnp.stack([src, dst])                     # [2, E], E = N*K

    params = init_params(kp, C_IN, HIDDEN, N_CLASSES, HEADS)
    graph = build_graph_constants(edge_index, N)           # hoisted: built once, reused every call

    fwd = jax.jit(functools.partial(gat_edgeconv_hybrid_forward, hidden=HIDDEN, heads=HEADS))
    out = fwd(params, x, graph)
    jax.block_until_ready(out)
    assert out.shape == (N, N_CLASSES)
    assert bool(jnp.all(jnp.isfinite(out)))
    print("KERNEL_OK")
</pallas_src>

<mosaic_0001>
module attributes {stable_mosaic.version = 11 : i64} {
  func.func @_fused_forward_kernel(%arg0: memref<64x6xf32, #tpu.memory_space<vmem>>, %arg1: memref<64x64xf32, #tpu.memory_space<vmem>>, %arg2: memref<512x64xbf16, #tpu.memory_space<vmem>>, %arg3: memref<512x64xbf16, #tpu.memory_space<vmem>>, %arg4: memref<64x512xbf16, #tpu.memory_space<vmem>>, %arg5: memref<64x512xbf16, #tpu.memory_space<vmem>>, %arg6: memref<5x128xf32, #tpu.memory_space<vmem>>, %arg7: memref<6x128xbf16, #tpu.memory_space<vmem>>, %arg8: memref<32x64xbf16, #tpu.memory_space<vmem>>, %arg9: memref<32x128xbf16, #tpu.memory_space<vmem>>, %arg10: memref<32x64xbf16, #tpu.memory_space<vmem>>, %arg11: memref<32x136xbf16, #tpu.memory_space<vmem>>, %arg12: memref<128x136xbf16, #tpu.memory_space<vmem>>, %arg13: memref<32x5xbf16, #tpu.memory_space<vmem>>, %arg14: memref<64x5xf32, #tpu.memory_space<vmem>>) attributes {dimension_semantics = [], scalar_prefetch = 0 : i64, scratch_operands = 0 : i64, tpu.core_type = #tpu.core_type<tc>} {
    %c0 = arith.constant 0 : index
    %c0_0 = arith.constant 0 : index
    %0 = vector.load %arg6[%c0, %c0_0] : memref<5x128xf32, #tpu.memory_space<vmem>>, vector<5x128xf32>
    %c0_1 = arith.constant 0 : index
    %c0_2 = arith.constant 0 : index
    %1 = vector.load %arg2[%c0_1, %c0_2] : memref<512x64xbf16, #tpu.memory_space<vmem>>, vector<512x64xbf16>
    %c0_3 = arith.constant 0 : index
    %c0_4 = arith.constant 0 : index
    %2 = vector.load %arg3[%c0_3, %c0_4] : memref<512x64xbf16, #tpu.memory_space<vmem>>, vector<512x64xbf16>
    %c0_5 = arith.constant 0 : index
    %c0_6 = arith.constant 0 : index
    %3 = vector.load %arg0[%c0_5, %c0_6] : memref<64x6xf32, #tpu.memory_space<vmem>>, vector<64x6xf32>
    %c0_7 = arith.constant 0 : index
    %c0_8 = arith.constant 0 : index
    %4 = vector.load %arg4[%c0_7, %c0_8] : memref<64x512xbf16, #tpu.memory_space<vmem>>, vector<64x512xbf16>
    %c0_9 = arith.constant 0 : index
    %c0_10 = arith.constant 0 : index
    %5 = vector.load %arg7[%c0_9, %c0_10] : memref<6x128xbf16, #tpu.memory_space<vmem>>, vector<6x128xbf16>
    %c0_11 = arith.constant 0 : index
    %c0_12 = arith.constant 0 : index
    %6 = vector.load %arg8[%c0_11, %c0_12] : memref<32x64xbf16, #tpu.memory_space<vmem>>, vector<32x64xbf16>
    %7 = vector.extract_strided_slice %0 {offsets = [0, 0], sizes = [1, 128], strides = [1, 1]} : vector<5x128xf32> to vector<1x128xf32>
    %8 = arith.truncf %3 : vector<64x6xf32> to vector<64x6xbf16>
    %cst = arith.constant dense<0.000000e+00> : vector<64x128xf32>
    %9 = tpu.matmul %8, %5, %cst {dimension_numbers = #tpu.dot_dimension_numbers<[1], [0], [0], [1], [0, 0, 1, 1], [], []>} : vector<64x6xbf16>, vector<6x128xbf16>, vector<64x128xf32> -> vector<64x128xf32>
    %10 = vector.extract_strided_slice %9 {offsets = [0, 0], sizes = [64, 64], strides = [1, 1]} : vector<64x128xf32> to vector<64x64xf32>
    %11 = arith.truncf %10 : vector<64x64xf32> to vector<64x64xbf16>
    %12 = vector.extract_strided_slice %9 {offsets = [0, 64], sizes = [64, 64], strides = [1, 1]} : vector<64x128xf32> to vector<64x64xf32>
    %13 = arith.truncf %12 : vector<64x64xf32> to vector<64x64xbf16>
    %cst_13 = arith.constant dense<0.000000e+00> : vector<512x64xf32>
    %14 = tpu.matmul %1, %11, %cst_13 {dimension_numbers = #tpu.dot_dimension_numbers<[1], [0], [0], [1], [0, 0, 1, 1], [], []>} : vector<512x64xbf16>, vector<64x64xbf16>, vector<512x64xf32> -> vector<512x64xf32>
    %cst_14 = arith.constant dense<0.000000e+00> : vector<512x64xf32>
    %15 = tpu.matmul %2, %13, %cst_14 {dimension_numbers = #tpu.dot_dimension_numbers<[1], [0], [0], [1], [0, 0, 1, 1], [], []>} : vector<512x64xbf16>, vector<64x64xbf16>, vector<512x64xf32> -> vector<512x64xf32>
    %16 = arith.addf %14, %15 : vector<512x64xf32>
    %17 = vector.extract_strided_slice %7 {offsets = [0, 0], sizes = [1, 32], strides = [1, 1]} : vector<1x128xf32> to vector<1x32xf32>
    %18 = vector.extract_strided_slice %7 {offsets = [0, 32], sizes = [1, 32], strides = [1, 1]} : vector<1x128xf32> to vector<1x32xf32>
    %19 = vector.extract_strided_slice %7 {offsets = [0, 64], sizes = [1, 32], strides = [1, 1]} : vector<1x128xf32> to vector<1x32xf32>
    %20 = vector.extract_strided_slice %7 {offsets = [0, 96], sizes = [1, 32], strides = [1, 1]} : vector<1x128xf32> to vector<1x32xf32>
    %21 = vector.extract_strided_slice %16 {offsets = [0, 0], sizes = [512, 32], strides = [1, 1]} : vector<512x64xf32> to vector<512x32xf32>
    %22 = vector.broadcast %17 : vector<1x32xf32> to vector<512x32xf32>
    %23 = arith.addf %21, %22 : vector<512x32xf32>
    %cst_15 = arith.constant 0.000000e+00 : f32
    %24 = vector.broadcast %cst_15 : f32 to vector<512x32xf32>
    %25 = arith.maximumf %23, %24 : vector<512x32xf32>
    %26 = vector.extract_strided_slice %16 {offsets = [0, 32], sizes = [512, 32], strides = [1, 1]} : vector<512x64xf32> to vector<512x32xf32>
    %27 = vector.broadcast %18 : vector<1x32xf32> to vector<512x32xf32>
    %28 = arith.addf %26, %27 : vector<512x32xf32>
    %29 = arith.truncf %25 : vector<512x32xf32> to vector<512x32xbf16>
    %30 = vector.extract_strided_slice %6 {offsets = [0, 0], sizes = [32, 32], strides = [1, 1]} : vector<32x64xbf16> to vector<32x32xbf16>
    %cst_16 = arith.constant dense<0.000000e+00> : vector<512x32xf32>
    %31 = tpu.matmul %29, %30, %cst_16 {dimension_numbers = #tpu.dot_dimension_numbers<[1], [0], [0], [1], [0, 0, 1, 1], [], []>} : vector<512x32xbf16>, vector<32x32xbf16>, vector<512x32xf32> -> vector<512x32xf32>
    %32 = vector.broadcast %19 : vector<1x32xf32> to vector<512x32xf32>
    %33 = arith.addf %31, %32 : vector<512x32xf32>
    %cst_17 = arith.constant 0.000000e+00 : f32
    %34 = vector.broadcast %cst_17 : f32 to vector<512x32xf32>
    %35 = arith.maximumf %33, %34 : vector<512x32xf32>
    %36 = arith.truncf %35 : vector<512x32xf32> to vector<512x32xbf16>
    %37 = vector.extract_strided_slice %6 {offsets = [0, 32], sizes = [32, 32], strides = [1, 1]} : vector<32x64xbf16> to vector<32x32xbf16>
    %cst_18 = arith.constant dense<0.000000e+00> : vector<512x32xf32>
    %38 = tpu.matmul %36, %37, %cst_18 {dimension_numbers = #tpu.dot_dimension_numbers<[1], [0], [0], [1], [0, 0, 1, 1], [], []>} : vector<512x32xbf16>, vector<32x32xbf16>, vector<512x32xf32> -> vector<512x32xf32>
    %39 = vector.broadcast %20 : vector<1x32xf32> to vector<512x32xf32>
    %40 = arith.addf %38, %39 : vector<512x32xf32>
    %41 = arith.addf %40, %28 : vector<512x32xf32>
    %42 = arith.truncf %41 : vector<512x32xf32> to vector<512x32xbf16>
    %cst_19 = arith.constant dense<0.000000e+00> : vector<64x32xf32>
    %43 = tpu.matmul %4, %42, %cst_19 {dimension_numbers = #tpu.dot_dimension_numbers<[1], [0], [0], [1], [0, 0, 1, 1], [], []>} : vector<64x512xbf16>, vector<512x32xbf16>, vector<64x32xf32> -> vector<64x32xf32>
    %cst_20 = arith.constant 0.000000e+00 : f32
    %44 = vector.broadcast %cst_20 : f32 to vector<64x32xf32>
    %45 = arith.maximumf %43, %44 : vector<64x32xf32>
    %c0_21 = arith.constant 0 : index
    %c0_22 = arith.constant 0 : index
    %46 = vector.load %arg5[%c0_21, %c0_22] : memref<64x512xbf16, #tpu.memory_space<vmem>>, vector<64x512xbf16>
    %c0_23 = arith.constant 0 : index
    %c0_24 = arith.constant 0 : index
    %47 = vector.load %arg9[%c0_23, %c0_24] : memref<32x128xbf16, #tpu.memory_space<vmem>>, vector<32x128xbf16>
    %c0_25 = arith.constant 0 : index
    %c0_26 = arith.constant 0 : index
    %48 = vector.load %arg10[%c0_25, %c0_26] : memref<32x64xbf16, #tpu.memory_space<vmem>>, vector<32x64xbf16>
    %49 = vector.extract_strided_slice %0 {offsets = [1, 0], sizes = [1, 128], strides = [1, 1]} : vector<5x128xf32> to vector<1x128xf32>
    %50 = arith.truncf %45 : vector<64x32xf32> to vector<64x32xbf16>
    %cst_27 = arith.constant dense<0.000000e+00> : vector<64x128xf32>
    %51 = tpu.matmul %50, %47, %cst_27 {dimension_numbers = #tpu.dot_dimension_numbers<[1], [0], [0], [1], [0, 0, 1, 1], [], []>} : vector<64x32xbf16>, vector<32x128xbf16>, vector<64x128xf32> -> vector<64x128xf32>
    %52 = vector.extract_strided_slice %51 {offsets = [0, 0], sizes = [64, 64], strides = [1, 1]} : vector<64x128xf32> to vector<64x64xf32>
    %53 = arith.truncf %52 : vector<64x64xf32> to vector<64x64xbf16>
    %54 = vector.extract_strided_slice %51 {offsets = [0, 64], sizes = [64, 64], strides = [1, 1]} : vector<64x128xf32> to vector<64x64xf32>
    %55 = arith.truncf %54 : vector<64x64xf32> to vector<64x64xbf16>
    %cst_28 = arith.constant dense<0.000000e+00> : vector<512x64xf32>
    %56 = tpu.matmul %1, %53, %cst_28 {dimension_numbers = #tpu.dot_dimension_numbers<[1], [0], [0], [1], [0, 0, 1, 1], [], []>} : vector<512x64xbf16>, vector<64x64xbf16>, vector<512x64xf32> -> vector<512x64xf32>
    %cst_29 = arith.constant dense<0.000000e+00> : vector<512x64xf32>
    %57 = tpu.matmul %2, %55, %cst_29 {dimension_numbers = #tpu.dot_dimension_numbers<[1], [0], [0], [1], [0, 0, 1, 1], [], []>} : vector<512x64xbf16>, vector<64x64xbf16>, vector<512x64xf32> -> vector<512x64xf32>
    %58 = arith.addf %56, %57 : vector<512x64xf32>
    %59 = vector.extract_strided_slice %49 {offsets = [0, 0], sizes = [1, 32], strides = [1, 1]} : vector<1x128xf32> to vector<1x32xf32>
    %60 = vector.extract_strided_slice %49 {offsets = [0, 32], sizes = [1, 32], strides = [1, 1]} : vector<1x128xf32> to vector<1x32xf32>
    %61 = vector.extract_strided_slice %49 {offsets = [0, 64], sizes = [1, 32], strides = [1, 1]} : vector<1x128xf32> to vector<1x32xf32>
    %62 = vector.extract_strided_slice %49 {offsets = [0, 96], sizes = [1, 32], strides = [1, 1]} : vector<1x128xf32> to vector<1x32xf32>
    %63 = vector.extract_strided_slice %58 {offsets = [0, 0], sizes = [512, 32], strides = [1, 1]} : vector<512x64xf32> to vector<512x32xf32>
    %64 = vector.broadcast %59 : vector<1x32xf32> to vector<512x32xf32>
    %65 = arith.addf %63, %64 : vector<512x32xf32>
    %cst_30 = arith.constant 0.000000e+00 : f32
    %66 = vector.broadcast %cst_30 : f32 to vector<512x32xf32>
    %67 = arith.maximumf %65, %66 : vector<512x32xf32>
    %68 = vector.extract_strided_slice %58 {offsets = [0, 32], sizes = [512, 32], strides = [1, 1]} : vector<512x64xf32> to vector<512x32xf32>
    %69 = vector.broadcast %60 : vector<1x32xf32> to vector<512x32xf32>
    %70 = arith.addf %68, %69 : vector<512x32xf32>
    %71 = arith.truncf %67 : vector<512x32xf32> to vector<512x32xbf16>
    %72 = vector.extract_strided_slice %48 {offsets = [0, 0], sizes = [32, 32], strides = [1, 1]} : vector<32x64xbf16> to vector<32x32xbf16>
    %cst_31 = arith.constant dense<0.000000e+00> : vector<512x32xf32>
    %73 = tpu.matmul %71, %72, %cst_31 {dimension_numbers = #tpu.dot_dimension_numbers<[1], [0], [0], [1], [0, 0, 1, 1], [], []>} : vector<512x32xbf16>, vector<32x32xbf16>, vector<512x32xf32> -> vector<512x32xf32>
    %74 = vector.broadcast %61 : vector<1x32xf32> to vector<512x32xf32>
    %75 = arith.addf %73, %74 : vector<512x32xf32>
    %cst_32 = arith.constant 0.000000e+00 : f32
    %76 = vector.broadcast %cst_32 : f32 to vector<512x32xf32>
    %77 = arith.maximumf %75, %76 : vector<512x32xf32>
    %78 = arith.truncf %77 : vector<512x32xf32> to vector<512x32xbf16>
    %79 = vector.extract_strided_slice %48 {offsets = [0, 32], sizes = [32, 32], strides = [1, 1]} : vector<32x64xbf16> to vector<32x32xbf16>
    %cst_33 = arith.constant dense<0.000000e+00> : vector<512x32xf32>
    %80 = tpu.matmul %78, %79, %cst_33 {dimension_numbers = #tpu.dot_dimension_numbers<[1], [0], [0], [1], [0, 0, 1, 1], [], []>} : vector<512x32xbf16>, vector<32x32xbf16>, vector<512x32xf32> -> vector<512x32xf32>
    %81 = vector.broadcast %62 : vector<1x32xf32> to vector<512x32xf32>
    %82 = arith.addf %80, %81 : vector<512x32xf32>
    %83 = arith.addf %82, %70 : vector<512x32xf32>
    %84 = arith.truncf %83 : vector<512x32xf32> to vector<512x32xbf16>
    %cst_34 = arith.constant dense<0.000000e+00> : vector<64x32xf32>
    %85 = tpu.matmul %46, %84, %cst_34 {dimension_numbers = #tpu.dot_dimension_numbers<[1], [0], [0], [1], [0, 0, 1, 1], [], []>} : vector<64x512xbf16>, vector<512x32xbf16>, vector<64x32xf32> -> vector<64x32xf32>
    %cst_35 = arith.constant 0.000000e+00 : f32
    %86 = vector.broadcast %cst_35 : f32 to vector<64x32xf32>
    %87 = arith.maximumf %85, %86 : vector<64x32xf32>
    %c0_36 = arith.constant 0 : index
    %c0_37 = arith.constant 0 : index
    %88 = vector.load %arg1[%c0_36, %c0_37] : memref<64x64xf32, #tpu.memory_space<vmem>>, vector<64x64xf32>
    %c0_38 = arith.constant 0 : index
    %c0_39 = arith.constant 0 : index
    %89 = vector.load %arg11[%c0_38, %c0_39] : memref<32x136xbf16, #tpu.memory_space<vmem>>, vector<32x136xbf16>
    %90 = vector.extract_strided_slice %0 {offsets = [2, 0], sizes = [1, 128], strides = [1, 1]} : vector<5x128xf32> to vector<1x128xf32>
    %91 = arith.truncf %87 : vector<64x32xf32> to vector<64x32xbf16>
    %cst_40 = arith.constant dense<0.000000e+00> : vector<64x136xf32>
    %92 = tpu.matmul %91, %89, %cst_40 {dimension_numbers = #tpu.dot_dimension_numbers<[1], [0], [0], [1], [0, 0, 1, 1], [], []>} : vector<64x32xbf16>, vector<32x136xbf16>, vector<64x136xf32> -> vector<64x136xf32>
    %93 = vector.extract_strided_slice %92 {offsets = [0, 0], sizes = [64, 128], strides = [1, 1]} : vector<64x136xf32> to vector<64x128xf32>
    %94 = vector.extract_strided_slice %92 {offsets = [0, 128], sizes = [64, 4], strides = [1, 1]} : vector<64x136xf32> to vector<64x4xf32>
    %95 = vector.extract_strided_slice %92 {offsets = [0, 132], sizes = [64, 4], strides = [1, 1]} : vector<64x136xf32> to vector<64x4xf32>
    %96 = tpu.transpose %94, [1, 0] : vector<64x4xf32> -> vector<4x64xf32>
    %97 = tpu.transpose %95, [1, 0] : vector<64x4xf32> -> vector<4x64xf32>
    %98 = vector.shape_cast %97 : vector<4x64xf32> to vector<4x64x1xf32>
    %99 = vector.shape_cast %96 : vector<4x64xf32> to vector<4x1x64xf32>
    %100 = vector.broadcast %98 : vector<4x64x1xf32> to vector<4x64x64xf32>
    %101 = vector.broadcast %99 : vector<4x1x64xf32> to vector<4x64x64xf32>
    %102 = arith.addf %100, %101 : vector<4x64x64xf32>
    %cst_41 = arith.constant 0.000000e+00 : f32
    %103 = vector.broadcast %cst_41 : f32 to vector<4x64x64xf32>
    %104 = arith.cmpf ogt, %102, %103 : vector<4x64x64xf32>
    %cst_42 = arith.constant 2.000000e-01 : f32
    %105 = vector.broadcast %cst_42 : f32 to vector<4x64x64xf32>
    %106 = arith.mulf %105, %102 : vector<4x64x64xf32>
    %107 = arith.select %104, %102, %106 : vector<4x64x64xi1>, vector<4x64x64xf32>
    %108 = vector.shape_cast %88 : vector<64x64xf32> to vector<1x64x64xf32>
    %cst_43 = arith.constant 0.000000e+00 : f32
    %109 = vector.broadcast %cst_43 : f32 to vector<1x64x64xf32>
    %110 = arith.cmpf ogt, %108, %109 : vector<1x64x64xf32>
    %cst_44 = arith.constant -1.000000e+30 : f32
    %111 = vector.shape_cast %110 : vector<1x64x64xi1> to vector<1x64x64xi1>
    %112 = vector.broadcast %111 : vector<1x64x64xi1> to vector<4x64x64xi1>
    %113 = vector.broadcast %cst_44 : f32 to vector<4x64x64xf32>
    %114 = arith.select %112, %107, %113 : vector<4x64x64xi1>, vector<4x64x64xf32>
    %cst_45 = arith.constant dense<0xFF800000> : vector<4x64xf32>
    %115 = vector.multi_reduction <maximumf>, %114, %cst_45 [2] : vector<4x64x64xf32> to vector<4x64xf32>
    %116 = vector.shape_cast %115 : vector<4x64xf32> to vector<4x64x1xf32>
    %117 = vector.broadcast %116 : vector<4x64x1xf32> to vector<4x64x64xf32>
    %118 = arith.subf %114, %117 : vector<4x64x64xf32>
    %119 = math.exp %118 : vector<4x64x64xf32>
    %cst_46 = arith.constant dense<0.000000e+00> : vector<4x64xf32>
    %120 = vector.multi_reduction <add>, %119, %cst_46 [2] : vector<4x64x64xf32> to vector<4x64xf32>
    %121 = vector.shape_cast %120 : vector<4x64xf32> to vector<4x64x1xf32>
    %122 = tpu.reciprocal %121 {approx = true} : vector<4x64x1xf32> -> vector<4x64x1xf32>
    %123 = vector.broadcast %122 : vector<4x64x1xf32> to vector<4x64x64xf32>
    %124 = arith.mulf %119, %123 : vector<4x64x64xf32>
    %125 = arith.truncf %93 : vector<64x128xf32> to vector<64x128xbf16>
    %126 = vector.extract_strided_slice %124 {offsets = [0, 0, 0], sizes = [1, 64, 64], strides = [1, 1, 1]} : vector<4x64x64xf32> to vector<1x64x64xf32>
    %127 = vector.shape_cast %126 : vector<1x64x64xf32> to vector<64x64xf32>
    %128 = arith.truncf %127 : vector<64x64xf32> to vector<64x64xbf16>
    %129 = vector.extract_strided_slice %125 {offsets = [0, 0], sizes = [64, 32], strides = [1, 1]} : vector<64x128xbf16> to vector<64x32xbf16>
    %cst_47 = arith.constant dense<0.000000e+00> : vector<64x32xf32>
    %130 = tpu.matmul %128, %129, %cst_47 {dimension_numbers = #tpu.dot_dimension_numbers<[1], [0], [0], [1], [0, 0, 1, 1], [], []>} : vector<64x64xbf16>, vector<64x32xbf16>, vector<64x32xf32> -> vector<64x32xf32>
    %131 = vector.extract_strided_slice %124 {offsets = [1, 0, 0], sizes = [1, 64, 64], strides = [1, 1, 1]} : vector<4x64x64xf32> to vector<1x64x64xf32>
    %132 = vector.shape_cast %131 : vector<1x64x64xf32> to vector<64x64xf32>
    %133 = arith.truncf %132 : vector<64x64xf32> to vector<64x64xbf16>
    %134 = vector.extract_strided_slice %125 {offsets = [0, 32], sizes = [64, 32], strides = [1, 1]} : vector<64x128xbf16> to vector<64x32xbf16>
    %cst_48 = arith.constant dense<0.000000e+00> : vector<64x32xf32>
    %135 = tpu.matmul %133, %134, %cst_48 {dimension_numbers = #tpu.dot_dimension_numbers<[1], [0], [0], [1], [0, 0, 1, 1], [], []>} : vector<64x64xbf16>, vector<64x32xbf16>, vector<64x32xf32> -> vector<64x32xf32>
    %136 = vector.extract_strided_slice %124 {offsets = [2, 0, 0], sizes = [1, 64, 64], strides = [1, 1, 1]} : vector<4x64x64xf32> to vector<1x64x64xf32>
    %137 = vector.shape_cast %136 : vector<1x64x64xf32> to vector<64x64xf32>
    %138 = arith.truncf %137 : vector<64x64xf32> to vector<64x64xbf16>
    %139 = vector.extract_strided_slice %125 {offsets = [0, 64], sizes = [64, 32], strides = [1, 1]} : vector<64x128xbf16> to vector<64x32xbf16>
    %cst_49 = arith.constant dense<0.000000e+00> : vector<64x32xf32>
    %140 = tpu.matmul %138, %139, %cst_49 {dimension_numbers = #tpu.dot_dimension_numbers<[1], [0], [0], [1], [0, 0, 1, 1], [], []>} : vector<64x64xbf16>, vector<64x32xbf16>, vector<64x32xf32> -> vector<64x32xf32>
    %141 = vector.extract_strided_slice %124 {offsets = [3, 0, 0], sizes = [1, 64, 64], strides = [1, 1, 1]} : vector<4x64x64xf32> to vector<1x64x64xf32>
    %142 = vector.shape_cast %141 : vector<1x64x64xf32> to vector<64x64xf32>
    %143 = arith.truncf %142 : vector<64x64xf32> to vector<64x64xbf16>
    %144 = vector.extract_strided_slice %125 {offsets = [0, 96], sizes = [64, 32], strides = [1, 1]} : vector<64x128xbf16> to vector<64x32xbf16>
    %cst_50 = arith.constant dense<0.000000e+00> : vector<64x32xf32>
    %145 = tpu.matmul %143, %144, %cst_50 {dimension_numbers = #tpu.dot_dimension_numbers<[1], [0], [0], [1], [0, 0, 1, 1], [], []>} : vector<64x64xbf16>, vector<64x32xbf16>, vector<64x32xf32> -> vector<64x32xf32>
    %146 = tpu.concatenate %130, %135, %140, %145 in 1 : vector<64x32xf32>, vector<64x32xf32>, vector<64x32xf32>, vector<64x32xf32> -> vector<64x128xf32>
    %147 = vector.broadcast %90 : vector<1x128xf32> to vector<64x128xf32>
    %148 = arith.addf %146, %147 : vector<64x128xf32>
    %cst_51 = arith.constant 0.000000e+00 : f32
    %149 = vector.broadcast %cst_51 : f32 to vector<64x128xf32>
    %150 = arith.cmpf ogt, %148, %149 : vector<64x128xf32>
    %cst_52 = arith.constant 0.000000e+00 : f32
    %151 = vector.broadcast %cst_52 : f32 to vector<64x128xf32>
    %152 = arith.minimumf %148, %151 : vector<64x128xf32>
    %153 = math.exp %152 : vector<64x128xf32>
    %cst_53 = arith.constant 1.000000e+00 : f32
    %154 = vector.broadcast %cst_53 : f32 to vector<64x128xf32>
    %155 = arith.subf %153, %154 : vector<64x128xf32>
    %156 = arith.select %150, %148, %155 : vector<64x128xi1>, vector<64x128xf32>
    %c0_54 = arith.constant 0 : index
    %c0_55 = arith.constant 0 : index
    %157 = vector.load %arg12[%c0_54, %c0_55] : memref<128x136xbf16, #tpu.memory_space<vmem>>, vector<128x136xbf16>
    %158 = vector.extract_strided_slice %0 {offsets = [3, 0], sizes = [1, 32], strides = [1, 1]} : vector<5x128xf32> to vector<1x32xf32>
    %159 = arith.truncf %156 : vector<64x128xf32> to vector<64x128xbf16>
    %cst_56 = arith.constant dense<0.000000e+00> : vector<64x136xf32>
    %160 = tpu.matmul %159, %157, %cst_56 {dimension_numbers = #tpu.dot_dimension_numbers<[1], [0], [0], [1], [0, 0, 1, 1], [], []>} : vector<64x128xbf16>, vector<128x136xbf16>, vector<64x136xf32> -> vector<64x136xf32>
    %161 = vector.extract_strided_slice %160 {offsets = [0, 0], sizes = [64, 128], strides = [1, 1]} : vector<64x136xf32> to vector<64x128xf32>
    %162 = vector.extract_strided_slice %160 {offsets = [0, 128], sizes = [64, 4], strides = [1, 1]} : vector<64x136xf32> to vector<64x4xf32>
    %163 = vector.extract_strided_slice %160 {offsets = [0, 132], sizes = [64, 4], strides = [1, 1]} : vector<64x136xf32> to vector<64x4xf32>
    %164 = tpu.transpose %162, [1, 0] : vector<64x4xf32> -> vector<4x64xf32>
    %165 = tpu.transpose %163, [1, 0] : vector<64x4xf32> -> vector<4x64xf32>
    %166 = vector.shape_cast %165 : vector<4x64xf32> to vector<4x64x1xf32>
    %167 = vector.shape_cast %164 : vector<4x64xf32> to vector<4x1x64xf32>
    %168 = vector.broadcast %166 : vector<4x64x1xf32> to vector<4x64x64xf32>
    %169 = vector.broadcast %167 : vector<4x1x64xf32> to vector<4x64x64xf32>
    %170 = arith.addf %168, %169 : vector<4x64x64xf32>
    %cst_57 = arith.constant 0.000000e+00 : f32
    %171 = vector.broadcast %cst_57 : f32 to vector<4x64x64xf32>
    %172 = arith.cmpf ogt, %170, %171 : vector<4x64x64xf32>
    %cst_58 = arith.constant 2.000000e-01 : f32
    %173 = vector.broadcast %cst_58 : f32 to vector<4x64x64xf32>
    %174 = arith.mulf %173, %170 : vector<4x64x64xf32>
    %175 = arith.select %172, %170, %174 : vector<4x64x64xi1>, vector<4x64x64xf32>
    %176 = vector.shape_cast %88 : vector<64x64xf32> to vector<1x64x64xf32>
    %cst_59 = arith.constant 0.000000e+00 : f32
    %177 = vector.broadcast %cst_59 : f32 to vector<1x64x64xf32>
    %178 = arith.cmpf ogt, %176, %177 : vector<1x64x64xf32>
    %cst_60 = arith.constant -1.000000e+30 : f32
    %179 = vector.shape_cast %178 : vector<1x64x64xi1> to vector<1x64x64xi1>
    %180 = vector.broadcast %179 : vector<1x64x64xi1> to vector<4x64x64xi1>
    %181 = vector.broadcast %cst_60 : f32 to vector<4x64x64xf32>
    %182 = arith.select %180, %175, %181 : vector<4x64x64xi1>, vector<4x64x64xf32>
    %cst_61 = arith.constant dense<0xFF800000> : vector<4x64xf32>
    %183 = vector.multi_reduction <maximumf>, %182, %cst_61 [2] : vector<4x64x64xf32> to vector<4x64xf32>
    %184 = vector.shape_cast %183 : vector<4x64xf32> to vector<4x64x1xf32>
    %185 = vector.broadcast %184 : vector<4x64x1xf32> to vector<4x64x64xf32>
    %186 = arith.subf %182, %185 : vector<4x64x64xf32>
    %187 = math.exp %186 : vector<4x64x64xf32>
    %cst_62 = arith.constant dense<0.000000e+00> : vector<4x64xf32>
    %188 = vector.multi_reduction <add>, %187, %cst_62 [2] : vector<4x64x64xf32> to vector<4x64xf32>
    %189 = vector.shape_cast %188 : vector<4x64xf32> to vector<4x64x1xf32>
    %190 = tpu.reciprocal %189 {approx = true} : vector<4x64x1xf32> -> vector<4x64x1xf32>
    %191 = vector.broadcast %190 : vector<4x64x1xf32> to vector<4x64x64xf32>
    %192 = arith.mulf %187, %191 : vector<4x64x64xf32>
    %193 = arith.truncf %161 : vector<64x128xf32> to vector<64x128xbf16>
    %194 = vector.extract_strided_slice %192 {offsets = [0, 0, 0], sizes = [1, 64, 64], strides = [1, 1, 1]} : vector<4x64x64xf32> to vector<1x64x64xf32>
    %195 = vector.shape_cast %194 : vector<1x64x64xf32> to vector<64x64xf32>
    %196 = arith.truncf %195 : vector<64x64xf32> to vector<64x64xbf16>
    %197 = vector.extract_strided_slice %193 {offsets = [0, 0], sizes = [64, 32], strides = [1, 1]} : vector<64x128xbf16> to vector<64x32xbf16>
    %cst_63 = arith.constant dense<0.000000e+00> : vector<64x32xf32>
    %198 = tpu.matmul %196, %197, %cst_63 {dimension_numbers = #tpu.dot_dimension_numbers<[1], [0], [0], [1], [0, 0, 1, 1], [], []>} : vector<64x64xbf16>, vector<64x32xbf16>, vector<64x32xf32> -> vector<64x32xf32>
    %199 = vector.extract_strided_slice %192 {offsets = [1, 0, 0], sizes = [1, 64, 64], strides = [1, 1, 1]} : vector<4x64x64xf32> to vector<1x64x64xf32>
    %200 = vector.shape_cast %199 : vector<1x64x64xf32> to vector<64x64xf32>
    %201 = arith.truncf %200 : vector<64x64xf32> to vector<64x64xbf16>
    %202 = vector.extract_strided_slice %193 {offsets = [0, 32], sizes = [64, 32], strides = [1, 1]} : vector<64x128xbf16> to vector<64x32xbf16>
    %cst_64 = arith.constant dense<0.000000e+00> : vector<64x32xf32>
    %203 = tpu.matmul %201, %202, %cst_64 {dimension_numbers = #tpu.dot_dimension_numbers<[1], [0], [0], [1], [0, 0, 1, 1], [], []>} : vector<64x64xbf16>, vector<64x32xbf16>, vector<64x32xf32> -> vector<64x32xf32>
    %204 = vector.extract_strided_slice %192 {offsets = [2, 0, 0], sizes = [1, 64, 64], strides = [1, 1, 1]} : vector<4x64x64xf32> to vector<1x64x64xf32>
    %205 = vector.shape_cast %204 : vector<1x64x64xf32> to vector<64x64xf32>
    %206 = arith.truncf %205 : vector<64x64xf32> to vector<64x64xbf16>
    %207 = vector.extract_strided_slice %193 {offsets = [0, 64], sizes = [64, 32], strides = [1, 1]} : vector<64x128xbf16> to vector<64x32xbf16>
    %cst_65 = arith.constant dense<0.000000e+00> : vector<64x32xf32>
    %208 = tpu.matmul %206, %207, %cst_65 {dimension_numbers = #tpu.dot_dimension_numbers<[1], [0], [0], [1], [0, 0, 1, 1], [], []>} : vector<64x64xbf16>, vector<64x32xbf16>, vector<64x32xf32> -> vector<64x32xf32>
    %209 = vector.extract_strided_slice %192 {offsets = [3, 0, 0], sizes = [1, 64, 64], strides = [1, 1, 1]} : vector<4x64x64xf32> to vector<1x64x64xf32>
    %210 = vector.shape_cast %209 : vector<1x64x64xf32> to vector<64x64xf32>
    %211 = arith.truncf %210 : vector<64x64xf32> to vector<64x64xbf16>
    %212 = vector.extract_strided_slice %193 {offsets = [0, 96], sizes = [64, 32], strides = [1, 1]} : vector<64x128xbf16> to vector<64x32xbf16>
    %cst_66 = arith.constant dense<0.000000e+00> : vector<64x32xf32>
    %213 = tpu.matmul %211, %212, %cst_66 {dimension_numbers = #tpu.dot_dimension_numbers<[1], [0], [0], [1], [0, 0, 1, 1], [], []>} : vector<64x64xbf16>, vector<64x32xbf16>, vector<64x32xf32> -> vector<64x32xf32>
    %214 = arith.addf %198, %203 : vector<64x32xf32>
    %215 = arith.addf %214, %208 : vector<64x32xf32>
    %216 = arith.addf %215, %213 : vector<64x32xf32>
    %cst_67 = arith.constant 2.500000e-01 : f32
    %217 = vector.broadcast %cst_67 : f32 to vector<64x32xf32>
    %218 = arith.mulf %216, %217 : vector<64x32xf32>
    %219 = vector.broadcast %158 : vector<1x32xf32> to vector<64x32xf32>
    %220 = arith.addf %218, %219 : vector<64x32xf32>
    %cst_68 = arith.constant 0.000000e+00 : f32
    %221 = vector.broadcast %cst_68 : f32 to vector<64x32xf32>
    %222 = arith.cmpf ogt, %220, %221 : vector<64x32xf32>
    %cst_69 = arith.constant 0.000000e+00 : f32
    %223 = vector.broadcast %cst_69 : f32 to vector<64x32xf32>
    %224 = arith.minimumf %220, %223 : vector<64x32xf32>
    %225 = math.exp %224 : vector<64x32xf32>
    %cst_70 = arith.constant 1.000000e+00 : f32
    %226 = vector.broadcast %cst_70 : f32 to vector<64x32xf32>
    %227 = arith.subf %225, %226 : vector<64x32xf32>
    %228 = arith.select %222, %220, %227 : vector<64x32xi1>, vector<64x32xf32>
    %229 = arith.truncf %228 : vector<64x32xf32> to vector<64x32xbf16>
    %c0_71 = arith.constant 0 : index
    %c0_72 = arith.constant 0 : index
    %230 = vector.load %arg13[%c0_71, %c0_72] : memref<32x5xbf16, #tpu.memory_space<vmem>>, vector<32x5xbf16>
    %cst_73 = arith.constant dense<0.000000e+00> : vector<64x5xf32>
    %231 = tpu.matmul %229, %230, %cst_73 {dimension_numbers = #tpu.dot_dimension_numbers<[1], [0], [0], [1], [0, 0, 1, 1], [], []>} : vector<64x32xbf16>, vector<32x5xbf16>, vector<64x5xf32> -> vector<64x5xf32>
    %232 = vector.extract_strided_slice %0 {offsets = [4, 0], sizes = [1, 5], strides = [1, 1]} : vector<5x128xf32> to vector<1x5xf32>
    %233 = vector.broadcast %232 : vector<1x5xf32> to vector<64x5xf32>
    %234 = arith.addf %231, %233 : vector<64x5xf32>
    %c0_74 = arith.constant 0 : index
    %c0_75 = arith.constant 0 : index
    %235 = vector.load %arg14[%c0_74, %c0_75] : memref<64x5xf32, #tpu.memory_space<vmem>>, vector<64x5xf32>
    tpu.vector_store %arg14[%c0_74, %c0_75], %234 {strides = array<i32>} : memref<64x5xf32, #tpu.memory_space<vmem>>, vector<64x5xf32>,
    return
  }
}

</mosaic_0001>

<llo_original>
// kernel: gat_edgeconv_hybrid_forward.1
$region0: #{gat_edgeconv_hybrid_forward.1}
  #allocation0 [shape = 'u32[]', space=smem, size = 0x4, offset = 0x4, fixed_abs, tag = 'smem constant byte address 0x4 - core index']
  #allocation1 [shape = 'u32[144,128]{1,0:T(1,128)}', space=vmem, size = 0x12000, scoped, tag = 'internal scratch']
  %s0 = inlined_call_operand.vmem [shape: f32[64,6], index: 0, kind: input, shape index: {}]
  %s1 = inlined_call_operand.vmem [shape: f32[64,64], index: 1, kind: input, shape index: {}]
  %s2 = inlined_call_operand.vmem [shape: bf16[512,64], index: 2, kind: input, shape index: {}]
  %s3 = inlined_call_operand.vmem [shape: bf16[512,64], index: 3, kind: input, shape index: {}]
  %s4 = inlined_call_operand.vmem [shape: bf16[64,512], index: 4, kind: input, shape index: {}]
  %s5 = inlined_call_operand.vmem [shape: bf16[64,512], index: 5, kind: input, shape index: {}]
  %s6 = inlined_call_operand.vmem [shape: f32[5,128], index: 6, kind: input, shape index: {}]
  %s7 = inlined_call_operand.vmem [shape: bf16[6,128], index: 7, kind: input, shape index: {}]
  %s8 = inlined_call_operand.vmem [shape: bf16[32,64], index: 8, kind: input, shape index: {}]
  %s9 = inlined_call_operand.vmem [shape: bf16[32,128], index: 9, kind: input, shape index: {}]
  %s10 = inlined_call_operand.vmem [shape: bf16[32,64], index: 10, kind: input, shape index: {}]
  %s11 = inlined_call_operand.vmem [shape: bf16[32,136], index: 11, kind: input, shape index: {}]
  %s12 = inlined_call_operand.vmem [shape: bf16[128,136], index: 12, kind: input, shape index: {}]
  %s13 = inlined_call_operand.vmem [shape: bf16[32,5], index: 13, kind: input, shape index: {}]
  %s14 = inlined_call_operand.vmem [shape: f32[64,5], index: 14, kind: output, shape index: {}]
  %s15 = sld [smem:[#allocation0]]
  $region66: #{gat_edgeconv_hybrid_forward.1} parent=0
    _
  %s17 = ssub.s32 1, %s15
  %s18 = scalar_select 0, %s17, %s15
  // Predicated region
  $region2: #{gat_edgeconv_hybrid_forward.1} parent=0 // pred_check
    _
  $region3: #{gat_edgeconv_hybrid_forward.1} parent=0 // pred_check_branch
    %20 = sbr.rel (0) target = $region5
  $region4: #{gat_edgeconv_hybrid_forward.1} parent=0 // pred_region
    _
  $region5: #{gat_edgeconv_hybrid_forward.1} parent=0 // pred_fallthru
    _
  // Predicated region
  $region6: #{gat_edgeconv_hybrid_forward.1} parent=0 // pred_check
    _
  $region7: #{gat_edgeconv_hybrid_forward.1} parent=0 // pred_check_branch
    %22 = sbr.rel (0) target = $region9
  $region8: #{gat_edgeconv_hybrid_forward.1} parent=0 // pred_region
    _
  $region9: #{gat_edgeconv_hybrid_forward.1} parent=0 // pred_fallthru
    _
  // Predicated region
  $region10: #{gat_edgeconv_hybrid_forward.1} parent=0 // pred_check
    _
  $region11: #{gat_edgeconv_hybrid_forward.1} parent=0 // pred_check_branch
    %24 = sbr.rel (0) target = $region13
  $region12: #{gat_edgeconv_hybrid_forward.1} parent=0 // pred_region
    _
  $region13: #{gat_edgeconv_hybrid_forward.1} parent=0 // pred_fallthru
    _
  // Predicated region
  $region14: #{gat_edgeconv_hybrid_forward.1} parent=0 // pred_check
    _
  $region15: #{gat_edgeconv_hybrid_forward.1} parent=0 // pred_check_branch
    %26 = sbr.rel (0) target = $region17
  $region16: #{gat_edgeconv_hybrid_forward.1} parent=0 // pred_region
    _
  $region17: #{gat_edgeconv_hybrid_forward.1} parent=0 // pred_fallthru
    _
  // Predicated region
  $region18: #{gat_edgeconv_hybrid_forward.1} parent=0 // pred_check
    _
  $region19: #{gat_edgeconv_hybrid_forward.1} parent=0 // pred_check_branch
    %28 = sbr.rel (0) target = $region21
  $region20: #{gat_edgeconv_hybrid_forward.1} parent=0 // pred_region
    _
  $region21: #{gat_edgeconv_hybrid_forward.1} parent=0 // pred_fallthru
    _
  // Predicated region
  $region22: #{gat_edgeconv_hybrid_forward.1} parent=0 // pred_check
    _
  $region23: #{gat_edgeconv_hybrid_forward.1} parent=0 // pred_check_branch
    %30 = sbr.rel (0) target = $region25
  $region24: #{gat_edgeconv_hybrid_forward.1} parent=0 // pred_region
    _
  $region25: #{gat_edgeconv_hybrid_forward.1} parent=0 // pred_fallthru
    _
  // Predicated region
  $region26: #{gat_edgeconv_hybrid_forward.1} parent=0 // pred_check
    _
  $region27: #{gat_edgeconv_hybrid_forward.1} parent=0 // pred_check_branch
    %32 = sbr.rel (0) target = $region29
  $region28: #{gat_edgeconv_hybrid_forward.1} parent=0 // pred_region
    _
  $region29: #{gat_edgeconv_hybrid_forward.1} parent=0 // pred_fallthru
    _
  // Predicated region
  $region30: #{gat_edgeconv_hybrid_forward.1} parent=0 // pred_check
    _
  $region31: #{gat_edgeconv_hybrid_forward.1} parent=0 // pred_check_branch
    %34 = sbr.rel (0) target = $region33
  $region32: #{gat_edgeconv_hybrid_forward.1} parent=0 // pred_region
    _
  $region33: #{gat_edgeconv_hybrid_forward.1} parent=0 // pred_fallthru
    _
  // Predicated region
  $region34: #{gat_edgeconv_hybrid_forward.1} parent=0 // pred_check
    _
  $region35: #{gat_edgeconv_hybrid_forward.1} parent=0 // pred_check_branch
    %36 = sbr.rel (0) target = $region37
  $region36: #{gat_edgeconv_hybrid_forward.1} parent=0 // pred_region
    _
  $region37: #{gat_edgeconv_hybrid_forward.1} parent=0 // pred_fallthru
    _
  // Predicated region
  $region38: #{gat_edgeconv_hybrid_forward.1} parent=0 // pred_check
    _
  $region39: #{gat_edgeconv_hybrid_forward.1} parent=0 // pred_check_branch
    %38 = sbr.rel (0) target = $region41
  $region40: #{gat_edgeconv_hybrid_forward.1} parent=0 // pred_region
    _
  $region41: #{gat_edgeconv_hybrid_forward.1} parent=0 // pred_fallthru
    _
  // Predicated region
  $region42: #{gat_edgeconv_hybrid_forward.1} parent=0 // pred_check
    _
  $region43: #{gat_edgeconv_hybrid_forward.1} parent=0 // pred_check_branch
    %40 = sbr.rel (0) target = $region45
  $region44: #{gat_edgeconv_hybrid_forward.1} parent=0 // pred_region
    _
  $region45: #{gat_edgeconv_hybrid_forward.1} parent=0 // pred_fallthru
    _
  // Predicated region
  $region46: #{gat_edgeconv_hybrid_forward.1} parent=0 // pred_check
    _
  $region47: #{gat_edgeconv_hybrid_forward.1} parent=0 // pred_check_branch
    %42 = sbr.rel (0) target = $region49
  $region48: #{gat_edgeconv_hybrid_forward.1} parent=0 // pred_region
    _
  $region49: #{gat_edgeconv_hybrid_forward.1} parent=0 // pred_fallthru
    _
  // Predicated region
  $region50: #{gat_edgeconv_hybrid_forward.1} parent=0 // pred_check
    _
  $region51: #{gat_edgeconv_hybrid_forward.1} parent=0 // pred_check_branch
    %44 = sbr.rel (0) target = $region53
  $region52: #{gat_edgeconv_hybrid_forward.1} parent=0 // pred_region
    _
  $region53: #{gat_edgeconv_hybrid_forward.1} parent=0 // pred_fallthru
    _
  // Predicated region
  $region54: #{gat_edgeconv_hybrid_forward.1} parent=0 // pred_check
    _
  $region55: #{gat_edgeconv_hybrid_forward.1} parent=0 // pred_check_branch
    %46 = sbr.rel (0) target = $region57
  $region56: #{gat_edgeconv_hybrid_forward.1} parent=0 // pred_region
    _
  $region57: #{gat_edgeconv_hybrid_forward.1} parent=0 // pred_fallthru
    _
  %v48 = vld [vmem:[%s6] sm:$0x1f]
  %v49 = vld [vmem:[%s2] sm:$0xf]
  %v50 = vld [vmem:[%s2 + $0x4] sm:$0xf]
  %v51 = vld [vmem:[%s2 + $0x8] sm:$0xf]
  %v52 = vld [vmem:[%s2 + $0xc] sm:$0xf]
  %v53 = vld [vmem:[%s2 + $0x10] sm:$0xf]
  %v54 = vld [vmem:[%s2 + $0x14] sm:$0xf]
  %v55 = vld [vmem:[%s2 + $0x18] sm:$0xf]
  %v56 = vld [vmem:[%s2 + $0x1c] sm:$0xf]
  %v57 = vld [vmem:[%s2 + $0x20] sm:$0xf]
  %v58 = vld [vmem:[%s2 + $0x24] sm:$0xf]
  %v59 = vld [vmem:[%s2 + $0x28] sm:$0xf]
  %v60 = vld [vmem:[%s2 + $0x2c] sm:$0xf]
  %v61 = vld [vmem:[%s2 + $0x30] sm:$0xf]
  %v62 = vld [vmem:[%s2 + $0x34] sm:$0xf]
  %v63 = vld [vmem:[%s2 + $0x38] sm:$0xf]
  %v64 = vld [vmem:[%s2 + $0x3c] sm:$0xf]
  %v65 = vld [vmem:[%s2 + $0x40] sm:$0xf]
  %v66 = vld [vmem:[%s2 + $0x44] sm:$0xf]
  %v67 = vld [vmem:[%s2 + $0x48] sm:$0xf]
  %v68 = vld [vmem:[%s2 + $0x4c] sm:$0xf]
  %v69 = vld [vmem:[%s2 + $0x50] sm:$0xf]
  %v70 = vld [vmem:[%s2 + $0x54] sm:$0xf]
  %v71 = vld [vmem:[%s2 + $0x58] sm:$0xf]
  %v72 = vld [vmem:[%s2 + $0x5c] sm:$0xf]
  %v73 = vld [vmem:[%s2 + $0x60] sm:$0xf]
  %v74 = vld [vmem:[%s2 + $0x64] sm:$0xf]
  %v75 = vld [vmem:[%s2 + $0x68] sm:$0xf]
  %v76 = vld [vmem:[%s2 + $0x6c] sm:$0xf]
  %v77 = vld [vmem:[%s2 + $0x70] sm:$0xf]
  %v78 = vld [vmem:[%s2 + $0x74] sm:$0xf]
  %v79 = vld [vmem:[%s2 + $0x78] sm:$0xf]
  %v80 = vld [vmem:[%s2 + $0x7c] sm:$0xf]
  %v81 = vld [vmem:[%s2 + $0x80] sm:$0xf]
  %v82 = vld [vmem:[%s2 + $0x84] sm:$0xf]
  %v83 = vld [vmem:[%s2 + $0x88] sm:$0xf]
  %v84 = vld [vmem:[%s2 + $0x8c] sm:$0xf]
  %v85 = vld [vmem:[%s2 + $0x90] sm:$0xf]
  %v86 = vld [vmem:[%s2 + $0x94] sm:$0xf]
  %v87 = vld [vmem:[%s2 + $0x98] sm:$0xf]
  %v88 = vld [vmem:[%s2 + $0x9c] sm:$0xf]
  %v89 = vld [vmem:[%s2 + $0xa0] sm:$0xf]
  %v90 = vld [vmem:[%s2 + $0xa4] sm:$0xf]
  %v91 = vld [vmem:[%s2 + $0xa8] sm:$0xf]
  %v92 = vld [vmem:[%s2 + $0xac] sm:$0xf]
  %v93 = vld [vmem:[%s2 + $0xb0] sm:$0xf]
  %v94 = vld [vmem:[%s2 + $0xb4] sm:$0xf]
  %v95 = vld [vmem:[%s2 + $0xb8] sm:$0xf]
  %v96 = vld [vmem:[%s2 + $0xbc] sm:$0xf]
  %v97 = vld [vmem:[%s2 + $0xc0] sm:$0xf]
  %v98 = vld [vmem:[%s2 + $0xc4] sm:$0xf]
  %v99 = vld [vmem:[%s2 + $0xc8] sm:$0xf]
  %v100 = vld [vmem:[%s2 + $0xcc] sm:$0xf]
  %v101 = vld [vmem:[%s2 + $0xd0] sm:$0xf]
  %v102 = vld [vmem:[%s2 + $0xd4] sm:$0xf]
  %v103 = vld [vmem:[%s2 + $0xd8] sm:$0xf]
  %v104 = vld [vmem:[%s2 + $0xdc] sm:$0xf]
  %v105 = vld [vmem:[%s2 + $0xe0] sm:$0xf]
  %v106 = vld [vmem:[%s2 + $0xe4] sm:$0xf]
  %v107 = vld [vmem:[%s2 + $0xe8] sm:$0xf]
  %v108 = vld [vmem:[%s2 + $0xec] sm:$0xf]
  %v109 = vld [vmem:[%s2 + $0xf0] sm:$0xf]
  %v110 = vld [vmem:[%s2 + $0xf4] sm:$0xf]
  %v111 = vld [vmem:[%s2 + $0xf8] sm:$0xf]
  %v112 = vld [vmem:[%s2 + $0xfc] sm:$0xf]
  %v113 = vld [vmem:[%s3] sm:$0xf]
  %v114 = vld [vmem:[%s3 + $0x4] sm:$0xf]
  %v115 = vld [vmem:[%s3 + $0x8] sm:$0xf]
  %v116 = vld [vmem:[%s3 + $0xc] sm:$0xf]
  %v117 = vld [vmem:[%s3 + $0x10] sm:$0xf]
  %v118 = vld [vmem:[%s3 + $0x14] sm:$0xf]
  %v119 = vld [vmem:[%s3 + $0x18] sm:$0xf]
  %v120 = vld [vmem:[%s3 + $0x1c] sm:$0xf]
  %v121 = vld [vmem:[%s3 + $0x20] sm:$0xf]
  %v122 = vld [vmem:[%s3 + $0x24] sm:$0xf]
  %v123 = vld [vmem:[%s3 + $0x28] sm:$0xf]
  %v124 = vld [vmem:[%s3 + $0x2c] sm:$0xf]
  %v125 = vld [vmem:[%s3 + $0x30] sm:$0xf]
  %v126 = vld [vmem:[%s3 + $0x34] sm:$0xf]
  %v127 = vld [vmem:[%s3 + $0x38] sm:$0xf]
  %v128 = vld [vmem:[%s3 + $0x3c] sm:$0xf]
  %v129 = vld [vmem:[%s3 + $0x40] sm:$0xf]
  %v130 = vld [vmem:[%s3 + $0x44] sm:$0xf]
  %v131 = vld [vmem:[%s3 + $0x48] sm:$0xf]
  %v132 = vld [vmem:[%s3 + $0x4c] sm:$0xf]
  %v133 = vld [vmem:[%s3 + $0x50] sm:$0xf]
  %v134 = vld [vmem:[%s3 + $0x54] sm:$0xf]
  %v135 = vld [vmem:[%s3 + $0x58] sm:$0xf]
  %v136 = vld [vmem:[%s3 + $0x5c] sm:$0xf]
  %v137 = vld [vmem:[%s3 + $0x60] sm:$0xf]
  %v138 = vld [vmem:[%s3 + $0x64] sm:$0xf]
  %v139 = vld [vmem:[%s3 + $0x68] sm:$0xf]
  %v140 = vld [vmem:[%s3 + $0x6c] sm:$0xf]
  %v141 = vld [vmem:[%s3 + $0x70] sm:$0xf]
  %v142 = vld [vmem:[%s3 + $0x74] sm:$0xf]
  %v143 = vld [vmem:[%s3 + $0x78] sm:$0xf]
  %v144 = vld [vmem:[%s3 + $0x7c] sm:$0xf]
  %v145 = vld [vmem:[%s3 + $0x80] sm:$0xf]
  %v146 = vld [vmem:[%s3 + $0x84] sm:$0xf]
  %v147 = vld [vmem:[%s3 + $0x88] sm:$0xf]
  %v148 = vld [vmem:[%s3 + $0x8c] sm:$0xf]
  %v149 = vld [vmem:[%s3 + $0x90] sm:$0xf]
  %v150 = vld [vmem:[%s3 + $0x94] sm:$0xf]
  %v151 = vld [vmem:[%s3 + $0x98] sm:$0xf]
  %v152 = vld [vmem:[%s3 + $0x9c] sm:$0xf]
  %v153 = vld [vmem:[%s3 + $0xa0] sm:$0xf]
  %v154 = vld [vmem:[%s3 + $0xa4] sm:$0xf]
  %v155 = vld [vmem:[%s3 + $0xa8] sm:$0xf]
  %v156 = vld [vmem:[%s3 + $0xac] sm:$0xf]
  %v157 = vld [vmem:[%s3 + $0xb0] sm:$0xf]
  %v158 = vld [vmem:[%s3 + $0xb4] sm:$0xf]
  %v159 = vld [vmem:[%s3 + $0xb8] sm:$0xf]
  %v160 = vld [vmem:[%s3 + $0xbc] sm:$0xf]
  %v161 = vld [vmem:[%s3 + $0xc0] sm:$0xf]
  %v162 = vld [vmem:[%s3 + $0xc4] sm:$0xf]
  %v163 = vld [vmem:[%s3 + $0xc8] sm:$0xf]
  %v164 = vld [vmem:[%s3 + $0xcc] sm:$0xf]
  %v165 = vld [vmem:[%s3 + $0xd0] sm:$0xf]
  %v166 = vld [vmem:[%s3 + $0xd4] sm:$0xf]
  %v167 = vld [vmem:[%s3 + $0xd8] sm:$0xf]
  %v168 = vld [vmem:[%s3 + $0xdc] sm:$0xf]
  %v169 = vld [vmem:[%s3 + $0xe0] sm:$0xf]
  %v170 = vld [vmem:[%s3 + $0xe4] sm:$0xf]
  %v171 = vld [vmem:[%s3 + $0xe8] sm:$0xf]
  %v172 = vld [vmem:[%s3 + $0xec] sm:$0xf]
  %v173 = vld [vmem:[%s3 + $0xf0] sm:$0xf]
  %v174 = vld [vmem:[%s3 + $0xf4] sm:$0xf]
  %v175 = vld [vmem:[%s3 + $0xf8] sm:$0xf]
  %v176 = vld [vmem:[%s3 + $0xfc] sm:$0xf]
  %v177 = vld [vmem:[%s0] sm:$0xff]
  %v178 = vld [vmem:[%s0 + $0x8] sm:$0xff]
  %v179 = vld [vmem:[%s0 + $0x10] sm:$0xff]
  %v180 = vld [vmem:[%s0 + $0x18] sm:$0xff]
  %v181 = vld [vmem:[%s0 + $0x20] sm:$0xff]
  %v182 = vld [vmem:[%s0 + $0x28] sm:$0xff]
  %v183 = vld [vmem:[%s0 + $0x30] sm:$0xff]
  %v184 = vld [vmem:[%s0 + $0x38] sm:$0xff]
  %v185 = vld [vmem:[%s4] sm:$0xff]
  %v186 = vld [vmem:[%s4 + $0x8] sm:$0xff]
  %v187 = vld [vmem:[%s4 + $0x10] sm:$0xff]
  %v188 = vld [vmem:[%s4 + $0x18] sm:$0xff]
  %v189 = vld [vmem:[%s4 + $0x20] sm:$0xff]
  %v190 = vld [vmem:[%s4 + $0x28] sm:$0xff]
  %v191 = vld [vmem:[%s4 + $0x30] sm:$0xff]
  %v192 = vld [vmem:[%s4 + $0x38] sm:$0xff]
  %v193 = vld [vmem:[%s4 + $0x40] sm:$0xff]
  %v194 = vld [vmem:[%s4 + $0x48] sm:$0xff]
  %v195 = vld [vmem:[%s4 + $0x50] sm:$0xff]
  %v196 = vld [vmem:[%s4 + $0x58] sm:$0xff]
  %v197 = vld [vmem:[%s4 + $0x60] sm:$0xff]
  %v198 = vld [vmem:[%s4 + $0x68] sm:$0xff]
  %v199 = vld [vmem:[%s4 + $0x70] sm:$0xff]
  %v200 = vld [vmem:[%s4 + $0x78] sm:$0xff]
  %v201 = vld [vmem:[%s7] sm:$0x7]
  %v202 = vld [vmem:[%s8] sm:$0xf]
  %v203 = vld [vmem:[%s8 + $0x4] sm:$0xf]
  %v204 = vld [vmem:[%s8 + $0x8] sm:$0xf]
  %v205 = vld [vmem:[%s8 + $0xc] sm:$0xf]
  %v206 = vpack.c.bf16 %v178, %v177
  %v207 = vpack.c.bf16 %v180, %v179
  %v208 = vpack.c.bf16 %v182, %v181
  %v209 = vpack.c.bf16 %v184, %v183
  %vm210 = vcmask 48128
  %v212 = vsel %vm210, %v206, 0
  %v215 = vsel %vm210, %v207, 0
  %v218 = vsel %vm210, %v208, 0
  %v221 = vsel %vm210, %v209, 0
  %vm223 = vcmask 1042432
  %v225 = vsel %vm223, %v201, 0
  %227 = vmatprep.subr.bf16.mxu0 0
  %228 = vmatpush1.bf16.msra.mxu0 %v225
  %229 = vmatprep.subr.bf16.mxu0 0
  %230 = vmatpush1.bf16.msra.mxu0 0
  %231 = vmatprep.subr.bf16.mxu0 0
  %232 = vmatpush1.bf16.msra.mxu0 0
  %233 = vmatprep.subr.bf16.mxu0 0
  %234 = vmatpush1.bf16.msra.mxu0 0
  %235 = vmatprep.subr.bf16.mxu0 0
  %236 = vmatpush1.bf16.msra.mxu0 0
  %237 = vmatprep.subr.bf16.mxu0 0
  %238 = vmatpush1.bf16.msra.mxu0 0
  %239 = vmatprep.subr.bf16.mxu0 0
  %240 = vmatpush1.bf16.msra.mxu0 0
  %241 = vmatprep.subr.bf16.mxu0 0
  %242 = vmatpush1.bf16.msra.mxu0 0
  %243 = vmatprep.subr.bf16.mxu0 0
  %244 = vmatpush1.bf16.msra.mxu0 0
  %245 = vmatprep.subr.bf16.mxu0 0
  %246 = vmatpush1.bf16.msra.mxu0 0
  %247 = vmatprep.subr.bf16.mxu0 0
  %248 = vmatpush1.bf16.msra.mxu0 0
  %249 = vmatprep.subr.bf16.mxu0 0
  %250 = vmatpush1.bf16.msra.mxu0 0
  %251 = vmatprep.subr.bf16.mxu0 0
  %252 = vmatpush1.bf16.msra.mxu0 0
  %253 = vmatprep.subr.bf16.mxu0 0
  %254 = vmatpush1.bf16.msra.mxu0 0
  %255 = vmatprep.subr.bf16.mxu0 0
  %256 = vmatpush1.bf16.msra.mxu0 0
  %257 = vmatprep.subr.bf16.mxu0 0
  %258 = vmatpush1.bf16.msra.mxu0 0
  %259 = vmatprep.mubr.bf16.mxu0 0
  %260 = vmatmul.mubr.bf16.gmra.mrb[0].mxu0 %v212
  %v261 = vpop.f32.mrb[0].mxu0
  %v262 = vadd.f32 0.0, %v261
  %v263 = vpop.f32.mrb[0].mxu0
  %v264 = vpop.f32.mrb[0].mxu0
  %v265 = vadd.f32 0.0, %v264
  %v266 = vpop.f32.mrb[0].mxu0
  %267 = vmatprep.mubr.bf16.mxu0 0
  %268 = vmatmul.mubr.bf16.gmra.mrb[0].mxu0 %v215
  %v269 = vpop.f32.mrb[0].mxu0
  %v270 = vadd.f32 0.0, %v269
  %v271 = vpop.f32.mrb[0].mxu0
  %v272 = vpop.f32.mrb[0].mxu0
  %v273 = vadd.f32 0.0, %v272
  %v274 = vpop.f32.mrb[0].mxu0
  %275 = vmatprep.mubr.bf16.mxu0 0
  %276 = vmatmul.mubr.bf16.gmra.mrb[0].mxu0 %v218
  %v277 = vpop.f32.mrb[0].mxu0
  %v278 = vadd.f32 0.0, %v277
  %v279 = vpop.f32.mrb[0].mxu0
  %v280 = vpop.f32.mrb[0].mxu0
  %v281 = vadd.f32 0.0, %v280
  %v282 = vpop.f32.mrb[0].mxu0
  %283 = vmatprep.mubr.bf16.mxu0 0
  %284 = vmatmul.mubr.bf16.gmra.mrb[0].mxu0 %v221
  %v285 = vpop.f32.mrb[0].mxu0
  %v286 = vadd.f32 0.0, %v285
  %v287 = vpop.f32.mrb[0].mxu0
  %v288 = vpop.f32.mrb[0].mxu0
  %v289 = vadd.f32 0.0, %v288
  %v290 = vpop.f32.mrb[0].mxu0
  %291 = vdwg.mxu0
  %v292 = vpack.c.bf16 %v265, %v262
  %v293 = vpack.c.bf16 %v273, %v270
  %v294 = vpack.c.bf16 %v281, %v278
  %v295 = vpack.c.bf16 %v289, %v286
  %v360 = vunpack.c.l.b16 %v113
  %v361 = vunpack.c.l.b16 %v114
  %v362 = vunpack.c.l.b16 %v115
  %v363 = vunpack.c.l.b16 %v116
  %v364 = vunpack.c.l.b16 %v117
  %v365 = vunpack.c.l.b16 %v118
  %v366 = vunpack.c.l.b16 %v119
  %v367 = vunpack.c.l.b16 %v120
  %v368 = vunpack.c.l.b16 %v121
  %v369 = vunpack.c.l.b16 %v122
  %v370 = vunpack.c.l.b16 %v123
  %v371 = vunpack.c.l.b16 %v124
  %v372 = vunpack.c.l.b16 %v125
  %v373 = vunpack.c.l.b16 %v126
  %v374 = vunpack.c.l.b16 %v127
  %v375 = vunpack.c.l.b16 %v128
  %v376 = vunpack.c.l.b16 %v129
  %v377 = vunpack.c.l.b16 %v130
  %v378 = vunpack.c.l.b16 %v131
  %v379 = vunpack.c.l.b16 %v132
  %v380 = vunpack.c.l.b16 %v133
  %v381 = vunpack.c.l.b16 %v134
  %v382 = vunpack.c.l.b16 %v135
  %v383 = vunpack.c.l.b16 %v136
  %v384 = vunpack.c.l.b16 %v137
  %v385 = vunpack.c.l.b16 %v138
  %v386 = vunpack.c.l.b16 %v139
  %v387 = vunpack.c.l.b16 %v140
  %v388 = vunpack.c.l.b16 %v141
  %v389 = vunpack.c.l.b16 %v142
  %v390 = vunpack.c.l.b16 %v143
  %v391 = vunpack.c.l.b16 %v144
  %v392 = vunpack.c.l.b16 %v145
  %v393 = vunpack.c.l.b16 %v146
  %v394 = vunpack.c.l.b16 %v147
  %v395 = vunpack.c.l.b16 %v148
  %v396 = vunpack.c.l.b16 %v149
  %v397 = vunpack.c.l.b16 %v150
  %v398 = vunpack.c.l.b16 %v151
  %v399 = vunpack.c.l.b16 %v152
  %v400 = vunpack.c.l.b16 %v153
  %v401 = vunpack.c.l.b16 %v154
  %v402 = vunpack.c.l.b16 %v155
  %v403 = vunpack.c.l.b16 %v156
  %v404 = vunpack.c.l.b16 %v157
  %v405 = vunpack.c.l.b16 %v158
  %v406 = vunpack.c.l.b16 %v159
  %v407 = vunpack.c.l.b16 %v160
  %v408 = vunpack.c.l.b16 %v161
  %v409 = vunpack.c.l.b16 %v162
  %v410 = vunpack.c.l.b16 %v163
  %v411 = vunpack.c.l.b16 %v164
  %v412 = vunpack.c.l.b16 %v165
  %v413 = vunpack.c.l.b16 %v166
  %v414 = vunpack.c.l.b16 %v167
  %v415 = vunpack.c.l.b16 %v168
  %v416 = vunpack.c.l.b16 %v169
  %v417 = vunpack.c.l.b16 %v170
  %v418 = vunpack.c.l.b16 %v171
  %v419 = vunpack.c.l.b16 %v172
  %v420 = vunpack.c.l.b16 %v173
  %v421 = vunpack.c.l.b16 %v174
  %v422 = vunpack.c.l.b16 %v175
  %v423 = vunpack.c.l.b16 %v176
  %v424 = vpack.c.b16 %v361, %v360
  %v425 = vpack.c.b16 %v363, %v362
  %v426 = vpack.c.b16 %v365, %v364
  %v427 = vpack.c.b16 %v367, %v366
  %v428 = vpack.c.b16 %v369, %v368
  %v429 = vpack.c.b16 %v371, %v370
  %v430 = vpack.c.b16 %v373, %v372
  %v431 = vpack.c.b16 %v375, %v374
  %v432 = vpack.c.b16 %v377, %v376
  %v433 = vpack.c.b16 %v379, %v378
  %v434 = vpack.c.b16 %v381, %v380
  %v435 = vpack.c.b16 %v383, %v382
  %v436 = vpack.c.b16 %v385, %v384
  %v437 = vpack.c.b16 %v387, %v386
  %v438 = vpack.c.b16 %v389, %v388
  %v439 = vpack.c.b16 %v391, %v390
  %v440 = vpack.c.b16 %v393, %v392
  %v441 = vpack.c.b16 %v395, %v394
  %v442 = vpack.c.b16 %v397, %v396
  %v443 = vpack.c.b16 %v399, %v398
  %v444 = vpack.c.b16 %v401, %v400
  %v445 = vpack.c.b16 %v403, %v402
  %v446 = vpack.c.b16 %v405, %v404
  %v447 = vpack.c.b16 %v407, %v406
  %v448 = vpack.c.b16 %v409, %v408
  %v449 = vpack.c.b16 %v411, %v410
  %v450 = vpack.c.b16 %v413, %v412
  %v451 = vpack.c.b16 %v415, %v414
  %v452 = vpack.c.b16 %v417, %v416
  %v453 = vpack.c.b16 %v419, %v418
  %v454 = vpack.c.b16 %v421, %v420
  %v455 = vpack.c.b16 %v423, %v422
  %460 = vrot.lane.b32.xlu0 %v292, 64
  %v461 = vpop.permute.xlu0 %460
  %462 = vrot.lane.b32.xlu0 %v293, 64
  %v463 = vpop.permute.xlu0 %462
  %464 = vrot.lane.b32.xlu0 %v294, 64
  %v465 = vpop.permute.xlu0 %464
  %466 = vrot.lane.b32.xlu0 %v295, 64
  %v467 = vpop.permute.xlu0 %466
  %vm472 = vcmask 523264
  %v474 = vsel %vm472, %v424, 0
  %v477 = vsel %vm472, %v425, 0
  %v480 = vsel %vm472, %v426, 0
  %v483 = vsel %vm472, %v427, 0
  %v486 = vsel %vm472, %v428, 0
  %v489 = vsel %vm472, %v429, 0
  %v492 = vsel %vm472, %v430, 0
  %v495 = vsel %vm472, %v431, 0
  %v498 = vsel %vm472, %v432, 0
  %v501 = vsel %vm472, %v433, 0
  %v504 = vsel %vm472, %v434, 0
  %v507 = vsel %vm472, %v435, 0
  %v510 = vsel %vm472, %v436, 0
  %v513 = vsel %vm472, %v437, 0
  %v516 = vsel %vm472, %v438, 0
  %v519 = vsel %vm472, %v439, 0
  %v522 = vsel %vm472, %v440, 0
  %v525 = vsel %vm472, %v441, 0
  %v528 = vsel %vm472, %v442, 0
  %v531 = vsel %vm472, %v443, 0
  %v534 = vsel %vm472, %v444, 0
  %v537 = vsel %vm472, %v445, 0
  %v540 = vsel %vm472, %v446, 0
  %v543 = vsel %vm472, %v447, 0
  %v546 = vsel %vm472, %v448, 0
  %v549 = vsel %vm472, %v449, 0
  %v552 = vsel %vm472, %v450, 0
  %v555 = vsel %vm472, %v451, 0
  %v558 = vsel %vm472, %v452, 0
  %v561 = vsel %vm472, %v453, 0
  %v564 = vsel %vm472, %v454, 0
  %v567 = vsel %vm472, %v455, 0
  %569 = vmatprep.subr.bf16.mxu0 0
  %570 = vmatpush1.bf16.msra.mxu0 %v461
  %571 = vmatprep.subr.bf16.mxu0 0
  %572 = vmatpush1.bf16.msra.mxu0 %v463
  %573 = vmatprep.subr.bf16.mxu0 0
  %574 = vmatpush1.bf16.msra.mxu0 %v465
  %575 = vmatprep.subr.bf16.mxu0 0
  %576 = vmatpush1.bf16.msra.mxu0 %v467
  %577 = vmatprep.subr.bf16.mxu0 0
  %578 = vmatpush1.bf16.msra.mxu0 0
  %579 = vmatprep.subr.bf16.mxu0 0
  %580 = vmatpush1.bf16.msra.mxu0 0
  %581 = vmatprep.subr.bf16.mxu0 0
  %582 = vmatpush1.bf16.msra.mxu0 0
  %583 = vmatprep.subr.bf16.mxu0 0
  %584 = vmatpush1.bf16.msra.mxu0 0
  %585 = vmatprep.subr.bf16.mxu0 0
  %586 = vmatpush1.bf16.msra.mxu0 0
  %587 = vmatprep.subr.bf16.mxu0 0
  %588 = vmatpush1.bf16.msra.mxu0 0
  %589 = vmatprep.subr.bf16.mxu0 0
  %590 = vmatpush1.bf16.msra.mxu0 0
  %591 = vmatprep.subr.bf16.mxu0 0
  %592 = vmatpush1.bf16.msra.mxu0 0
  %593 = vmatprep.subr.bf16.mxu0 0
  %594 = vmatpush1.bf16.msra.mxu0 0
  %595 = vmatprep.subr.bf16.mxu0 0
  %596 = vmatpush1.bf16.msra.mxu0 0
  %597 = vmatprep.subr.bf16.mxu0 0
  %598 = vmatpush1.bf16.msra.mxu0 0
  %599 = vmatprep.subr.bf16.mxu0 0
  %600 = vmatpush1.bf16.msra.mxu0 0
  %601 = vmatprep.mubr.bf16.mxu0 0
  %602 = vmatmul.mubr.bf16.gmra.mrb[0].mxu0 %v474
  %v603 = vpop.f32.mrb[0].mxu0
  %v604 = vadd.f32 0.0, %v603
  %v605 = vpop.f32.mrb[0].mxu0
  %v606 = vpop.f32.mrb[0].mxu0
  %v607 = vadd.f32 0.0, %v606
  %v608 = vpop.f32.mrb[0].mxu0
  %609 = vmatprep.mubr.bf16.mxu0 0
  %610 = vmatmul.mubr.bf16.gmra.mrb[0].mxu0 %v477
  %v611 = vpop.f32.mrb[0].mxu0
  %v612 = vadd.f32 0.0, %v611
  %v613 = vpop.f32.mrb[0].mxu0
  %v614 = vpop.f32.mrb[0].mxu0
  %v615 = vadd.f32 0.0, %v614
  %v616 = vpop.f32.mrb[0].mxu0
  %617 = vmatprep.mubr.bf16.mxu0 0
  %618 = vmatmul.mubr.bf16.gmra.mrb[0].mxu0 %v480
  %v619 = vpop.f32.mrb[0].mxu0
  %v620 = vadd.f32 0.0, %v619
  %v621 = vpop.f32.mrb[0].mxu0
  %v622 = vpop.f32.mrb[0].mxu0
  %v623 = vadd.f32 0.0, %v622
  %v624 = vpop.f32.mrb[0].mxu0
  %625 = vmatprep.mubr.bf16.mxu0 0
  %626 = vmatmul.mubr.bf16.gmra.mrb[0].mxu0 %v483
  %v627 = vpop.f32.mrb[0].mxu0
  %v628 = vadd.f32 0.0, %v627
  %v629 = vpop.f32.mrb[0].mxu0
  %v630 = vpop.f32.mrb[0].mxu0
  %v631 = vadd.f32 0.0, %v630
  %v632 = vpop.f32.mrb[0].mxu0
  %633 = vmatprep.mubr.bf16.mxu0 0
  %634 = vmatmul.mubr.bf16.gmra.mrb[0].mxu0 %v486
  %v635 = vpop.f32.mrb[0].mxu0
  %v636 = vadd.f32 0.0, %v635
  %v637 = vpop.f32.mrb[0].mxu0
  %v638 = vpop.f32.mrb[0].mxu0
  %v639 = vadd.f32 0.0, %v638
  %v640 = vpop.f32.mrb[0].mxu0
  %641 = vmatprep.mubr.bf16.mxu0 0
  %642 = vmatmul.mubr.bf16.gmra.mrb[0].mxu0 %v489
  %v643 = vpop.f32.mrb[0].mxu0
  %v644 = vadd.f32 0.0, %v643
  %v645 = vpop.f32.mrb[0].mxu0
  %v646 = vpop.f32.mrb[0].mxu0
  %v647 = vadd.f32 0.0, %v646
  %v648 = vpop.f32.mrb[0].mxu0
  %649 = vmatprep.mubr.bf16.mxu0 0
  %650 = vmatmul.mubr.bf16.gmra.mrb[0].mxu0 %v492
  %v651 = vpop.f32.mrb[0].mxu0
  %v652 = vadd.f32 0.0, %v651
  %v653 = vpop.f32.mrb[0].mxu0
  %v654 = vpop.f32.mrb[0].mxu0
  %v655 = vadd.f32 0.0, %v654
  %v656 = vpop.f32.mrb[0].mxu0
  %657 = vmatprep.mubr.bf16.mxu0 0
  %658 = vmatmul.mubr.bf16.gmra.mrb[0].mxu0 %v495
  %v659 = vpop.f32.mrb[0].mxu0
  %v660 = vadd.f32 0.0, %v659
  %v661 = vpop.f32.mrb[0].mxu0
  %v662 = vpop.f32.mrb[0].mxu0
  %v663 = vadd.f32 0.0, %v662
  %v664 = vpop.f32.mrb[0].mxu0
  %665 = vmatprep.mubr.bf16.mxu0 0
  %666 = vmatmul.mubr.bf16.gmra.mrb[0].mxu0 %v498
  %v667 = vpop.f32.mrb[0].mxu0
  %v668 = vadd.f32 0.0, %v667
  %v669 = vpop.f32.mrb[0].mxu0
  %v670 = vpop.f32.mrb[0].mxu0
  %v671 = vadd.f32 0.0, %v670
  %v672 = vpop.f32.mrb[0].mxu0
  %673 = vmatprep.mubr.bf16.mxu0 0
  %674 = vmatmul.mubr.bf16.gmra.mrb[0].mxu0 %v501
  %v675 = vpop.f32.mrb[0].mxu0
  %v676 = vadd.f32 0.0, %v675
  %v677 = vpop.f32.mrb[0].mxu0
  %v678 = vpop.f32.mrb[0].mxu0
  %v679 = vadd.f32 0.0, %v678
  %v680 = vpop.f32.mrb[0].mxu0
  %681 = vmatprep.mubr.bf16.mxu0 0
  %682 = vmatmul.mubr.bf16.gmra.mrb[0].mxu0 %v504
  %v683 = vpop.f32.mrb[0].mxu0
  %v684 = vadd.f32 0.0, %v683
  %v685 = vpop.f32.mrb[0].mxu0
  %v686 = vpop.f32.mrb[0].mxu0
  %v687 = vadd.f32 0.0, %v686
  %v688 = vpop.f32.mrb[0].mxu0
  %689 = vmatprep.mubr.bf16.mxu0 0
  %690 = vmatmul.mubr.bf16.gmra.mrb[0].mxu0 %v507
  %v691 = vpop.f32.mrb[0].mxu0
  %v692 = vadd.f32 0.0, %v691
  %v693 = vpop.f32.mrb[0].mxu0
  %v694 = vpop.f32.mrb[0].mxu0
  %v695 = vadd.f32 0.0, %v694
  %v696 = vpop.f32.mrb[0].mxu0
  %697 = vmatprep.mubr.bf16.mxu0 0
  %698 = vmatmul.mubr.bf16.gmra.mrb[0].mxu0 %v510
  %v699 = vpop.f32.mrb[0].mxu0
  %v700 = vadd.f32 0.0, %v699
  %v701 = vpop.f32.mrb[0].mxu0
  %v702 = vpop.f32.mrb[0].mxu0
  %v703 = vadd.f32 0.0, %v702
  %v704 = vpop.f32.mrb[0].mxu0
  %705 = vmatprep.mubr.bf16.mxu0 0
  %706 = vmatmul.mubr.bf16.gmra.mrb[0].mxu0 %v513
  %v707 = vpop.f32.mrb[0].mxu0
  %v708 = vadd.f32 0.0, %v707
  %v709 = vpop.f32.mrb[0].mxu0
  %v710 = vpop.f32.mrb[0].mxu0
  %v711 = vadd.f32 0.0, %v710
  %v712 = vpop.f32.mrb[0].mxu0
  %713 = vmatprep.mubr.bf16.mxu0 0
  %714 = vmatmul.mubr.bf16.gmra.mrb[0].mxu0 %v516
  %v715 = vpop.f32.mrb[0].mxu0
  %v716 = vadd.f32 0.0, %v715
  %v717 = vpop.f32.mrb[0].mxu0
  %v718 = vpop.f32.mrb[0].mxu0
  %v719 = vadd.f32 0.0, %v718
  %v720 = vpop.f32.mrb[0].mxu0
  %721 = vmatprep.mubr.bf16.mxu0 0
  %722 = vmatmul.mubr.bf16.gmra.mrb[0].mxu0 %v519
  %v723 = vpop.f32.mrb[0].mxu0
  %v724 = vadd.f32 0.0, %v723
  %v725 = vpop.f32.mrb[0].mxu0
  %v726 = vpop.f32.mrb[0].mxu0
  %v727 = vadd.f32 0.0, %v726
  %v728 = vpop.f32.mrb[0].mxu0
  %729 = vmatprep.mubr.bf16.mxu0 0
  %730 = vmatmul.mubr.bf16.gmra.mrb[0].mxu0 %v522
  %v731 = vpop.f32.mrb[0].mxu0
  %v732 = vadd.f32 0.0, %v731
  %v733 = vpop.f32.mrb[0].mxu0
  %v734 = vpop.f32.mrb[0].mxu0
  %v735 = vadd.f32 0.0, %v734
  %v736 = vpop.f32.mrb[0].mxu0
  %737 = vmatprep.mubr.bf16.mxu0 0
  %738 = vmatmul.mubr.bf16.gmra.mrb[0].mxu0 %v525
  %v739 = vpop.f32.mrb[0].mxu0
  %v740 = vadd.f32 0.0, %v739
  %v741 = vpop.f32.mrb[0].mxu0
  %v742 = vpop.f32.mrb[0].mxu0
  %v743 = vadd.f32 0.0, %v742
  %v744 = vpop.f32.mrb[0].mxu0
  %745 = vmatprep.mubr.bf16.mxu0 0
  %746 = vmatmul.mubr.bf16.gmra.mrb[0].mxu0 %v528
  %v747 = vpop.f32.mrb[0].mxu0
  %v748 = vadd.f32 0.0, %v747
  %v749 = vpop.f32.mrb[0].mxu0
  %v750 = vpop.f32.mrb[0].mxu0
  %v751 = vadd.f32 0.0, %v750
  %v752 = vpop.f32.mrb[0].mxu0
  %753 = vmatprep.mubr.bf16.mxu0 0
  %754 = vmatmul.mubr.bf16.gmra.mrb[0].mxu0 %v531
  %v755 = vpop.f32.mrb[0].mxu0
  %v756 = vadd.f32 0.0, %v755
  %v757 = vpop.f32.mrb[0].mxu0
  %v758 = vpop.f32.mrb[0].mxu0
  %v759 = vadd.f32 0.0, %v758
  %v760 = vpop.f32.mrb[0].mxu0
  %761 = vmatprep.mubr.bf16.mxu0 0
  %762 = vmatmul.mubr.bf16.gmra.mrb[0].mxu0 %v534
  %v763 = vpop.f32.mrb[0].mxu0
  %v764 = vadd.f32 0.0, %v763
  %v765 = vpop.f32.mrb[0].mxu0
  %v766 = vpop.f32.mrb[0].mxu0
  %v767 = vadd.f32 0.0, %v766
  %v768 = vpop.f32.mrb[0].mxu0
  %769 = vmatprep.mubr.bf16.mxu0 0
  %770 = vmatmul.mubr.bf16.gmra.mrb[0].mxu0 %v537
  %v771 = vpop.f32.mrb[0].mxu0
  %v772 = vadd.f32 0.0, %v771
  %v773 = vpop.f32.mrb[0].mxu0
  %v774 = vpop.f32.mrb[0].mxu0
  %v775 = vadd.f32 0.0, %v774
  %v776 = vpop.f32.mrb[0].mxu0
  %777 = vmatprep.mubr.bf16.mxu0 0
  %778 = vmatmul.mubr.bf16.gmra.mrb[0].mxu0 %v540
  %v779 = vpop.f32.mrb[0].mxu0
  %v780 = vadd.f32 0.0, %v779
  %v781 = vpop.f32.mrb[0].mxu0
  %v782 = vpop.f32.mrb[0].mxu0
  %v783 = vadd.f32 0.0, %v782
  %v784 = vpop.f32.mrb[0].mxu0
  %785 = vmatprep.mubr.bf16.mxu0 0
  %786 = vmatmul.mubr.bf16.gmra.mrb[0].mxu0 %v543
  %v787 = vpop.f32.mrb[0].mxu0
  %v788 = vadd.f32 0.0, %v787
  %v789 = vpop.f32.mrb[0].mxu0
  %v790 = vpop.f32.mrb[0].mxu0
  %v791 = vadd.f32 0.0, %v790
  %v792 = vpop.f32.mrb[0].mxu0
  %793 = vmatprep.mubr.bf16.mxu0 0
  %794 = vmatmul.mubr.bf16.gmra.mrb[0].mxu0 %v546
  %v795 = vpop.f32.mrb[0].mxu0
  %v796 = vadd.f32 0.0, %v795
  %v797 = vpop.f32.mrb[0].mxu0
  %v798 = vpop.f32.mrb[0].mxu0
  %v799 = vadd.f32 0.0, %v798
  %v800 = vpop.f32.mrb[0].mxu0
  %801 = vmatprep.mubr.bf16.mxu0 0
  %802 = vmatmul.mubr.bf16.gmra.mrb[0].mxu0 %v549
  %v803 = vpop.f32.mrb[0].mxu0
  %v804 = vadd.f32 0.0, %v803
  %v805 = vpop.f32.mrb[0].mxu0
  %v806 = vpop.f32.mrb[0].mxu0
  %v807 = vadd.f32 0.0, %v806
  %v808 = vpop.f32.mrb[0].mxu0
  %809 = vmatprep.mubr.bf16.mxu0 0
  %810 = vmatmul.mubr.bf16.gmra.mrb[0].mxu0 %v552
  %v811 = vpop.f32.mrb[0].mxu0
  %v812 = vadd.f32 0.0, %v811
  %v813 = vpop.f32.mrb[0].mxu0
  %v814 = vpop.f32.mrb[0].mxu0
  %v815 = vadd.f32 0.0, %v814
  %v816 = vpop.f32.mrb[0].mxu0
  %817 = vmatprep.mubr.bf16.mxu0 0
  %818 = vmatmul.mubr.bf16.gmra.mrb[0].mxu0 %v555
  %v819 = vpop.f32.mrb[0].mxu0
  %v820 = vadd.f32 0.0, %v819
  %v821 = vpop.f32.mrb[0].mxu0
  %v822 = vpop.f32.mrb[0].mxu0
  %v823 = vadd.f32 0.0, %v822
  %v824 = vpop.f32.mrb[0].mxu0
  %825 = vmatprep.mubr.bf16.mxu0 0
  %826 = vmatmul.mubr.bf16.gmra.mrb[0].mxu0 %v558
  %v827 = vpop.f32.mrb[0].mxu0
  %v828 = vadd.f32 0.0, %v827
  %v829 = vpop.f32.mrb[0].mxu0
  %v830 = vpop.f32.mrb[0].mxu0
  %v831 = vadd.f32 0.0, %v830
  %v832 = vpop.f32.mrb[0].mxu0
  %833 = vmatprep.mubr.bf16.mxu0 0
  %834 = vmatmul.mubr.bf16.gmra.mrb[0].mxu0 %v561
  %v835 = vpop.f32.mrb[0].mxu0
  %v836 = vadd.f32 0.0, %v835
  %v837 = vpop.f32.mrb[0].mxu0
  %v838 = vpop.f32.mrb[0].mxu0
  %v839 = vadd.f32 0.0, %v838
  %v840 = vpop.f32.mrb[0].mxu0
  %841 = vmatprep.mubr.bf16.mxu0 0
  %842 = vmatmul.mubr.bf16.gmra.mrb[0].mxu0 %v564
  %v843 = vpop.f32.mrb[0].mxu0
  %v844 = vadd.f32 0.0, %v843
  %v845 = vpop.f32.mrb[0].mxu0
  %v846 = vpop.f32.mrb[0].mxu0
  %v847 = vadd.f32 0.0, %v846
  %v848 = vpop.f32.mrb[0].mxu0
  %849 = vmatprep.mubr.bf16.mxu0 0
  %850 = vmatmul.mubr.bf16.gmra.mrb[0].mxu0 %v567
  %v851 = vpop.f32.mrb[0].mxu0
  %v852 = vadd.f32 0.0, %v851
  %v853 = vpop.f32.mrb[0].mxu0
  %v854 = vpop.f32.mrb[0].mxu0
  %v855 = vadd.f32 0.0, %v854
  %v856 = vpop.f32.mrb[0].mxu0
  %857 = vdwg.mxu0
  %v922 = vunpack.c.l.b16 %v49
  %v923 = vunpack.c.l.b16 %v50
  %v924 = vunpack.c.l.b16 %v51
  %v925 = vunpack.c.l.b16 %v52
  %v926 = vunpack.c.l.b16 %v53
  %v927 = vunpack.c.l.b16 %v54
  %v928 = vunpack.c.l.b16 %v55
  %v929 = vunpack.c.l.b16 %v56
  %v930 = vunpack.c.l.b16 %v57
  %v931 = vunpack.c.l.b16 %v58
  %v932 = vunpack.c.l.b16 %v59
  %v933 = vunpack.c.l.b16 %v60
  %v934 = vunpack.c.l.b16 %v61
  %v935 = vunpack.c.l.b16 %v62
  %v936 = vunpack.c.l.b16 %v63
  %v937 = vunpack.c.l.b16 %v64
  %v938 = vunpack.c.l.b16 %v65
  %v939 = vunpack.c.l.b16 %v66
  %v940 = vunpack.c.l.b16 %v67
  %v941 = vunpack.c.l.b16 %v68
  %v942 = vunpack.c.l.b16 %v69
  %v943 = vunpack.c.l.b16 %v70
  %v944 = vunpack.c.l.b16 %v71
  %v945 = vunpack.c.l.b16 %v72
  %v946 = vunpack.c.l.b16 %v73
  %v947 = vunpack.c.l.b16 %v74
  %v948 = vunpack.c.l.b16 %v75
  %v949 = vunpack.c.l.b16 %v76
  %v950 = vunpack.c.l.b16 %v77
  %v951 = vunpack.c.l.b16 %v78
  %v952 = vunpack.c.l.b16 %v79
  %v953 = vunpack.c.l.b16 %v80
  %v954 = vunpack.c.l.b16 %v81
  %v955 = vunpack.c.l.b16 %v82
  %v956 = vunpack.c.l.b16 %v83
  %v957 = vunpack.c.l.b16 %v84
  %v958 = vunpack.c.l.b16 %v85
  %v959 = vunpack.c.l.b16 %v86
  %v960 = vunpack.c.l.b16 %v87
  %v961 = vunpack.c.l.b16 %v88
  %v962 = vunpack.c.l.b16 %v89
  %v963 = vunpack.c.l.b16 %v90
  %v964 = vunpack.c.l.b16 %v91
  %v965 = vunpack.c.l.b16 %v92
  %v966 = vunpack.c.l.b16 %v93
  %v967 = vunpack.c.l.b16 %v94
  %v968 = vunpack.c.l.b16 %v95
  %v969 = vunpack.c.l.b16 %v96
  %v970 = vunpack.c.l.b16 %v97
  %v971 = vunpack.c.l.b16 %v98
  %v972 = vunpack.c.l.b16 %v99
  %v973 = vunpack.c.l.b16 %v100
  %v974 = vunpack.c.l.b16 %v101
  %v975 = vunpack.c.l.b16 %v102
  %v976 = vunpack.c.l.b16 %v103
  %v977 = vunpack.c.l.b16 %v104
  %v978 = vunpack.c.l.b16 %v105
  %v979 = vunpack.c.l.b16 %v106
  %v980 = vunpack.c.l.b16 %v107
  %v981 = vunpack.c.l.b16 %v108
  %v982 = vunpack.c.l.b16 %v109
  %v983 = vunpack.c.l.b16 %v110
  %v984 = vunpack.c.l.b16 %v111
  %v985 = vunpack.c.l.b16 %v112
  %v986 = vpack.c.b16 %v923, %v922
  %v987 = vpack.c.b16 %v925, %v924
  %v988 = vpack.c.b16 %v927, %v926
  %v989 = vpack.c.b16 %v929, %v928
  %v990 = vpack.c.b16 %v931, %v930
  %v991 = vpack.c.b16 %v933, %v932
  %v992 = vpack.c.b16 %v935, %v934
  %v993 = vpack.c.b16 %v937, %v936
  %v994 = vpack.c.b16 %v939, %v938
  %v995 = vpack.c.b16 %v941, %v940
  %v996 = vpack.c.b16 %v943, %v942
  %v997 = vpack.c.b16 %v945, %v944
  %v998 = vpack.c.b16 %v947, %v946
  %v999 = vpack.c.b16 %v949, %v948
  %v1000 = vpack.c.b16 %v951, %v950
  %v1001 = vpack.c.b16 %v953, %v952
  %v1002 = vpack.c.b16 %v955, %v954
  %v1003 = vpack.c.b16 %v957, %v956
  %v1004 = vpack.c.b16 %v959, %v958
  %v1005 = vpack.c.b16 %v961, %v960
  %v1006 = vpack.c.b16 %v963, %v962
  %v1007 = vpack.c.b16 %v965, %v964
  %v1008 = vpack.c.b16 %v967, %v966
  %v1009 = vpack.c.b16 %v969, %v968
  %v1010 = vpack.c.b16 %v971, %v970
  %v1011 = vpack.c.b16 %v973, %v972
  %v1012 = vpack.c.b16 %v975, %v974
  %v1013 = vpack.c.b16 %v977, %v976
  %v1014 = vpack.c.b16 %v979, %v978
  %v1015 = vpack.c.b16 %v981, %v980
  %v1016 = vpack.c.b16 %v983, %v982
  %v1017 = vpack.c.b16 %v985, %v984
  %v1019 = vsel %vm472, %v986, 0
  %v1022 = vsel %vm472, %v987, 0
  %v1025 = vsel %vm472, %v988, 0
  %v1028 = vsel %vm472, %v989, 0
  %v1031 = vsel %vm472, %v990, 0
  %v1034 = vsel %vm472, %v991, 0
  %v1037 = vsel %vm472, %v992, 0
  %v1040 = vsel %vm472, %v993, 0
  %v1043 = vsel %vm472, %v994, 0
  %v1046 = vsel %vm472, %v995, 0
  %v1049 = vsel %vm472, %v996, 0
  %v1052 = vsel %vm472, %v997, 0
  %v1055 = vsel %vm472, %v998, 0
  %v1058 = vsel %vm472, %v999, 0
  %v1061 = vsel %vm472, %v1000, 0
  %v1064 = vsel %vm472, %v1001, 0
  %v1067 = vsel %vm472, %v1002, 0
  %v1070 = vsel %vm472, %v1003, 0
  %v1073 = vsel %vm472, %v1004, 0
  %v1076 = vsel %vm472, %v1005, 0
  %v1079 = vsel %vm472, %v1006, 0
  %v1082 = vsel %vm472, %v1007, 0
  %v1085 = vsel %vm472, %v1008, 0
  %v1088 = vsel %vm472, %v1009, 0
  %v1091 = vsel %vm472, %v1010, 0
  %v1094 = vsel %vm472, %v1011, 0
  %v1097 = vsel %vm472, %v1012, 0
  %v1100 = vsel %vm472, %v1013, 0
  %v1103 = vsel %vm472, %v1014, 0
  %v1106 = vsel %vm472, %v1015, 0
  %v1109 = vsel %vm472, %v1016, 0
  %v1112 = vsel %vm472, %v1017, 0
  %1114 = vmatprep.subr.bf16.mxu0 0
  %1115 = vmatpush1.bf16.msra.mxu0 %v292
  %1116 = vmatprep.subr.bf16.mxu0 0
  %1117 = vmatpush1.bf16.msra.mxu0 %v293
  %1118 = vmatprep.subr.bf16.mxu0 0
  %1119 = vmatpush1.bf16.msra.mxu0 %v294
  %1120 = vmatprep.subr.bf16.mxu0 0
  %1121 = vmatpush1.bf16.msra.mxu0 %v295
  %1122 = vmatprep.subr.bf16.mxu0 0
  %1123 = vmatpush1.bf16.msra.mxu0 0
  %1124 = vmatprep.subr.bf16.mxu0 0
  %1125 = vmatpush1.bf16.msra.mxu0 0
  %1126 = vmatprep.subr.bf16.mxu0 0
  %1127 = vmatpush1.bf16.msra.mxu0 0
  %1128 = vmatprep.subr.bf16.mxu0 0
  %1129 = vmatpush1.bf16.msra.mxu0 0
  %1130 = vmatprep.subr.bf16.mxu0 0
  %1131 = vmatpush1.bf16.msra.mxu0 0
  %1132 = vmatprep.subr.bf16.mxu0 0
  %1133 = vmatpush1.bf16.msra.mxu0 0
  %1134 = vmatprep.subr.bf16.mxu0 0
  %1135 = vmatpush1.bf16.msra.mxu0 0
  %1136 = vmatprep.subr.bf16.mxu0 0
  %1137 = vmatpush1.bf16.msra.mxu0 0
  %1138 = vmatprep.subr.bf16.mxu0 0
  %1139 = vmatpush1.bf16.msra.mxu0 0
  %1140 = vmatprep.subr.bf16.mxu0 0
  %1141 = vmatpush1.bf16.msra.mxu0 0
  %1142 = vmatprep.subr.bf16.mxu0 0
  %1143 = vmatpush1.bf16.msra.mxu0 0
  %1144 = vmatprep.subr.bf16.mxu0 0
  %1145 = vmatpush1.bf16.msra.mxu0 0
  %1146 = vmatprep.mubr.bf16.mxu0 0
  %1147 = vmatmul.mubr.bf16.gmra.mrb[0].mxu0 %v1019
  %v1148 = vpop.f32.mrb[0].mxu0
  %v1149 = vadd.f32 %v604, %v1148
  %v1150 = vpop.f32.mrb[0].mxu0
  %v1151 = vpop.f32.mrb[0].mxu0
  %v1152 = vadd.f32 %v607, %v1151
  %v1153 = vpop.f32.mrb[0].mxu0
  %1154 = vmatprep.mubr.bf16.mxu0 0
  %1155 = vmatmul.mubr.bf16.gmra.mrb[0].mxu0 %v1022
  %v1156 = vpop.f32.mrb[0].mxu0
  %v1157 = vadd.f32 %v612, %v1156
  %v1158 = vpop.f32.mrb[0].mxu0
  %v1159 = vpop.f32.mrb[0].mxu0
  %v1160 = vadd.f32 %v615, %v1159
  %v1161 = vpop.f32.mrb[0].mxu0
  %1162 = vmatprep.mubr.bf16.mxu0 0
  %1163 = vmatmul.mubr.bf16.gmra.mrb[0].mxu0 %v1025
  %v1164 = vpop.f32.mrb[0].mxu0
  %v1165 = vadd.f32 %v620, %v1164
  %v1166 = vpop.f32.mrb[0].mxu0
  %v1167 = vpop.f32.mrb[0].mxu0
  %v1168 = vadd.f32 %v623, %v1167
  %v1169 = vpop.f32.mrb[0].mxu0
  %1170 = vmatprep.mubr.bf16.mxu0 0
  %1171 = vmatmul.mubr.bf16.gmra.mrb[0].mxu0 %v1028
  %v1172 = vpop.f32.mrb[0].mxu0
  %v1173 = vadd.f32 %v628, %v1172
  %v1174 = vpop.f32.mrb[0].mxu0
  %v1175 = vpop.f32.mrb[0].mxu0
  %v1176 = vadd.f32 %v631, %v1175
  %v1177 = vpop.f32.mrb[0].mxu0
  %1178 = vmatprep.mubr.bf16.mxu0 0
  %1179 = vmatmul.mubr.bf16.gmra.mrb[0].mxu0 %v1031
  %v1180 = vpop.f32.mrb[0].mxu0
  %v1181 = vadd.f32 %v636, %v1180
  %v1182 = vpop.f32.mrb[0].mxu0
  %v1183 = vpop.f32.mrb[0].mxu0
  %v1184 = vadd.f32 %v639, %v1183
  %v1185 = vpop.f32.mrb[0].mxu0
  %1186 = vmatprep.mubr.bf16.mxu0 0
  %1187 = vmatmul.mubr.bf16.gmra.mrb[0].mxu0 %v1034
  %v1188 = vpop.f32.mrb[0].mxu0
  %v1189 = vadd.f32 %v644, %v1188
  %v1190 = vpop.f32.mrb[0].mxu0
  %v1191 = vpop.f32.mrb[0].mxu0
  %v1192 = vadd.f32 %v647, %v1191
  %v1193 = vpop.f32.mrb[0].mxu0
  %1194 = vmatprep.mubr.bf16.mxu0 0
  %1195 = vmatmul.mubr.bf16.gmra.mrb[0].mxu0 %v1037
  %v1196 = vpop.f32.mrb[0].mxu0
  %v1197 = vadd.f32 %v652, %v1196
  %v1198 = vpop.f32.mrb[0].mxu0
  %v1199 = vpop.f32.mrb[0].mxu0
  %v1200 = vadd.f32 %v655, %v1199
  %v1201 = vpop.f32.mrb[0].mxu0
  %1202 = vmatprep.mubr.bf16.mxu0 0
  %1203 = vmatmul.mubr.bf16.gmra.mrb[0].mxu0 %v1040
  %v1204 = vpop.f32.mrb[0].mxu0
  %v1205 = vadd.f32 %v660, %v1204
  %v1206 = vpop.f32.mrb[0].mxu0
  %v1207 = vpop.f32.mrb[0].mxu0
  %v1208 = vadd.f32 %v663, %v1207
  %v1209 = vpop.f32.mrb[0].mxu0
  %1210 = vmatprep.mubr.bf16.mxu0 0
  %1211 = vmatmul.mubr.bf16.gmra.mrb[0].mxu0 %v1043
  %v1212 = vpop.f32.mrb[0].mxu0
  %v1213 = vadd.f32 %v668, %v1212
  %v1214 = vpop.f32.mrb[0].mxu0
  %v1215 = vpop.f32.mrb[0].mxu0
  %v1216 = vadd.f32 %v671, %v1215
  %v1217 = vpop.f32.mrb[0].mxu0
  %1218 = vmatprep.mubr.bf16.mxu0 0
  %1219 = vmatmul.mubr.bf16.gmra.mrb[0].mxu0 %v1046
  %v1220 = vpop.f32.mrb[0].mxu0
  %v1221 = vadd.f32 %v676, %v1220
  %v1222 = vpop.f32.mrb[0].mxu0
  %v1223 = vpop.f32.mrb[0].mxu0
  %v1224 = vadd.f32 %v679, %v1223
  %v1225 = vpop.f32.mrb[0].mxu0
  %1226 = vmatprep.mubr.bf16.mxu0 0
  %1227 = vmatmul.mubr.bf16.gmra.mrb[0].mxu0 %v1049
  %v1228 = vpop.f32.mrb[0].mxu0
  %v1229 = vadd.f32 %v684, %v1228
  %v1230 = vpop.f32.mrb[0].mxu0
  %v1231 = vpop.f32.mrb[0].mxu0
  %v1232 = vadd.f32 %v687, %v1231
  %v1233 = vpop.f32.mrb[0].mxu0
  %1234 = vmatprep.mubr.bf16.mxu0 0
  %1235 = vmatmul.mubr.bf16.gmra.mrb[0].mxu0 %v1052
  %v1236 = vpop.f32.mrb[0].mxu0
  %v1237 = vadd.f32 %v692, %v1236
  %v1238 = vpop.f32.mrb[0].mxu0
  %v1239 = vpop.f32.mrb[0].mxu0
  %v1240 = vadd.f32 %v695, %v1239
  %v1241 = vpop.f32.mrb[0].mxu0
  %1242 = vmatprep.mubr.bf16.mxu0 0
  %1243 = vmatmul.mubr.bf16.gmra.mrb[0].mxu0 %v1055
  %v1244 = vpop.f32.mrb[0].mxu0
  %v1245 = vadd.f32 %v700, %v1244
  %v1246 = vpop.f32.mrb[0].mxu0
  %v1247 = vpop.f32.mrb[0].mxu0
  %v1248 = vadd.f32 %v703, %v1247
  %v1249 = vpop.f32.mrb[0].mxu0
  %1250 = vmatprep.mubr.bf16.mxu0 0
  %1251 = vmatmul.mubr.bf16.gmra.mrb[0].mxu0 %v1058
  %v1252 = vpop.f32.mrb[0].mxu0
  %v1253 = vadd.f32 %v708, %v1252
  %v1254 = vpop.f32.mrb[0].mxu0
  %v1255 = vpop.f32.mrb[0].mxu0
  %v1256 = vadd.f32 %v711, %v1255
  %v1257 = vpop.f32.mrb[0].mxu0
  %1258 = vmatprep.mubr.bf16.mxu0 0
  %1259 = vmatmul.mubr.bf16.gmra.mrb[0].mxu0 %v1061
  %v1260 = vpop.f32.mrb[0].mxu0
  %v1261 = vadd.f32 %v716, %v1260
  %v1262 = vpop.f32.mrb[0].mxu0
  %v1263 = vpop.f32.mrb[0].mxu0
  %v1264 = vadd.f32 %v719, %v1263
  %v1265 = vpop.f32.mrb[0].mxu0
  %1266 = vmatprep.mubr.bf16.mxu0 0
  %1267 = vmatmul.mubr.bf16.gmra.mrb[0].mxu0 %v1064
  %v1268 = vpop.f32.mrb[0].mxu0
  %v1269 = vadd.f32 %v724, %v1268
  %v1270 = vpop.f32.mrb[0].mxu0
  %v1271 = vpop.f32.mrb[0].mxu0
  %v1272 = vadd.f32 %v727, %v1271
  %v1273 = vpop.f32.mrb[0].mxu0
  %1274 = vmatprep.mubr.bf16.mxu0 0
  %1275 = vmatmul.mubr.bf16.gmra.mrb[0].mxu0 %v1067
  %v1276 = vpop.f32.mrb[0].mxu0
  %v1277 = vadd.f32 %v732, %v1276
  %v1278 = vpop.f32.mrb[0].mxu0
  %v1279 = vpop.f32.mrb[0].mxu0
  %v1280 = vadd.f32 %v735, %v1279
  %v1281 = vpop.f32.mrb[0].mxu0
  %1282 = vmatprep.mubr.bf16.mxu0 0
  %1283 = vmatmul.mubr.bf16.gmra.mrb[0].mxu0 %v1070
  %v1284 = vpop.f32.mrb[0].mxu0
  %v1285 = vadd.f32 %v740, %v1284
  %v1286 = vpop.f32.mrb[0].mxu0
  %v1287 = vpop.f32.mrb[0].mxu0
  %v1288 = vadd.f32 %v743, %v1287
  %v1289 = vpop.f32.mrb[0].mxu0
  %1290 = vmatprep.mubr.bf16.mxu0 0
  %1291 = vmatmul.mubr.bf16.gmra.mrb[0].mxu0 %v1073
  %v1292 = vpop.f32.mrb[0].mxu0
  %v1293 = vadd.f32 %v748, %v1292
  %v1294 = vpop.f32.mrb[0].mxu0
  %v1295 = vpop.f32.mrb[0].mxu0
  %v1296 = vadd.f32 %v751, %v1295
  %v1297 = vpop.f32.mrb[0].mxu0
  %1298 = vmatprep.mubr.bf16.mxu0 0
  %1299 = vmatmul.mubr.bf16.gmra.mrb[0].mxu0 %v1076
  %v1300 = vpop.f32.mrb[0].mxu0
  %v1301 = vadd.f32 %v756, %v1300
  %v1302 = vpop.f32.mrb[0].mxu0
  %v1303 = vpop.f32.mrb[0].mxu0
  %v1304 = vadd.f32 %v759, %v1303
  %v1305 = vpop.f32.mrb[0].mxu0
  %1306 = vmatprep.mubr.bf16.mxu0 0
  %1307 = vmatmul.mubr.bf16.gmra.mrb[0].mxu0 %v1079
  %v1308 = vpop.f32.mrb[0].mxu0
  %v1309 = vadd.f32 %v764, %v1308
  %v1310 = vpop.f32.mrb[0].mxu0
  %v1311 = vpop.f32.mrb[0].mxu0
  %v1312 = vadd.f32 %v767, %v1311
  %v1313 = vpop.f32.mrb[0].mxu0
  %1314 = vmatprep.mubr.bf16.mxu0 0
  %1315 = vmatmul.mubr.bf16.gmra.mrb[0].mxu0 %v1082
  %v1316 = vpop.f32.mrb[0].mxu0
  %v1317 = vadd.f32 %v772, %v1316
  %v1318 = vpop.f32.mrb[0].mxu0
  %v1319 = vpop.f32.mrb[0].mxu0
  %v1320 = vadd.f32 %v775, %v1319
  %v1321 = vpop.f32.mrb[0].mxu0
  %1322 = vmatprep.mubr.bf16.mxu0 0
  %1323 = vmatmul.mubr.bf16.gmra.mrb[0].mxu0 %v1085
  %v1324 = vpop.f32.mrb[0].mxu0
  %v1325 = vadd.f32 %v780, %v1324
  %v1326 = vpop.f32.mrb[0].mxu0
  %v1327 = vpop.f32.mrb[0].mxu0
  %v1328 = vadd.f32 %v783, %v1327
  %v1329 = vpop.f32.mrb[0].mxu0
  %1330 = vmatprep.mubr.bf16.mxu0 0
  %1331 = vmatmul.mubr.bf16.gmra.mrb[0].mxu0 %v1088
  %v1332 = vpop.f32.mrb[0].mxu0
  %v1333 = vadd.f32 %v788, %v1332
  %v1334 = vpop.f32.mrb[0].mxu0
  %v1335 = vpop.f32.mrb[0].mxu0
  %v1336 = vadd.f32 %v791, %v1335
  %v1337 = vpop.f32.mrb[0].mxu0
  %1338 = vmatprep.mubr.bf16.mxu0 0
  %1339 = vmatmul.mubr.bf16.gmra.mrb[0].mxu0 %v1091
  %v1340 = vpop.f32.mrb[0].mxu0
  %v1341 = vadd.f32 %v796, %v1340
  %v1342 = vpop.f32.mrb[0].mxu0
  %v1343 = vpop.f32.mrb[0].mxu0
  %v1344 = vadd.f32 %v799, %v1343
  %v1345 = vpop.f32.mrb[0].mxu0
  %1346 = vmatprep.mubr.bf16.mxu0 0
  %1347 = vmatmul.mubr.bf16.gmra.mrb[0].mxu0 %v1094
  %v1348 = vpop.f32.mrb[0].mxu0
  %v1349 = vadd.f32 %v804, %v1348
  %v1350 = vpop.f32.mrb[0].mxu0
  %v1351 = vpop.f32.mrb[0].mxu0
  %v1352 = vadd.f32 %v807, %v1351
  %v1353 = vpop.f32.mrb[0].mxu0
  %1354 = vmatprep.mubr.bf16.mxu0 0
  %1355 = vmatmul.mubr.bf16.gmra.mrb[0].mxu0 %v1097
  %v1356 = vpop.f32.mrb[0].mxu0
  %v1357 = vadd.f32 %v812, %v1356
  %v1358 = vpop.f32.mrb[0].mxu0
  %v1359 = vpop.f32.mrb[0].mxu0
  %v1360 = vadd.f32 %v815, %v1359
  %v1361 = vpop.f32.mrb[0].mxu0
  %1362 = vmatprep.mubr.bf16.mxu0 0
  %1363 = vmatmul.mubr.bf16.gmra.mrb[0].mxu0 %v1100
  %v1364 = vpop.f32.mrb[0].mxu0
  %v1365 = vadd.f32 %v820, %v1364
  %v1366 = vpop.f32.mrb[0].mxu0
  %v1367 = vpop.f32.mrb[0].mxu0
  %v1368 = vadd.f32 %v823, %v1367
  %v1369 = vpop.f32.mrb[0].mxu0
  %1370 = vmatprep.mubr.bf16.mxu0 0
  %1371 = vmatmul.mubr.bf16.gmra.mrb[0].mxu0 %v1103
  %v1372 = vpop.f32.mrb[0].mxu0
  %v1373 = vadd.f32 %v828, %v1372
  %v1374 = vpop.f32.mrb[0].mxu0
  %v1375 = vpop.f32.mrb[0].mxu0
  %v1376 = vadd.f32 %v831, %v1375
  %v1377 = vpop.f32.mrb[0].mxu0
  %1378 = vmatprep.mubr.bf16.mxu0 0
  %1379 = vmatmul.mubr.bf16.gmra.mrb[0].mxu0 %v1106
  %v1380 = vpop.f32.mrb[0].mxu0
  %v1381 = vadd.f32 %v836, %v1380
  %v1382 = vpop.f32.mrb[0].mxu0
  %v1383 = vpop.f32.mrb[0].mxu0
  %v1384 = vadd.f32 %v839, %v1383
  %v1385 = vpop.f32.mrb[0].mxu0
  %1386 = vmatprep.mubr.bf16.mxu0 0
  %1387 = vmatmul.mubr.bf16.gmra.mrb[0].mxu0 %v1109
  %v1388 = vpop.f32.mrb[0].mxu0
  %v1389 = vadd.f32 %v844, %v1388
  %v1390 = vpop.f32.mrb[0].mxu0
  %v1391 = vpop.f32.mrb[0].mxu0
  %v1392 = vadd.f32 %v847, %v1391
  %v1393 = vpop.f32.mrb[0].mxu0
  %1394 = vmatprep.mubr.bf16.mxu0 0
  %1395 = vmatmul.mubr.bf16.gmra.mrb[0].mxu0 %v1112
  %v1396 = vpop.f32.mrb[0].mxu0
  %v1397 = vadd.f32 %v852, %v1396
  %v1398 = vpop.f32.mrb[0].mxu0
  %v1399 = vpop.f32.mrb[0].mxu0
  %v1400 = vadd.f32 %v855, %v1399
  %v1401 = vpop.f32.mrb[0].mxu0
  %1402 = vdwg.mxu0
  %v1403 = vlaneseq
  %v1404 = vshrl.u32 %v1403, 7
  %v1405 = vsub.s32 0, %v1404
  %v1406 = vrot.slane %v48, %v1405
  %v1407 = vadd.f32 %v1149, %v1406
  %v1408 = vadd.f32 %v1152, %v1406
  %v1409 = vadd.f32 %v1157, %v1406
  %v1410 = vadd.f32 %v1160, %v1406
  %v1411 = vadd.f32 %v1165, %v1406
  %v1412 = vadd.f32 %v1168, %v1406
  %v1413 = vadd.f32 %v1173, %v1406
  %v1414 = vadd.f32 %v1176, %v1406
  %v1415 = vadd.f32 %v1181, %v1406
  %v1416 = vadd.f32 %v1184, %v1406
  %v1417 = vadd.f32 %v1189, %v1406
  %v1418 = vadd.f32 %v1192, %v1406
  %v1419 = vadd.f32 %v1197, %v1406
  %v1420 = vadd.f32 %v1200, %v1406
  %v1421 = vadd.f32 %v1205, %v1406
  %v1422 = vadd.f32 %v1208, %v1406
  %v1423 = vadd.f32 %v1213, %v1406
  %v1424 = vadd.f32 %v1216, %v1406
  %v1425 = vadd.f32 %v1221, %v1406
  %v1426 = vadd.f32 %v1224, %v1406
  %v1427 = vadd.f32 %v1229, %v1406
  %v1428 = vadd.f32 %v1232, %v1406
  %v1429 = vadd.f32 %v1237, %v1406
  %v1430 = vadd.f32 %v1240, %v1406
  %v1431 = vadd.f32 %v1245, %v1406
  %v1432 = vadd.f32 %v1248, %v1406
  %v1433 = vadd.f32 %v1253, %v1406
  %v1434 = vadd.f32 %v1256, %v1406
  %v1435 = vadd.f32 %v1261, %v1406
  %v1436 = vadd.f32 %v1264, %v1406
  %v1437 = vadd.f32 %v1269, %v1406
  %v1438 = vadd.f32 %v1272, %v1406
  %v1439 = vadd.f32 %v1277, %v1406
  %v1440 = vadd.f32 %v1280, %v1406
  %v1441 = vadd.f32 %v1285, %v1406
  %v1442 = vadd.f32 %v1288, %v1406
  %v1443 = vadd.f32 %v1293, %v1406
  %v1444 = vadd.f32 %v1296, %v1406
  %v1445 = vadd.f32 %v1301, %v1406
  %v1446 = vadd.f32 %v1304, %v1406
  %v1447 = vadd.f32 %v1309, %v1406
  %v1448 = vadd.f32 %v1312, %v1406
  %v1449 = vadd.f32 %v1317, %v1406
  %v1450 = vadd.f32 %v1320, %v1406
  %v1451 = vadd.f32 %v1325, %v1406
  %v1452 = vadd.f32 %v1328, %v1406
  %v1453 = vadd.f32 %v1333, %v1406
  %v1454 = vadd.f32 %v1336, %v1406
  %v1455 = vadd.f32 %v1341, %v1406
  %v1456 = vadd.f32 %v1344, %v1406
  %v1457 = vadd.f32 %v1349, %v1406
  %v1458 = vadd.f32 %v1352, %v1406
  %v1459 = vadd.f32 %v1357, %v1406
  %v1460 = vadd.f32 %v1360, %v1406
  %v1461 = vadd.f32 %v1365, %v1406
  %v1462 = vadd.f32 %v1368, %v1406
  %v1463 = vadd.f32 %v1373, %v1406
  %v1464 = vadd.f32 %v1376, %v1406
  %v1465 = vadd.f32 %v1381, %v1406
  %v1466 = vadd.f32 %v1384, %v1406
  %v1467 = vadd.f32 %v1389, %v1406
  %v1468 = vadd.f32 %v1392, %v1406
  %v1469 = vadd.f32 %v1397, %v1406
  %v1470 = vadd.f32 %v1400, %v1406
  %v1471 = vmax.f32 %v1407, 0.0
  %v1472 = vmax.f32 %v1408, 0.0
  %v1473 = vmax.f32 %v1409, 0.0
  %v1474 = vmax.f32 %v1410, 0.0
  %v1475 = vmax.f32 %v1411, 0.0
  %v1476 = vmax.f32 %v1412, 0.0
  %v1477 = vmax.f32 %v1413, 0.0
  %v1478 = vmax.f32 %v1414, 0.0
  %v1479 = vmax.f32 %v1415, 0.0
  %v1480 = vmax.f32 %v1416, 0.0
  %v1481 = vmax.f32 %v1417, 0.0
  %v1482 = vmax.f32 %v1418, 0.0
  %v1483 = vmax.f32 %v1419, 0.0
  %v1484 = vmax.f32 %v1420, 0.0
  %v1485 = vmax.f32 %v1421, 0.0
  %v1486 = vmax.f32 %v1422, 0.0
  %v1487 = vmax.f32 %v1423, 0.0
  %v1488 = vmax.f32 %v1424, 0.0
  %v1489 = vmax.f32 %v1425, 0.0
  %v1490 = vmax.f32 %v1426, 0.0
  %v1491 = vmax.f32 %v1427, 0.0
  %v1492 = vmax.f32 %v1428, 0.0
  %v1493 = vmax.f32 %v1429, 0.0
  %v1494 = vmax.f32 %v1430, 0.0
  %v1495 = vmax.f32 %v1431, 0.0
  %v1496 = vmax.f32 %v1432, 0.0
  %v1497 = vmax.f32 %v1433, 0.0
  %v1498 = vmax.f32 %v1434, 0.0
  %v1499 = vmax.f32 %v1435, 0.0
  %v1500 = vmax.f32 %v1436, 0.0
  %v1501 = vmax.f32 %v1437, 0.0
  %v1502 = vmax.f32 %v1438, 0.0
  %v1503 = vmax.f32 %v1439, 0.0
  %v1504 = vmax.f32 %v1440, 0.0
  %v1505 = vmax.f32 %v1441, 0.0
  %v1506 = vmax.f32 %v1442, 0.0
  %v1507 = vmax.f32 %v1443, 0.0
  %v1508 = vmax.f32 %v1444, 0.0
  %v1509 = vmax.f32 %v1445, 0.0
  %v1510 = vmax.f32 %v1446, 0.0
  %v1511 = vmax.f32 %v1447, 0.0
  %v1512 = vmax.f32 %v1448, 0.0
  %v1513 = vmax.f32 %v1449, 0.0
  %v1514 = vmax.f32 %v1450, 0.0
  %v1515 = vmax.f32 %v1451, 0.0
  %v1516 = vmax.f32 %v1452, 0.0
  %v1517 = vmax.f32 %v1453, 0.0
  %v1518 = vmax.f32 %v1454, 0.0
  %v1519 = vmax.f32 %v1455, 0.0
  %v1520 = vmax.f32 %v1456, 0.0
  %v1521 = vmax.f32 %v1457, 0.0
  %v1522 = vmax.f32 %v1458, 0.0
  %v1523 = vmax.f32 %v1459, 0.0
  %v1524 = vmax.f32 %v1460, 0.0
  %v1525 = vmax.f32 %v1461, 0.0
  %v1526 = vmax.f32 %v1462, 0.0
  %v1527 = vmax.f32 %v1463, 0.0
  %v1528 = vmax.f32 %v1464, 0.0
  %v1529 = vmax.f32 %v1465, 0.0
  %v1530 = vmax.f32 %v1466, 0.0
  %v1531 = vmax.f32 %v1467, 0.0
  %v1532 = vmax.f32 %v1468, 0.0
  %v1533 = vmax.f32 %v1469, 0.0
  %v1534 = vmax.f32 %v1470, 0.0
  %v1535 = vpack.c.bf16 %v1472, %v1471
  %v1536 = vpack.c.bf16 %v1474, %v1473
  %v1537 = vpack.c.bf16 %v1476, %v1475
  %v1538 = vpack.c.bf16 %v1478, %v1477
  %v1539 = vpack.c.bf16 %v1480, %v1479
  %v1540 = vpack.c.bf16 %v1482, %v1481
  %v1541 = vpack.c.bf16 %v1484, %v1483
  %v1542 = vpack.c.bf16 %v1486, %v1485
  %v1543 = vpack.c.bf16 %v1488, %v1487
  %v1544 = vpack.c.bf16 %v1490, %v1489
  %v1545 = vpack.c.bf16 %v1492, %v1491
  %v1546 = vpack.c.bf16 %v1494, %v1493
  %v1547 = vpack.c.bf16 %v1496, %v1495
  %v1548 = vpack.c.bf16 %v1498, %v1497
  %v1549 = vpack.c.bf16 %v1500, %v1499
  %v1550 = vpack.c.bf16 %v1502, %v1501
  %v1551 = vpack.c.bf16 %v1504, %v1503
  %v1552 = vpack.c.bf16 %v1506, %v1505
  %v1553 = vpack.c.bf16 %v1508, %v1507
  %v1554 = vpack.c.bf16 %v1510, %v1509
  %v1555 = vpack.c.bf16 %v1512, %v1511
  %v1556 = vpack.c.bf16 %v1514, %v1513
  %v1557 = vpack.c.bf16 %v1516, %v1515
  %v1558 = vpack.c.bf16 %v1518, %v1517
  %v1559 = vpack.c.bf16 %v1520, %v1519
  %v1560 = vpack.c.bf16 %v1522, %v1521
  %v1561 = vpack.c.bf16 %v1524, %v1523
  %v1562 = vpack.c.bf16 %v1526, %v1525
  %v1563 = vpack.c.bf16 %v1528, %v1527
  %v1564 = vpack.c.bf16 %v1530, %v1529
  %v1565 = vpack.c.bf16 %v1532, %v1531
  %v1566 = vpack.c.bf16 %v1534, %v1533
  %v1571 = vunpack.c.l.b16 %v202
  %v1572 = vunpack.c.l.b16 %v203
  %v1573 = vunpack.c.l.b16 %v204
  %v1574 = vunpack.c.l.b16 %v205
  %v1575 = vpack.c.b16 %v1572, %v1571
  %v1576 = vpack.c.b16 %v1574, %v1573
  %1580 = vrot.lane.b32.xlu0 %v1406, 64
  %v1581 = vpop.permute.xlu0 %1580
  %vm1583 = vcmask 261120
  %v1585 = vsel %vm1583, %v1535, 0
  %v1588 = vsel %vm1583, %v1536, 0
  %v1591 = vsel %vm1583, %v1537, 0
  %v1594 = vsel %vm1583, %v1538, 0
  %v1597 = vsel %vm1583, %v1539, 0
  %v1600 = vsel %vm1583, %v1540, 0
  %v1603 = vsel %vm1583, %v1541, 0
  %v1606 = vsel %vm1583, %v1542, 0
  %v1609 = vsel %vm1583, %v1543, 0
  %v1612 = vsel %vm1583, %v1544, 0
  %v1615 = vsel %vm1583, %v1545, 0
  %v1618 = vsel %vm1583, %v1546, 0
  %v1621 = vsel %vm1583, %v1547, 0
  %v1624 = vsel %vm1583, %v1548, 0
  %v1627 = vsel %vm1583, %v1549, 0
  %v1630 = vsel %vm1583, %v1550, 0
  %v1633 = vsel %vm1583, %v1551, 0
  %v1636 = vsel %vm1583, %v1552, 0
  %v1639 = vsel %vm1583, %v1553, 0
  %v1642 = vsel %vm1583, %v1554, 0
  %v1645 = vsel %vm1583, %v1555, 0
  %v1648 = vsel %vm1583, %v1556, 0
  %v1651 = vsel %vm1583, %v1557, 0
  %v1654 = vsel %vm1583, %v1558, 0
  %v1657 = vsel %vm1583, %v1559, 0
  %v1660 = vsel %vm1583, %v1560, 0
  %v1663 = vsel %vm1583, %v1561, 0
  %v1666 = vsel %vm1583, %v1562, 0
  %v1669 = vsel %vm1583, %v1563, 0
  %v1672 = vsel %vm1583, %v1564, 0
  %v1675 = vsel %vm1583, %v1565, 0
  %v1678 = vsel %vm1583, %v1566, 0
  %1680 = vmatprep.subr.bf16.mxu0 0
  %1681 = vmatpush1.bf16.msra.mxu0 %v1575
  %1682 = vmatprep.subr.bf16.mxu0 0
  %1683 = vmatpush1.bf16.msra.mxu0 %v1576
  %1684 = vmatprep.subr.bf16.mxu0 0
  %1685 = vmatpush1.bf16.msra.mxu0 0
  %1686 = vmatprep.subr.bf16.mxu0 0
  %1687 = vmatpush1.bf16.msra.mxu0 0
  %1688 = vmatprep.subr.bf16.mxu0 0
  %1689 = vmatpush1.bf16.msra.mxu0 0
  %1690 = vmatprep.subr.bf16.mxu0 0
  %1691 = vmatpush1.bf16.msra.mxu0 0
  %1692 = vmatprep.subr.bf16.mxu0 0
  %1693 = vmatpush1.bf16.msra.mxu0 0
  %1694 = vmatprep.subr.bf16.mxu0 0
  %1695 = vmatpush1.bf16.msra.mxu0 0
  %1696 = vmatprep.subr.bf16.mxu0 0
  %1697 = vmatpush1.bf16.msra.mxu0 0
  %1698 = vmatprep.subr.bf16.mxu0 0
  %1699 = vmatpush1.bf16.msra.mxu0 0
  %1700 = vmatprep.subr.bf16.mxu0 0
  %1701 = vmatpush1.bf16.msra.mxu0 0
  %1702 = vmatprep.subr.bf16.mxu0 0
  %1703 = vmatpush1.bf16.msra.mxu0 0
  %1704 = vmatprep.subr.bf16.mxu0 0
  %1705 = vmatpush1.bf16.msra.mxu0 0
  %1706 = vmatprep.subr.bf16.mxu0 0
  %1707 = vmatpush1.bf16.msra.mxu0 0
  %1708 = vmatprep.subr.bf16.mxu0 0
  %1709 = vmatpush1.bf16.msra.mxu0 0
  %1710 = vmatprep.subr.bf16.mxu0 0
  %1711 = vmatpush1.bf16.msra.mxu0 0
  %1712 = vmatprep.mubr.bf16.mxu0 0
  %1713 = vmatmul.mubr.bf16.gmra.mrb[0].mxu0 %v1585
  %v1714 = vpop.f32.mrb[0].mxu0
  %v1715 = vadd.f32 %v1581, %v1714
  %v1716 = vpop.f32.mrb[0].mxu0
  %v1717 = vpop.f32.mrb[0].mxu0
  %v1718 = vadd.f32 %v1581, %v1717
  %v1719 = vpop.f32.mrb[0].mxu0
  %1720 = vmatprep.mubr.bf16.mxu0 0
  %1721 = vmatmul.mubr.bf16.gmra.mrb[0].mxu0 %v1588
  %v1722 = vpop.f32.mrb[0].mxu0
  %v1723 = vadd.f32 %v1581, %v1722
  %v1724 = vpop.f32.mrb[0].mxu0
  %v1725 = vpop.f32.mrb[0].mxu0
  %v1726 = vadd.f32 %v1581, %v1725
  %v1727 = vpop.f32.mrb[0].mxu0
  %1728 = vmatprep.mubr.bf16.mxu0 0
  %1729 = vmatmul.mubr.bf16.gmra.mrb[0].mxu0 %v1591
  %v1730 = vpop.f32.mrb[0].mxu0
  %v1731 = vadd.f32 %v1581, %v1730
  %v1732 = vpop.f32.mrb[0].mxu0
  %v1733 = vpop.f32.mrb[0].mxu0
  %v1734 = vadd.f32 %v1581, %v1733
  %v1735 = vpop.f32.mrb[0].mxu0
  %1736 = vmatprep.mubr.bf16.mxu0 0
  %1737 = vmatmul.mubr.bf16.gmra.mrb[0].mxu0 %v1594
  %v1738 = vpop.f32.mrb[0].mxu0
  %v1739 = vadd.f32 %v1581, %v1738
  %v1740 = vpop.f32.mrb[0].mxu0
  %v1741 = vpop.f32.mrb[0].mxu0
  %v1742 = vadd.f32 %v1581, %v1741
  %v1743 = vpop.f32.mrb[0].mxu0
  %1744 = vmatprep.mubr.bf16.mxu0 0
  %1745 = vmatmul.mubr.bf16.gmra.mrb[0].mxu0 %v1597
  %v1746 = vpop.f32.mrb[0].mxu0
  %v1747 = vadd.f32 %v1581, %v1746
  %v1748 = vpop.f32.mrb[0].mxu0
  %v1749 = vpop.f32.mrb[0].mxu0
  %v1750 = vadd.f32 %v1581, %v1749
  %v1751 = vpop.f32.mrb[0].mxu0
  %1752 = vmatprep.mubr.bf16.mxu0 0
  %1753 = vmatmul.mubr.bf16.gmra.mrb[0].mxu0 %v1600
  %v1754 = vpop.f32.mrb[0].mxu0
  %v1755 = vadd.f32 %v1581, %v1754
  %v1756 = vpop.f32.mrb[0].mxu0
  %v1757 = vpop.f32.mrb[0].mxu0
  %v1758 = vadd.f32 %v1581, %v1757
  %v1759 = vpop.f32.mrb[0].mxu0
  %1760 = vmatprep.mubr.bf16.mxu0 0
  %1761 = vmatmul.mubr.bf16.gmra.mrb[0].mxu0 %v1603
  %v1762 = vpop.f32.mrb[0].mxu0
  %v1763 = vadd.f32 %v1581, %v1762
  %v1764 = vpop.f32.mrb[0].mxu0
  %v1765 = vpop.f32.mrb[0].mxu0
  %v1766 = vadd.f32 %v1581, %v1765
  %v1767 = vpop.f32.mrb[0].mxu0
  %1768 = vmatprep.mubr.bf16.mxu0 0
  %1769 = vmatmul.mubr.bf16.gmra.mrb[0].mxu0 %v1606
  %v1770 = vpop.f32.mrb[0].mxu0
  %v1771 = vadd.f32 %v1581, %v1770
  %v1772 = vpop.f32.mrb[0].mxu0
  %v1773 = vpop.f32.mrb[0].mxu0
  %v1774 = vadd.f32 %v1581, %v1773
  %v1775 = vpop.f32.mrb[0].mxu0
  %1776 = vmatprep.mubr.bf16.mxu0 0
  %1777 = vmatmul.mubr.bf16.gmra.mrb[0].mxu0 %v1609
  %v1778 = vpop.f32.mrb[0].mxu0
  %v1779 = vadd.f32 %v1581, %v1778
  %v1780 = vpop.f32.mrb[0].mxu0
  %v1781 = vpop.f32.mrb[0].mxu0
  %v1782 = vadd.f32 %v1581, %v1781
  %v1783 = vpop.f32.mrb[0].mxu0
  %1784 = vmatprep.mubr.bf16.mxu0 0
  %1785 = vmatmul.mubr.bf16.gmra.mrb[0].mxu0 %v1612
  %v1786 = vpop.f32.mrb[0].mxu0
  %v1787 = vadd.f32 %v1581, %v1786
  %v1788 = vpop.f32.mrb[0].mxu0
  %v1789 = vpop.f32.mrb[0].mxu0
  %v1790 = vadd.f32 %v1581, %v1789
  %v1791 = vpop.f32.mrb[0].mxu0
  %1792 = vmatprep.mubr.bf16.mxu0 0
  %1793 = vmatmul.mubr.bf16.gmra.mrb[0].mxu0 %v1615
  %v1794 = vpop.f32.mrb[0].mxu0
  %v1795 = vadd.f32 %v1581, %v1794
  %v1796 = vpop.f32.mrb[0].mxu0
  %v1797 = vpop.f32.mrb[0].mxu0
  %v1798 = vadd.f32 %v1581, %v1797
  %v1799 = vpop.f32.mrb[0].mxu0
  %1800 = vmatprep.mubr.bf16.mxu0 0
  %1801 = vmatmul.mubr.bf16.gmra.mrb[0].mxu0 %v1618
  %v1802 = vpop.f32.mrb[0].mxu0
  %v1803 = vadd.f32 %v1581, %v1802
  %v1804 = vpop.f32.mrb[0].mxu0
  %v1805 = vpop.f32.mrb[0].mxu0
  %v1806 = vadd.f32 %v1581, %v1805
  %v1807 = vpop.f32.mrb[0].mxu0
  %1808 = vmatprep.mubr.bf16.mxu0 0
  %1809 = vmatmul.mubr.bf16.gmra.mrb[0].mxu0 %v1621
  %v1810 = vpop.f32.mrb[0].mxu0
  %v1811 = vadd.f32 %v1581, %v1810
  %v1812 = vpop.f32.mrb[0].mxu0
  %v1813 = vpop.f32.mrb[0].mxu0
  %v1814 = vadd.f32 %v1581, %v1813
  %v1815 = vpop.f32.mrb[0].mxu0
  %1816 = vmatprep.mubr.bf16.mxu0 0
  %1817 = vmatmul.mubr.bf16.gmra.mrb[0].mxu0 %v1624
  %v1818 = vpop.f32.mrb[0].mxu0
  %v1819 = vadd.f32 %v1581, %v1818
  %v1820 = vpop.f32.mrb[0].mxu0
  %v1821 = vpop.f32.mrb[0].mxu0
  %v1822 = vadd.f32 %v1581, %v1821
  %v1823 = vpop.f32.mrb[0].mxu0
  %1824 = vmatprep.mubr.bf16.mxu0 0
  %1825 = vmatmul.mubr.bf16.gmra.mrb[0].mxu0 %v1627
  %v1826 = vpop.f32.mrb[0].mxu0
  %v1827 = vadd.f32 %v1581, %v1826
  %v1828 = vpop.f32.mrb[0].mxu0
  %v1829 = vpop.f32.mrb[0].mxu0
  %v1830 = vadd.f32 %v1581, %v1829
  %v1831 = vpop.f32.mrb[0].mxu0
  %1832 = vmatprep.mubr.bf16.mxu0 0
  %1833 = vmatmul.mubr.bf16.gmra.mrb[0].mxu0 %v1630
  %v1834 = vpop.f32.mrb[0].mxu0
  %v1835 = vadd.f32 %v1581, %v1834
  %v1836 = vpop.f32.mrb[0].mxu0
  %v1837 = vpop.f32.mrb[0].mxu0
  %v1838 = vadd.f32 %v1581, %v1837
  %v1839 = vpop.f32.mrb[0].mxu0
  %1840 = vmatprep.mubr.bf16.mxu0 0
  %1841 = vmatmul.mubr.bf16.gmra.mrb[0].mxu0 %v1633
  %v1842 = vpop.f32.mrb[0].mxu0
  %v1843 = vadd.f32 %v1581, %v1842
  %v1844 = vpop.f32.mrb[0].mxu0
  %v1845 = vpop.f32.mrb[0].mxu0
  %v1846 = vadd.f32 %v1581, %v1845
  %v1847 = vpop.f32.mrb[0].mxu0
  %1848 = vmatprep.mubr.bf16.mxu0 0
  %1849 = vmatmul.mubr.bf16.gmra.mrb[0].mxu0 %v1636
  %v1850 = vpop.f32.mrb[0].mxu0
  %v1851 = vadd.f32 %v1581, %v1850
  %v1852 = vpop.f32.mrb[0].mxu0
  %v1853 = vpop.f32.mrb[0].mxu0
  %v1854 = vadd.f32 %v1581, %v1853
  %v1855 = vpop.f32.mrb[0].mxu0
  %1856 = vmatprep.mubr.bf16.mxu0 0
  %1857 = vmatmul.mubr.bf16.gmra.mrb[0].mxu0 %v1639
  %v1858 = vpop.f32.mrb[0].mxu0
  %v1859 = vadd.f32 %v1581, %v1858
  %v1860 = vpop.f32.mrb[0].mxu0
  %v1861 = vpop.f32.mrb[0].mxu0
  %v1862 = vadd.f32 %v1581, %v1861
  %v1863 = vpop.f32.mrb[0].mxu0
  %1864 = vmatprep.mubr.bf16.mxu0 0
  %1865 = vmatmul.mubr.bf16.gmra.mrb[0].mxu0 %v1642
  %v1866 = vpop.f32.mrb[0].mxu0
  %v1867 = vadd.f32 %v1581, %v1866
  %v1868 = vpop.f32.mrb[0].mxu0
  %v1869 = vpop.f32.mrb[0].mxu0
  %v1870 = vadd.f32 %v1581, %v1869
  %v1871 = vpop.f32.mrb[0].mxu0
  %1872 = vmatprep.mubr.bf16.mxu0 0
  %1873 = vmatmul.mubr.bf16.gmra.mrb[0].mxu0 %v1645
  %v1874 = vpop.f32.mrb[0].mxu0
  %v1875 = vadd.f32 %v1581, %v1874
  %v1876 = vpop.f32.mrb[0].mxu0
  %v1877 = vpop.f32.mrb[0].mxu0
  %v1878 = vadd.f32 %v1581, %v1877
  %v1879 = vpop.f32.mrb[0].mxu0
  %1880 = vmatprep.mubr.bf16.mxu0 0
  %1881 = vmatmul.mubr.bf16.gmra.mrb[0].mxu0 %v1648
  %v1882 = vpop.f32.mrb[0].mxu0
  %v1883 = vadd.f32 %v1581, %v1882
  %v1884 = vpop.f32.mrb[0].mxu0
  %v1885 = vpop.f32.mrb[0].mxu0
  %v1886 = vadd.f32 %v1581, %v1885
  %v1887 = vpop.f32.mrb[0].mxu0
  %1888 = vmatprep.mubr.bf16.mxu0 0
  %1889 = vmatmul.mubr.bf16.gmra.mrb[0].mxu0 %v1651
  %v1890 = vpop.f32.mrb[0].mxu0
  %v1891 = vadd.f32 %v1581, %v1890
  %v1892 = vpop.f32.mrb[0].mxu0
  %v1893 = vpop.f32.mrb[0].mxu0
  %v1894 = vadd.f32 %v1581, %v1893
  %v1895 = vpop.f32.mrb[0].mxu0
  %1896 = vmatprep.mubr.bf16.mxu0 0
  %1897 = vmatmul.mubr.bf16.gmra.mrb[0].mxu0 %v1654
  %v1898 = vpop.f32.mrb[0].mxu0
  %v1899 = vadd.f32 %v1581, %v1898
  %v1900 = vpop.f32.mrb[0].mxu0
  %v1901 = vpop.f32.mrb[0].mxu0
  %v1902 = vadd.f32 %v1581, %v1901
  %v1903 = vpop.f32.mrb[0].mxu0
  %1904 = vmatprep.mubr.bf16.mxu0 0
  %1905 = vmatmul.mubr.bf16.gmra.mrb[0].mxu0 %v1657
  %v1906 = vpop.f32.mrb[0].mxu0
  %v1907 = vadd.f32 %v1581, %v1906
  %v1908 = vpop.f32.mrb[0].mxu0
  %v1909 = vpop.f32.mrb[0].mxu0
  %v1910 = vadd.f32 %v1581, %v1909
  %v1911 = vpop.f32.mrb[0].mxu0
  %1912 = vmatprep.mubr.bf16.mxu0 0
  %1913 = vmatmul.mubr.bf16.gmra.mrb[0].mxu0 %v1660
  %v1914 = vpop.f32.mrb[0].mxu0
  %v1915 = vadd.f32 %v1581, %v1914
  %v1916 = vpop.f32.mrb[0].mxu0
  %v1917 = vpop.f32.mrb[0].mxu0
  %v1918 = vadd.f32 %v1581, %v1917
  %v1919 = vpop.f32.mrb[0].mxu0
  %1920 = vmatprep.mubr.bf16.mxu0 0
  %1921 = vmatmul.mubr.bf16.gmra.mrb[0].mxu0 %v1663
  %v1922 = vpop.f32.mrb[0].mxu0
  %v1923 = vadd.f32 %v1581, %v1922
  %v1924 = vpop.f32.mrb[0].mxu0
  %v1925 = vpop.f32.mrb[0].mxu0
  %v1926 = vadd.f32 %v1581, %v1925
  %v1927 = vpop.f32.mrb[0].mxu0
  %1928 = vmatprep.mubr.bf16.mxu0 0
  %1929 = vmatmul.mubr.bf16.gmra.mrb[0].mxu0 %v1666
  %v1930 = vpop.f32.mrb[0].mxu0
  %v1931 = vadd.f32 %v1581, %v1930
  %v1932 = vpop.f32.mrb[0].mxu0
  %v1933 = vpop.f32.mrb[0].mxu0
  %v1934 = vadd.f32 %v1581, %v1933
  %v1935 = vpop.f32.mrb[0].mxu0
  %1936 = vmatprep.mubr.bf16.mxu0 0
  %1937 = vmatmul.mubr.bf16.gmra.mrb[0].mxu0 %v1669
  %v1938 = vpop.f32.mrb[0].mxu0
  %v1939 = vadd.f32 %v1581, %v1938
  %v1940 = vpop.f32.mrb[0].mxu0
  %v1941 = vpop.f32.mrb[0].mxu0
  %v1942 = vadd.f32 %v1581, %v1941
  %v1943 = vpop.f32.mrb[0].mxu0
  %1944 = vmatprep.mubr.bf16.mxu0 0
  %1945 = vmatmul.mubr.bf16.gmra.mrb[0].mxu0 %v1672
  %v1946 = vpop.f32.mrb[0].mxu0
  %v1947 = vadd.f32 %v1581, %v1946
  %v1948 = vpop.f32.mrb[0].mxu0
  %v1949 = vpop.f32.mrb[0].mxu0
  %v1950 = vadd.f32 %v1581, %v1949
  %v1951 = vpop.f32.mrb[0].mxu0
  %1952 = vmatprep.mubr.bf16.mxu0 0
  %1953 = vmatmul.mubr.bf16.gmra.mrb[0].mxu0 %v1675
  %v1954 = vpop.f32.mrb[0].mxu0
  %v1955 = vadd.f32 %v1581, %v1954
  %v1956 = vpop.f32.mrb[0].mxu0
  %v1957 = vpop.f32.mrb[0].mxu0
  %v1958 = vadd.f32 %v1581, %v1957
  %v1959 = vpop.f32.mrb[0].mxu0
  %1960 = vmatprep.mubr.bf16.mxu0 0
  %1961 = vmatmul.mubr.bf16.gmra.mrb[0].mxu0 %v1678
  %v1962 = vpop.f32.mrb[0].mxu0
  %v1963 = vadd.f32 %v1581, %v1962
  %v1964 = vpop.f32.mrb[0].mxu0
  %v1965 = vpop.f32.mrb[0].mxu0
  %v1966 = vadd.f32 %v1581, %v1965
  %v1967 = vpop.f32.mrb[0].mxu0
  %1968 = vdwg.mxu0
  %v1969 = vmax.f32 %v1715, 0.0
  %v1970 = vmax.f32 %v1718, 0.0
  %v1971 = vmax.f32 %v1723, 0.0
  %v1972 = vmax.f32 %v1726, 0.0
  %v1973 = vmax.f32 %v1731, 0.0
  %v1974 = vmax.f32 %v1734, 0.0
  %v1975 = vmax.f32 %v1739, 0.0
  %v1976 = vmax.f32 %v1742, 0.0
  %v1977 = vmax.f32 %v1747, 0.0
  %v1978 = vmax.f32 %v1750, 0.0
  %v1979 = vmax.f32 %v1755, 0.0
  %v1980 = vmax.f32 %v1758, 0.0
  %v1981 = vmax.f32 %v1763, 0.0
  %v1982 = vmax.f32 %v1766, 0.0
  %v1983 = vmax.f32 %v1771, 0.0
  %v1984 = vmax.f32 %v1774, 0.0
  %v1985 = vmax.f32 %v1779, 0.0
  %v1986 = vmax.f32 %v1782, 0.0
  %v1987 = vmax.f32 %v1787, 0.0
  %v1988 = vmax.f32 %v1790, 0.0
  %v1989 = vmax.f32 %v1795, 0.0
  %v1990 = vmax.f32 %v1798, 0.0
  %v1991 = vmax.f32 %v1803, 0.0
  %v1992 = vmax.f32 %v1806, 0.0
  %v1993 = vmax.f32 %v1811, 0.0
  %v1994 = vmax.f32 %v1814, 0.0
  %v1995 = vmax.f32 %v1819, 0.0
  %v1996 = vmax.f32 %v1822, 0.0
  %v1997 = vmax.f32 %v1827, 0.0
  %v1998 = vmax.f32 %v1830, 0.0
  %v1999 = vmax.f32 %v1835, 0.0
  %v2000 = vmax.f32 %v1838, 0.0
  %v2001 = vmax.f32 %v1843, 0.0
  %v2002 = vmax.f32 %v1846, 0.0
  %v2003 = vmax.f32 %v1851, 0.0
  %v2004 = vmax.f32 %v1854, 0.0
  %v2005 = vmax.f32 %v1859, 0.0
  %v2006 = vmax.f32 %v1862, 0.0
  %v2007 = vmax.f32 %v1867, 0.0
  %v2008 = vmax.f32 %v1870, 0.0
  %v2009 = vmax.f32 %v1875, 0.0
  %v2010 = vmax.f32 %v1878, 0.0
  %v2011 = vmax.f32 %v1883, 0.0
  %v2012 = vmax.f32 %v1886, 0.0
  %v2013 = vmax.f32 %v1891, 0.0
  %v2014 = vmax.f32 %v1894, 0.0
  %v2015 = vmax.f32 %v1899, 0.0
  %v2016 = vmax.f32 %v1902, 0.0
  %v2017 = vmax.f32 %v1907, 0.0
  %v2018 = vmax.f32 %v1910, 0.0
  %v2019 = vmax.f32 %v1915, 0.0
  %v2020 = vmax.f32 %v1918, 0.0
  %v2021 = vmax.f32 %v1923, 0.0
  %v2022 = vmax.f32 %v1926, 0.0
  %v2023 = vmax.f32 %v1931, 0.0
  %v2024 = vmax.f32 %v1934, 0.0
  %v2025 = vmax.f32 %v1939, 0.0
  %v2026 = vmax.f32 %v1942, 0.0
  %v2027 = vmax.f32 %v1947, 0.0
  %v2028 = vmax.f32 %v1950, 0.0
  %v2029 = vmax.f32 %v1955, 0.0
  %v2030 = vmax.f32 %v1958, 0.0
  %v2031 = vmax.f32 %v1963, 0.0
  %v2032 = vmax.f32 %v1966, 0.0
  %v2033 = vpack.c.bf16 %v1970, %v1969
  %v2034 = vpack.c.bf16 %v1972, %v1971
  %v2035 = vpack.c.bf16 %v1974, %v1973
  %v2036 = vpack.c.bf16 %v1976, %v1975
  %v2037 = vpack.c.bf16 %v1978, %v1977
  %v2038 = vpack.c.bf16 %v1980, %v1979
  %v2039 = vpack.c.bf16 %v1982, %v1981
  %v2040 = vpack.c.bf16 %v1984, %v1983
  %v2041 = vpack.c.bf16 %v1986, %v1985
  %v2042 = vpack.c.bf16 %v1988, %v1987
  %v2043 = vpack.c.bf16 %v1990, %v1989
  %v2044 = vpack.c.bf16 %v1992, %v1991
  %v2045 = vpack.c.bf16 %v1994, %v1993
  %v2046 = vpack.c.bf16 %v1996, %v1995
  %v2047 = vpack.c.bf16 %v1998, %v1997
  %v2048 = vpack.c.bf16 %v2000, %v1999
  %v2049 = vpack.c.bf16 %v2002, %v2001
  %v2050 = vpack.c.bf16 %v2004, %v2003
  %v2051 = vpack.c.bf16 %v2006, %v2005
  %v2052 = vpack.c.bf16 %v2008, %v2007
  %v2053 = vpack.c.bf16 %v2010, %v2009
  %v2054 = vpack.c.bf16 %v2012, %v2011
  %v2055 = vpack.c.bf16 %v2014, %v2013
  %v2056 = vpack.c.bf16 %v2016, %v2015
  %v2057 = vpack.c.bf16 %v2018, %v2017
  %v2058 = vpack.c.bf16 %v2020, %v2019
  %v2059 = vpack.c.bf16 %v2022, %v2021
  %v2060 = vpack.c.bf16 %v2024, %v2023
  %v2061 = vpack.c.bf16 %v2026, %v2025
  %v2062 = vpack.c.bf16 %v2028, %v2027
  %v2063 = vpack.c.bf16 %v2030, %v2029
  %v2064 = vpack.c.bf16 %v2032, %v2031
  %2065 = vrot.lane.b32.xlu0 %v1575, 96
  %v2066 = vpop.permute.xlu0 %2065
  %2067 = vrot.lane.b32.xlu0 %v1576, 96
  %v2068 = vpop.permute.xlu0 %2067
  %2071 = vrot.lane.b32.xlu0 %v1406, 32
  %v2072 = vpop.permute.xlu0 %2071
  %v2075 = vsel %vm1583, %v2033, 0
  %v2078 = vsel %vm1583, %v2034, 0
  %v2081 = vsel %vm1583, %v2035, 0
  %v2084 = vsel %vm1583, %v2036, 0
  %v2087 = vsel %vm1583, %v2037, 0
  %v2090 = vsel %vm1583, %v2038, 0
  %v2093 = vsel %vm1583, %v2039, 0
  %v2096 = vsel %vm1583, %v2040, 0
  %v2099 = vsel %vm1583, %v2041, 0
  %v2102 = vsel %vm1583, %v2042, 0
  %v2105 = vsel %vm1583, %v2043, 0
  %v2108 = vsel %vm1583, %v2044, 0
  %v2111 = vsel %vm1583, %v2045, 0
  %v2114 = vsel %vm1583, %v2046, 0
  %v2117 = vsel %vm1583, %v2047, 0
  %v2120 = vsel %vm1583, %v2048, 0
  %v2123 = vsel %vm1583, %v2049, 0
  %v2126 = vsel %vm1583, %v2050, 0
  %v2129 = vsel %vm1583, %v2051, 0
  %v2132 = vsel %vm1583, %v2052, 0
  %v2135 = vsel %vm1583, %v2053, 0
  %v2138 = vsel %vm1583, %v2054, 0
  %v2141 = vsel %vm1583, %v2055, 0
  %v2144 = vsel %vm1583, %v2056, 0
  %v2147 = vsel %vm1583, %v2057, 0
  %v2150 = vsel %vm1583, %v2058, 0
  %v2153 = vsel %vm1583, %v2059, 0
  %v2156 = vsel %vm1583, %v2060, 0
  %v2159 = vsel %vm1583, %v2061, 0
  %v2162 = vsel %vm1583, %v2062, 0
  %v2165 = vsel %vm1583, %v2063, 0
  %v2168 = vsel %vm1583, %v2064, 0
  %2170 = vmatprep.subr.bf16.mxu0 0
  %2171 = vmatpush1.bf16.msra.mxu0 %v2066
  %2172 = vmatprep.subr.bf16.mxu0 0
  %2173 = vmatpush1.bf16.msra.mxu0 %v2068
  %2174 = vmatprep.subr.bf16.mxu0 0
  %2175 = vmatpush1.bf16.msra.mxu0 0
  %2176 = vmatprep.subr.bf16.mxu0 0
  %2177 = vmatpush1.bf16.msra.mxu0 0
  %2178 = vmatprep.subr.bf16.mxu0 0
  %2179 = vmatpush1.bf16.msra.mxu0 0
  %2180 = vmatprep.subr.bf16.mxu0 0
  %2181 = vmatpush1.bf16.msra.mxu0 0
  %2182 = vmatprep.subr.bf16.mxu0 0
  %2183 = vmatpush1.bf16.msra.mxu0 0
  %2184 = vmatprep.subr.bf16.mxu0 0
  %2185 = vmatpush1.bf16.msra.mxu0 0
  %2186 = vmatprep.subr.bf16.mxu0 0
  %2187 = vmatpush1.bf16.msra.mxu0 0
  %2188 = vmatprep.subr.bf16.mxu0 0
  %2189 = vmatpush1.bf16.msra.mxu0 0
  %2190 = vmatprep.subr.bf16.mxu0 0
  %2191 = vmatpush1.bf16.msra.mxu0 0
  %2192 = vmatprep.subr.bf16.mxu0 0
  %2193 = vmatpush1.bf16.msra.mxu0 0
  %2194 = vmatprep.subr.bf16.mxu0 0
  %2195 = vmatpush1.bf16.msra.mxu0 0
  %2196 = vmatprep.subr.bf16.mxu0 0
  %2197 = vmatpush1.bf16.msra.mxu0 0
  %2198 = vmatprep.subr.bf16.mxu0 0
  %2199 = vmatpush1.bf16.msra.mxu0 0
  %2200 = vmatprep.subr.bf16.mxu0 0
  %2201 = vmatpush1.bf16.msra.mxu0 0
  %2202 = vmatprep.mubr.bf16.mxu0 0
  %2203 = vmatmul.mubr.bf16.gmra.mrb[0].mxu0 %v2075
  %v2204 = vpop.f32.mrb[0].mxu0
  %v2205 = vadd.f32 %v2072, %v2204
  %v2206 = vpop.f32.mrb[0].mxu0
  %v2207 = vpop.f32.mrb[0].mxu0
  %v2208 = vadd.f32 %v2072, %v2207
  %v2209 = vpop.f32.mrb[0].mxu0
  %2210 = vmatprep.mubr.bf16.mxu0 0
  %2211 = vmatmul.mubr.bf16.gmra.mrb[0].mxu0 %v2078
  %v2212 = vpop.f32.mrb[0].mxu0
  %v2213 = vadd.f32 %v2072, %v2212
  %v2214 = vpop.f32.mrb[0].mxu0
  %v2215 = vpop.f32.mrb[0].mxu0
  %v2216 = vadd.f32 %v2072, %v2215
  %v2217 = vpop.f32.mrb[0].mxu0
  %2218 = vmatprep.mubr.bf16.mxu0 0
  %2219 = vmatmul.mubr.bf16.gmra.mrb[0].mxu0 %v2081
  %v2220 = vpop.f32.mrb[0].mxu0
  %v2221 = vadd.f32 %v2072, %v2220
  %v2222 = vpop.f32.mrb[0].mxu0
  %v2223 = vpop.f32.mrb[0].mxu0
  %v2224 = vadd.f32 %v2072, %v2223
  %v2225 = vpop.f32.mrb[0].mxu0
  %2226 = vmatprep.mubr.bf16.mxu0 0
  %2227 = vmatmul.mubr.bf16.gmra.mrb[0].mxu0 %v2084
  %v2228 = vpop.f32.mrb[0].mxu0
  %v2229 = vadd.f32 %v2072, %v2228
  %v2230 = vpop.f32.mrb[0].mxu0
  %v2231 = vpop.f32.mrb[0].mxu0
  %v2232 = vadd.f32 %v2072, %v2231
  %v2233 = vpop.f32.mrb[0].mxu0
  %2234 = vmatprep.mubr.bf16.mxu0 0
  %2235 = vmatmul.mubr.bf16.gmra.mrb[0].mxu0 %v2087
  %v2236 = vpop.f32.mrb[0].mxu0
  %v2237 = vadd.f32 %v2072, %v2236
  %v2238 = vpop.f32.mrb[0].mxu0
  %v2239 = vpop.f32.mrb[0].mxu0
  %v2240 = vadd.f32 %v2072, %v2239
  %v2241 = vpop.f32.mrb[0].mxu0
  %2242 = vmatprep.mubr.bf16.mxu0 0
  %2243 = vmatmul.mubr.bf16.gmra.mrb[0].mxu0 %v2090
  %v2244 = vpop.f32.mrb[0].mxu0
  %v2245 = vadd.f32 %v2072, %v2244
  %v2246 = vpop.f32.mrb[0].mxu0
  %v2247 = vpop.f32.mrb[0].mxu0
  %v2248 = vadd.f32 %v2072, %v2247
  %v2249 = vpop.f32.mrb[0].mxu0
  %2250 = vmatprep.mubr.bf16.mxu0 0
  %2251 = vmatmul.mubr.bf16.gmra.mrb[0].mxu0 %v2093
  %v2252 = vpop.f32.mrb[0].mxu0
  %v2253 = vadd.f32 %v2072, %v2252
  %v2254 = vpop.f32.mrb[0].mxu0
  %v2255 = vpop.f32.mrb[0].mxu0
  %v2256 = vadd.f32 %v2072, %v2255
  %v2257 = vpop.f32.mrb[0].mxu0
  %2258 = vmatprep.mubr.bf16.mxu0 0
  %2259 = vmatmul.mubr.bf16.gmra.mrb[0].mxu0 %v2096
  %v2260 = vpop.f32.mrb[0].mxu0
  %v2261 = vadd.f32 %v2072, %v2260
  %v2262 = vpop.f32.mrb[0].mxu0
  %v2263 = vpop.f32.mrb[0].mxu0
  %v2264 = vadd.f32 %v2072, %v2263
  %v2265 = vpop.f32.mrb[0].mxu0
  %2266 = vmatprep.mubr.bf16.mxu0 0
  %2267 = vmatmul.mubr.bf16.gmra.mrb[0].mxu0 %v2099
  %v2268 = vpop.f32.mrb[0].mxu0
  %v2269 = vadd.f32 %v2072, %v2268
  %v2270 = vpop.f32.mrb[0].mxu0
  %v2271 = vpop.f32.mrb[0].mxu0
  %v2272 = vadd.f32 %v2072, %v2271
  %v2273 = vpop.f32.mrb[0].mxu0
  %2274 = vmatprep.mubr.bf16.mxu0 0
  %2275 = vmatmul.mubr.bf16.gmra.mrb[0].mxu0 %v2102
  %v2276 = vpop.f32.mrb[0].mxu0
  %v2277 = vadd.f32 %v2072, %v2276
  %v2278 = vpop.f32.mrb[0].mxu0
  %v2279 = vpop.f32.mrb[0].mxu0
  %v2280 = vadd.f32 %v2072, %v2279
  %v2281 = vpop.f32.mrb[0].mxu0
  %2282 = vmatprep.mubr.bf16.mxu0 0
  %2283 = vmatmul.mubr.bf16.gmra.mrb[0].mxu0 %v2105
  %v2284 = vpop.f32.mrb[0].mxu0
  %v2285 = vadd.f32 %v2072, %v2284
  %v2286 = vpop.f32.mrb[0].mxu0
  %v2287 = vpop.f32.mrb[0].mxu0
  %v2288 = vadd.f32 %v2072, %v2287
  %v2289 = vpop.f32.mrb[0].mxu0
  %2290 = vmatprep.mubr.bf16.mxu0 0
  %2291 = vmatmul.mubr.bf16.gmra.mrb[0].mxu0 %v2108
  %v2292 = vpop.f32.mrb[0].mxu0
  %v2293 = vadd.f32 %v2072, %v2292
  %v2294 = vpop.f32.mrb[0].mxu0
  %v2295 = vpop.f32.mrb[0].mxu0
  %v2296 = vadd.f32 %v2072, %v2295
  %v2297 = vpop.f32.mrb[0].mxu0
  %2298 = vmatprep.mubr.bf16.mxu0 0
  %2299 = vmatmul.mubr.bf16.gmra.mrb[0].mxu0 %v2111
  %v2300 = vpop.f32.mrb[0].mxu0
  %v2301 = vadd.f32 %v2072, %v2300
  %v2302 = vpop.f32.mrb[0].mxu0
  %v2303 = vpop.f32.mrb[0].mxu0
  %v2304 = vadd.f32 %v2072, %v2303
  %v2305 = vpop.f32.mrb[0].mxu0
  %2306 = vmatprep.mubr.bf16.mxu0 0
  %2307 = vmatmul.mubr.bf16.gmra.mrb[0].mxu0 %v2114
  %v2308 = vpop.f32.mrb[0].mxu0
  %v2309 = vadd.f32 %v2072, %v2308
  %v2310 = vpop.f32.mrb[0].mxu0
  %v2311 = vpop.f32.mrb[0].mxu0
  %v2312 = vadd.f32 %v2072, %v2311
  %v2313 = vpop.f32.mrb[0].mxu0
  %2314 = vmatprep.mubr.bf16.mxu0 0
  %2315 = vmatmul.mubr.bf16.gmra.mrb[0].mxu0 %v2117
  %v2316 = vpop.f32.mrb[0].mxu0
  %v2317 = vadd.f32 %v2072, %v2316
  %v2318 = vpop.f32.mrb[0].mxu0
  %v2319 = vpop.f32.mrb[0].mxu0
  %v2320 = vadd.f32 %v2072, %v2319
  %v2321 = vpop.f32.mrb[0].mxu0
  %2322 = vmatprep.mubr.bf16.mxu0 0
  %2323 = vmatmul.mubr.bf16.gmra.mrb[0].mxu0 %v2120
  %v2324 = vpop.f32.mrb[0].mxu0
  %v2325 = vadd.f32 %v2072, %v2324
  %v2326 = vpop.f32.mrb[0].mxu0
  %v2327 = vpop.f32.mrb[0].mxu0
  %v2328 = vadd.f32 %v2072, %v2327
  %v2329 = vpop.f32.mrb[0].mxu0
  %2330 = vmatprep.mubr.bf16.mxu0 0
  %2331 = vmatmul.mubr.bf16.gmra.mrb[0].mxu0 %v2123
  %v2332 = vpop.f32.mrb[0].mxu0
  %v2333 = vadd.f32 %v2072, %v2332
  %v2334 = vpop.f32.mrb[0].mxu0
  %v2335 = vpop.f32.mrb[0].mxu0
  %v2336 = vadd.f32 %v2072, %v2335
  %v2337 = vpop.f32.mrb[0].mxu0
  %2338 = vmatprep.mubr.bf16.mxu0 0
  %2339 = vmatmul.mubr.bf16.gmra.mrb[0].mxu0 %v2126
  %v2340 = vpop.f32.mrb[0].mxu0
  %v2341 = vadd.f32 %v2072, %v2340
  %v2342 = vpop.f32.mrb[0].mxu0
  %v2343 = vpop.f32.mrb[0].mxu0
  %v2344 = vadd.f32 %v2072, %v2343
  %v2345 = vpop.f32.mrb[0].mxu0
  %2346 = vmatprep.mubr.bf16.mxu0 0
  %2347 = vmatmul.mubr.bf16.gmra.mrb[0].mxu0 %v2129
  %v2348 = vpop.f32.mrb[0].mxu0
  %v2349 = vadd.f32 %v2072, %v2348
  %v2350 = vpop.f32.mrb[0].mxu0
  %v2351 = vpop.f32.mrb[0].mxu0
  %v2352 = vadd.f32 %v2072, %v2351
  %v2353 = vpop.f32.mrb[0].mxu0
  %2354 = vmatprep.mubr.bf16.mxu0 0
  %2355 = vmatmul.mubr.bf16.gmra.mrb[0].mxu0 %v2132
  %v2356 = vpop.f32.mrb[0].mxu0
  %v2357 = vadd.f32 %v2072, %v2356
  %v2358 = vpop.f32.mrb[0].mxu0
  %v2359 = vpop.f32.mrb[0].mxu0
  %v2360 = vadd.f32 %v2072, %v2359
  %v2361 = vpop.f32.mrb[0].mxu0
  %2362 = vmatprep.mubr.bf16.mxu0 0
  %2363 = vmatmul.mubr.bf16.gmra.mrb[0].mxu0 %v2135
  %v2364 = vpop.f32.mrb[0].mxu0
  %v2365 = vadd.f32 %v2072, %v2364
  %v2366 = vpop.f32.mrb[0].mxu0
  %v2367 = vpop.f32.mrb[0].mxu0
  %v2368 = vadd.f32 %v2072, %v2367
  %v2369 = vpop.f32.mrb[0].mxu0
  %2370 = vmatprep.mubr.bf16.mxu0 0
  %2371 = vmatmul.mubr.bf16.gmra.mrb[0].mxu0 %v2138
  %v2372 = vpop.f32.mrb[0].mxu0
  %v2373 = vadd.f32 %v2072, %v2372
  %v2374 = vpop.f32.mrb[0].mxu0
  %v2375 = vpop.f32.mrb[0].mxu0
  %v2376 = vadd.f32 %v2072, %v2375
  %v2377 = vpop.f32.mrb[0].mxu0
  %2378 = vmatprep.mubr.bf16.mxu0 0
  %2379 = vmatmul.mubr.bf16.gmra.mrb[0].mxu0 %v2141
  %v2380 = vpop.f32.mrb[0].mxu0
  %v2381 = vadd.f32 %v2072, %v2380
  %v2382 = vpop.f32.mrb[0].mxu0
  %v2383 = vpop.f32.mrb[0].mxu0
  %v2384 = vadd.f32 %v2072, %v2383
  %v2385 = vpop.f32.mrb[0].mxu0
  %2386 = vmatprep.mubr.bf16.mxu0 0
  %2387 = vmatmul.mubr.bf16.gmra.mrb[0].mxu0 %v2144
  %v2388 = vpop.f32.mrb[0].mxu0
  %v2389 = vadd.f32 %v2072, %v2388
  %v2390 = vpop.f32.mrb[0].mxu0
  %v2391 = vpop.f32.mrb[0].mxu0
  %v2392 = vadd.f32 %v2072, %v2391
  %v2393 = vpop.f32.mrb[0].mxu0
  %2394 = vmatprep.mubr.bf16.mxu0 0
  %2395 = vmatmul.mubr.bf16.gmra.mrb[0].mxu0 %v2147
  %v2396 = vpop.f32.mrb[0].mxu0
  %v2397 = vadd.f32 %v2072, %v2396
  %v2398 = vpop.f32.mrb[0].mxu0
  %v2399 = vpop.f32.mrb[0].mxu0
  %v2400 = vadd.f32 %v2072, %v2399
  %v2401 = vpop.f32.mrb[0].mxu0
  %2402 = vmatprep.mubr.bf16.mxu0 0
  %2403 = vmatmul.mubr.bf16.gmra.mrb[0].mxu0 %v2150
  %v2404 = vpop.f32.mrb[0].mxu0
  %v2405 = vadd.f32 %v2072, %v2404
  %v2406 = vpop.f32.mrb[0].mxu0
  %v2407 = vpop.f32.mrb[0].mxu0
  %v2408 = vadd.f32 %v2072, %v2407
  %v2409 = vpop.f32.mrb[0].mxu0
  %2410 = vmatprep.mubr.bf16.mxu0 0
  %2411 = vmatmul.mubr.bf16.gmra.mrb[0].mxu0 %v2153
  %v2412 = vpop.f32.mrb[0].mxu0
  %v2413 = vadd.f32 %v2072, %v2412
  %v2414 = vpop.f32.mrb[0].mxu0
  %v2415 = vpop.f32.mrb[0].mxu0
  %v2416 = vadd.f32 %v2072, %v2415
  %v2417 = vpop.f32.mrb[0].mxu0
  %2418 = vmatprep.mubr.bf16.mxu0 0
  %2419 = vmatmul.mubr.bf16.gmra.mrb[0].mxu0 %v2156
  %v2420 = vpop.f32.mrb[0].mxu0
  %v2421 = vadd.f32 %v2072, %v2420
  %v2422 = vpop.f32.mrb[0].mxu0
  %v2423 = vpop.f32.mrb[0].mxu0
  %v2424 = vadd.f32 %v2072, %v2423
  %v2425 = vpop.f32.mrb[0].mxu0
  %2426 = vmatprep.mubr.bf16.mxu0 0
  %2427 = vmatmul.mubr.bf16.gmra.mrb[0].mxu0 %v2159
  %v2428 = vpop.f32.mrb[0].mxu0
  %v2429 = vadd.f32 %v2072, %v2428
  %v2430 = vpop.f32.mrb[0].mxu0
  %v2431 = vpop.f32.mrb[0].mxu0
  %v2432 = vadd.f32 %v2072, %v2431
  %v2433 = vpop.f32.mrb[0].mxu0
  %2434 = vmatprep.mubr.bf16.mxu0 0
  %2435 = vmatmul.mubr.bf16.gmra.mrb[0].mxu0 %v2162
  %v2436 = vpop.f32.mrb[0].mxu0
  %v2437 = vadd.f32 %v2072, %v2436
  %v2438 = vpop.f32.mrb[0].mxu0
  %v2439 = vpop.f32.mrb[0].mxu0
  %v2440 = vadd.f32 %v2072, %v2439
  %v2441 = vpop.f32.mrb[0].mxu0
  %2442 = vmatprep.mubr.bf16.mxu0 0
  %2443 = vmatmul.mubr.bf16.gmra.mrb[0].mxu0 %v2165
  %v2444 = vpop.f32.mrb[0].mxu0
  %v2445 = vadd.f32 %v2072, %v2444
  %v2446 = vpop.f32.mrb[0].mxu0
  %v2447 = vpop.f32.mrb[0].mxu0
  %v2448 = vadd.f32 %v2072, %v2447
  %v2449 = vpop.f32.mrb[0].mxu0
  %2450 = vmatprep.mubr.bf16.mxu0 0
  %2451 = vmatmul.mubr.bf16.gmra.mrb[0].mxu0 %v2168
  %v2452 = vpop.f32.mrb[0].mxu0
  %v2453 = vadd.f32 %v2072, %v2452
  %v2454 = vpop.f32.mrb[0].mxu0
  %v2455 = vpop.f32.mrb[0].mxu0
  %v2456 = vadd.f32 %v2072, %v2455
  %v2457 = vpop.f32.mrb[0].mxu0
  %2458 = vdwg.mxu0
  %2523 = vrot.lane.b32.xlu0 %v1407, 96
  %v2524 = vpop.permute.xlu0 %2523
  %2525 = vrot.lane.b32.xlu0 %v1408, 96
  %v2526 = vpop.permute.xlu0 %2525
  %2527 = vrot.lane.b32.xlu0 %v1409, 96
  %v2528 = vpop.permute.xlu0 %2527
  %2529 = vrot.lane.b32.xlu0 %v1410, 96
  %v2530 = vpop.permute.xlu0 %2529
  %2531 = vrot.lane.b32.xlu0 %v1411, 96
  %v2532 = vpop.permute.xlu0 %2531
  %2533 = vrot.lane.b32.xlu0 %v1412, 96
  %v2534 = vpop.permute.xlu0 %2533
  %2535 = vrot.lane.b32.xlu0 %v1413, 96
  %v2536 = vpop.permute.xlu0 %2535
  %2537 = vrot.lane.b32.xlu0 %v1414, 96
  %v2538 = vpop.permute.xlu0 %2537
  %2539 = vrot.lane.b32.xlu0 %v1415, 96
  %v2540 = vpop.permute.xlu0 %2539
  %2541 = vrot.lane.b32.xlu0 %v1416, 96
  %v2542 = vpop.permute.xlu0 %2541
  %2543 = vrot.lane.b32.xlu0 %v1417, 96
  %v2544 = vpop.permute.xlu0 %2543
  %2545 = vrot.lane.b32.xlu0 %v1418, 96
  %v2546 = vpop.permute.xlu0 %2545
  %2547 = vrot.lane.b32.xlu0 %v1419, 96
  %v2548 = vpop.permute.xlu0 %2547
  %2549 = vrot.lane.b32.xlu0 %v1420, 96
  %v2550 = vpop.permute.xlu0 %2549
  %2551 = vrot.lane.b32.xlu0 %v1421, 96
  %v2552 = vpop.permute.xlu0 %2551
  %2553 = vrot.lane.b32.xlu0 %v1422, 96
  %v2554 = vpop.permute.xlu0 %2553
  %2555 = vrot.lane.b32.xlu0 %v1423, 96
  %v2556 = vpop.permute.xlu0 %2555
  %2557 = vrot.lane.b32.xlu0 %v1424, 96
  %v2558 = vpop.permute.xlu0 %2557
  %2559 = vrot.lane.b32.xlu0 %v1425, 96
  %v2560 = vpop.permute.xlu0 %2559
  %2561 = vrot.lane.b32.xlu0 %v1426, 96
  %v2562 = vpop.permute.xlu0 %2561
  %2563 = vrot.lane.b32.xlu0 %v1427, 96
  %v2564 = vpop.permute.xlu0 %2563
  %2565 = vrot.lane.b32.xlu0 %v1428, 96
  %v2566 = vpop.permute.xlu0 %2565
  %2567 = vrot.lane.b32.xlu0 %v1429, 96
  %v2568 = vpop.permute.xlu0 %2567
  %2569 = vrot.lane.b32.xlu0 %v1430, 96
  %v2570 = vpop.permute.xlu0 %2569
  %2571 = vrot.lane.b32.xlu0 %v1431, 96
  %v2572 = vpop.permute.xlu0 %2571
  %2573 = vrot.lane.b32.xlu0 %v1432, 96
  %v2574 = vpop.permute.xlu0 %2573
  %2575 = vrot.lane.b32.xlu0 %v1433, 96
  %v2576 = vpop.permute.xlu0 %2575
  %2577 = vrot.lane.b32.xlu0 %v1434, 96
  %v2578 = vpop.permute.xlu0 %2577
  %2579 = vrot.lane.b32.xlu0 %v1435, 96
  %v2580 = vpop.permute.xlu0 %2579
  %2581 = vrot.lane.b32.xlu0 %v1436, 96
  %v2582 = vpop.permute.xlu0 %2581
  %2583 = vrot.lane.b32.xlu0 %v1437, 96
  %v2584 = vpop.permute.xlu0 %2583
  %2585 = vrot.lane.b32.xlu0 %v1438, 96
  %v2586 = vpop.permute.xlu0 %2585
  %2587 = vrot.lane.b32.xlu0 %v1439, 96
  %v2588 = vpop.permute.xlu0 %2587
  %2589 = vrot.lane.b32.xlu0 %v1440, 96
  %v2590 = vpop.permute.xlu0 %2589
  %2591 = vrot.lane.b32.xlu0 %v1441, 96
  %v2592 = vpop.permute.xlu0 %2591
  %2593 = vrot.lane.b32.xlu0 %v1442, 96
  %v2594 = vpop.permute.xlu0 %2593
  %2595 = vrot.lane.b32.xlu0 %v1443, 96
  %v2596 = vpop.permute.xlu0 %2595
  %2597 = vrot.lane.b32.xlu0 %v1444, 96
  %v2598 = vpop.permute.xlu0 %2597
  %2599 = vrot.lane.b32.xlu0 %v1445, 96
  %v2600 = vpop.permute.xlu0 %2599
  %2601 = vrot.lane.b32.xlu0 %v1446, 96
  %v2602 = vpop.permute.xlu0 %2601
  %2603 = vrot.lane.b32.xlu0 %v1447, 96
  %v2604 = vpop.permute.xlu0 %2603
  %2605 = vrot.lane.b32.xlu0 %v1448, 96
  %v2606 = vpop.permute.xlu0 %2605
  %2607 = vrot.lane.b32.xlu0 %v1449, 96
  %v2608 = vpop.permute.xlu0 %2607
  %2609 = vrot.lane.b32.xlu0 %v1450, 96
  %v2610 = vpop.permute.xlu0 %2609
  %2611 = vrot.lane.b32.xlu0 %v1451, 96
  %v2612 = vpop.permute.xlu0 %2611
  %2613 = vrot.lane.b32.xlu0 %v1452, 96
  %v2614 = vpop.permute.xlu0 %2613
  %2615 = vrot.lane.b32.xlu0 %v1453, 96
  %v2616 = vpop.permute.xlu0 %2615
  %2617 = vrot.lane.b32.xlu0 %v1454, 96
  %v2618 = vpop.permute.xlu0 %2617
  %2619 = vrot.lane.b32.xlu0 %v1455, 96
  %v2620 = vpop.permute.xlu0 %2619
  %2621 = vrot.lane.b32.xlu0 %v1456, 96
  %v2622 = vpop.permute.xlu0 %2621
  %2623 = vrot.lane.b32.xlu0 %v1457, 96
  %v2624 = vpop.permute.xlu0 %2623
  %2625 = vrot.lane.b32.xlu0 %v1458, 96
  %v2626 = vpop.permute.xlu0 %2625
  %2627 = vrot.lane.b32.xlu0 %v1459, 96
  %v2628 = vpop.permute.xlu0 %2627
  %2629 = vrot.lane.b32.xlu0 %v1460, 96
  %v2630 = vpop.permute.xlu0 %2629
  %2631 = vrot.lane.b32.xlu0 %v1461, 96
  %v2632 = vpop.permute.xlu0 %2631
  %2633 = vrot.lane.b32.xlu0 %v1462, 96
  %v2634 = vpop.permute.xlu0 %2633
  %2635 = vrot.lane.b32.xlu0 %v1463, 96
  %v2636 = vpop.permute.xlu0 %2635
  %2637 = vrot.lane.b32.xlu0 %v1464, 96
  %v2638 = vpop.permute.xlu0 %2637
  %2639 = vrot.lane.b32.xlu0 %v1465, 96
  %v2640 = vpop.permute.xlu0 %2639
  %2641 = vrot.lane.b32.xlu0 %v1466, 96
  %v2642 = vpop.permute.xlu0 %2641
  %2643 = vrot.lane.b32.xlu0 %v1467, 96
  %v2644 = vpop.permute.xlu0 %2643
  %2645 = vrot.lane.b32.xlu0 %v1468, 96
  %v2646 = vpop.permute.xlu0 %2645
  %2647 = vrot.lane.b32.xlu0 %v1469, 96
  %v2648 = vpop.permute.xlu0 %2647
  %2649 = vrot.lane.b32.xlu0 %v1470, 96
  %v2650 = vpop.permute.xlu0 %2649
  %v2715 = vadd.f32 %v2205, %v2524
  %v2716 = vadd.f32 %v2208, %v2526
  %v2717 = vadd.f32 %v2213, %v2528
  %v2718 = vadd.f32 %v2216, %v2530
  %v2719 = vadd.f32 %v2221, %v2532
  %v2720 = vadd.f32 %v2224, %v2534
  %v2721 = vadd.f32 %v2229, %v2536
  %v2722 = vadd.f32 %v2232, %v2538
  %v2723 = vadd.f32 %v2237, %v2540
  %v2724 = vadd.f32 %v2240, %v2542
  %v2725 = vadd.f32 %v2245, %v2544
  %v2726 = vadd.f32 %v2248, %v2546
  %v2727 = vadd.f32 %v2253, %v2548
  %v2728 = vadd.f32 %v2256, %v2550
  %v2729 = vadd.f32 %v2261, %v2552
  %v2730 = vadd.f32 %v2264, %v2554
  %v2731 = vadd.f32 %v2269, %v2556
  %v2732 = vadd.f32 %v2272, %v2558
  %v2733 = vadd.f32 %v2277, %v2560
  %v2734 = vadd.f32 %v2280, %v2562
  %v2735 = vadd.f32 %v2285, %v2564
  %v2736 = vadd.f32 %v2288, %v2566
  %v2737 = vadd.f32 %v2293, %v2568
  %v2738 = vadd.f32 %v2296, %v2570
  %v2739 = vadd.f32 %v2301, %v2572
  %v2740 = vadd.f32 %v2304, %v2574
  %v2741 = vadd.f32 %v2309, %v2576
  %v2742 = vadd.f32 %v2312, %v2578
  %v2743 = vadd.f32 %v2317, %v2580
  %v2744 = vadd.f32 %v2320, %v2582
  %v2745 = vadd.f32 %v2325, %v2584
  %v2746 = vadd.f32 %v2328, %v2586
  %v2747 = vadd.f32 %v2333, %v2588
  %v2748 = vadd.f32 %v2336, %v2590
  %v2749 = vadd.f32 %v2341, %v2592
  %v2750 = vadd.f32 %v2344, %v2594
  %v2751 = vadd.f32 %v2349, %v2596
  %v2752 = vadd.f32 %v2352, %v2598
  %v2753 = vadd.f32 %v2357, %v2600
  %v2754 = vadd.f32 %v2360, %v2602
  %v2755 = vadd.f32 %v2365, %v2604
  %v2756 = vadd.f32 %v2368, %v2606
  %v2757 = vadd.f32 %v2373, %v2608
  %v2758 = vadd.f32 %v2376, %v2610
  %v2759 = vadd.f32 %v2381, %v2612
  %v2760 = vadd.f32 %v2384, %v2614
  %v2761 = vadd.f32 %v2389, %v2616
  %v2762 = vadd.f32 %v2392, %v2618
  %v2763 = vadd.f32 %v2397, %v2620
  %v2764 = vadd.f32 %v2400, %v2622
  %v2765 = vadd.f32 %v2405, %v2624
  %v2766 = vadd.f32 %v2408, %v2626
  %v2767 = vadd.f32 %v2413, %v2628
  %v2768 = vadd.f32 %v2416, %v2630
  %v2769 = vadd.f32 %v2421, %v2632
  %v2770 = vadd.f32 %v2424, %v2634
  %v2771 = vadd.f32 %v2429, %v2636
  %v2772 = vadd.f32 %v2432, %v2638
  %v2773 = vadd.f32 %v2437, %v2640
  %v2774 = vadd.f32 %v2440, %v2642
  %v2775 = vadd.f32 %v2445, %v2644
  %v2776 = vadd.f32 %v2448, %v2646
  %v2777 = vadd.f32 %v2453, %v2648
  %v2778 = vadd.f32 %v2456, %v2650
  %v2779 = vpack.c.bf16 %v2716, %v2715
  %v2780 = vpack.c.bf16 %v2718, %v2717
  %v2781 = vpack.c.bf16 %v2720, %v2719
  %v2782 = vpack.c.bf16 %v2722, %v2721
  %v2783 = vpack.c.bf16 %v2724, %v2723
  %v2784 = vpack.c.bf16 %v2726, %v2725
  %v2785 = vpack.c.bf16 %v2728, %v2727
  %v2786 = vpack.c.bf16 %v2730, %v2729
  %v2787 = vpack.c.bf16 %v2732, %v2731
  %v2788 = vpack.c.bf16 %v2734, %v2733
  %v2789 = vpack.c.bf16 %v2736, %v2735
  %v2790 = vpack.c.bf16 %v2738, %v2737
  %v2791 = vpack.c.bf16 %v2740, %v2739
  %v2792 = vpack.c.bf16 %v2742, %v2741
  %v2793 = vpack.c.bf16 %v2744, %v2743
  %v2794 = vpack.c.bf16 %v2746, %v2745
  %v2795 = vpack.c.bf16 %v2748, %v2747
  %v2796 = vpack.c.bf16 %v2750, %v2749
  %v2797 = vpack.c.bf16 %v2752, %v2751
  %v2798 = vpack.c.bf16 %v2754, %v2753
  %v2799 = vpack.c.bf16 %v2756, %v2755
  %v2800 = vpack.c.bf16 %v2758, %v2757
  %v2801 = vpack.c.bf16 %v2760, %v2759
  %v2802 = vpack.c.bf16 %v2762, %v2761
  %v2803 = vpack.c.bf16 %v2764, %v2763
  %v2804 = vpack.c.bf16 %v2766, %v2765
  %v2805 = vpack.c.bf16 %v2768, %v2767
  %v2806 = vpack.c.bf16 %v2770, %v2769
  %v2807 = vpack.c.bf16 %v2772, %v2771
  %v2808 = vpack.c.bf16 %v2774, %v2773
  %v2809 = vpack.c.bf16 %v2776, %v2775
  %v2810 = vpack.c.bf16 %v2778, %v2777
  %v2827 = vunpack.c.l.b16 %v185
  %v2828 = vunpack.c.h.b16 %v185
  %v2829 = vunpack.c.l.b16 %v186
  %v2830 = vunpack.c.h.b16 %v186
  %v2831 = vunpack.c.l.b16 %v187
  %v2832 = vunpack.c.h.b16 %v187
  %v2833 = vunpack.c.l.b16 %v188
  %v2834 = vunpack.c.h.b16 %v188
  %v2835 = vunpack.c.l.b16 %v189
  %v2836 = vunpack.c.h.b16 %v189
  %v2837 = vunpack.c.l.b16 %v190
  %v2838 = vunpack.c.h.b16 %v190
  %v2839 = vunpack.c.l.b16 %v191
  %v2840 = vunpack.c.h.b16 %v191
  %v2841 = vunpack.c.l.b16 %v192
  %v2842 = vunpack.c.h.b16 %v192
  %v2843 = vunpack.c.l.b16 %v193
  %v2844 = vunpack.c.h.b16 %v193
  %v2845 = vunpack.c.l.b16 %v194
  %v2846 = vunpack.c.h.b16 %v194
  %v2847 = vunpack.c.l.b16 %v195
  %v2848 = vunpack.c.h.b16 %v195
  %v2849 = vunpack.c.l.b16 %v196
  %v2850 = vunpack.c.h.b16 %v196
  %v2851 = vunpack.c.l.b16 %v197
  %v2852 = vunpack.c.h.b16 %v197
  %v2853 = vunpack.c.l.b16 %v198
  %v2854 = vunpack.c.h.b16 %v198
  %v2855 = vunpack.c.l.b16 %v199
  %v2856 = vunpack.c.h.b16 %v199
  %v2857 = vunpack.c.l.b16 %v200
  %v2858 = vunpack.c.h.b16 %v200
  %v2859 = vpack.c.b16 %v2831, %v2827
  %v2860 = vpack.c.b16 %v2832, %v2828
  %v2861 = vpack.c.b16 %v2833, %v2829
  %v2862 = vpack.c.b16 %v2834, %v2830
  %v2863 = vpack.c.b16 %v2839, %v2835
  %v2864 = vpack.c.b16 %v2840, %v2836
  %v2865 = vpack.c.b16 %v2841, %v2837
  %v2866 = vpack.c.b16 %v2842, %v2838
  %v2867 = vpack.c.b16 %v2847, %v2843
  %v2868 = vpack.c.b16 %v2848, %v2844
  %v2869 = vpack.c.b16 %v2849, %v2845
  %v2870 = vpack.c.b16 %v2850, %v2846
  %v2871 = vpack.c.b16 %v2855, %v2851
  %v2872 = vpack.c.b16 %v2856, %v2852
  %v2873 = vpack.c.b16 %v2857, %v2853
  %v2874 = vpack.c.b16 %v2858, %v2854
  %2891 = vmatprep.subr.bf16.mxu0 0
  %2892 = vmatpush1.bf16.msra.mxu0 %v2779
  %2893 = vmatprep.subr.bf16.mxu0 0
  %2894 = vmatpush1.bf16.msra.mxu0 %v2780
  %2895 = vmatprep.subr.bf16.mxu0 0
  %2896 = vmatpush1.bf16.msra.mxu0 %v2781
  %2897 = vmatprep.subr.bf16.mxu0 0
  %2898 = vmatpush1.bf16.msra.mxu0 %v2782
  %2899 = vmatprep.subr.bf16.mxu0 0
  %2900 = vmatpush1.bf16.msra.mxu0 %v2783
  %2901 = vmatprep.subr.bf16.mxu0 0
  %2902 = vmatpush1.bf16.msra.mxu0 %v2784
  %2903 = vmatprep.subr.bf16.mxu0 0
  %2904 = vmatpush1.bf16.msra.mxu0 %v2785
  %2905 = vmatprep.subr.bf16.mxu0 0
  %2906 = vmatpush1.bf16.msra.mxu0 %v2786
  %2907 = vmatprep.subr.bf16.mxu0 0
  %2908 = vmatpush1.bf16.msra.mxu0 %v2787
  %2909 = vmatprep.subr.bf16.mxu0 0
  %2910 = vmatpush1.bf16.msra.mxu0 %v2788
  %2911 = vmatprep.subr.bf16.mxu0 0
  %2912 = vmatpush1.bf16.msra.mxu0 %v2789
  %2913 = vmatprep.subr.bf16.mxu0 0
  %2914 = vmatpush1.bf16.msra.mxu0 %v2790
  %2915 = vmatprep.subr.bf16.mxu0 0
  %2916 = vmatpush1.bf16.msra.mxu0 %v2791
  %2917 = vmatprep.subr.bf16.mxu0 0
  %2918 = vmatpush1.bf16.msra.mxu0 %v2792
  %2919 = vmatprep.subr.bf16.mxu0 0
  %2920 = vmatpush1.bf16.msra.mxu0 %v2793
  %2921 = vmatprep.subr.bf16.mxu0 0
  %2922 = vmatpush1.bf16.msra.mxu0 %v2794
  %2923 = vmatprep.mubr.bf16.mxu0 %v2860
  %2924 = vmatmul.mubr.bf16.gmra.mrb[0].mxu0 %v2859
  %v2925 = vpop.f32.mrb[0].mxu0
  %v2926 = vadd.f32 0.0, %v2925
  %v2927 = vpop.f32.mrb[0].mxu0
  %v2928 = vpop.f32.mrb[0].mxu0
  %v2929 = vadd.f32 0.0, %v2928
  %v2930 = vpop.f32.mrb[0].mxu0
  %2931 = vmatprep.mubr.bf16.mxu0 %v2864
  %2932 = vmatmul.mubr.bf16.gmra.mrb[0].mxu0 %v2863
  %v2933 = vpop.f32.mrb[0].mxu0
  %v2934 = vadd.f32 0.0, %v2933
  %v2935 = vpop.f32.mrb[0].mxu0
  %v2936 = vpop.f32.mrb[0].mxu0
  %v2937 = vadd.f32 0.0, %v2936
  %v2938 = vpop.f32.mrb[0].mxu0
  %2939 = vmatprep.mubr.bf16.mxu0 %v2868
  %2940 = vmatmul.mubr.bf16.gmra.mrb[0].mxu0 %v2867
  %v2941 = vpop.f32.mrb[0].mxu0
  %v2942 = vadd.f32 0.0, %v2941
  %v2943 = vpop.f32.mrb[0].mxu0
  %v2944 = vpop.f32.mrb[0].mxu0
  %v2945 = vadd.f32 0.0, %v2944
  %v2946 = vpop.f32.mrb[0].mxu0
  %2947 = vmatprep.mubr.bf16.mxu0 %v2872
  %2948 = vmatmul.mubr.bf16.gmra.mrb[0].mxu0 %v2871
  %v2949 = vpop.f32.mrb[0].mxu0
  %v2950 = vadd.f32 0.0, %v2949
  %v2951 = vpop.f32.mrb[0].mxu0
  %v2952 = vpop.f32.mrb[0].mxu0
  %v2953 = vadd.f32 0.0, %v2952
  %v2954 = vpop.f32.mrb[0].mxu0
  %2955 = vdwg.mxu0
  %2956 = vmatprep.subr.bf16.mxu0 0
  %2957 = vmatpush1.bf16.msra.mxu0 %v2795
  %2958 = vmatprep.subr.bf16.mxu0 0
  %2959 = vmatpush1.bf16.msra.mxu0 %v2796
  %2960 = vmatprep.subr.bf16.mxu0 0
  %2961 = vmatpush1.bf16.msra.mxu0 %v2797
  %2962 = vmatprep.subr.bf16.mxu0 0
  %2963 = vmatpush1.bf16.msra.mxu0 %v2798
  %2964 = vmatprep.subr.bf16.mxu0 0
  %2965 = vmatpush1.bf16.msra.mxu0 %v2799
  %2966 = vmatprep.subr.bf16.mxu0 0
  %2967 = vmatpush1.bf16.msra.mxu0 %v2800
  %2968 = vmatprep.subr.bf16.mxu0 0
  %2969 = vmatpush1.bf16.msra.mxu0 %v2801
  %2970 = vmatprep.subr.bf16.mxu0 0
  %2971 = vmatpush1.bf16.msra.mxu0 %v2802
  %2972 = vmatprep.subr.bf16.mxu0 0
  %2973 = vmatpush1.bf16.msra.mxu0 %v2803
  %2974 = vmatprep.subr.bf16.mxu0 0
  %2975 = vmatpush1.bf16.msra.mxu0 %v2804
  %2976 = vmatprep.subr.bf16.mxu0 0
  %2977 = vmatpush1.bf16.msra.mxu0 %v2805
  %2978 = vmatprep.subr.bf16.mxu0 0
  %2979 = vmatpush1.bf16.msra.mxu0 %v2806
  %2980 = vmatprep.subr.bf16.mxu0 0
  %2981 = vmatpush1.bf16.msra.mxu0 %v2807
  %2982 = vmatprep.subr.bf16.mxu0 0
  %2983 = vmatpush1.bf16.msra.mxu0 %v2808
  %2984 = vmatprep.subr.bf16.mxu0 0
  %2985 = vmatpush1.bf16.msra.mxu0 %v2809
  %2986 = vmatprep.subr.bf16.mxu0 0
  %2987 = vmatpush1.bf16.msra.mxu0 %v2810
  %2988 = vmatprep.mubr.bf16.mxu0 %v2862
  %2989 = vmatmul.mubr.bf16.gmra.mrb[0].mxu0 %v2861
  %v2990 = vpop.f32.mrb[0].mxu0
  %v2991 = vadd.f32 %v2926, %v2990
  %v2992 = vpop.f32.mrb[0].mxu0
  %v2993 = vpop.f32.mrb[0].mxu0
  %v2994 = vadd.f32 %v2929, %v2993
  %v2995 = vpop.f32.mrb[0].mxu0
  %2996 = vmatprep.mubr.bf16.mxu0 %v2866
  %2997 = vmatmul.mubr.bf16.gmra.mrb[0].mxu0 %v2865
  %v2998 = vpop.f32.mrb[0].mxu0
  %v2999 = vadd.f32 %v2934, %v2998
  %v3000 = vpop.f32.mrb[0].mxu0
  %v3001 = vpop.f32.mrb[0].mxu0
  %v3002 = vadd.f32 %v2937, %v3001
  %v3003 = vpop.f32.mrb[0].mxu0
  %3004 = vmatprep.mubr.bf16.mxu0 %v2870
  %3005 = vmatmul.mubr.bf16.gmra.mrb[0].mxu0 %v2869
  %v3006 = vpop.f32.mrb[0].mxu0
  %v3007 = vadd.f32 %v2942, %v3006
  %v3008 = vpop.f32.mrb[0].mxu0
  %v3009 = vpop.f32.mrb[0].mxu0
  %v3010 = vadd.f32 %v2945, %v3009
  %v3011 = vpop.f32.mrb[0].mxu0
  %3012 = vmatprep.mubr.bf16.mxu0 %v2874
  %3013 = vmatmul.mubr.bf16.gmra.mrb[0].mxu0 %v2873
  %v3014 = vpop.f32.mrb[0].mxu0
  %v3015 = vadd.f32 %v2950, %v3014
  %v3016 = vpop.f32.mrb[0].mxu0
  %v3017 = vpop.f32.mrb[0].mxu0
  %v3018 = vadd.f32 %v2953, %v3017
  %v3019 = vpop.f32.mrb[0].mxu0
  %3020 = vdwg.mxu0
  %v3021 = vmax.f32 %v2991, 0.0
  %v3022 = vmax.f32 %v2994, 0.0
  %v3023 = vmax.f32 %v2999, 0.0
  %v3024 = vmax.f32 %v3002, 0.0
  %v3025 = vmax.f32 %v3007, 0.0
  %v3026 = vmax.f32 %v3010, 0.0
  %v3027 = vmax.f32 %v3015, 0.0
  %v3028 = vmax.f32 %v3018, 0.0
  %v3029 = vld [vmem:[%s5] sm:$0xff]
  %v3030 = vld [vmem:[%s5 + $0x8] sm:$0xff]
  %v3031 = vld [vmem:[%s5 + $0x10] sm:$0xff]
  %v3032 = vld [vmem:[%s5 + $0x18] sm:$0xff]
  %v3033 = vld [vmem:[%s5 + $0x20] sm:$0xff]
  %v3034 = vld [vmem:[%s5 + $0x28] sm:$0xff]
  %v3035 = vld [vmem:[%s5 + $0x30] sm:$0xff]
  %v3036 = vld [vmem:[%s5 + $0x38] sm:$0xff]
  %v3037 = vld [vmem:[%s5 + $0x40] sm:$0xff]
  %v3038 = vld [vmem:[%s5 + $0x48] sm:$0xff]
  %v3039 = vld [vmem:[%s5 + $0x50] sm:$0xff]
  %v3040 = vld [vmem:[%s5 + $0x58] sm:$0xff]
  %v3041 = vld [vmem:[%s5 + $0x60] sm:$0xff]
  %v3042 = vld [vmem:[%s5 + $0x68] sm:$0xff]
  %v3043 = vld [vmem:[%s5 + $0x70] sm:$0xff]
  %v3044 = vld [vmem:[%s5 + $0x78] sm:$0xff]
  %v3045 = vld [vmem:[%s9] sm:$0xf]
  %v3046 = vld [vmem:[%s9 + $0x4] sm:$0xf]
  %v3047 = vld [vmem:[%s9 + $0x8] sm:$0xf]
  %v3048 = vld [vmem:[%s9 + $0xc] sm:$0xf]
  %v3049 = vld [vmem:[%s10] sm:$0xf]
  %v3050 = vld [vmem:[%s10 + $0x4] sm:$0xf]
  %v3051 = vld [vmem:[%s10 + $0x8] sm:$0xf]
  %v3052 = vld [vmem:[%s10 + $0xc] sm:$0xf]
  %v3053 = vpack.c.bf16 %v3022, %v3021
  %v3054 = vpack.c.bf16 %v3024, %v3023
  %v3055 = vpack.c.bf16 %v3026, %v3025
  %v3056 = vpack.c.bf16 %v3028, %v3027
  %v3061 = vunpack.c.l.b16 %v3045
  %v3062 = vunpack.c.l.b16 %v3046
  %v3063 = vunpack.c.l.b16 %v3047
  %v3064 = vunpack.c.l.b16 %v3048
  %v3065 = vpack.c.b16 %v3062, %v3061
  %v3066 = vpack.c.b16 %v3064, %v3063
  %v3070 = vsel %vm1583, %v3053, 0
  %v3073 = vsel %vm1583, %v3054, 0
  %v3076 = vsel %vm1583, %v3055, 0
  %v3079 = vsel %vm1583, %v3056, 0
  %3081 = vmatprep.subr.bf16.mxu0 0
  %3082 = vmatpush1.bf16.msra.mxu0 %v3065
  %3083 = vmatprep.subr.bf16.mxu0 0
  %3084 = vmatpush1.bf16.msra.mxu0 %v3066
  %3085 = vmatprep.subr.bf16.mxu0 0
  %3086 = vmatpush1.bf16.msra.mxu0 0
  %3087 = vmatprep.subr.bf16.mxu0 0
  %3088 = vmatpush1.bf16.msra.mxu0 0
  %3089 = vmatprep.subr.bf16.mxu0 0
  %3090 = vmatpush1.bf16.msra.mxu0 0
  %3091 = vmatprep.subr.bf16.mxu0 0
  %3092 = vmatpush1.bf16.msra.mxu0 0
  %3093 = vmatprep.subr.bf16.mxu0 0
  %3094 = vmatpush1.bf16.msra.mxu0 0
  %3095 = vmatprep.subr.bf16.mxu0 0
  %3096 = vmatpush1.bf16.msra.mxu0 0
  %3097 = vmatprep.subr.bf16.mxu0 0
  %3098 = vmatpush1.bf16.msra.mxu0 0
  %3099 = vmatprep.subr.bf16.mxu0 0
  %3100 = vmatpush1.bf16.msra.mxu0 0
  %3101 = vmatprep.subr.bf16.mxu0 0
  %3102 = vmatpush1.bf16.msra.mxu0 0
  %3103 = vmatprep.subr.bf16.mxu0 0
  %3104 = vmatpush1.bf16.msra.mxu0 0
  %3105 = vmatprep.subr.bf16.mxu0 0
  %3106 = vmatpush1.bf16.msra.mxu0 0
  %3107 = vmatprep.subr.bf16.mxu0 0
  %3108 = vmatpush1.bf16.msra.mxu0 0
  %3109 = vmatprep.subr.bf16.mxu0 0
  %3110 = vmatpush1.bf16.msra.mxu0 0
  %3111 = vmatprep.subr.bf16.mxu0 0
  %3112 = vmatpush1.bf16.msra.mxu0 0
  %3113 = vmatprep.mubr.bf16.mxu0 0
  %3114 = vmatmul.mubr.bf16.gmra.mrb[0].mxu0 %v3070
  %v3115 = vpop.f32.mrb[0].mxu0
  %v3116 = vadd.f32 0.0, %v3115
  %v3117 = vpop.f32.mrb[0].mxu0
  %v3118 = vpop.f32.mrb[0].mxu0
  %v3119 = vadd.f32 0.0, %v3118
  %v3120 = vpop.f32.mrb[0].mxu0
  %3121 = vmatprep.mubr.bf16.mxu0 0
  %3122 = vmatmul.mubr.bf16.gmra.mrb[0].mxu0 %v3073
  %v3123 = vpop.f32.mrb[0].mxu0
  %v3124 = vadd.f32 0.0, %v3123
  %v3125 = vpop.f32.mrb[0].mxu0
  %v3126 = vpop.f32.mrb[0].mxu0
  %v3127 = vadd.f32 0.0, %v3126
  %v3128 = vpop.f32.mrb[0].mxu0
  %3129 = vmatprep.mubr.bf16.mxu0 0
  %3130 = vmatmul.mubr.bf16.gmra.mrb[0].mxu0 %v3076
  %v3131 = vpop.f32.mrb[0].mxu0
  %v3132 = vadd.f32 0.0, %v3131
  %v3133 = vpop.f32.mrb[0].mxu0
  %v3134 = vpop.f32.mrb[0].mxu0
  %v3135 = vadd.f32 0.0, %v3134
  %v3136 = vpop.f32.mrb[0].mxu0
  %3137 = vmatprep.mubr.bf16.mxu0 0
  %3138 = vmatmul.mubr.bf16.gmra.mrb[0].mxu0 %v3079
  %v3139 = vpop.f32.mrb[0].mxu0
  %v3140 = vadd.f32 0.0, %v3139
  %v3141 = vpop.f32.mrb[0].mxu0
  %v3142 = vpop.f32.mrb[0].mxu0
  %v3143 = vadd.f32 0.0, %v3142
  %v3144 = vpop.f32.mrb[0].mxu0
  %3145 = vdwg.mxu0
  %v3146 = vpack.c.bf16 %v3119, %v3116
  %v3147 = vpack.c.bf16 %v3127, %v3124
  %v3148 = vpack.c.bf16 %v3135, %v3132
  %v3149 = vpack.c.bf16 %v3143, %v3140
  %3154 = vrot.lane.b32.xlu0 %v3146, 64
  %v3155 = vpop.permute.xlu0 %3154
  %3156 = vrot.lane.b32.xlu0 %v3147, 64
  %v3157 = vpop.permute.xlu0 %3156
  %3158 = vrot.lane.b32.xlu0 %v3148, 64
  %v3159 = vpop.permute.xlu0 %3158
  %3160 = vrot.lane.b32.xlu0 %v3149, 64
  %v3161 = vpop.permute.xlu0 %3160
  %3166 = vmatprep.subr.bf16.mxu0 0
  %3167 = vmatpush1.bf16.msra.mxu0 %v3155
  %3168 = vmatprep.subr.bf16.mxu0 0
  %3169 = vmatpush1.bf16.msra.mxu0 %v3157
  %3170 = vmatprep.subr.bf16.mxu0 0
  %3171 = vmatpush1.bf16.msra.mxu0 %v3159
  %3172 = vmatprep.subr.bf16.mxu0 0
  %3173 = vmatpush1.bf16.msra.mxu0 %v3161
  %3174 = vmatprep.subr.bf16.mxu0 0
  %3175 = vmatpush1.bf16.msra.mxu0 0
  %3176 = vmatprep.subr.bf16.mxu0 0
  %3177 = vmatpush1.bf16.msra.mxu0 0
  %3178 = vmatprep.subr.bf16.mxu0 0
  %3179 = vmatpush1.bf16.msra.mxu0 0
  %3180 = vmatprep.subr.bf16.mxu0 0
  %3181 = vmatpush1.bf16.msra.mxu0 0
  %3182 = vmatprep.subr.bf16.mxu0 0
  %3183 = vmatpush1.bf16.msra.mxu0 0
  %3184 = vmatprep.subr.bf16.mxu0 0
  %3185 = vmatpush1.bf16.msra.mxu0 0
  %3186 = vmatprep.subr.bf16.mxu0 0
  %3187 = vmatpush1.bf16.msra.mxu0 0
  %3188 = vmatprep.subr.bf16.mxu0 0
  %3189 = vmatpush1.bf16.msra.mxu0 0
  %3190 = vmatprep.subr.bf16.mxu0 0
  %3191 = vmatpush1.bf16.msra.mxu0 0
  %3192 = vmatprep.subr.bf16.mxu0 0
  %3193 = vmatpush1.bf16.msra.mxu0 0
  %3194 = vmatprep.subr.bf16.mxu0 0
  %3195 = vmatpush1.bf16.msra.mxu0 0
  %3196 = vmatprep.subr.bf16.mxu0 0
  %3197 = vmatpush1.bf16.msra.mxu0 0
  %3198 = vmatprep.mubr.bf16.mxu0 0
  %3199 = vmatmul.mubr.bf16.gmra.mrb[0].mxu0 %v474
  %v3200 = vpop.f32.mrb[0].mxu0
  %v3201 = vadd.f32 0.0, %v3200
  %v3202 = vpop.f32.mrb[0].mxu0
  %v3203 = vpop.f32.mrb[0].mxu0
  %v3204 = vadd.f32 0.0, %v3203
  %v3205 = vpop.f32.mrb[0].mxu0
  %3206 = vmatprep.mubr.bf16.mxu0 0
  %3207 = vmatmul.mubr.bf16.gmra.mrb[0].mxu0 %v477
  %v3208 = vpop.f32.mrb[0].mxu0
  %v3209 = vadd.f32 0.0, %v3208
  %v3210 = vpop.f32.mrb[0].mxu0
  %v3211 = vpop.f32.mrb[0].mxu0
  %v3212 = vadd.f32 0.0, %v3211
  %v3213 = vpop.f32.mrb[0].mxu0
  %3214 = vmatprep.mubr.bf16.mxu0 0
  %3215 = vmatmul.mubr.bf16.gmra.mrb[0].mxu0 %v480
  %v3216 = vpop.f32.mrb[0].mxu0
  %v3217 = vadd.f32 0.0, %v3216
  %v3218 = vpop.f32.mrb[0].mxu0
  %v3219 = vpop.f32.mrb[0].mxu0
  %v3220 = vadd.f32 0.0, %v3219
  %v3221 = vpop.f32.mrb[0].mxu0
  %3222 = vmatprep.mubr.bf16.mxu0 0
  %3223 = vmatmul.mubr.bf16.gmra.mrb[0].mxu0 %v483
  %v3224 = vpop.f32.mrb[0].mxu0
  %v3225 = vadd.f32 0.0, %v3224
  %v3226 = vpop.f32.mrb[0].mxu0
  %v3227 = vpop.f32.mrb[0].mxu0
  %v3228 = vadd.f32 0.0, %v3227
  %v3229 = vpop.f32.mrb[0].mxu0
  %3230 = vmatprep.mubr.bf16.mxu0 0
  %3231 = vmatmul.mubr.bf16.gmra.mrb[0].mxu0 %v486
  %v3232 = vpop.f32.mrb[0].mxu0
  %v3233 = vadd.f32 0.0, %v3232
  %v3234 = vpop.f32.mrb[0].mxu0
  %v3235 = vpop.f32.mrb[0].mxu0
  %v3236 = vadd.f32 0.0, %v3235
  %v3237 = vpop.f32.mrb[0].mxu0
  %3238 = vmatprep.mubr.bf16.mxu0 0
  %3239 = vmatmul.mubr.bf16.gmra.mrb[0].mxu0 %v489
  %v3240 = vpop.f32.mrb[0].mxu0
  %v3241 = vadd.f32 0.0, %v3240
  %v3242 = vpop.f32.mrb[0].mxu0
  %v3243 = vpop.f32.mrb[0].mxu0
  %v3244 = vadd.f32 0.0, %v3243
  %v3245 = vpop.f32.mrb[0].mxu0
  %3246 = vmatprep.mubr.bf16.mxu0 0
  %3247 = vmatmul.mubr.bf16.gmra.mrb[0].mxu0 %v492
  %v3248 = vpop.f32.mrb[0].mxu0
  %v3249 = vadd.f32 0.0, %v3248
  %v3250 = vpop.f32.mrb[0].mxu0
  %v3251 = vpop.f32.mrb[0].mxu0
  %v3252 = vadd.f32 0.0, %v3251
  %v3253 = vpop.f32.mrb[0].mxu0
  %3254 = vmatprep.mubr.bf16.mxu0 0
  %3255 = vmatmul.mubr.bf16.gmra.mrb[0].mxu0 %v495
  %v3256 = vpop.f32.mrb[0].mxu0
  %v3257 = vadd.f32 0.0, %v3256
  %v3258 = vpop.f32.mrb[0].mxu0
  %v3259 = vpop.f32.mrb[0].mxu0
  %v3260 = vadd.f32 0.0, %v3259
  %v3261 = vpop.f32.mrb[0].mxu0
  %3262 = vmatprep.mubr.bf16.mxu0 0
  %3263 = vmatmul.mubr.bf16.gmra.mrb[0].mxu0 %v498
  %v3264 = vpop.f32.mrb[0].mxu0
  %v3265 = vadd.f32 0.0, %v3264
  %v3266 = vpop.f32.mrb[0].mxu0
  %v3267 = vpop.f32.mrb[0].mxu0
  %v3268 = vadd.f32 0.0, %v3267
  %v3269 = vpop.f32.mrb[0].mxu0
  %3270 = vmatprep.mubr.bf16.mxu0 0
  %3271 = vmatmul.mubr.bf16.gmra.mrb[0].mxu0 %v501
  %v3272 = vpop.f32.mrb[0].mxu0
  %v3273 = vadd.f32 0.0, %v3272
  %v3274 = vpop.f32.mrb[0].mxu0
  %v3275 = vpop.f32.mrb[0].mxu0
  %v3276 = vadd.f32 0.0, %v3275
  %v3277 = vpop.f32.mrb[0].mxu0
  %3278 = vmatprep.mubr.bf16.mxu0 0
  %3279 = vmatmul.mubr.bf16.gmra.mrb[0].mxu0 %v504
  %v3280 = vpop.f32.mrb[0].mxu0
  %v3281 = vadd.f32 0.0, %v3280
  %v3282 = vpop.f32.mrb[0].mxu0
  %v3283 = vpop.f32.mrb[0].mxu0
  %v3284 = vadd.f32 0.0, %v3283
  %v3285 = vpop.f32.mrb[0].mxu0
  %3286 = vmatprep.mubr.bf16.mxu0 0
  %3287 = vmatmul.mubr.bf16.gmra.mrb[0].mxu0 %v507
  %v3288 = vpop.f32.mrb[0].mxu0
  %v3289 = vadd.f32 0.0, %v3288
  %v3290 = vpop.f32.mrb[0].mxu0
  %v3291 = vpop.f32.mrb[0].mxu0
  %v3292 = vadd.f32 0.0, %v3291
  %v3293 = vpop.f32.mrb[0].mxu0
  %3294 = vmatprep.mubr.bf16.mxu0 0
  %3295 = vmatmul.mubr.bf16.gmra.mrb[0].mxu0 %v510
  %v3296 = vpop.f32.mrb[0].mxu0
  %v3297 = vadd.f32 0.0, %v3296
  %v3298 = vpop.f32.mrb[0].mxu0
  %v3299 = vpop.f32.mrb[0].mxu0
  %v3300 = vadd.f32 0.0, %v3299
  %v3301 = vpop.f32.mrb[0].mxu0
  %3302 = vmatprep.mubr.bf16.mxu0 0
  %3303 = vmatmul.mubr.bf16.gmra.mrb[0].mxu0 %v513
  %v3304 = vpop.f32.mrb[0].mxu0
  %v3305 = vadd.f32 0.0, %v3304
  %v3306 = vpop.f32.mrb[0].mxu0
  %v3307 = vpop.f32.mrb[0].mxu0
  %v3308 = vadd.f32 0.0, %v3307
  %v3309 = vpop.f32.mrb[0].mxu0
  %3310 = vmatprep.mubr.bf16.mxu0 0
  %3311 = vmatmul.mubr.bf16.gmra.mrb[0].mxu0 %v516
  %v3312 = vpop.f32.mrb[0].mxu0
  %v3313 = vadd.f32 0.0, %v3312
  %v3314 = vpop.f32.mrb[0].mxu0
  %v3315 = vpop.f32.mrb[0].mxu0
  %v3316 = vadd.f32 0.0, %v3315
  %v3317 = vpop.f32.mrb[0].mxu0
  %3318 = vmatprep.mubr.bf16.mxu0 0
  %3319 = vmatmul.mubr.bf16.gmra.mrb[0].mxu0 %v519
  %v3320 = vpop.f32.mrb[0].mxu0
  %v3321 = vadd.f32 0.0, %v3320
  %v3322 = vpop.f32.mrb[0].mxu0
  %v3323 = vpop.f32.mrb[0].mxu0
  %v3324 = vadd.f32 0.0, %v3323
  %v3325 = vpop.f32.mrb[0].mxu0
  %3326 = vmatprep.mubr.bf16.mxu0 0
  %3327 = vmatmul.mubr.bf16.gmra.mrb[0].mxu0 %v522
  %v3328 = vpop.f32.mrb[0].mxu0
  %v3329 = vadd.f32 0.0, %v3328
  %v3330 = vpop.f32.mrb[0].mxu0
  %v3331 = vpop.f32.mrb[0].mxu0
  %v3332 = vadd.f32 0.0, %v3331
  %v3333 = vpop.f32.mrb[0].mxu0
  %3334 = vmatprep.mubr.bf16.mxu0 0
  %3335 = vmatmul.mubr.bf16.gmra.mrb[0].mxu0 %v525
  %v3336 = vpop.f32.mrb[0].mxu0
  %v3337 = vadd.f32 0.0, %v3336
  %v3338 = vpop.f32.mrb[0].mxu0
  %v3339 = vpop.f32.mrb[0].mxu0
  %v3340 = vadd.f32 0.0, %v3339
  %v3341 = vpop.f32.mrb[0].mxu0
  %3342 = vmatprep.mubr.bf16.mxu0 0
  %3343 = vmatmul.mubr.bf16.gmra.mrb[0].mxu0 %v528
  %v3344 = vpop.f32.mrb[0].mxu0
  %v3345 = vadd.f32 0.0, %v3344
  %v3346 = vpop.f32.mrb[0].mxu0
  %v3347 = vpop.f32.mrb[0].mxu0
  %v3348 = vadd.f32 0.0, %v3347
  %v3349 = vpop.f32.mrb[0].mxu0
  %3350 = vmatprep.mubr.bf16.mxu0 0
  %3351 = vmatmul.mubr.bf16.gmra.mrb[0].mxu0 %v531
  %v3352 = vpop.f32.mrb[0].mxu0
  %v3353 = vadd.f32 0.0, %v3352
  %v3354 = vpop.f32.mrb[0].mxu0
  %v3355 = vpop.f32.mrb[0].mxu0
  %v3356 = vadd.f32 0.0, %v3355
  %v3357 = vpop.f32.mrb[0].mxu0
  %3358 = vmatprep.mubr.bf16.mxu0 0
  %3359 = vmatmul.mubr.bf16.gmra.mrb[0].mxu0 %v534
  %v3360 = vpop.f32.mrb[0].mxu0
  %v3361 = vadd.f32 0.0, %v3360
  %v3362 = vpop.f32.mrb[0].mxu0
  %v3363 = vpop.f32.mrb[0].mxu0
  %v3364 = vadd.f32 0.0, %v3363
  %v3365 = vpop.f32.mrb[0].mxu0
  %3366 = vmatprep.mubr.bf16.mxu0 0
  %3367 = vmatmul.mubr.bf16.gmra.mrb[0].mxu0 %v537
  %v3368 = vpop.f32.mrb[0].mxu0
  %v3369 = vadd.f32 0.0, %v3368
  %v3370 = vpop.f32.mrb[0].mxu0
  %v3371 = vpop.f32.mrb[0].mxu0
  %v3372 = vadd.f32 0.0, %v3371
  %v3373 = vpop.f32.mrb[0].mxu0
  %3374 = vmatprep.mubr.bf16.mxu0 0
  %3375 = vmatmul.mubr.bf16.gmra.mrb[0].mxu0 %v540
  %v3376 = vpop.f32.mrb[0].mxu0
  %v3377 = vadd.f32 0.0, %v3376
  %v3378 = vpop.f32.mrb[0].mxu0
  %v3379 = vpop.f32.mrb[0].mxu0
  %v3380 = vadd.f32 0.0, %v3379
  %v3381 = vpop.f32.mrb[0].mxu0
  %3382 = vmatprep.mubr.bf16.mxu0 0
  %3383 = vmatmul.mubr.bf16.gmra.mrb[0].mxu0 %v543
  %v3384 = vpop.f32.mrb[0].mxu0
  %v3385 = vadd.f32 0.0, %v3384
  %v3386 = vpop.f32.mrb[0].mxu0
  %v3387 = vpop.f32.mrb[0].mxu0
  %v3388 = vadd.f32 0.0, %v3387
  %v3389 = vpop.f32.mrb[0].mxu0
  %3390 = vmatprep.mubr.bf16.mxu0 0
  %3391 = vmatmul.mubr.bf16.gmra.mrb[0].mxu0 %v546
  %v3392 = vpop.f32.mrb[0].mxu0
  %v3393 = vadd.f32 0.0, %v3392
  %v3394 = vpop.f32.mrb[0].mxu0
  %v3395 = vpop.f32.mrb[0].mxu0
  %v3396 = vadd.f32 0.0, %v3395
  %v3397 = vpop.f32.mrb[0].mxu0
  %3398 = vmatprep.mubr.bf16.mxu0 0
  %3399 = vmatmul.mubr.bf16.gmra.mrb[0].mxu0 %v549
  %v3400 = vpop.f32.mrb[0].mxu0
  %v3401 = vadd.f32 0.0, %v3400
  %v3402 = vpop.f32.mrb[0].mxu0
  %v3403 = vpop.f32.mrb[0].mxu0
  %v3404 = vadd.f32 0.0, %v3403
  %v3405 = vpop.f32.mrb[0].mxu0
  %3406 = vmatprep.mubr.bf16.mxu0 0
  %3407 = vmatmul.mubr.bf16.gmra.mrb[0].mxu0 %v552
  %v3408 = vpop.f32.mrb[0].mxu0
  %v3409 = vadd.f32 0.0, %v3408
  %v3410 = vpop.f32.mrb[0].mxu0
  %v3411 = vpop.f32.mrb[0].mxu0
  %v3412 = vadd.f32 0.0, %v3411
  %v3413 = vpop.f32.mrb[0].mxu0
  %3414 = vmatprep.mubr.bf16.mxu0 0
  %3415 = vmatmul.mubr.bf16.gmra.mrb[0].mxu0 %v555
  %v3416 = vpop.f32.mrb[0].mxu0
  %v3417 = vadd.f32 0.0, %v3416
  %v3418 = vpop.f32.mrb[0].mxu0
  %v3419 = vpop.f32.mrb[0].mxu0
  %v3420 = vadd.f32 0.0, %v3419
  %v3421 = vpop.f32.mrb[0].mxu0
  %3422 = vmatprep.mubr.bf16.mxu0 0
  %3423 = vmatmul.mubr.bf16.gmra.mrb[0].mxu0 %v558
  %v3424 = vpop.f32.mrb[0].mxu0
  %v3425 = vadd.f32 0.0, %v3424
  %v3426 = vpop.f32.mrb[0].mxu0
  %v3427 = vpop.f32.mrb[0].mxu0
  %v3428 = vadd.f32 0.0, %v3427
  %v3429 = vpop.f32.mrb[0].mxu0
  %3430 = vmatprep.mubr.bf16.mxu0 0
  %3431 = vmatmul.mubr.bf16.gmra.mrb[0].mxu0 %v561
  %v3432 = vpop.f32.mrb[0].mxu0
  %v3433 = vadd.f32 0.0, %v3432
  %v3434 = vpop.f32.mrb[0].mxu0
  %v3435 = vpop.f32.mrb[0].mxu0
  %v3436 = vadd.f32 0.0, %v3435
  %v3437 = vpop.f32.mrb[0].mxu0
  %3438 = vmatprep.mubr.bf16.mxu0 0
  %3439 = vmatmul.mubr.bf16.gmra.mrb[0].mxu0 %v564
  %v3440 = vpop.f32.mrb[0].mxu0
  %v3441 = vadd.f32 0.0, %v3440
  %v3442 = vpop.f32.mrb[0].mxu0
  %v3443 = vpop.f32.mrb[0].mxu0
  %v3444 = vadd.f32 0.0, %v3443
  %v3445 = vpop.f32.mrb[0].mxu0
  %3446 = vmatprep.mubr.bf16.mxu0 0
  %3447 = vmatmul.mubr.bf16.gmra.mrb[0].mxu0 %v567
  %v3448 = vpop.f32.mrb[0].mxu0
  %v3449 = vadd.f32 0.0, %v3448
  %v3450 = vpop.f32.mrb[0].mxu0
  %v3451 = vpop.f32.mrb[0].mxu0
  %v3452 = vadd.f32 0.0, %v3451
  %v3453 = vpop.f32.mrb[0].mxu0
  %3454 = vdwg.mxu0
  %3455 = vmatprep.subr.bf16.mxu0 0
  %3456 = vmatpush1.bf16.msra.mxu0 %v3146
  %3457 = vmatprep.subr.bf16.mxu0 0
  %3458 = vmatpush1.bf16.msra.mxu0 %v3147
  %3459 = vmatprep.subr.bf16.mxu0 0
  %3460 = vmatpush1.bf16.msra.mxu0 %v3148
  %3461 = vmatprep.subr.bf16.mxu0 0
  %3462 = vmatpush1.bf16.msra.mxu0 %v3149
  %3463 = vmatprep.subr.bf16.mxu0 0
  %3464 = vmatpush1.bf16.msra.mxu0 0
  %3465 = vmatprep.subr.bf16.mxu0 0
  %3466 = vmatpush1.bf16.msra.mxu0 0
  %3467 = vmatprep.subr.bf16.mxu0 0
  %3468 = vmatpush1.bf16.msra.mxu0 0
  %3469 = vmatprep.subr.bf16.mxu0 0
  %3470 = vmatpush1.bf16.msra.mxu0 0
  %3471 = vmatprep.subr.bf16.mxu0 0
  %3472 = vmatpush1.bf16.msra.mxu0 0
  %3473 = vmatprep.subr.bf16.mxu0 0
  %3474 = vmatpush1.bf16.msra.mxu0 0
  %3475 = vmatprep.subr.bf16.mxu0 0
  %3476 = vmatpush1.bf16.msra.mxu0 0
  %3477 = vmatprep.subr.bf16.mxu0 0
  %3478 = vmatpush1.bf16.msra.mxu0 0
  %3479 = vmatprep.subr.bf16.mxu0 0
  %3480 = vmatpush1.bf16.msra.mxu0 0
  %3481 = vmatprep.subr.bf16.mxu0 0
  %3482 = vmatpush1.bf16.msra.mxu0 0
  %3483 = vmatprep.subr.bf16.mxu0 0
  %3484 = vmatpush1.bf16.msra.mxu0 0
  %3485 = vmatprep.subr.bf16.mxu0 0
  %3486 = vmatpush1.bf16.msra.mxu0 0
  %3487 = vmatprep.mubr.bf16.mxu0 0
  %3488 = vmatmul.mubr.bf16.gmra.mrb[0].mxu0 %v1019
  %v3489 = vpop.f32.mrb[0].mxu0
  %v3490 = vadd.f32 %v3201, %v3489
  %v3491 = vpop.f32.mrb[0].mxu0
  %v3492 = vpop.f32.mrb[0].mxu0
  %v3493 = vadd.f32 %v3204, %v3492
  %v3494 = vpop.f32.mrb[0].mxu0
  %3495 = vmatprep.mubr.bf16.mxu0 0
  %3496 = vmatmul.mubr.bf16.gmra.mrb[0].mxu0 %v1022
  %v3497 = vpop.f32.mrb[0].mxu0
  %v3498 = vadd.f32 %v3209, %v3497
  %v3499 = vpop.f32.mrb[0].mxu0
  %v3500 = vpop.f32.mrb[0].mxu0
  %v3501 = vadd.f32 %v3212, %v3500
  %v3502 = vpop.f32.mrb[0].mxu0
  %3503 = vmatprep.mubr.bf16.mxu0 0
  %3504 = vmatmul.mubr.bf16.gmra.mrb[0].mxu0 %v1025
  %v3505 = vpop.f32.mrb[0].mxu0
  %v3506 = vadd.f32 %v3217, %v3505
  %v3507 = vpop.f32.mrb[0].mxu0
  %v3508 = vpop.f32.mrb[0].mxu0
  %v3509 = vadd.f32 %v3220, %v3508
  %v3510 = vpop.f32.mrb[0].mxu0
  %3511 = vmatprep.mubr.bf16.mxu0 0
  %3512 = vmatmul.mubr.bf16.gmra.mrb[0].mxu0 %v1028
  %v3513 = vpop.f32.mrb[0].mxu0
  %v3514 = vadd.f32 %v3225, %v3513
  %v3515 = vpop.f32.mrb[0].mxu0
  %v3516 = vpop.f32.mrb[0].mxu0
  %v3517 = vadd.f32 %v3228, %v3516
  %v3518 = vpop.f32.mrb[0].mxu0
  %3519 = vmatprep.mubr.bf16.mxu0 0
  %3520 = vmatmul.mubr.bf16.gmra.mrb[0].mxu0 %v1031
  %v3521 = vpop.f32.mrb[0].mxu0
  %v3522 = vadd.f32 %v3233, %v3521
  %v3523 = vpop.f32.mrb[0].mxu0
  %v3524 = vpop.f32.mrb[0].mxu0
  %v3525 = vadd.f32 %v3236, %v3524
  %v3526 = vpop.f32.mrb[0].mxu0
  %3527 = vmatprep.mubr.bf16.mxu0 0
  %3528 = vmatmul.mubr.bf16.gmra.mrb[0].mxu0 %v1034
  %v3529 = vpop.f32.mrb[0].mxu0
  %v3530 = vadd.f32 %v3241, %v3529
  %v3531 = vpop.f32.mrb[0].mxu0
  %v3532 = vpop.f32.mrb[0].mxu0
  %v3533 = vadd.f32 %v3244, %v3532
  %v3534 = vpop.f32.mrb[0].mxu0
  %3535 = vmatprep.mubr.bf16.mxu0 0
  %3536 = vmatmul.mubr.bf16.gmra.mrb[0].mxu0 %v1037
  %v3537 = vpop.f32.mrb[0].mxu0
  %v3538 = vadd.f32 %v3249, %v3537
  %v3539 = vpop.f32.mrb[0].mxu0
  %v3540 = vpop.f32.mrb[0].mxu0
  %v3541 = vadd.f32 %v3252, %v3540
  %v3542 = vpop.f32.mrb[0].mxu0
  %3543 = vmatprep.mubr.bf16.mxu0 0
  %3544 = vmatmul.mubr.bf16.gmra.mrb[0].mxu0 %v1040
  %v3545 = vpop.f32.mrb[0].mxu0
  %v3546 = vadd.f32 %v3257, %v3545
  %v3547 = vpop.f32.mrb[0].mxu0
  %v3548 = vpop.f32.mrb[0].mxu0
  %v3549 = vadd.f32 %v3260, %v3548
  %v3550 = vpop.f32.mrb[0].mxu0
  %3551 = vmatprep.mubr.bf16.mxu0 0
  %3552 = vmatmul.mubr.bf16.gmra.mrb[0].mxu0 %v1043
  %v3553 = vpop.f32.mrb[0].mxu0
  %v3554 = vadd.f32 %v3265, %v3553
  %v3555 = vpop.f32.mrb[0].mxu0
  %v3556 = vpop.f32.mrb[0].mxu0
  %v3557 = vadd.f32 %v3268, %v3556
  %v3558 = vpop.f32.mrb[0].mxu0
  %3559 = vmatprep.mubr.bf16.mxu0 0
  %3560 = vmatmul.mubr.bf16.gmra.mrb[0].mxu0 %v1046
  %v3561 = vpop.f32.mrb[0].mxu0
  %v3562 = vadd.f32 %v3273, %v3561
  %v3563 = vpop.f32.mrb[0].mxu0
  %v3564 = vpop.f32.mrb[0].mxu0
  %v3565 = vadd.f32 %v3276, %v3564
  %v3566 = vpop.f32.mrb[0].mxu0
  %3567 = vmatprep.mubr.bf16.mxu0 0
  %3568 = vmatmul.mubr.bf16.gmra.mrb[0].mxu0 %v1049
  %v3569 = vpop.f32.mrb[0].mxu0
  %v3570 = vadd.f32 %v3281, %v3569
  %v3571 = vpop.f32.mrb[0].mxu0
  %v3572 = vpop.f32.mrb[0].mxu0
  %v3573 = vadd.f32 %v3284, %v3572
  %v3574 = vpop.f32.mrb[0].mxu0
  %3575 = vmatprep.mubr.bf16.mxu0 0
  %3576 = vmatmul.mubr.bf16.gmra.mrb[0].mxu0 %v1052
  %v3577 = vpop.f32.mrb[0].mxu0
  %v3578 = vadd.f32 %v3289, %v3577
  %v3579 = vpop.f32.mrb[0].mxu0
  %v3580 = vpop.f32.mrb[0].mxu0
  %v3581 = vadd.f32 %v3292, %v3580
  %v3582 = vpop.f32.mrb[0].mxu0
  %3583 = vmatprep.mubr.bf16.mxu0 0
  %3584 = vmatmul.mubr.bf16.gmra.mrb[0].mxu0 %v1055
  %v3585 = vpop.f32.mrb[0].mxu0
  %v3586 = vadd.f32 %v3297, %v3585
  %v3587 = vpop.f32.mrb[0].mxu0
  %v3588 = vpop.f32.mrb[0].mxu0
  %v3589 = vadd.f32 %v3300, %v3588
  %v3590 = vpop.f32.mrb[0].mxu0
  %3591 = vmatprep.mubr.bf16.mxu0 0
  %3592 = vmatmul.mubr.bf16.gmra.mrb[0].mxu0 %v1058
  %v3593 = vpop.f32.mrb[0].mxu0
  %v3594 = vadd.f32 %v3305, %v3593
  %v3595 = vpop.f32.mrb[0].mxu0
  %v3596 = vpop.f32.mrb[0].mxu0
  %v3597 = vadd.f32 %v3308, %v3596
  %v3598 = vpop.f32.mrb[0].mxu0
  %3599 = vmatprep.mubr.bf16.mxu0 0
  %3600 = vmatmul.mubr.bf16.gmra.mrb[0].mxu0 %v1061
  %v3601 = vpop.f32.mrb[0].mxu0
  %v3602 = vadd.f32 %v3313, %v3601
  %v3603 = vpop.f32.mrb[0].mxu0
  %v3604 = vpop.f32.mrb[0].mxu0
  %v3605 = vadd.f32 %v3316, %v3604
  %v3606 = vpop.f32.mrb[0].mxu0
  %3607 = vmatprep.mubr.bf16.mxu0 0
  %3608 = vmatmul.mubr.bf16.gmra.mrb[0].mxu0 %v1064
  %v3609 = vpop.f32.mrb[0].mxu0
  %v3610 = vadd.f32 %v3321, %v3609
  %v3611 = vpop.f32.mrb[0].mxu0
  %v3612 = vpop.f32.mrb[0].mxu0
  %v3613 = vadd.f32 %v3324, %v3612
  %v3614 = vpop.f32.mrb[0].mxu0
  %3615 = vmatprep.mubr.bf16.mxu0 0
  %3616 = vmatmul.mubr.bf16.gmra.mrb[0].mxu0 %v1067
  %v3617 = vpop.f32.mrb[0].mxu0
  %v3618 = vadd.f32 %v3329, %v3617
  %v3619 = vpop.f32.mrb[0].mxu0
  %v3620 = vpop.f32.mrb[0].mxu0
  %v3621 = vadd.f32 %v3332, %v3620
  %v3622 = vpop.f32.mrb[0].mxu0
  %3623 = vmatprep.mubr.bf16.mxu0 0
  %3624 = vmatmul.mubr.bf16.gmra.mrb[0].mxu0 %v1070
  %v3625 = vpop.f32.mrb[0].mxu0
  %v3626 = vadd.f32 %v3337, %v3625
  %v3627 = vpop.f32.mrb[0].mxu0
  %v3628 = vpop.f32.mrb[0].mxu0
  %v3629 = vadd.f32 %v3340, %v3628
  %v3630 = vpop.f32.mrb[0].mxu0
  %3631 = vmatprep.mubr.bf16.mxu0 0
  %3632 = vmatmul.mubr.bf16.gmra.mrb[0].mxu0 %v1073
  %v3633 = vpop.f32.mrb[0].mxu0
  %v3634 = vadd.f32 %v3345, %v3633
  %v3635 = vpop.f32.mrb[0].mxu0
  %v3636 = vpop.f32.mrb[0].mxu0
  %v3637 = vadd.f32 %v3348, %v3636
  %v3638 = vpop.f32.mrb[0].mxu0
  %3639 = vmatprep.mubr.bf16.mxu0 0
  %3640 = vmatmul.mubr.bf16.gmra.mrb[0].mxu0 %v1076
  %v3641 = vpop.f32.mrb[0].mxu0
  %v3642 = vadd.f32 %v3353, %v3641
  %v3643 = vpop.f32.mrb[0].mxu0
  %v3644 = vpop.f32.mrb[0].mxu0
  %v3645 = vadd.f32 %v3356, %v3644
  %v3646 = vpop.f32.mrb[0].mxu0
  %3647 = vmatprep.mubr.bf16.mxu0 0
  %3648 = vmatmul.mubr.bf16.gmra.mrb[0].mxu0 %v1079
  %v3649 = vpop.f32.mrb[0].mxu0
  %v3650 = vadd.f32 %v3361, %v3649
  %v3651 = vpop.f32.mrb[0].mxu0
  %v3652 = vpop.f32.mrb[0].mxu0
  %v3653 = vadd.f32 %v3364, %v3652
  %v3654 = vpop.f32.mrb[0].mxu0
  %3655 = vmatprep.mubr.bf16.mxu0 0
  %3656 = vmatmul.mubr.bf16.gmra.mrb[0].mxu0 %v1082
  %v3657 = vpop.f32.mrb[0].mxu0
  %v3658 = vadd.f32 %v3369, %v3657
  %v3659 = vpop.f32.mrb[0].mxu0
  %v3660 = vpop.f32.mrb[0].mxu0
  %v3661 = vadd.f32 %v3372, %v3660
  %v3662 = vpop.f32.mrb[0].mxu0
  %3663 = vmatprep.mubr.bf16.mxu0 0
  %3664 = vmatmul.mubr.bf16.gmra.mrb[0].mxu0 %v1085
  %v3665 = vpop.f32.mrb[0].mxu0
  %v3666 = vadd.f32 %v3377, %v3665
  %v3667 = vpop.f32.mrb[0].mxu0
  %v3668 = vpop.f32.mrb[0].mxu0
  %v3669 = vadd.f32 %v3380, %v3668
  %v3670 = vpop.f32.mrb[0].mxu0
  %3671 = vmatprep.mubr.bf16.mxu0 0
  %3672 = vmatmul.mubr.bf16.gmra.mrb[0].mxu0 %v1088
  %v3673 = vpop.f32.mrb[0].mxu0
  %v3674 = vadd.f32 %v3385, %v3673
  %v3675 = vpop.f32.mrb[0].mxu0
  %v3676 = vpop.f32.mrb[0].mxu0
  %v3677 = vadd.f32 %v3388, %v3676
  %v3678 = vpop.f32.mrb[0].mxu0
  %3679 = vmatprep.mubr.bf16.mxu0 0
  %3680 = vmatmul.mubr.bf16.gmra.mrb[0].mxu0 %v1091
  %v3681 = vpop.f32.mrb[0].mxu0
  %v3682 = vadd.f32 %v3393, %v3681
  %v3683 = vpop.f32.mrb[0].mxu0
  %v3684 = vpop.f32.mrb[0].mxu0
  %v3685 = vadd.f32 %v3396, %v3684
  %v3686 = vpop.f32.mrb[0].mxu0
  %3687 = vmatprep.mubr.bf16.mxu0 0
  %3688 = vmatmul.mubr.bf16.gmra.mrb[0].mxu0 %v1094
  %v3689 = vpop.f32.mrb[0].mxu0
  %v3690 = vadd.f32 %v3401, %v3689
  %v3691 = vpop.f32.mrb[0].mxu0
  %v3692 = vpop.f32.mrb[0].mxu0
  %v3693 = vadd.f32 %v3404, %v3692
  %v3694 = vpop.f32.mrb[0].mxu0
  %3695 = vmatprep.mubr.bf16.mxu0 0
  %3696 = vmatmul.mubr.bf16.gmra.mrb[0].mxu0 %v1097
  %v3697 = vpop.f32.mrb[0].mxu0
  %v3698 = vadd.f32 %v3409, %v3697
  %v3699 = vpop.f32.mrb[0].mxu0
  %v3700 = vpop.f32.mrb[0].mxu0
  %v3701 = vadd.f32 %v3412, %v3700
  %v3702 = vpop.f32.mrb[0].mxu0
  %3703 = vmatprep.mubr.bf16.mxu0 0
  %3704 = vmatmul.mubr.bf16.gmra.mrb[0].mxu0 %v1100
  %v3705 = vpop.f32.mrb[0].mxu0
  %v3706 = vadd.f32 %v3417, %v3705
  %v3707 = vpop.f32.mrb[0].mxu0
  %v3708 = vpop.f32.mrb[0].mxu0
  %v3709 = vadd.f32 %v3420, %v3708
  %v3710 = vpop.f32.mrb[0].mxu0
  %3711 = vmatprep.mubr.bf16.mxu0 0
  %3712 = vmatmul.mubr.bf16.gmra.mrb[0].mxu0 %v1103
  %v3713 = vpop.f32.mrb[0].mxu0
  %v3714 = vadd.f32 %v3425, %v3713
  %v3715 = vpop.f32.mrb[0].mxu0
  %v3716 = vpop.f32.mrb[0].mxu0
  %v3717 = vadd.f32 %v3428, %v3716
  %v3718 = vpop.f32.mrb[0].mxu0
  %3719 = vmatprep.mubr.bf16.mxu0 0
  %3720 = vmatmul.mubr.bf16.gmra.mrb[0].mxu0 %v1106
  %v3721 = vpop.f32.mrb[0].mxu0
  %v3722 = vadd.f32 %v3433, %v3721
  %v3723 = vpop.f32.mrb[0].mxu0
  %v3724 = vpop.f32.mrb[0].mxu0
  %v3725 = vadd.f32 %v3436, %v3724
  %v3726 = vpop.f32.mrb[0].mxu0
  %3727 = vmatprep.mubr.bf16.mxu0 0
  %3728 = vmatmul.mubr.bf16.gmra.mrb[0].mxu0 %v1109
  %v3729 = vpop.f32.mrb[0].mxu0
  %v3730 = vadd.f32 %v3441, %v3729
  %v3731 = vpop.f32.mrb[0].mxu0
  %v3732 = vpop.f32.mrb[0].mxu0
  %v3733 = vadd.f32 %v3444, %v3732
  %v3734 = vpop.f32.mrb[0].mxu0
  %3735 = vmatprep.mubr.bf16.mxu0 0
  %3736 = vmatmul.mubr.bf16.gmra.mrb[0].mxu0 %v1112
  %v3737 = vpop.f32.mrb[0].mxu0
  %v3738 = vadd.f32 %v3449, %v3737
  %v3739 = vpop.f32.mrb[0].mxu0
  %v3740 = vpop.f32.mrb[0].mxu0
  %v3741 = vadd.f32 %v3452, %v3740
  %v3742 = vpop.f32.mrb[0].mxu0
  %3743 = vdwg.mxu0
  %v3744 = vlaneseq
  %v3745 = vshrl.u32 %v3744, 7
  %v3746 = vsub.s32 1, %v3745
  %v3747 = vrot.slane %v48, %v3746
  %v3748 = vadd.f32 %v3490, %v3747
  %v3749 = vadd.f32 %v3493, %v3747
  %v3750 = vadd.f32 %v3498, %v3747
  %v3751 = vadd.f32 %v3501, %v3747
  %v3752 = vadd.f32 %v3506, %v3747
  %v3753 = vadd.f32 %v3509, %v3747
  %v3754 = vadd.f32 %v3514, %v3747
  %v3755 = vadd.f32 %v3517, %v3747
  %v3756 = vadd.f32 %v3522, %v3747
  %v3757 = vadd.f32 %v3525, %v3747
  %v3758 = vadd.f32 %v3530, %v3747
  %v3759 = vadd.f32 %v3533, %v3747
  %v3760 = vadd.f32 %v3538, %v3747
  %v3761 = vadd.f32 %v3541, %v3747
  %v3762 = vadd.f32 %v3546, %v3747
  %v3763 = vadd.f32 %v3549, %v3747
  %v3764 = vadd.f32 %v3554, %v3747
  %v3765 = vadd.f32 %v3557, %v3747
  %v3766 = vadd.f32 %v3562, %v3747
  %v3767 = vadd.f32 %v3565, %v3747
  %v3768 = vadd.f32 %v3570, %v3747
  %v3769 = vadd.f32 %v3573, %v3747
  %v3770 = vadd.f32 %v3578, %v3747
  %v3771 = vadd.f32 %v3581, %v3747
  %v3772 = vadd.f32 %v3586, %v3747
  %v3773 = vadd.f32 %v3589, %v3747
  %v3774 = vadd.f32 %v3594, %v3747
  %v3775 = vadd.f32 %v3597, %v3747
  %v3776 = vadd.f32 %v3602, %v3747
  %v3777 = vadd.f32 %v3605, %v3747
  %v3778 = vadd.f32 %v3610, %v3747
  %v3779 = vadd.f32 %v3613, %v3747
  %v3780 = vadd.f32 %v3618, %v3747
  %v3781 = vadd.f32 %v3621, %v3747
  %v3782 = vadd.f32 %v3626, %v3747
  %v3783 = vadd.f32 %v3629, %v3747
  %v3784 = vadd.f32 %v3634, %v3747
  %v3785 = vadd.f32 %v3637, %v3747
  %v3786 = vadd.f32 %v3642, %v3747
  %v3787 = vadd.f32 %v3645, %v3747
  %v3788 = vadd.f32 %v3650, %v3747
  %v3789 = vadd.f32 %v3653, %v3747
  %v3790 = vadd.f32 %v3658, %v3747
  %v3791 = vadd.f32 %v3661, %v3747
  %v3792 = vadd.f32 %v3666, %v3747
  %v3793 = vadd.f32 %v3669, %v3747
  %v3794 = vadd.f32 %v3674, %v3747
  %v3795 = vadd.f32 %v3677, %v3747
  %v3796 = vadd.f32 %v3682, %v3747
  %v3797 = vadd.f32 %v3685, %v3747
  %v3798 = vadd.f32 %v3690, %v3747
  %v3799 = vadd.f32 %v3693, %v3747
  %v3800 = vadd.f32 %v3698, %v3747
  %v3801 = vadd.f32 %v3701, %v3747
  %v3802 = vadd.f32 %v3706, %v3747
  %v3803 = vadd.f32 %v3709, %v3747
  %v3804 = vadd.f32 %v3714, %v3747
  %v3805 = vadd.f32 %v3717, %v3747
  %v3806 = vadd.f32 %v3722, %v3747
  %v3807 = vadd.f32 %v3725, %v3747
  %v3808 = vadd.f32 %v3730, %v3747
  %v3809 = vadd.f32 %v3733, %v3747
  %v3810 = vadd.f32 %v3738, %v3747
  %v3811 = vadd.f32 %v3741, %v3747
  %v3812 = vmax.f32 %v3748, 0.0
  %v3813 = vmax.f32 %v3749, 0.0
  %v3814 = vmax.f32 %v3750, 0.0
  %v3815 = vmax.f32 %v3751, 0.0
  %v3816 = vmax.f32 %v3752, 0.0
  %v3817 = vmax.f32 %v3753, 0.0
  %v3818 = vmax.f32 %v3754, 0.0
  %v3819 = vmax.f32 %v3755, 0.0
  %v3820 = vmax.f32 %v3756, 0.0
  %v3821 = vmax.f32 %v3757, 0.0
  %v3822 = vmax.f32 %v3758, 0.0
  %v3823 = vmax.f32 %v3759, 0.0
  %v3824 = vmax.f32 %v3760, 0.0
  %v3825 = vmax.f32 %v3761, 0.0
  %v3826 = vmax.f32 %v3762, 0.0
  %v3827 = vmax.f32 %v3763, 0.0
  %v3828 = vmax.f32 %v3764, 0.0
  %v3829 = vmax.f32 %v3765, 0.0
  %v3830 = vmax.f32 %v3766, 0.0
  %v3831 = vmax.f32 %v3767, 0.0
  %v3832 = vmax.f32 %v3768, 0.0
  %v3833 = vmax.f32 %v3769, 0.0
  %v3834 = vmax.f32 %v3770, 0.0
  %v3835 = vmax.f32 %v3771, 0.0
  %v3836 = vmax.f32 %v3772, 0.0
  %v3837 = vmax.f32 %v3773, 0.0
  %v3838 = vmax.f32 %v3774, 0.0
  %v3839 = vmax.f32 %v3775, 0.0
  %v3840 = vmax.f32 %v3776, 0.0
  %v3841 = vmax.f32 %v3777, 0.0
  %v3842 = vmax.f32 %v3778, 0.0
  %v3843 = vmax.f32 %v3779, 0.0
  %v3844 = vmax.f32 %v3780, 0.0
  %v3845 = vmax.f32 %v3781, 0.0
  %v3846 = vmax.f32 %v3782, 0.0
  %v3847 = vmax.f32 %v3783, 0.0
  %v3848 = vmax.f32 %v3784, 0.0
  %v3849 = vmax.f32 %v3785, 0.0
  %v3850 = vmax.f32 %v3786, 0.0
  %v3851 = vmax.f32 %v3787, 0.0
  %v3852 = vmax.f32 %v3788, 0.0
  %v3853 = vmax.f32 %v3789, 0.0
  %v3854 = vmax.f32 %v3790, 0.0
  %v3855 = vmax.f32 %v3791, 0.0
  %v3856 = vmax.f32 %v3792, 0.0
  %v3857 = vmax.f32 %v3793, 0.0
  %v3858 = vmax.f32 %v3794, 0.0
  %v3859 = vmax.f32 %v3795, 0.0
  %v3860 = vmax.f32 %v3796, 0.0
  %v3861 = vmax.f32 %v3797, 0.0
  %v3862 = vmax.f32 %v3798, 0.0
  %v3863 = vmax.f32 %v3799, 0.0
  %v3864 = vmax.f32 %v3800, 0.0
  %v3865 = vmax.f32 %v3801, 0.0
  %v3866 = vmax.f32 %v3802, 0.0
  %v3867 = vmax.f32 %v3803, 0.0
  %v3868 = vmax.f32 %v3804, 0.0
  %v3869 = vmax.f32 %v3805, 0.0
  %v3870 = vmax.f32 %v3806, 0.0
  %v3871 = vmax.f32 %v3807, 0.0
  %v3872 = vmax.f32 %v3808, 0.0
  %v3873 = vmax.f32 %v3809, 0.0
  %v3874 = vmax.f32 %v3810, 0.0
  %v3875 = vmax.f32 %v3811, 0.0
  %v3876 = vpack.c.bf16 %v3813, %v3812
  %v3877 = vpack.c.bf16 %v3815, %v3814
  %v3878 = vpack.c.bf16 %v3817, %v3816
  %v3879 = vpack.c.bf16 %v3819, %v3818
  %v3880 = vpack.c.bf16 %v3821, %v3820
  %v3881 = vpack.c.bf16 %v3823, %v3822
  %v3882 = vpack.c.bf16 %v3825, %v3824
  %v3883 = vpack.c.bf16 %v3827, %v3826
  %v3884 = vpack.c.bf16 %v3829, %v3828
  %v3885 = vpack.c.bf16 %v3831, %v3830
  %v3886 = vpack.c.bf16 %v3833, %v3832
  %v3887 = vpack.c.bf16 %v3835, %v3834
  %v3888 = vpack.c.bf16 %v3837, %v3836
  %v3889 = vpack.c.bf16 %v3839, %v3838
  %v3890 = vpack.c.bf16 %v3841, %v3840
  %v3891 = vpack.c.bf16 %v3843, %v3842
  %v3892 = vpack.c.bf16 %v3845, %v3844
  %v3893 = vpack.c.bf16 %v3847, %v3846
  %v3894 = vpack.c.bf16 %v3849, %v3848
  %v3895 = vpack.c.bf16 %v3851, %v3850
  %v3896 = vpack.c.bf16 %v3853, %v3852
  %v3897 = vpack.c.bf16 %v3855, %v3854
  %v3898 = vpack.c.bf16 %v3857, %v3856
  %v3899 = vpack.c.bf16 %v3859, %v3858
  %v3900 = vpack.c.bf16 %v3861, %v3860
  %v3901 = vpack.c.bf16 %v3863, %v3862
  %v3902 = vpack.c.bf16 %v3865, %v3864
  %v3903 = vpack.c.bf16 %v3867, %v3866
  %v3904 = vpack.c.bf16 %v3869, %v3868
  %v3905 = vpack.c.bf16 %v3871, %v3870
  %v3906 = vpack.c.bf16 %v3873, %v3872
  %v3907 = vpack.c.bf16 %v3875, %v3874
  %v3912 = vunpack.c.l.b16 %v3049
  %v3913 = vunpack.c.l.b16 %v3050
  %v3914 = vunpack.c.l.b16 %v3051
  %v3915 = vunpack.c.l.b16 %v3052
  %v3916 = vpack.c.b16 %v3913, %v3912
  %v3917 = vpack.c.b16 %v3915, %v3914
  %3921 = vrot.lane.b32.xlu0 %v3747, 64
  %v3922 = vpop.permute.xlu0 %3921
  %v3925 = vsel %vm1583, %v3876, 0
  %v3928 = vsel %vm1583, %v3877, 0
  %v3931 = vsel %vm1583, %v3878, 0
  %v3934 = vsel %vm1583, %v3879, 0
  %v3937 = vsel %vm1583, %v3880, 0
  %v3940 = vsel %vm1583, %v3881, 0
  %v3943 = vsel %vm1583, %v3882, 0
  %v3946 = vsel %vm1583, %v3883, 0
  %v3949 = vsel %vm1583, %v3884, 0
  %v3952 = vsel %vm1583, %v3885, 0
  %v3955 = vsel %vm1583, %v3886, 0
  %v3958 = vsel %vm1583, %v3887, 0
  %v3961 = vsel %vm1583, %v3888, 0
  %v3964 = vsel %vm1583, %v3889, 0
  %v3967 = vsel %vm1583, %v3890, 0
  %v3970 = vsel %vm1583, %v3891, 0
  %v3973 = vsel %vm1583, %v3892, 0
  %v3976 = vsel %vm1583, %v3893, 0
  %v3979 = vsel %vm1583, %v3894, 0
  %v3982 = vsel %vm1583, %v3895, 0
  %v3985 = vsel %vm1583, %v3896, 0
  %v3988 = vsel %vm1583, %v3897, 0
  %v3991 = vsel %vm1583, %v3898, 0
  %v3994 = vsel %vm1583, %v3899, 0
  %v3997 = vsel %vm1583, %v3900, 0
  %v4000 = vsel %vm1583, %v3901, 0
  %v4003 = vsel %vm1583, %v3902, 0
  %v4006 = vsel %vm1583, %v3903, 0
  %v4009 = vsel %vm1583, %v3904, 0
  %v4012 = vsel %vm1583, %v3905, 0
  %v4015 = vsel %vm1583, %v3906, 0
  %v4018 = vsel %vm1583, %v3907, 0
  %4020 = vmatprep.subr.bf16.mxu0 0
  %4021 = vmatpush1.bf16.msra.mxu0 %v3916
  %4022 = vmatprep.subr.bf16.mxu0 0
  %4023 = vmatpush1.bf16.msra.mxu0 %v3917
  %4024 = vmatprep.subr.bf16.mxu0 0
  %4025 = vmatpush1.bf16.msra.mxu0 0
  %4026 = vmatprep.subr.bf16.mxu0 0
  %4027 = vmatpush1.bf16.msra.mxu0 0
  %4028 = vmatprep.subr.bf16.mxu0 0
  %4029 = vmatpush1.bf16.msra.mxu0 0
  %4030 = vmatprep.subr.bf16.mxu0 0
  %4031 = vmatpush1.bf16.msra.mxu0 0
  %4032 = vmatprep.subr.bf16.mxu0 0
  %4033 = vmatpush1.bf16.msra.mxu0 0
  %4034 = vmatprep.subr.bf16.mxu0 0
  %4035 = vmatpush1.bf16.msra.mxu0 0
  %4036 = vmatprep.subr.bf16.mxu0 0
  %4037 = vmatpush1.bf16.msra.mxu0 0
  %4038 = vmatprep.subr.bf16.mxu0 0
  %4039 = vmatpush1.bf16.msra.mxu0 0
  %4040 = vmatprep.subr.bf16.mxu0 0
  %4041 = vmatpush1.bf16.msra.mxu0 0
  %4042 = vmatprep.subr.bf16.mxu0 0
  %4043 = vmatpush1.bf16.msra.mxu0 0
  %4044 = vmatprep.subr.bf16.mxu0 0
  %4045 = vmatpush1.bf16.msra.mxu0 0
  %4046 = vmatprep.subr.bf16.mxu0 0
  %4047 = vmatpush1.bf16.msra.mxu0 0
  %4048 = vmatprep.subr.bf16.mxu0 0
  %4049 = vmatpush1.bf16.msra.mxu0 0
  %4050 = vmatprep.subr.bf16.mxu0 0
  %4051 = vmatpush1.bf16.msra.mxu0 0
  %4052 = vmatprep.mubr.bf16.mxu0 0
  %4053 = vmatmul.mubr.bf16.gmra.mrb[0].mxu0 %v3925
  %v4054 = vpop.f32.mrb[0].mxu0
  %v4055 = vadd.f32 %v3922, %v4054
  %v4056 = vpop.f32.mrb[0].mxu0
  %v4057 = vpop.f32.mrb[0].mxu0
  %v4058 = vadd.f32 %v3922, %v4057
  %v4059 = vpop.f32.mrb[0].mxu0
  %4060 = vmatprep.mubr.bf16.mxu0 0
  %4061 = vmatmul.mubr.bf16.gmra.mrb[0].mxu0 %v3928
  %v4062 = vpop.f32.mrb[0].mxu0
  %v4063 = vadd.f32 %v3922, %v4062
  %v4064 = vpop.f32.mrb[0].mxu0
  %v4065 = vpop.f32.mrb[0].mxu0
  %v4066 = vadd.f32 %v3922, %v4065
  %v4067 = vpop.f32.mrb[0].mxu0
  %4068 = vmatprep.mubr.bf16.mxu0 0
  %4069 = vmatmul.mubr.bf16.gmra.mrb[0].mxu0 %v3931
  %v4070 = vpop.f32.mrb[0].mxu0
  %v4071 = vadd.f32 %v3922, %v4070
  %v4072 = vpop.f32.mrb[0].mxu0
  %v4073 = vpop.f32.mrb[0].mxu0
  %v4074 = vadd.f32 %v3922, %v4073
  %v4075 = vpop.f32.mrb[0].mxu0
  %4076 = vmatprep.mubr.bf16.mxu0 0
  %4077 = vmatmul.mubr.bf16.gmra.mrb[0].mxu0 %v3934
  %v4078 = vpop.f32.mrb[0].mxu0
  %v4079 = vadd.f32 %v3922, %v4078
  %v4080 = vpop.f32.mrb[0].mxu0
  %v4081 = vpop.f32.mrb[0].mxu0
  %v4082 = vadd.f32 %v3922, %v4081
  %v4083 = vpop.f32.mrb[0].mxu0
  %4084 = vmatprep.mubr.bf16.mxu0 0
  %4085 = vmatmul.mubr.bf16.gmra.mrb[0].mxu0 %v3937
  %v4086 = vpop.f32.mrb[0].mxu0
  %v4087 = vadd.f32 %v3922, %v4086
  %v4088 = vpop.f32.mrb[0].mxu0
  %v4089 = vpop.f32.mrb[0].mxu0
  %v4090 = vadd.f32 %v3922, %v4089
  %v4091 = vpop.f32.mrb[0].mxu0
  %4092 = vmatprep.mubr.bf16.mxu0 0
  %4093 = vmatmul.mubr.bf16.gmra.mrb[0].mxu0 %v3940
  %v4094 = vpop.f32.mrb[0].mxu0
  %v4095 = vadd.f32 %v3922, %v4094
  %v4096 = vpop.f32.mrb[0].mxu0
  %v4097 = vpop.f32.mrb[0].mxu0
  %v4098 = vadd.f32 %v3922, %v4097
  %v4099 = vpop.f32.mrb[0].mxu0
  %4100 = vmatprep.mubr.bf16.mxu0 0
  %4101 = vmatmul.mubr.bf16.gmra.mrb[0].mxu0 %v3943
  %v4102 = vpop.f32.mrb[0].mxu0
  %v4103 = vadd.f32 %v3922, %v4102
  %v4104 = vpop.f32.mrb[0].mxu0
  %v4105 = vpop.f32.mrb[0].mxu0
  %v4106 = vadd.f32 %v3922, %v4105
  %v4107 = vpop.f32.mrb[0].mxu0
  %4108 = vmatprep.mubr.bf16.mxu0 0
  %4109 = vmatmul.mubr.bf16.gmra.mrb[0].mxu0 %v3946
  %v4110 = vpop.f32.mrb[0].mxu0
  %v4111 = vadd.f32 %v3922, %v4110
  %v4112 = vpop.f32.mrb[0].mxu0
  %v4113 = vpop.f32.mrb[0].mxu0
  %v4114 = vadd.f32 %v3922, %v4113
  %v4115 = vpop.f32.mrb[0].mxu0
  %4116 = vmatprep.mubr.bf16.mxu0 0
  %4117 = vmatmul.mubr.bf16.gmra.mrb[0].mxu0 %v3949
  %v4118 = vpop.f32.mrb[0].mxu0
  %v4119 = vadd.f32 %v3922, %v4118
  %v4120 = vpop.f32.mrb[0].mxu0
  %v4121 = vpop.f32.mrb[0].mxu0
  %v4122 = vadd.f32 %v3922, %v4121
  %v4123 = vpop.f32.mrb[0].mxu0
  %4124 = vmatprep.mubr.bf16.mxu0 0
  %4125 = vmatmul.mubr.bf16.gmra.mrb[0].mxu0 %v3952
  %v4126 = vpop.f32.mrb[0].mxu0
  %v4127 = vadd.f32 %v3922, %v4126
  %v4128 = vpop.f32.mrb[0].mxu0
  %v4129 = vpop.f32.mrb[0].mxu0
  %v4130 = vadd.f32 %v3922, %v4129
  %v4131 = vpop.f32.mrb[0].mxu0
  %4132 = vmatprep.mubr.bf16.mxu0 0
  %4133 = vmatmul.mubr.bf16.gmra.mrb[0].mxu0 %v3955
  %v4134 = vpop.f32.mrb[0].mxu0
  %v4135 = vadd.f32 %v3922, %v4134
  %v4136 = vpop.f32.mrb[0].mxu0
  %v4137 = vpop.f32.mrb[0].mxu0
  %v4138 = vadd.f32 %v3922, %v4137
  %v4139 = vpop.f32.mrb[0].mxu0
  %4140 = vmatprep.mubr.bf16.mxu0 0
  %4141 = vmatmul.mubr.bf16.gmra.mrb[0].mxu0 %v3958
  %v4142 = vpop.f32.mrb[0].mxu0
  %v4143 = vadd.f32 %v3922, %v4142
  %v4144 = vpop.f32.mrb[0].mxu0
  %v4145 = vpop.f32.mrb[0].mxu0
  %v4146 = vadd.f32 %v3922, %v4145
  %v4147 = vpop.f32.mrb[0].mxu0
  %4148 = vmatprep.mubr.bf16.mxu0 0
  %4149 = vmatmul.mubr.bf16.gmra.mrb[0].mxu0 %v3961
  %v4150 = vpop.f32.mrb[0].mxu0
  %v4151 = vadd.f32 %v3922, %v4150
  %v4152 = vpop.f32.mrb[0].mxu0
  %v4153 = vpop.f32.mrb[0].mxu0
  %v4154 = vadd.f32 %v3922, %v4153
  %v4155 = vpop.f32.mrb[0].mxu0
  %4156 = vmatprep.mubr.bf16.mxu0 0
  %4157 = vmatmul.mubr.bf16.gmra.mrb[0].mxu0 %v3964
  %v4158 = vpop.f32.mrb[0].mxu0
  %v4159 = vadd.f32 %v3922, %v4158
  %v4160 = vpop.f32.mrb[0].mxu0
  %v4161 = vpop.f32.mrb[0].mxu0
  %v4162 = vadd.f32 %v3922, %v4161
  %v4163 = vpop.f32.mrb[0].mxu0
  %4164 = vmatprep.mubr.bf16.mxu0 0
  %4165 = vmatmul.mubr.bf16.gmra.mrb[0].mxu0 %v3967
  %v4166 = vpop.f32.mrb[0].mxu0
  %v4167 = vadd.f32 %v3922, %v4166
  %v4168 = vpop.f32.mrb[0].mxu0
  %v4169 = vpop.f32.mrb[0].mxu0
  %v4170 = vadd.f32 %v3922, %v4169
  %v4171 = vpop.f32.mrb[0].mxu0
  %4172 = vmatprep.mubr.bf16.mxu0 0
  %4173 = vmatmul.mubr.bf16.gmra.mrb[0].mxu0 %v3970
  %v4174 = vpop.f32.mrb[0].mxu0
  %v4175 = vadd.f32 %v3922, %v4174
  %v4176 = vpop.f32.mrb[0].mxu0
  %v4177 = vpop.f32.mrb[0].mxu0
  %v4178 = vadd.f32 %v3922, %v4177
  %v4179 = vpop.f32.mrb[0].mxu0
  %4180 = vmatprep.mubr.bf16.mxu0 0
  %4181 = vmatmul.mubr.bf16.gmra.mrb[0].mxu0 %v3973
  %v4182 = vpop.f32.mrb[0].mxu0
  %v4183 = vadd.f32 %v3922, %v4182
  %v4184 = vpop.f32.mrb[0].mxu0
  %v4185 = vpop.f32.mrb[0].mxu0
  %v4186 = vadd.f32 %v3922, %v4185
  %v4187 = vpop.f32.mrb[0].mxu0
  %4188 = vmatprep.mubr.bf16.mxu0 0
  %4189 = vmatmul.mubr.bf16.gmra.mrb[0].mxu0 %v3976
  %v4190 = vpop.f32.mrb[0].mxu0
  %v4191 = vadd.f32 %v3922, %v4190
  %v4192 = vpop.f32.mrb[0].mxu0
  %v4193 = vpop.f32.mrb[0].mxu0
  %v4194 = vadd.f32 %v3922, %v4193
  %v4195 = vpop.f32.mrb[0].mxu0
  %4196 = vmatprep.mubr.bf16.mxu0 0
  %4197 = vmatmul.mubr.bf16.gmra.mrb[0].mxu0 %v3979
  %v4198 = vpop.f32.mrb[0].mxu0
  %v4199 = vadd.f32 %v3922, %v4198
  %v4200 = vpop.f32.mrb[0].mxu0
  %v4201 = vpop.f32.mrb[0].mxu0
  %v4202 = vadd.f32 %v3922, %v4201
  %v4203 = vpop.f32.mrb[0].mxu0
  %4204 = vmatprep.mubr.bf16.mxu0 0
  %4205 = vmatmul.mubr.bf16.gmra.mrb[0].mxu0 %v3982
  %v4206 = vpop.f32.mrb[0].mxu0
  %v4207 = vadd.f32 %v3922, %v4206
  %v4208 = vpop.f32.mrb[0].mxu0
  %v4209 = vpop.f32.mrb[0].mxu0
  %v4210 = vadd.f32 %v3922, %v4209
  %v4211 = vpop.f32.mrb[0].mxu0
  %4212 = vmatprep.mubr.bf16.mxu0 0
  %4213 = vmatmul.mubr.bf16.gmra.mrb[0].mxu0 %v3985
  %v4214 = vpop.f32.mrb[0].mxu0
  %v4215 = vadd.f32 %v3922, %v4214
  %v4216 = vpop.f32.mrb[0].mxu0
  %v4217 = vpop.f32.mrb[0].mxu0
  %v4218 = vadd.f32 %v3922, %v4217
  %v4219 = vpop.f32.mrb[0].mxu0
  %4220 = vmatprep.mubr.bf16.mxu0 0
  %4221 = vmatmul.mubr.bf16.gmra.mrb[0].mxu0 %v3988
  %v4222 = vpop.f32.mrb[0].mxu0
  %v4223 = vadd.f32 %v3922, %v4222
  %v4224 = vpop.f32.mrb[0].mxu0
  %v4225 = vpop.f32.mrb[0].mxu0
  %v4226 = vadd.f32 %v3922, %v4225
  %v4227 = vpop.f32.mrb[0].mxu0
  %4228 = vmatprep.mubr.bf16.mxu0 0
  %4229 = vmatmul.mubr.bf16.gmra.mrb[0].mxu0 %v3991
  %v4230 = vpop.f32.mrb[0].mxu0
  %v4231 = vadd.f32 %v3922, %v4230
  %v4232 = vpop.f32.mrb[0].mxu0
  %v4233 = vpop.f32.mrb[0].mxu0
  %v4234 = vadd.f32 %v3922, %v4233
  %v4235 = vpop.f32.mrb[0].mxu0
  %4236 = vmatprep.mubr.bf16.mxu0 0
  %4237 = vmatmul.mubr.bf16.gmra.mrb[0].mxu0 %v3994
  %v4238 = vpop.f32.mrb[0].mxu0
  %v4239 = vadd.f32 %v3922, %v4238
  %v4240 = vpop.f32.mrb[0].mxu0
  %v4241 = vpop.f32.mrb[0].mxu0
  %v4242 = vadd.f32 %v3922, %v4241
  %v4243 = vpop.f32.mrb[0].mxu0
  %4244 = vmatprep.mubr.bf16.mxu0 0
  %4245 = vmatmul.mubr.bf16.gmra.mrb[0].mxu0 %v3997
  %v4246 = vpop.f32.mrb[0].mxu0
  %v4247 = vadd.f32 %v3922, %v4246
  %v4248 = vpop.f32.mrb[0].mxu0
  %v4249 = vpop.f32.mrb[0].mxu0
  %v4250 = vadd.f32 %v3922, %v4249
  %v4251 = vpop.f32.mrb[0].mxu0
  %4252 = vmatprep.mubr.bf16.mxu0 0
  %4253 = vmatmul.mubr.bf16.gmra.mrb[0].mxu0 %v4000
  %v4254 = vpop.f32.mrb[0].mxu0
  %v4255 = vadd.f32 %v3922, %v4254
  %v4256 = vpop.f32.mrb[0].mxu0
  %v4257 = vpop.f32.mrb[0].mxu0
  %v4258 = vadd.f32 %v3922, %v4257
  %v4259 = vpop.f32.mrb[0].mxu0
  %4260 = vmatprep.mubr.bf16.mxu0 0
  %4261 = vmatmul.mubr.bf16.gmra.mrb[0].mxu0 %v4003
  %v4262 = vpop.f32.mrb[0].mxu0
  %v4263 = vadd.f32 %v3922, %v4262
  %v4264 = vpop.f32.mrb[0].mxu0
  %v4265 = vpop.f32.mrb[0].mxu0
  %v4266 = vadd.f32 %v3922, %v4265
  %v4267 = vpop.f32.mrb[0].mxu0
  %4268 = vmatprep.mubr.bf16.mxu0 0
  %4269 = vmatmul.mubr.bf16.gmra.mrb[0].mxu0 %v4006
  %v4270 = vpop.f32.mrb[0].mxu0
  %v4271 = vadd.f32 %v3922, %v4270
  %v4272 = vpop.f32.mrb[0].mxu0
  %v4273 = vpop.f32.mrb[0].mxu0
  %v4274 = vadd.f32 %v3922, %v4273
  %v4275 = vpop.f32.mrb[0].mxu0
  %4276 = vmatprep.mubr.bf16.mxu0 0
  %4277 = vmatmul.mubr.bf16.gmra.mrb[0].mxu0 %v4009
  %v4278 = vpop.f32.mrb[0].mxu0
  %v4279 = vadd.f32 %v3922, %v4278
  %v4280 = vpop.f32.mrb[0].mxu0
  %v4281 = vpop.f32.mrb[0].mxu0
  %v4282 = vadd.f32 %v3922, %v4281
  %v4283 = vpop.f32.mrb[0].mxu0
  %4284 = vmatprep.mubr.bf16.mxu0 0
  %4285 = vmatmul.mubr.bf16.gmra.mrb[0].mxu0 %v4012
  %v4286 = vpop.f32.mrb[0].mxu0
  %v4287 = vadd.f32 %v3922, %v4286
  %v4288 = vpop.f32.mrb[0].mxu0
  %v4289 = vpop.f32.mrb[0].mxu0
  %v4290 = vadd.f32 %v3922, %v4289
  %v4291 = vpop.f32.mrb[0].mxu0
  %4292 = vmatprep.mubr.bf16.mxu0 0
  %4293 = vmatmul.mubr.bf16.gmra.mrb[0].mxu0 %v4015
  %v4294 = vpop.f32.mrb[0].mxu0
  %v4295 = vadd.f32 %v3922, %v4294
  %v4296 = vpop.f32.mrb[0].mxu0
  %v4297 = vpop.f32.mrb[0].mxu0
  %v4298 = vadd.f32 %v3922, %v4297
  %v4299 = vpop.f32.mrb[0].mxu0
  %4300 = vmatprep.mubr.bf16.mxu0 0
  %4301 = vmatmul.mubr.bf16.gmra.mrb[0].mxu0 %v4018
  %v4302 = vpop.f32.mrb[0].mxu0
  %v4303 = vadd.f32 %v3922, %v4302
  %v4304 = vpop.f32.mrb[0].mxu0
  %v4305 = vpop.f32.mrb[0].mxu0
  %v4306 = vadd.f32 %v3922, %v4305
  %v4307 = vpop.f32.mrb[0].mxu0
  %4308 = vdwg.mxu0
  %v4309 = vmax.f32 %v4055, 0.0
  %v4310 = vmax.f32 %v4058, 0.0
  %v4311 = vmax.f32 %v4063, 0.0
  %v4312 = vmax.f32 %v4066, 0.0
  %v4313 = vmax.f32 %v4071, 0.0
  %v4314 = vmax.f32 %v4074, 0.0
  %v4315 = vmax.f32 %v4079, 0.0
  %v4316 = vmax.f32 %v4082, 0.0
  %v4317 = vmax.f32 %v4087, 0.0
  %v4318 = vmax.f32 %v4090, 0.0
  %v4319 = vmax.f32 %v4095, 0.0
  %v4320 = vmax.f32 %v4098, 0.0
  %v4321 = vmax.f32 %v4103, 0.0
  %v4322 = vmax.f32 %v4106, 0.0
  %v4323 = vmax.f32 %v4111, 0.0
  %v4324 = vmax.f32 %v4114, 0.0
  %v4325 = vmax.f32 %v4119, 0.0
  %v4326 = vmax.f32 %v4122, 0.0
  %v4327 = vmax.f32 %v4127, 0.0
  %v4328 = vmax.f32 %v4130, 0.0
  %v4329 = vmax.f32 %v4135, 0.0
  %v4330 = vmax.f32 %v4138, 0.0
  %v4331 = vmax.f32 %v4143, 0.0
  %v4332 = vmax.f32 %v4146, 0.0
  %v4333 = vmax.f32 %v4151, 0.0
  %v4334 = vmax.f32 %v4154, 0.0
  %v4335 = vmax.f32 %v4159, 0.0
  %v4336 = vmax.f32 %v4162, 0.0
  %v4337 = vmax.f32 %v4167, 0.0
  %v4338 = vmax.f32 %v4170, 0.0
  %v4339 = vmax.f32 %v4175, 0.0
  %v4340 = vmax.f32 %v4178, 0.0
  %v4341 = vmax.f32 %v4183, 0.0
  %v4342 = vmax.f32 %v4186, 0.0
  %v4343 = vmax.f32 %v4191, 0.0
  %v4344 = vmax.f32 %v4194, 0.0
  %v4345 = vmax.f32 %v4199, 0.0
  %v4346 = vmax.f32 %v4202, 0.0
  %v4347 = vmax.f32 %v4207, 0.0
  %v4348 = vmax.f32 %v4210, 0.0
  %v4349 = vmax.f32 %v4215, 0.0
  %v4350 = vmax.f32 %v4218, 0.0
  %v4351 = vmax.f32 %v4223, 0.0
  %v4352 = vmax.f32 %v4226, 0.0
  %v4353 = vmax.f32 %v4231, 0.0
  %v4354 = vmax.f32 %v4234, 0.0
  %v4355 = vmax.f32 %v4239, 0.0
  %v4356 = vmax.f32 %v4242, 0.0
  %v4357 = vmax.f32 %v4247, 0.0
  %v4358 = vmax.f32 %v4250, 0.0
  %v4359 = vmax.f32 %v4255, 0.0
  %v4360 = vmax.f32 %v4258, 0.0
  %v4361 = vmax.f32 %v4263, 0.0
  %v4362 = vmax.f32 %v4266, 0.0
  %v4363 = vmax.f32 %v4271, 0.0
  %v4364 = vmax.f32 %v4274, 0.0
  %v4365 = vmax.f32 %v4279, 0.0
  %v4366 = vmax.f32 %v4282, 0.0
  %v4367 = vmax.f32 %v4287, 0.0
  %v4368 = vmax.f32 %v4290, 0.0
  %v4369 = vmax.f32 %v4295, 0.0
  %v4370 = vmax.f32 %v4298, 0.0
  %v4371 = vmax.f32 %v4303, 0.0
  %v4372 = vmax.f32 %v4306, 0.0
  %v4373 = vpack.c.bf16 %v4310, %v4309
  %v4374 = vpack.c.bf16 %v4312, %v4311
  %v4375 = vpack.c.bf16 %v4314, %v4313
  %v4376 = vpack.c.bf16 %v4316, %v4315
  %v4377 = vpack.c.bf16 %v4318, %v4317
  %v4378 = vpack.c.bf16 %v4320, %v4319
  %v4379 = vpack.c.bf16 %v4322, %v4321
  %v4380 = vpack.c.bf16 %v4324, %v4323
  %v4381 = vpack.c.bf16 %v4326, %v4325
  %v4382 = vpack.c.bf16 %v4328, %v4327
  %v4383 = vpack.c.bf16 %v4330, %v4329
  %v4384 = vpack.c.bf16 %v4332, %v4331
  %v4385 = vpack.c.bf16 %v4334, %v4333
  %v4386 = vpack.c.bf16 %v4336, %v4335
  %v4387 = vpack.c.bf16 %v4338, %v4337
  %v4388 = vpack.c.bf16 %v4340, %v4339
  %v4389 = vpack.c.bf16 %v4342, %v4341
  %v4390 = vpack.c.bf16 %v4344, %v4343
  %v4391 = vpack.c.bf16 %v4346, %v4345
  %v4392 = vpack.c.bf16 %v4348, %v4347
  %v4393 = vpack.c.bf16 %v4350, %v4349
  %v4394 = vpack.c.bf16 %v4352, %v4351
  %v4395 = vpack.c.bf16 %v4354, %v4353
  %v4396 = vpack.c.bf16 %v4356, %v4355
  %v4397 = vpack.c.bf16 %v4358, %v4357
  %v4398 = vpack.c.bf16 %v4360, %v4359
  %v4399 = vpack.c.bf16 %v4362, %v4361
  %v4400 = vpack.c.bf16 %v4364, %v4363
  %v4401 = vpack.c.bf16 %v4366, %v4365
  %v4402 = vpack.c.bf16 %v4368, %v4367
  %v4403 = vpack.c.bf16 %v4370, %v4369
  %v4404 = vpack.c.bf16 %v4372, %v4371
  %4405 = vrot.lane.b32.xlu0 %v3916, 96
  %v4406 = vpop.permute.xlu0 %4405
  %4407 = vrot.lane.b32.xlu0 %v3917, 96
  %v4408 = vpop.permute.xlu0 %4407
  %4411 = vrot.lane.b32.xlu0 %v3747, 32
  %v4412 = vpop.permute.xlu0 %4411
  %v4415 = vsel %vm1583, %v4373, 0
  %v4418 = vsel %vm1583, %v4374, 0
  %v4421 = vsel %vm1583, %v4375, 0
  %v4424 = vsel %vm1583, %v4376, 0
  %v4427 = vsel %vm1583, %v4377, 0
  %v4430 = vsel %vm1583, %v4378, 0
  %v4433 = vsel %vm1583, %v4379, 0
  %v4436 = vsel %vm1583, %v4380, 0
  %v4439 = vsel %vm1583, %v4381, 0
  %v4442 = vsel %vm1583, %v4382, 0
  %v4445 = vsel %vm1583, %v4383, 0
  %v4448 = vsel %vm1583, %v4384, 0
  %v4451 = vsel %vm1583, %v4385, 0
  %v4454 = vsel %vm1583, %v4386, 0
  %v4457 = vsel %vm1583, %v4387, 0
  %v4460 = vsel %vm1583, %v4388, 0
  %v4463 = vsel %vm1583, %v4389, 0
  %v4466 = vsel %vm1583, %v4390, 0
  %v4469 = vsel %vm1583, %v4391, 0
  %v4472 = vsel %vm1583, %v4392, 0
  %v4475 = vsel %vm1583, %v4393, 0
  %v4478 = vsel %vm1583, %v4394, 0
  %v4481 = vsel %vm1583, %v4395, 0
  %v4484 = vsel %vm1583, %v4396, 0
  %v4487 = vsel %vm1583, %v4397, 0
  %v4490 = vsel %vm1583, %v4398, 0
  %v4493 = vsel %vm1583, %v4399, 0
  %v4496 = vsel %vm1583, %v4400, 0
  %v4499 = vsel %vm1583, %v4401, 0
  %v4502 = vsel %vm1583, %v4402, 0
  %v4505 = vsel %vm1583, %v4403, 0
  %v4508 = vsel %vm1583, %v4404, 0
  %4510 = vmatprep.subr.bf16.mxu0 0
  %4511 = vmatpush1.bf16.msra.mxu0 %v4406
  %4512 = vmatprep.subr.bf16.mxu0 0
  %4513 = vmatpush1.bf16.msra.mxu0 %v4408
  %4514 = vmatprep.subr.bf16.mxu0 0
  %4515 = vmatpush1.bf16.msra.mxu0 0
  %4516 = vmatprep.subr.bf16.mxu0 0
  %4517 = vmatpush1.bf16.msra.mxu0 0
  %4518 = vmatprep.subr.bf16.mxu0 0
  %4519 = vmatpush1.bf16.msra.mxu0 0
  %4520 = vmatprep.subr.bf16.mxu0 0
  %4521 = vmatpush1.bf16.msra.mxu0 0
  %4522 = vmatprep.subr.bf16.mxu0 0
  %4523 = vmatpush1.bf16.msra.mxu0 0
  %4524 = vmatprep.subr.bf16.mxu0 0
  %4525 = vmatpush1.bf16.msra.mxu0 0
  %4526 = vmatprep.subr.bf16.mxu0 0
  %4527 = vmatpush1.bf16.msra.mxu0 0
  %4528 = vmatprep.subr.bf16.mxu0 0
  %4529 = vmatpush1.bf16.msra.mxu0 0
  %4530 = vmatprep.subr.bf16.mxu0 0
  %4531 = vmatpush1.bf16.msra.mxu0 0
  %4532 = vmatprep.subr.bf16.mxu0 0
  %4533 = vmatpush1.bf16.msra.mxu0 0
  %4534 = vmatprep.subr.bf16.mxu0 0
  %4535 = vmatpush1.bf16.msra.mxu0 0
  %4536 = vmatprep.subr.bf16.mxu0 0
  %4537 = vmatpush1.bf16.msra.mxu0 0
  %4538 = vmatprep.subr.bf16.mxu0 0
  %4539 = vmatpush1.bf16.msra.mxu0 0
  %4540 = vmatprep.subr.bf16.mxu0 0
  %4541 = vmatpush1.bf16.msra.mxu0 0
  %4542 = vmatprep.mubr.bf16.mxu0 0
  %4543 = vmatmul.mubr.bf16.gmra.mrb[0].mxu0 %v4415
  %v4544 = vpop.f32.mrb[0].mxu0
  %v4545 = vadd.f32 %v4412, %v4544
  %v4546 = vpop.f32.mrb[0].mxu0
  %v4547 = vpop.f32.mrb[0].mxu0
  %v4548 = vadd.f32 %v4412, %v4547
  %v4549 = vpop.f32.mrb[0].mxu0
  %4550 = vmatprep.mubr.bf16.mxu0 0
  %4551 = vmatmul.mubr.bf16.gmra.mrb[0].mxu0 %v4418
  %v4552 = vpop.f32.mrb[0].mxu0
  %v4553 = vadd.f32 %v4412, %v4552
  %v4554 = vpop.f32.mrb[0].mxu0
  %v4555 = vpop.f32.mrb[0].mxu0
  %v4556 = vadd.f32 %v4412, %v4555
  %v4557 = vpop.f32.mrb[0].mxu0
  %4558 = vmatprep.mubr.bf16.mxu0 0
  %4559 = vmatmul.mubr.bf16.gmra.mrb[0].mxu0 %v4421
  %v4560 = vpop.f32.mrb[0].mxu0
  %v4561 = vadd.f32 %v4412, %v4560
  %v4562 = vpop.f32.mrb[0].mxu0
  %v4563 = vpop.f32.mrb[0].mxu0
  %v4564 = vadd.f32 %v4412, %v4563
  %v4565 = vpop.f32.mrb[0].mxu0
  %4566 = vmatprep.mubr.bf16.mxu0 0
  %4567 = vmatmul.mubr.bf16.gmra.mrb[0].mxu0 %v4424
  %v4568 = vpop.f32.mrb[0].mxu0
  %v4569 = vadd.f32 %v4412, %v4568
  %v4570 = vpop.f32.mrb[0].mxu0
  %v4571 = vpop.f32.mrb[0].mxu0
  %v4572 = vadd.f32 %v4412, %v4571
  %v4573 = vpop.f32.mrb[0].mxu0
  %4574 = vmatprep.mubr.bf16.mxu0 0
  %4575 = vmatmul.mubr.bf16.gmra.mrb[0].mxu0 %v4427
  %v4576 = vpop.f32.mrb[0].mxu0
  %v4577 = vadd.f32 %v4412, %v4576
  %v4578 = vpop.f32.mrb[0].mxu0
  %v4579 = vpop.f32.mrb[0].mxu0
  %v4580 = vadd.f32 %v4412, %v4579
  %v4581 = vpop.f32.mrb[0].mxu0
  %4582 = vmatprep.mubr.bf16.mxu0 0
  %4583 = vmatmul.mubr.bf16.gmra.mrb[0].mxu0 %v4430
  %v4584 = vpop.f32.mrb[0].mxu0
  %v4585 = vadd.f32 %v4412, %v4584
  %v4586 = vpop.f32.mrb[0].mxu0
  %v4587 = vpop.f32.mrb[0].mxu0
  %v4588 = vadd.f32 %v4412, %v4587
  %v4589 = vpop.f32.mrb[0].mxu0
  %4590 = vmatprep.mubr.bf16.mxu0 0
  %4591 = vmatmul.mubr.bf16.gmra.mrb[0].mxu0 %v4433
  %v4592 = vpop.f32.mrb[0].mxu0
  %v4593 = vadd.f32 %v4412, %v4592
  %v4594 = vpop.f32.mrb[0].mxu0
  %v4595 = vpop.f32.mrb[0].mxu0
  %v4596 = vadd.f32 %v4412, %v4595
  %v4597 = vpop.f32.mrb[0].mxu0
  %4598 = vmatprep.mubr.bf16.mxu0 0
  %4599 = vmatmul.mubr.bf16.gmra.mrb[0].mxu0 %v4436
  %v4600 = vpop.f32.mrb[0].mxu0
  %v4601 = vadd.f32 %v4412, %v4600
  %v4602 = vpop.f32.mrb[0].mxu0
  %v4603 = vpop.f32.mrb[0].mxu0
  %v4604 = vadd.f32 %v4412, %v4603
  %v4605 = vpop.f32.mrb[0].mxu0
  %4606 = vmatprep.mubr.bf16.mxu0 0
  %4607 = vmatmul.mubr.bf16.gmra.mrb[0].mxu0 %v4439
  %v4608 = vpop.f32.mrb[0].mxu0
  %v4609 = vadd.f32 %v4412, %v4608
  %v4610 = vpop.f32.mrb[0].mxu0
  %v4611 = vpop.f32.mrb[0].mxu0
  %v4612 = vadd.f32 %v4412, %v4611
  %v4613 = vpop.f32.mrb[0].mxu0
  %4614 = vmatprep.mubr.bf16.mxu0 0
  %4615 = vmatmul.mubr.bf16.gmra.mrb[0].mxu0 %v4442
  %v4616 = vpop.f32.mrb[0].mxu0
  %v4617 = vadd.f32 %v4412, %v4616
  %v4618 = vpop.f32.mrb[0].mxu0
  %v4619 = vpop.f32.mrb[0].mxu0
  %v4620 = vadd.f32 %v4412, %v4619
  %v4621 = vpop.f32.mrb[0].mxu0
  %4622 = vmatprep.mubr.bf16.mxu0 0
  %4623 = vmatmul.mubr.bf16.gmra.mrb[0].mxu0 %v4445
  %v4624 = vpop.f32.mrb[0].mxu0
  %v4625 = vadd.f32 %v4412, %v4624
  %v4626 = vpop.f32.mrb[0].mxu0
  %v4627 = vpop.f32.mrb[0].mxu0
  %v4628 = vadd.f32 %v4412, %v4627
  %v4629 = vpop.f32.mrb[0].mxu0
  %4630 = vmatprep.mubr.bf16.mxu0 0
  %4631 = vmatmul.mubr.bf16.gmra.mrb[0].mxu0 %v4448
  %v4632 = vpop.f32.mrb[0].mxu0
  %v4633 = vadd.f32 %v4412, %v4632
  %v4634 = vpop.f32.mrb[0].mxu0
  %v4635 = vpop.f32.mrb[0].mxu0
  %v4636 = vadd.f32 %v4412, %v4635
  %v4637 = vpop.f32.mrb[0].mxu0
  %4638 = vmatprep.mubr.bf16.mxu0 0
  %4639 = vmatmul.mubr.bf16.gmra.mrb[0].mxu0 %v4451
  %v4640 = vpop.f32.mrb[0].mxu0
  %v4641 = vadd.f32 %v4412, %v4640
  %v4642 = vpop.f32.mrb[0].mxu0
  %v4643 = vpop.f32.mrb[0].mxu0
  %v4644 = vadd.f32 %v4412, %v4643
  %v4645 = vpop.f32.mrb[0].mxu0
  %4646 = vmatprep.mubr.bf16.mxu0 0
  %4647 = vmatmul.mubr.bf16.gmra.mrb[0].mxu0 %v4454
  %v4648 = vpop.f32.mrb[0].mxu0
  %v4649 = vadd.f32 %v4412, %v4648
  %v4650 = vpop.f32.mrb[0].mxu0
  %v4651 = vpop.f32.mrb[0].mxu0
  %v4652 = vadd.f32 %v4412, %v4651
  %v4653 = vpop.f32.mrb[0].mxu0
  %4654 = vmatprep.mubr.bf16.mxu0 0
  %4655 = vmatmul.mubr.bf16.gmra.mrb[0].mxu0 %v4457
  %v4656 = vpop.f32.mrb[0].mxu0
  %v4657 = vadd.f32 %v4412, %v4656
  %v4658 = vpop.f32.mrb[0].mxu0
  %v4659 = vpop.f32.mrb[0].mxu0
  %v4660 = vadd.f32 %v4412, %v4659
  %v4661 = vpop.f32.mrb[0].mxu0
  %4662 = vmatprep.mubr.bf16.mxu0 0
  %4663 = vmatmul.mubr.bf16.gmra.mrb[0].mxu0 %v4460
  %v4664 = vpop.f32.mrb[0].mxu0
  %v4665 = vadd.f32 %v4412, %v4664
  %v4666 = vpop.f32.mrb[0].mxu0
  %v4667 = vpop.f32.mrb[0].mxu0
  %v4668 = vadd.f32 %v4412, %v4667
  %v4669 = vpop.f32.mrb[0].mxu0
  %4670 = vmatprep.mubr.bf16.mxu0 0
  %4671 = vmatmul.mubr.bf16.gmra.mrb[0].mxu0 %v4463
  %v4672 = vpop.f32.mrb[0].mxu0
  %v4673 = vadd.f32 %v4412, %v4672
  %v4674 = vpop.f32.mrb[0].mxu0
  %v4675 = vpop.f32.mrb[0].mxu0
  %v4676 = vadd.f32 %v4412, %v4675
  %v4677 = vpop.f32.mrb[0].mxu0
  %4678 = vmatprep.mubr.bf16.mxu0 0
  %4679 = vmatmul.mubr.bf16.gmra.mrb[0].mxu0 %v4466
  %v4680 = vpop.f32.mrb[0].mxu0
  %v4681 = vadd.f32 %v4412, %v4680
  %v4682 = vpop.f32.mrb[0].mxu0
  %v4683 = vpop.f32.mrb[0].mxu0
  %v4684 = vadd.f32 %v4412, %v4683
  %v4685 = vpop.f32.mrb[0].mxu0
  %4686 = vmatprep.mubr.bf16.mxu0 0
  %4687 = vmatmul.mubr.bf16.gmra.mrb[0].mxu0 %v4469
  %v4688 = vpop.f32.mrb[0].mxu0
  %v4689 = vadd.f32 %v4412, %v4688
  %v4690 = vpop.f32.mrb[0].mxu0
  %v4691 = vpop.f32.mrb[0].mxu0
  %v4692 = vadd.f32 %v4412, %v4691
  %v4693 = vpop.f32.mrb[0].mxu0
  %4694 = vmatprep.mubr.bf16.mxu0 0
  %4695 = vmatmul.mubr.bf16.gmra.mrb[0].mxu0 %v4472
  %v4696 = vpop.f32.mrb[0].mxu0
  %v4697 = vadd.f32 %v4412, %v4696
  %v4698 = vpop.f32.mrb[0].mxu0
  %v4699 = vpop.f32.mrb[0].mxu0
  %v4700 = vadd.f32 %v4412, %v4699
  %v4701 = vpop.f32.mrb[0].mxu0
  %4702 = vmatprep.mubr.bf16.mxu0 0
  %4703 = vmatmul.mubr.bf16.gmra.mrb[0].mxu0 %v4475
  %v4704 = vpop.f32.mrb[0].mxu0
  %v4705 = vadd.f32 %v4412, %v4704
  %v4706 = vpop.f32.mrb[0].mxu0
  %v4707 = vpop.f32.mrb[0].mxu0
  %v4708 = vadd.f32 %v4412, %v4707
  %v4709 = vpop.f32.mrb[0].mxu0
  %4710 = vmatprep.mubr.bf16.mxu0 0
  %4711 = vmatmul.mubr.bf16.gmra.mrb[0].mxu0 %v4478
  %v4712 = vpop.f32.mrb[0].mxu0
  %v4713 = vadd.f32 %v4412, %v4712
  %v4714 = vpop.f32.mrb[0].mxu0
  %v4715 = vpop.f32.mrb[0].mxu0
  %v4716 = vadd.f32 %v4412, %v4715
  %v4717 = vpop.f32.mrb[0].mxu0
  %4718 = vmatprep.mubr.bf16.mxu0 0
  %4719 = vmatmul.mubr.bf16.gmra.mrb[0].mxu0 %v4481
  %v4720 = vpop.f32.mrb[0].mxu0
  %v4721 = vadd.f32 %v4412, %v4720
  %v4722 = vpop.f32.mrb[0].mxu0
  %v4723 = vpop.f32.mrb[0].mxu0
  %v4724 = vadd.f32 %v4412, %v4723
  %v4725 = vpop.f32.mrb[0].mxu0
  %4726 = vmatprep.mubr.bf16.mxu0 0
  %4727 = vmatmul.mubr.bf16.gmra.mrb[0].mxu0 %v4484
  %v4728 = vpop.f32.mrb[0].mxu0
  %v4729 = vadd.f32 %v4412, %v4728
  %v4730 = vpop.f32.mrb[0].mxu0
  %v4731 = vpop.f32.mrb[0].mxu0
  %v4732 = vadd.f32 %v4412, %v4731
  %v4733 = vpop.f32.mrb[0].mxu0
  %4734 = vmatprep.mubr.bf16.mxu0 0
  %4735 = vmatmul.mubr.bf16.gmra.mrb[0].mxu0 %v4487
  %v4736 = vpop.f32.mrb[0].mxu0
  %v4737 = vadd.f32 %v4412, %v4736
  %v4738 = vpop.f32.mrb[0].mxu0
  %v4739 = vpop.f32.mrb[0].mxu0
  %v4740 = vadd.f32 %v4412, %v4739
  %v4741 = vpop.f32.mrb[0].mxu0
  %4742 = vmatprep.mubr.bf16.mxu0 0
  %4743 = vmatmul.mubr.bf16.gmra.mrb[0].mxu0 %v4490
  %v4744 = vpop.f32.mrb[0].mxu0
  %v4745 = vadd.f32 %v4412, %v4744
  %v4746 = vpop.f32.mrb[0].mxu0
  %v4747 = vpop.f32.mrb[0].mxu0
  %v4748 = vadd.f32 %v4412, %v4747
  %v4749 = vpop.f32.mrb[0].mxu0
  %4750 = vmatprep.mubr.bf16.mxu0 0
  %4751 = vmatmul.mubr.bf16.gmra.mrb[0].mxu0 %v4493
  %v4752 = vpop.f32.mrb[0].mxu0
  %v4753 = vadd.f32 %v4412, %v4752
  %v4754 = vpop.f32.mrb[0].mxu0
  %v4755 = vpop.f32.mrb[0].mxu0
  %v4756 = vadd.f32 %v4412, %v4755
  %v4757 = vpop.f32.mrb[0].mxu0
  %4758 = vmatprep.mubr.bf16.mxu0 0
  %4759 = vmatmul.mubr.bf16.gmra.mrb[0].mxu0 %v4496
  %v4760 = vpop.f32.mrb[0].mxu0
  %v4761 = vadd.f32 %v4412, %v4760
  %v4762 = vpop.f32.mrb[0].mxu0
  %v4763 = vpop.f32.mrb[0].mxu0
  %v4764 = vadd.f32 %v4412, %v4763
  %v4765 = vpop.f32.mrb[0].mxu0
  %4766 = vmatprep.mubr.bf16.mxu0 0
  %4767 = vmatmul.mubr.bf16.gmra.mrb[0].mxu0 %v4499
  %v4768 = vpop.f32.mrb[0].mxu0
  %v4769 = vadd.f32 %v4412, %v4768
  %v4770 = vpop.f32.mrb[0].mxu0
  %v4771 = vpop.f32.mrb[0].mxu0
  %v4772 = vadd.f32 %v4412, %v4771
  %v4773 = vpop.f32.mrb[0].mxu0
  %4774 = vmatprep.mubr.bf16.mxu0 0
  %4775 = vmatmul.mubr.bf16.gmra.mrb[0].mxu0 %v4502
  %v4776 = vpop.f32.mrb[0].mxu0
  %v4777 = vadd.f32 %v4412, %v4776
  %v4778 = vpop.f32.mrb[0].mxu0
  %v4779 = vpop.f32.mrb[0].mxu0
  %v4780 = vadd.f32 %v4412, %v4779
  %v4781 = vpop.f32.mrb[0].mxu0
  %4782 = vmatprep.mubr.bf16.mxu0 0
  %4783 = vmatmul.mubr.bf16.gmra.mrb[0].mxu0 %v4505
  %v4784 = vpop.f32.mrb[0].mxu0
  %v4785 = vadd.f32 %v4412, %v4784
  %v4786 = vpop.f32.mrb[0].mxu0
  %v4787 = vpop.f32.mrb[0].mxu0
  %v4788 = vadd.f32 %v4412, %v4787
  %v4789 = vpop.f32.mrb[0].mxu0
  %4790 = vmatprep.mubr.bf16.mxu0 0
  %4791 = vmatmul.mubr.bf16.gmra.mrb[0].mxu0 %v4508
  %v4792 = vpop.f32.mrb[0].mxu0
  %v4793 = vadd.f32 %v4412, %v4792
  %v4794 = vpop.f32.mrb[0].mxu0
  %v4795 = vpop.f32.mrb[0].mxu0
  %v4796 = vadd.f32 %v4412, %v4795
  %v4797 = vpop.f32.mrb[0].mxu0
  %4798 = vdwg.mxu0
  %4863 = vrot.lane.b32.xlu0 %v3748, 96
  %v4864 = vpop.permute.xlu0 %4863
  %4865 = vrot.lane.b32.xlu0 %v3749, 96
  %v4866 = vpop.permute.xlu0 %4865
  %4867 = vrot.lane.b32.xlu0 %v3750, 96
  %v4868 = vpop.permute.xlu0 %4867
  %4869 = vrot.lane.b32.xlu0 %v3751, 96
  %v4870 = vpop.permute.xlu0 %4869
  %4871 = vrot.lane.b32.xlu0 %v3752, 96
  %v4872 = vpop.permute.xlu0 %4871
  %4873 = vrot.lane.b32.xlu0 %v3753, 96
  %v4874 = vpop.permute.xlu0 %4873
  %4875 = vrot.lane.b32.xlu0 %v3754, 96
  %v4876 = vpop.permute.xlu0 %4875
  %4877 = vrot.lane.b32.xlu0 %v3755, 96
  %v4878 = vpop.permute.xlu0 %4877
  %4879 = vrot.lane.b32.xlu0 %v3756, 96
  %v4880 = vpop.permute.xlu0 %4879
  %4881 = vrot.lane.b32.xlu0 %v3757, 96
  %v4882 = vpop.permute.xlu0 %4881
  %4883 = vrot.lane.b32.xlu0 %v3758, 96
  %v4884 = vpop.permute.xlu0 %4883
  %4885 = vrot.lane.b32.xlu0 %v3759, 96
  %v4886 = vpop.permute.xlu0 %4885
  %4887 = vrot.lane.b32.xlu0 %v3760, 96
  %v4888 = vpop.permute.xlu0 %4887
  %4889 = vrot.lane.b32.xlu0 %v3761, 96
  %v4890 = vpop.permute.xlu0 %4889
  %4891 = vrot.lane.b32.xlu0 %v3762, 96
  %v4892 = vpop.permute.xlu0 %4891
  %4893 = vrot.lane.b32.xlu0 %v3763, 96
  %v4894 = vpop.permute.xlu0 %4893
  %4895 = vrot.lane.b32.xlu0 %v3764, 96
  %v4896 = vpop.permute.xlu0 %4895
  %4897 = vrot.lane.b32.xlu0 %v3765, 96
  %v4898 = vpop.permute.xlu0 %4897
  %4899 = vrot.lane.b32.xlu0 %v3766, 96
  %v4900 = vpop.permute.xlu0 %4899
  %4901 = vrot.lane.b32.xlu0 %v3767, 96
  %v4902 = vpop.permute.xlu0 %4901
  %4903 = vrot.lane.b32.xlu0 %v3768, 96
  %v4904 = vpop.permute.xlu0 %4903
  %4905 = vrot.lane.b32.xlu0 %v3769, 96
  %v4906 = vpop.permute.xlu0 %4905
  %4907 = vrot.lane.b32.xlu0 %v3770, 96
  %v4908 = vpop.permute.xlu0 %4907
  %4909 = vrot.lane.b32.xlu0 %v3771, 96
  %v4910 = vpop.permute.xlu0 %4909
  %4911 = vrot.lane.b32.xlu0 %v3772, 96
  %v4912 = vpop.permute.xlu0 %4911
  %4913 = vrot.lane.b32.xlu0 %v3773, 96
  %v4914 = vpop.permute.xlu0 %4913
  %4915 = vrot.lane.b32.xlu0 %v3774, 96
  %v4916 = vpop.permute.xlu0 %4915
  %4917 = vrot.lane.b32.xlu0 %v3775, 96
  %v4918 = vpop.permute.xlu0 %4917
  %4919 = vrot.lane.b32.xlu0 %v3776, 96
  %v4920 = vpop.permute.xlu0 %4919
  %4921 = vrot.lane.b32.xlu0 %v3777, 96
  %v4922 = vpop.permute.xlu0 %4921
  %4923 = vrot.lane.b32.xlu0 %v3778, 96
  %v4924 = vpop.permute.xlu0 %4923
  %4925 = vrot.lane.b32.xlu0 %v3779, 96
  %v4926 = vpop.permute.xlu0 %4925
  %4927 = vrot.lane.b32.xlu0 %v3780, 96
  %v4928 = vpop.permute.xlu0 %4927
  %4929 = vrot.lane.b32.xlu0 %v3781, 96
  %v4930 = vpop.permute.xlu0 %4929
  %4931 = vrot.lane.b32.xlu0 %v3782, 96
  %v4932 = vpop.permute.xlu0 %4931
  %4933 = vrot.lane.b32.xlu0 %v3783, 96
  %v4934 = vpop.permute.xlu0 %4933
  %4935 = vrot.lane.b32.xlu0 %v3784, 96
  %v4936 = vpop.permute.xlu0 %4935
  %4937 = vrot.lane.b32.xlu0 %v3785, 96
  %v4938 = vpop.permute.xlu0 %4937
  %4939 = vrot.lane.b32.xlu0 %v3786, 96
  %v4940 = vpop.permute.xlu0 %4939
  %4941 = vrot.lane.b32.xlu0 %v3787, 96
  %v4942 = vpop.permute.xlu0 %4941
  %4943 = vrot.lane.b32.xlu0 %v3788, 96
  %v4944 = vpop.permute.xlu0 %4943
  %4945 = vrot.lane.b32.xlu0 %v3789, 96
  %v4946 = vpop.permute.xlu0 %4945
  %4947 = vrot.lane.b32.xlu0 %v3790, 96
  %v4948 = vpop.permute.xlu0 %4947
  %4949 = vrot.lane.b32.xlu0 %v3791, 96
  %v4950 = vpop.permute.xlu0 %4949
  %4951 = vrot.lane.b32.xlu0 %v3792, 96
  %v4952 = vpop.permute.xlu0 %4951
  %4953 = vrot.lane.b32.xlu0 %v3793, 96
  %v4954 = vpop.permute.xlu0 %4953
  %4955 = vrot.lane.b32.xlu0 %v3794, 96
  %v4956 = vpop.permute.xlu0 %4955
  %4957 = vrot.lane.b32.xlu0 %v3795, 96
  %v4958 = vpop.permute.xlu0 %4957
  %4959 = vrot.lane.b32.xlu0 %v3796, 96
  %v4960 = vpop.permute.xlu0 %4959
  %4961 = vrot.lane.b32.xlu0 %v3797, 96
  %v4962 = vpop.permute.xlu0 %4961
  %4963 = vrot.lane.b32.xlu0 %v3798, 96
  %v4964 = vpop.permute.xlu0 %4963
  %4965 = vrot.lane.b32.xlu0 %v3799, 96
  %v4966 = vpop.permute.xlu0 %4965
  %4967 = vrot.lane.b32.xlu0 %v3800, 96
  %v4968 = vpop.permute.xlu0 %4967
  %4969 = vrot.lane.b32.xlu0 %v3801, 96
  %v4970 = vpop.permute.xlu0 %4969
  %4971 = vrot.lane.b32.xlu0 %v3802, 96
  %v4972 = vpop.permute.xlu0 %4971
  %4973 = vrot.lane.b32.xlu0 %v3803, 96
  %v4974 = vpop.permute.xlu0 %4973
  %4975 = vrot.lane.b32.xlu0 %v3804, 96
  %v4976 = vpop.permute.xlu0 %4975
  %4977 = vrot.lane.b32.xlu0 %v3805, 96
  %v4978 = vpop.permute.xlu0 %4977
  %4979 = vrot.lane.b32.xlu0 %v3806, 96
  %v4980 = vpop.permute.xlu0 %4979
  %4981 = vrot.lane.b32.xlu0 %v3807, 96
  %v4982 = vpop.permute.xlu0 %4981
  %4983 = vrot.lane.b32.xlu0 %v3808, 96
  %v4984 = vpop.permute.xlu0 %4983
  %4985 = vrot.lane.b32.xlu0 %v3809, 96
  %v4986 = vpop.permute.xlu0 %4985
  %4987 = vrot.lane.b32.xlu0 %v3810, 96
  %v4988 = vpop.permute.xlu0 %4987
  %4989 = vrot.lane.b32.xlu0 %v3811, 96
  %v4990 = vpop.permute.xlu0 %4989
  %v5055 = vadd.f32 %v4545, %v4864
  %v5056 = vadd.f32 %v4548, %v4866
  %v5057 = vadd.f32 %v4553, %v4868
  %v5058 = vadd.f32 %v4556, %v4870
  %v5059 = vadd.f32 %v4561, %v4872
  %v5060 = vadd.f32 %v4564, %v4874
  %v5061 = vadd.f32 %v4569, %v4876
  %v5062 = vadd.f32 %v4572, %v4878
  %v5063 = vadd.f32 %v4577, %v4880
  %v5064 = vadd.f32 %v4580, %v4882
  %v5065 = vadd.f32 %v4585, %v4884
  %v5066 = vadd.f32 %v4588, %v4886
  %v5067 = vadd.f32 %v4593, %v4888
  %v5068 = vadd.f32 %v4596, %v4890
  %v5069 = vadd.f32 %v4601, %v4892
  %v5070 = vadd.f32 %v4604, %v4894
  %v5071 = vadd.f32 %v4609, %v4896
  %v5072 = vadd.f32 %v4612, %v4898
  %v5073 = vadd.f32 %v4617, %v4900
  %v5074 = vadd.f32 %v4620, %v4902
  %v5075 = vadd.f32 %v4625, %v4904
  %v5076 = vadd.f32 %v4628, %v4906
  %v5077 = vadd.f32 %v4633, %v4908
  %v5078 = vadd.f32 %v4636, %v4910
  %v5079 = vadd.f32 %v4641, %v4912
  %v5080 = vadd.f32 %v4644, %v4914
  %v5081 = vadd.f32 %v4649, %v4916
  %v5082 = vadd.f32 %v4652, %v4918
  %v5083 = vadd.f32 %v4657, %v4920
  %v5084 = vadd.f32 %v4660, %v4922
  %v5085 = vadd.f32 %v4665, %v4924
  %v5086 = vadd.f32 %v4668, %v4926
  %v5087 = vadd.f32 %v4673, %v4928
  %v5088 = vadd.f32 %v4676, %v4930
  %v5089 = vadd.f32 %v4681, %v4932
  %v5090 = vadd.f32 %v4684, %v4934
  %v5091 = vadd.f32 %v4689, %v4936
  %v5092 = vadd.f32 %v4692, %v4938
  %v5093 = vadd.f32 %v4697, %v4940
  %v5094 = vadd.f32 %v4700, %v4942
  %v5095 = vadd.f32 %v4705, %v4944
  %v5096 = vadd.f32 %v4708, %v4946
  %v5097 = vadd.f32 %v4713, %v4948
  %v5098 = vadd.f32 %v4716, %v4950
  %v5099 = vadd.f32 %v4721, %v4952
  %v5100 = vadd.f32 %v4724, %v4954
  %v5101 = vadd.f32 %v4729, %v4956
  %v5102 = vadd.f32 %v4732, %v4958
  %v5103 = vadd.f32 %v4737, %v4960
  %v5104 = vadd.f32 %v4740, %v4962
  %v5105 = vadd.f32 %v4745, %v4964
  %v5106 = vadd.f32 %v4748, %v4966
  %v5107 = vadd.f32 %v4753, %v4968
  %v5108 = vadd.f32 %v4756, %v4970
  %v5109 = vadd.f32 %v4761, %v4972
  %v5110 = vadd.f32 %v4764, %v4974
  %v5111 = vadd.f32 %v4769, %v4976
  %v5112 = vadd.f32 %v4772, %v4978
  %v5113 = vadd.f32 %v4777, %v4980
  %v5114 = vadd.f32 %v4780, %v4982
  %v5115 = vadd.f32 %v4785, %v4984
  %v5116 = vadd.f32 %v4788, %v4986
  %v5117 = vadd.f32 %v4793, %v4988
  %v5118 = vadd.f32 %v4796, %v4990
  %v5119 = vpack.c.bf16 %v5056, %v5055
  %v5120 = vpack.c.bf16 %v5058, %v5057
  %v5121 = vpack.c.bf16 %v5060, %v5059
  %v5122 = vpack.c.bf16 %v5062, %v5061
  %v5123 = vpack.c.bf16 %v5064, %v5063
  %v5124 = vpack.c.bf16 %v5066, %v5065
  %v5125 = vpack.c.bf16 %v5068, %v5067
  %v5126 = vpack.c.bf16 %v5070, %v5069
  %v5127 = vpack.c.bf16 %v5072, %v5071
  %v5128 = vpack.c.bf16 %v5074, %v5073
  %v5129 = vpack.c.bf16 %v5076, %v5075
  %v5130 = vpack.c.bf16 %v5078, %v5077
  %v5131 = vpack.c.bf16 %v5080, %v5079
  %v5132 = vpack.c.bf16 %v5082, %v5081
  %v5133 = vpack.c.bf16 %v5084, %v5083
  %v5134 = vpack.c.bf16 %v5086, %v5085
  %v5135 = vpack.c.bf16 %v5088, %v5087
  %v5136 = vpack.c.bf16 %v5090, %v5089
  %v5137 = vpack.c.bf16 %v5092, %v5091
  %v5138 = vpack.c.bf16 %v5094, %v5093
  %v5139 = vpack.c.bf16 %v5096, %v5095
  %v5140 = vpack.c.bf16 %v5098, %v5097
  %v5141 = vpack.c.bf16 %v5100, %v5099
  %v5142 = vpack.c.bf16 %v5102, %v5101
  %v5143 = vpack.c.bf16 %v5104, %v5103
  %v5144 = vpack.c.bf16 %v5106, %v5105
  %v5145 = vpack.c.bf16 %v5108, %v5107
  %v5146 = vpack.c.bf16 %v5110, %v5109
  %v5147 = vpack.c.bf16 %v5112, %v5111
  %v5148 = vpack.c.bf16 %v5114, %v5113
  %v5149 = vpack.c.bf16 %v5116, %v5115
  %v5150 = vpack.c.bf16 %v5118, %v5117
  %v5167 = vunpack.c.l.b16 %v3029
  %v5168 = vunpack.c.h.b16 %v3029
  %v5169 = vunpack.c.l.b16 %v3030
  %v5170 = vunpack.c.h.b16 %v3030
  %v5171 = vunpack.c.l.b16 %v3031
  %v5172 = vunpack.c.h.b16 %v3031
  %v5173 = vunpack.c.l.b16 %v3032
  %v5174 = vunpack.c.h.b16 %v3032
  %v5175 = vunpack.c.l.b16 %v3033
  %v5176 = vunpack.c.h.b16 %v3033
  %v5177 = vunpack.c.l.b16 %v3034
  %v5178 = vunpack.c.h.b16 %v3034
  %v5179 = vunpack.c.l.b16 %v3035
  %v5180 = vunpack.c.h.b16 %v3035
  %v5181 = vunpack.c.l.b16 %v3036
  %v5182 = vunpack.c.h.b16 %v3036
  %v5183 = vunpack.c.l.b16 %v3037
  %v5184 = vunpack.c.h.b16 %v3037
  %v5185 = vunpack.c.l.b16 %v3038
  %v5186 = vunpack.c.h.b16 %v3038
  %v5187 = vunpack.c.l.b16 %v3039
  %v5188 = vunpack.c.h.b16 %v3039
  %v5189 = vunpack.c.l.b16 %v3040
  %v5190 = vunpack.c.h.b16 %v3040
  %v5191 = vunpack.c.l.b16 %v3041
  %v5192 = vunpack.c.h.b16 %v3041
  %v5193 = vunpack.c.l.b16 %v3042
  %v5194 = vunpack.c.h.b16 %v3042
  %v5195 = vunpack.c.l.b16 %v3043
  %v5196 = vunpack.c.h.b16 %v3043
  %v5197 = vunpack.c.l.b16 %v3044
  %v5198 = vunpack.c.h.b16 %v3044
  %v5199 = vpack.c.b16 %v5171, %v5167
  %v5200 = vpack.c.b16 %v5172, %v5168
  %v5201 = vpack.c.b16 %v5173, %v5169
  %v5202 = vpack.c.b16 %v5174, %v5170
  %v5203 = vpack.c.b16 %v5179, %v5175
  %v5204 = vpack.c.b16 %v5180, %v5176
  %v5205 = vpack.c.b16 %v5181, %v5177
  %v5206 = vpack.c.b16 %v5182, %v5178
  %v5207 = vpack.c.b16 %v5187, %v5183
  %v5208 = vpack.c.b16 %v5188, %v5184
  %v5209 = vpack.c.b16 %v5189, %v5185
  %v5210 = vpack.c.b16 %v5190, %v5186
  %v5211 = vpack.c.b16 %v5195, %v5191
  %v5212 = vpack.c.b16 %v5196, %v5192
  %v5213 = vpack.c.b16 %v5197, %v5193
  %v5214 = vpack.c.b16 %v5198, %v5194
  %5231 = vmatprep.subr.bf16.mxu0 0
  %5232 = vmatpush1.bf16.msra.mxu0 %v5119
  %5233 = vmatprep.subr.bf16.mxu0 0
  %5234 = vmatpush1.bf16.msra.mxu0 %v5120
  %5235 = vmatprep.subr.bf16.mxu0 0
  %5236 = vmatpush1.bf16.msra.mxu0 %v5121
  %5237 = vmatprep.subr.bf16.mxu0 0
  %5238 = vmatpush1.bf16.msra.mxu0 %v5122
  %5239 = vmatprep.subr.bf16.mxu0 0
  %5240 = vmatpush1.bf16.msra.mxu0 %v5123
  %5241 = vmatprep.subr.bf16.mxu0 0
  %5242 = vmatpush1.bf16.msra.mxu0 %v5124
  %5243 = vmatprep.subr.bf16.mxu0 0
  %5244 = vmatpush1.bf16.msra.mxu0 %v5125
  %5245 = vmatprep.subr.bf16.mxu0 0
  %5246 = vmatpush1.bf16.msra.mxu0 %v5126
  %5247 = vmatprep.subr.bf16.mxu0 0
  %5248 = vmatpush1.bf16.msra.mxu0 %v5127
  %5249 = vmatprep.subr.bf16.mxu0 0
  %5250 = vmatpush1.bf16.msra.mxu0 %v5128
  %5251 = vmatprep.subr.bf16.mxu0 0
  %5252 = vmatpush1.bf16.msra.mxu0 %v5129
  %5253 = vmatprep.subr.bf16.mxu0 0
  %5254 = vmatpush1.bf16.msra.mxu0 %v5130
  %5255 = vmatprep.subr.bf16.mxu0 0
  %5256 = vmatpush1.bf16.msra.mxu0 %v5131
  %5257 = vmatprep.subr.bf16.mxu0 0
  %5258 = vmatpush1.bf16.msra.mxu0 %v5132
  %5259 = vmatprep.subr.bf16.mxu0 0
  %5260 = vmatpush1.bf16.msra.mxu0 %v5133
  %5261 = vmatprep.subr.bf16.mxu0 0
  %5262 = vmatpush1.bf16.msra.mxu0 %v5134
  %5263 = vmatprep.mubr.bf16.mxu0 %v5200
  %5264 = vmatmul.mubr.bf16.gmra.mrb[0].mxu0 %v5199
  %v5265 = vpop.f32.mrb[0].mxu0
  %v5266 = vadd.f32 0.0, %v5265
  %v5267 = vpop.f32.mrb[0].mxu0
  %v5268 = vpop.f32.mrb[0].mxu0
  %v5269 = vadd.f32 0.0, %v5268
  %v5270 = vpop.f32.mrb[0].mxu0
  %5271 = vmatprep.mubr.bf16.mxu0 %v5204
  %5272 = vmatmul.mubr.bf16.gmra.mrb[0].mxu0 %v5203
  %v5273 = vpop.f32.mrb[0].mxu0
  %v5274 = vadd.f32 0.0, %v5273
  %v5275 = vpop.f32.mrb[0].mxu0
  %v5276 = vpop.f32.mrb[0].mxu0
  %v5277 = vadd.f32 0.0, %v5276
  %v5278 = vpop.f32.mrb[0].mxu0
  %5279 = vmatprep.mubr.bf16.mxu0 %v5208
  %5280 = vmatmul.mubr.bf16.gmra.mrb[0].mxu0 %v5207
  %v5281 = vpop.f32.mrb[0].mxu0
  %v5282 = vadd.f32 0.0, %v5281
  %v5283 = vpop.f32.mrb[0].mxu0
  %v5284 = vpop.f32.mrb[0].mxu0
  %v5285 = vadd.f32 0.0, %v5284
  %v5286 = vpop.f32.mrb[0].mxu0
  %5287 = vmatprep.mubr.bf16.mxu0 %v5212
  %5288 = vmatmul.mubr.bf16.gmra.mrb[0].mxu0 %v5211
  %v5289 = vpop.f32.mrb[0].mxu0
  %v5290 = vadd.f32 0.0, %v5289
  %v5291 = vpop.f32.mrb[0].mxu0
  %v5292 = vpop.f32.mrb[0].mxu0
  %v5293 = vadd.f32 0.0, %v5292
  %v5294 = vpop.f32.mrb[0].mxu0
  %5295 = vdwg.mxu0
  %5296 = vmatprep.subr.bf16.mxu0 0
  %5297 = vmatpush1.bf16.msra.mxu0 %v5135
  %5298 = vmatprep.subr.bf16.mxu0 0
  %5299 = vmatpush1.bf16.msra.mxu0 %v5136
  %5300 = vmatprep.subr.bf16.mxu0 0
  %5301 = vmatpush1.bf16.msra.mxu0 %v5137
  %5302 = vmatprep.subr.bf16.mxu0 0
  %5303 = vmatpush1.bf16.msra.mxu0 %v5138
  %5304 = vmatprep.subr.bf16.mxu0 0
  %5305 = vmatpush1.bf16.msra.mxu0 %v5139
  %5306 = vmatprep.subr.bf16.mxu0 0
  %5307 = vmatpush1.bf16.msra.mxu0 %v5140
  %5308 = vmatprep.subr.bf16.mxu0 0
  %5309 = vmatpush1.bf16.msra.mxu0 %v5141
  %5310 = vmatprep.subr.bf16.mxu0 0
  %5311 = vmatpush1.bf16.msra.mxu0 %v5142
  %5312 = vmatprep.subr.bf16.mxu0 0
  %5313 = vmatpush1.bf16.msra.mxu0 %v5143
  %5314 = vmatprep.subr.bf16.mxu0 0
  %5315 = vmatpush1.bf16.msra.mxu0 %v5144
  %5316 = vmatprep.subr.bf16.mxu0 0
  %5317 = vmatpush1.bf16.msra.mxu0 %v5145
  %5318 = vmatprep.subr.bf16.mxu0 0
  %5319 = vmatpush1.bf16.msra.mxu0 %v5146
  %5320 = vmatprep.subr.bf16.mxu0 0
  %5321 = vmatpush1.bf16.msra.mxu0 %v5147
  %5322 = vmatprep.subr.bf16.mxu0 0
  %5323 = vmatpush1.bf16.msra.mxu0 %v5148
  %5324 = vmatprep.subr.bf16.mxu0 0
  %5325 = vmatpush1.bf16.msra.mxu0 %v5149
  %5326 = vmatprep.subr.bf16.mxu0 0
  %5327 = vmatpush1.bf16.msra.mxu0 %v5150
  %5328 = vmatprep.mubr.bf16.mxu0 %v5202
  %5329 = vmatmul.mubr.bf16.gmra.mrb[0].mxu0 %v5201
  %v5330 = vpop.f32.mrb[0].mxu0
  %v5331 = vadd.f32 %v5266, %v5330
  %v5332 = vpop.f32.mrb[0].mxu0
  %v5333 = vpop.f32.mrb[0].mxu0
  %v5334 = vadd.f32 %v5269, %v5333
  %v5335 = vpop.f32.mrb[0].mxu0
  %5336 = vmatprep.mubr.bf16.mxu0 %v5206
  %5337 = vmatmul.mubr.bf16.gmra.mrb[0].mxu0 %v5205
  %v5338 = vpop.f32.mrb[0].mxu0
  %v5339 = vadd.f32 %v5274, %v5338
  %v5340 = vpop.f32.mrb[0].mxu0
  %v5341 = vpop.f32.mrb[0].mxu0
  %v5342 = vadd.f32 %v5277, %v5341
  %v5343 = vpop.f32.mrb[0].mxu0
  %5344 = vmatprep.mubr.bf16.mxu0 %v5210
  %5345 = vmatmul.mubr.bf16.gmra.mrb[0].mxu0 %v5209
  %v5346 = vpop.f32.mrb[0].mxu0
  %v5347 = vadd.f32 %v5282, %v5346
  %v5348 = vpop.f32.mrb[0].mxu0
  %v5349 = vpop.f32.mrb[0].mxu0
  %v5350 = vadd.f32 %v5285, %v5349
  %v5351 = vpop.f32.mrb[0].mxu0
  %5352 = vmatprep.mubr.bf16.mxu0 %v5214
  %5353 = vmatmul.mubr.bf16.gmra.mrb[0].mxu0 %v5213
  %v5354 = vpop.f32.mrb[0].mxu0
  %v5355 = vadd.f32 %v5290, %v5354
  %v5356 = vpop.f32.mrb[0].mxu0
  %v5357 = vpop.f32.mrb[0].mxu0
  %v5358 = vadd.f32 %v5293, %v5357
  %v5359 = vpop.f32.mrb[0].mxu0
  %5360 = vdwg.mxu0
  %v5361 = vmax.f32 %v5331, 0.0
  %v5362 = vmax.f32 %v5334, 0.0
  %v5363 = vmax.f32 %v5339, 0.0
  %v5364 = vmax.f32 %v5342, 0.0
  %v5365 = vmax.f32 %v5347, 0.0
  %v5366 = vmax.f32 %v5350, 0.0
  %v5367 = vmax.f32 %v5355, 0.0
  %v5368 = vmax.f32 %v5358, 0.0
  %v5369 = vld [vmem:[%s1] sm:$0xff]
  %v5370 = vld [vmem:[%s1 + $0x8] sm:$0xff]
  %v5371 = vld [vmem:[%s1 + $0x10] sm:$0xff]
  %v5372 = vld [vmem:[%s1 + $0x18] sm:$0xff]
  %v5373 = vld [vmem:[%s1 + $0x20] sm:$0xff]
  %v5374 = vld [vmem:[%s1 + $0x28] sm:$0xff]
  %v5375 = vld [vmem:[%s1 + $0x30] sm:$0xff]
  %v5376 = vld [vmem:[%s1 + $0x38] sm:$0xff]
  %v5377 = vld [vmem:[%s11] sm:$0xff]
  %v5378 = vld [vmem:[%s11 + $0x8] sm:$0xff]
  %v5379 = vld [vmem:[%s11 + $0x10] sm:$0xff]
  %v5380 = vld [vmem:[%s11 + $0x18] sm:$0xff]
  %v5381 = vpack.c.bf16 %v5362, %v5361
  %v5382 = vpack.c.bf16 %v5364, %v5363
  %v5383 = vpack.c.bf16 %v5366, %v5365
  %v5384 = vpack.c.bf16 %v5368, %v5367
  %v5389 = vunpack.c.l.b16 %v5377
  %v5390 = vunpack.c.h.b16 %v5377
  %v5391 = vunpack.c.l.b16 %v5378
  %v5392 = vunpack.c.h.b16 %v5378
  %v5393 = vunpack.c.l.b16 %v5379
  %v5394 = vunpack.c.h.b16 %v5379
  %v5395 = vunpack.c.l.b16 %v5380
  %v5396 = vunpack.c.h.b16 %v5380
  %v5397 = vpack.c.b16 %v5391, %v5389
  %v5398 = vpack.c.b16 %v5392, %v5390
  %v5399 = vpack.c.b16 %v5395, %v5393
  %v5400 = vpack.c.b16 %v5396, %v5394
  %v5406 = vsel %vm1583, %v5381, 0
  %v5409 = vsel %vm1583, %v5382, 0
  %v5412 = vsel %vm1583, %v5383, 0
  %v5415 = vsel %vm1583, %v5384, 0
  %5417 = vmatprep.subr.bf16.mxu0 %v5398
  %5418 = vmatpush1.bf16.msra.mxu0 %v5397
  %5419 = vmatprep.subr.bf16.mxu0 %v5400
  %5420 = vmatpush1.bf16.msra.mxu0 %v5399
  %5421 = vmatprep.subr.bf16.mxu0 0
  %5422 = vmatpush1.bf16.msra.mxu0 0
  %5423 = vmatprep.subr.bf16.mxu0 0
  %5424 = vmatpush1.bf16.msra.mxu0 0
  %5425 = vmatprep.subr.bf16.mxu0 0
  %5426 = vmatpush1.bf16.msra.mxu0 0
  %5427 = vmatprep.subr.bf16.mxu0 0
  %5428 = vmatpush1.bf16.msra.mxu0 0
  %5429 = vmatprep.subr.bf16.mxu0 0
  %5430 = vmatpush1.bf16.msra.mxu0 0
  %5431 = vmatprep.subr.bf16.mxu0 0
  %5432 = vmatpush1.bf16.msra.mxu0 0
  %5433 = vmatprep.subr.bf16.mxu0 0
  %5434 = vmatpush1.bf16.msra.mxu0 0
  %5435 = vmatprep.subr.bf16.mxu0 0
  %5436 = vmatpush1.bf16.msra.mxu0 0
  %5437 = vmatprep.subr.bf16.mxu0 0
  %5438 = vmatpush1.bf16.msra.mxu0 0
  %5439 = vmatprep.subr.bf16.mxu0 0
  %5440 = vmatpush1.bf16.msra.mxu0 0
  %5441 = vmatprep.subr.bf16.mxu0 0
  %5442 = vmatpush1.bf16.msra.mxu0 0
  %5443 = vmatprep.subr.bf16.mxu0 0
  %5444 = vmatpush1.bf16.msra.mxu0 0
  %5445 = vmatprep.subr.bf16.mxu0 0
  %5446 = vmatpush1.bf16.msra.mxu0 0
  %5447 = vmatprep.subr.bf16.mxu0 0
  %5448 = vmatpush1.bf16.msra.mxu0 0
  %5449 = vmatprep.mubr.bf16.mxu0 0
  %5450 = vmatmul.mubr.bf16.gmra.mrb[0].mxu0 %v5406
  %v5451 = vpop.f32.mrb[0].mxu0
  %v5452 = vadd.f32 0.0, %v5451
  %v5453 = vpop.f32.mrb[0].mxu0
  %v5454 = vadd.f32 0.0, %v5453
  %v5455 = vpop.f32.mrb[0].mxu0
  %v5456 = vadd.f32 0.0, %v5455
  %v5457 = vpop.f32.mrb[0].mxu0
  %v5458 = vadd.f32 0.0, %v5457
  %5459 = vmatprep.mubr.bf16.mxu0 0
  %5460 = vmatmul.mubr.bf16.gmra.mrb[0].mxu0 %v5409
  %v5461 = vpop.f32.mrb[0].mxu0
  %v5462 = vadd.f32 0.0, %v5461
  %v5463 = vpop.f32.mrb[0].mxu0
  %v5464 = vadd.f32 0.0, %v5463
  %v5465 = vpop.f32.mrb[0].mxu0
  %v5466 = vadd.f32 0.0, %v5465
  %v5467 = vpop.f32.mrb[0].mxu0
  %v5468 = vadd.f32 0.0, %v5467
  %5469 = vmatprep.mubr.bf16.mxu0 0
  %5470 = vmatmul.mubr.bf16.gmra.mrb[0].mxu0 %v5412
  %v5471 = vpop.f32.mrb[0].mxu0
  %v5472 = vadd.f32 0.0, %v5471
  %v5473 = vpop.f32.mrb[0].mxu0
  %v5474 = vadd.f32 0.0, %v5473
  %v5475 = vpop.f32.mrb[0].mxu0
  %v5476 = vadd.f32 0.0, %v5475
  %v5477 = vpop.f32.mrb[0].mxu0
  %v5478 = vadd.f32 0.0, %v5477
  %5479 = vmatprep.mubr.bf16.mxu0 0
  %5480 = vmatmul.mubr.bf16.gmra.mrb[0].mxu0 %v5415
  %v5481 = vpop.f32.mrb[0].mxu0
  %v5482 = vadd.f32 0.0, %v5481
  %v5483 = vpop.f32.mrb[0].mxu0
  %v5484 = vadd.f32 0.0, %v5483
  %v5485 = vpop.f32.mrb[0].mxu0
  %v5486 = vadd.f32 0.0, %v5485
  %v5487 = vpop.f32.mrb[0].mxu0
  %v5488 = vadd.f32 0.0, %v5487
  %5489 = vdwg.mxu0
  %5490 = vxpose.xlu0.b32.start [1/16] %v5454, 128
  %5491 = vxpose.xlu0.b32.cont [2/16] %v5458, 128
  %5492 = vxpose.xlu0.b32.cont [3/16] %v5464, 128
  %5493 = vxpose.xlu0.b32.cont [4/16] %v5468, 128
  %5494 = vxpose.xlu0.b32.cont [5/16] %v5474, 128
  %5495 = vxpose.xlu0.b32.cont [6/16] %v5478, 128
  %5496 = vxpose.xlu0.b32.cont [7/16] %v5484, 128
  %5497 = vxpose.xlu0.b32.cont [8/16] %v5488, 128
  %5498 = vxpose.xlu0.b32.cont [9/16] 0.0, 128
  %5499 = vxpose.xlu0.b32.cont [10/16] 0.0, 128
  %5500 = vxpose.xlu0.b32.cont [11/16] 0.0, 128
  %5501 = vxpose.xlu0.b32.cont [12/16] 0.0, 128
  %5502 = vxpose.xlu0.b32.cont [13/16] 0.0, 128
  %5503 = vxpose.xlu0.b32.cont [14/16] 0.0, 128
  %5504 = vxpose.xlu0.b32.cont [15/16] 0.0, 128
  %5505 = vxpose.xlu0.b32.end [16/16] 0.0, 128
  %v5506 = vpop.trf.xlu0
  %v5507 = vpop.trf.xlu0
  %v5508 = vpop.trf.xlu0
  %v5509 = vpop.trf.xlu0
  %v5510 = vpop.trf.xlu0
  %v5511 = vpop.trf.xlu0
  %v5512 = vpop.trf.xlu0
  %v5513 = vpop.trf.xlu0
  %v5514 = vpop.trf.xlu0
  %v5515 = vpop.trf.xlu0
  %v5516 = vpop.trf.xlu0
  %v5517 = vpop.trf.xlu0
  %v5518 = vpop.trf.xlu0
  %v5519 = vpop.trf.xlu0
  %v5520 = vpop.trf.xlu0
  %v5521 = vpop.trf.xlu0
  %5530 = vrot.lane.b32.xlu0 %v5454, 124
  %v5531 = vpop.permute.xlu0 %5530
  %5532 = vrot.lane.b32.xlu0 %v5458, 124
  %v5533 = vpop.permute.xlu0 %5532
  %5534 = vrot.lane.b32.xlu0 %v5464, 124
  %v5535 = vpop.permute.xlu0 %5534
  %5536 = vrot.lane.b32.xlu0 %v5468, 124
  %v5537 = vpop.permute.xlu0 %5536
  %5538 = vrot.lane.b32.xlu0 %v5474, 124
  %v5539 = vpop.permute.xlu0 %5538
  %5540 = vrot.lane.b32.xlu0 %v5478, 124
  %v5541 = vpop.permute.xlu0 %5540
  %5542 = vrot.lane.b32.xlu0 %v5484, 124
  %v5543 = vpop.permute.xlu0 %5542
  %5544 = vrot.lane.b32.xlu0 %v5488, 124
  %v5545 = vpop.permute.xlu0 %5544
  %5554 = vxpose.xlu0.b32.start [1/16] %v5531, 128
  %5555 = vxpose.xlu0.b32.cont [2/16] %v5533, 128
  %5556 = vxpose.xlu0.b32.cont [3/16] %v5535, 128
  %5557 = vxpose.xlu0.b32.cont [4/16] %v5537, 128
  %5558 = vxpose.xlu0.b32.cont [5/16] %v5539, 128
  %5559 = vxpose.xlu0.b32.cont [6/16] %v5541, 128
  %5560 = vxpose.xlu0.b32.cont [7/16] %v5543, 128
  %5561 = vxpose.xlu0.b32.cont [8/16] %v5545, 128
  %5562 = vxpose.xlu0.b32.cont [9/16] 0.0, 128
  %5563 = vxpose.xlu0.b32.cont [10/16] 0.0, 128
  %5564 = vxpose.xlu0.b32.cont [11/16] 0.0, 128
  %5565 = vxpose.xlu0.b32.cont [12/16] 0.0, 128
  %5566 = vxpose.xlu0.b32.cont [13/16] 0.0, 128
  %5567 = vxpose.xlu0.b32.cont [14/16] 0.0, 128
  %5568 = vxpose.xlu0.b32.cont [15/16] 0.0, 128
  %5569 = vxpose.xlu0.b32.end [16/16] 0.0, 128
  %v5570 = vpop.trf.xlu0
  %v5571 = vpop.trf.xlu0
  %v5572 = vpop.trf.xlu0
  %v5573 = vpop.trf.xlu0
  %v5574 = vpop.trf.xlu0
  %v5575 = vpop.trf.xlu0
  %v5576 = vpop.trf.xlu0
  %v5577 = vpop.trf.xlu0
  %v5578 = vpop.trf.xlu0
  %v5579 = vpop.trf.xlu0
  %v5580 = vpop.trf.xlu0
  %v5581 = vpop.trf.xlu0
  %v5582 = vpop.trf.xlu0
  %v5583 = vpop.trf.xlu0
  %v5584 = vpop.trf.xlu0
  %v5585 = vpop.trf.xlu0
  %v5586 = vlaneseq
  %v5587 = vshrl.u32 %v5586, 7
  %v5588 = vsub.s32 0, %v5587
  %v5589 = vrot.slane %v5570, %v5588
  %5591 = vbcast.lane.b32.xlu0 %v5589, 256
  %v5592 = vpop.permute.xlu0 %5591
  %s5594 = sor.u32 256, 8
  %5595 = vbcast.lane.b32.xlu0 %v5589, %s5594
  %v5596 = vpop.permute.xlu0 %5595
  %s5598 = sor.u32 256, 16
  %5599 = vbcast.lane.b32.xlu0 %v5589, %s5598
  %v5600 = vpop.permute.xlu0 %5599
  %s5602 = sor.u32 256, 24
  %5603 = vbcast.lane.b32.xlu0 %v5589, %s5602
  %v5604 = vpop.permute.xlu0 %5603
  %s5606 = sor.u32 256, 32
  %5607 = vbcast.lane.b32.xlu0 %v5589, %s5606
  %v5608 = vpop.permute.xlu0 %5607
  %s5610 = sor.u32 256, 40
  %5611 = vbcast.lane.b32.xlu0 %v5589, %s5610
  %v5612 = vpop.permute.xlu0 %5611
  %s5614 = sor.u32 256, 48
  %5615 = vbcast.lane.b32.xlu0 %v5589, %s5614
  %v5616 = vpop.permute.xlu0 %5615
  %s5618 = sor.u32 256, 56
  %5619 = vbcast.lane.b32.xlu0 %v5589, %s5618
  %v5620 = vpop.permute.xlu0 %5619
  %v5621 = vlaneseq
  %v5622 = vshrl.u32 %v5621, 7
  %v5623 = vsub.s32 1, %v5622
  %v5624 = vrot.slane %v5570, %v5623
  %5626 = vbcast.lane.b32.xlu0 %v5624, 256
  %v5627 = vpop.permute.xlu0 %5626
  %s5629 = sor.u32 256, 8
  %5630 = vbcast.lane.b32.xlu0 %v5624, %s5629
  %v5631 = vpop.permute.xlu0 %5630
  %s5633 = sor.u32 256, 16
  %5634 = vbcast.lane.b32.xlu0 %v5624, %s5633
  %v5635 = vpop.permute.xlu0 %5634
  %s5637 = sor.u32 256, 24
  %5638 = vbcast.lane.b32.xlu0 %v5624, %s5637
  %v5639 = vpop.permute.xlu0 %5638
  %s5641 = sor.u32 256, 32
  %5642 = vbcast.lane.b32.xlu0 %v5624, %s5641
  %v5643 = vpop.permute.xlu0 %5642
  %s5645 = sor.u32 256, 40
  %5646 = vbcast.lane.b32.xlu0 %v5624, %s5645
  %v5647 = vpop.permute.xlu0 %5646
  %s5649 = sor.u32 256, 48
  %5650 = vbcast.lane.b32.xlu0 %v5624, %s5649
  %v5651 = vpop.permute.xlu0 %5650
  %s5653 = sor.u32 256, 56
  %5654 = vbcast.lane.b32.xlu0 %v5624, %s5653
  %v5655 = vpop.permute.xlu0 %5654
  %v5656 = vlaneseq
  %v5657 = vshrl.u32 %v5656, 7
  %v5658 = vsub.s32 2, %v5657
  %v5659 = vrot.slane %v5570, %v5658
  %5661 = vbcast.lane.b32.xlu0 %v5659, 256
  %v5662 = vpop.permute.xlu0 %5661
  %s5664 = sor.u32 256, 8
  %5665 = vbcast.lane.b32.xlu0 %v5659, %s5664
  %v5666 = vpop.permute.xlu0 %5665
  %s5668 = sor.u32 256, 16
  %5669 = vbcast.lane.b32.xlu0 %v5659, %s5668
  %v5670 = vpop.permute.xlu0 %5669
  %s5672 = sor.u32 256, 24
  %5673 = vbcast.lane.b32.xlu0 %v5659, %s5672
  %v5674 = vpop.permute.xlu0 %5673
  %s5676 = sor.u32 256, 32
  %5677 = vbcast.lane.b32.xlu0 %v5659, %s5676
  %v5678 = vpop.permute.xlu0 %5677
  %s5680 = sor.u32 256, 40
  %5681 = vbcast.lane.b32.xlu0 %v5659, %s5680
  %v5682 = vpop.permute.xlu0 %5681
  %s5684 = sor.u32 256, 48
  %5685 = vbcast.lane.b32.xlu0 %v5659, %s5684
  %v5686 = vpop.permute.xlu0 %5685
  %s5688 = sor.u32 256, 56
  %5689 = vbcast.lane.b32.xlu0 %v5659, %s5688
  %v5690 = vpop.permute.xlu0 %5689
  %v5691 = vlaneseq
  %v5692 = vshrl.u32 %v5691, 7
  %v5693 = vsub.s32 3, %v5692
  %v5694 = vrot.slane %v5570, %v5693
  %5696 = vbcast.lane.b32.xlu0 %v5694, 256
  %v5697 = vpop.permute.xlu0 %5696
  %s5699 = sor.u32 256, 8
  %5700 = vbcast.lane.b32.xlu0 %v5694, %s5699
  %v5701 = vpop.permute.xlu0 %5700
  %s5703 = sor.u32 256, 16
  %5704 = vbcast.lane.b32.xlu0 %v5694, %s5703
  %v5705 = vpop.permute.xlu0 %5704
  %s5707 = sor.u32 256, 24
  %5708 = vbcast.lane.b32.xlu0 %v5694, %s5707
  %v5709 = vpop.permute.xlu0 %5708
  %s5711 = sor.u32 256, 32
  %5712 = vbcast.lane.b32.xlu0 %v5694, %s5711
  %v5713 = vpop.permute.xlu0 %5712
  %s5715 = sor.u32 256, 40
  %5716 = vbcast.lane.b32.xlu0 %v5694, %s5715
  %v5717 = vpop.permute.xlu0 %5716
  %s5719 = sor.u32 256, 48
  %5720 = vbcast.lane.b32.xlu0 %v5694, %s5719
  %v5721 = vpop.permute.xlu0 %5720
  %s5723 = sor.u32 256, 56
  %5724 = vbcast.lane.b32.xlu0 %v5694, %s5723
  %v5725 = vpop.permute.xlu0 %5724
  %v5728 = vunpack.c.l.s4 1966171168
  %v5729 = vunpack.c.0.s8 %v5728
  %v5730 = vlaneseq
  %v5731 = vshrl.u32 %v5730, 7
  %v5732 = vsub.s32 %v5729, %v5731
  %v5733 = vrot.slane %v5506, %v5732
  %v5734 = vcombine.high %v5733, %v5733
  %v5736 = vunpack.c.l.s4 1966171168
  %v5737 = vunpack.c.0.s8 %v5736
  %v5738 = vlaneseq
  %v5739 = vshrl.u32 %v5738, 7
  %v5740 = vsub.s32 %v5737, %v5739
  %v5741 = vrot.slane %v5733, %v5740
  %v5743 = vunpack.c.l.s4 1966171168
  %v5744 = vunpack.c.0.s8 %v5743
  %v5745 = vlaneseq
  %v5746 = vshrl.u32 %v5745, 7
  %v5747 = vsub.s32 %v5744, %v5746
  %v5748 = vrot.slane %v5734, %v5747
  %v5749 = vcombine.high %v5741, %v5741
  %v5750 = vcombine.high %v5748, %v5748
  %v5751 = vlaneseq
  %v5752 = vshrl.u32 %v5751, 7
  %v5753 = vsub.s32 0, %v5752
  %v5754 = vrot.slane %v5741, %v5753
  %v5755 = vlaneseq
  %v5756 = vshrl.u32 %v5755, 7
  %v5757 = vsub.s32 0, %v5756
  %v5758 = vrot.slane %v5748, %v5757
  %v5759 = vlaneseq
  %v5760 = vshrl.u32 %v5759, 7
  %v5761 = vsub.s32 0, %v5760
  %v5762 = vrot.slane %v5749, %v5761
  %v5763 = vlaneseq
  %v5764 = vshrl.u32 %v5763, 7
  %v5765 = vsub.s32 0, %v5764
  %v5766 = vrot.slane %v5750, %v5765
  %v5771 = vadd.f32 %v5592, %v5754
  %v5772 = vadd.f32 %v5596, %v5754
  %v5773 = vadd.f32 %v5600, %v5754
  %v5774 = vadd.f32 %v5604, %v5754
  %v5775 = vadd.f32 %v5608, %v5754
  %v5776 = vadd.f32 %v5612, %v5754
  %v5777 = vadd.f32 %v5616, %v5754
  %v5778 = vadd.f32 %v5620, %v5754
  %v5779 = vadd.f32 %v5627, %v5758
  %v5780 = vadd.f32 %v5631, %v5758
  %v5781 = vadd.f32 %v5635, %v5758
  %v5782 = vadd.f32 %v5639, %v5758
  %v5783 = vadd.f32 %v5643, %v5758
  %v5784 = vadd.f32 %v5647, %v5758
  %v5785 = vadd.f32 %v5651, %v5758
  %v5786 = vadd.f32 %v5655, %v5758
  %v5787 = vadd.f32 %v5662, %v5762
  %v5788 = vadd.f32 %v5666, %v5762
  %v5789 = vadd.f32 %v5670, %v5762
  %v5790 = vadd.f32 %v5674, %v5762
  %v5791 = vadd.f32 %v5678, %v5762
  %v5792 = vadd.f32 %v5682, %v5762
  %v5793 = vadd.f32 %v5686, %v5762
  %v5794 = vadd.f32 %v5690, %v5762
  %v5795 = vadd.f32 %v5697, %v5766
  %v5796 = vadd.f32 %v5701, %v5766
  %v5797 = vadd.f32 %v5705, %v5766
  %v5798 = vadd.f32 %v5709, %v5766
  %v5799 = vadd.f32 %v5713, %v5766
  %v5800 = vadd.f32 %v5717, %v5766
  %v5801 = vadd.f32 %v5721, %v5766
  %v5802 = vadd.f32 %v5725, %v5766
  %vm5803 = vcmp.gt.f32.partialorder %v5771, 0.0
  %vm5804 = vcmp.gt.f32.partialorder %v5772, 0.0
  %vm5805 = vcmp.gt.f32.partialorder %v5773, 0.0
  %vm5806 = vcmp.gt.f32.partialorder %v5774, 0.0
  %vm5807 = vcmp.gt.f32.partialorder %v5775, 0.0
  %vm5808 = vcmp.gt.f32.partialorder %v5776, 0.0
  %vm5809 = vcmp.gt.f32.partialorder %v5777, 0.0
  %vm5810 = vcmp.gt.f32.partialorder %v5778, 0.0
  %vm5811 = vcmp.gt.f32.partialorder %v5779, 0.0
  %vm5812 = vcmp.gt.f32.partialorder %v5780, 0.0
  %vm5813 = vcmp.gt.f32.partialorder %v5781, 0.0
  %vm5814 = vcmp.gt.f32.partialorder %v5782, 0.0
  %vm5815 = vcmp.gt.f32.partialorder %v5783, 0.0
  %vm5816 = vcmp.gt.f32.partialorder %v5784, 0.0
  %vm5817 = vcmp.gt.f32.partialorder %v5785, 0.0
  %vm5818 = vcmp.gt.f32.partialorder %v5786, 0.0
  %vm5819 = vcmp.gt.f32.partialorder %v5787, 0.0
  %vm5820 = vcmp.gt.f32.partialorder %v5788, 0.0
  %vm5821 = vcmp.gt.f32.partialorder %v5789, 0.0
  %vm5822 = vcmp.gt.f32.partialorder %v5790, 0.0
  %vm5823 = vcmp.gt.f32.partialorder %v5791, 0.0
  %vm5824 = vcmp.gt.f32.partialorder %v5792, 0.0
  %vm5825 = vcmp.gt.f32.partialorder %v5793, 0.0
  %vm5826 = vcmp.gt.f32.partialorder %v5794, 0.0
  %vm5827 = vcmp.gt.f32.partialorder %v5795, 0.0
  %vm5828 = vcmp.gt.f32.partialorder %v5796, 0.0
  %vm5829 = vcmp.gt.f32.partialorder %v5797, 0.0
  %vm5830 = vcmp.gt.f32.partialorder %v5798, 0.0
  %vm5831 = vcmp.gt.f32.partialorder %v5799, 0.0
  %vm5832 = vcmp.gt.f32.partialorder %v5800, 0.0
  %vm5833 = vcmp.gt.f32.partialorder %v5801, 0.0
  %vm5834 = vcmp.gt.f32.partialorder %v5802, 0.0
  %v5835 = vmul.f32 %v5771, 0.2
  %v5836 = vmul.f32 %v5772, 0.2
  %v5837 = vmul.f32 %v5773, 0.2
  %v5838 = vmul.f32 %v5774, 0.2
  %v5839 = vmul.f32 %v5775, 0.2
  %v5840 = vmul.f32 %v5776, 0.2
  %v5841 = vmul.f32 %v5777, 0.2
  %v5842 = vmul.f32 %v5778, 0.2
  %v5843 = vmul.f32 %v5779, 0.2
  %v5844 = vmul.f32 %v5780, 0.2
  %v5845 = vmul.f32 %v5781, 0.2
  %v5846 = vmul.f32 %v5782, 0.2
  %v5847 = vmul.f32 %v5783, 0.2
  %v5848 = vmul.f32 %v5784, 0.2
  %v5849 = vmul.f32 %v5785, 0.2
  %v5850 = vmul.f32 %v5786, 0.2
  %v5851 = vmul.f32 %v5787, 0.2
  %v5852 = vmul.f32 %v5788, 0.2
  %v5853 = vmul.f32 %v5789, 0.2
  %v5854 = vmul.f32 %v5790, 0.2
  %v5855 = vmul.f32 %v5791, 0.2
  %v5856 = vmul.f32 %v5792, 0.2
  %v5857 = vmul.f32 %v5793, 0.2
  %v5858 = vmul.f32 %v5794, 0.2
  %v5859 = vmul.f32 %v5795, 0.2
  %v5860 = vmul.f32 %v5796, 0.2
  %v5861 = vmul.f32 %v5797, 0.2
  %v5862 = vmul.f32 %v5798, 0.2
  %v5863 = vmul.f32 %v5799, 0.2
  %v5864 = vmul.f32 %v5800, 0.2
  %v5865 = vmul.f32 %v5801, 0.2
  %v5866 = vmul.f32 %v5802, 0.2
  %v5867 = vsel %vm5803, %v5771, %v5835
  %v5868 = vsel %vm5804, %v5772, %v5836
  %v5869 = vsel %vm5805, %v5773, %v5837
  %v5870 = vsel %vm5806, %v5774, %v5838
  %v5871 = vsel %vm5807, %v5775, %v5839
  %v5872 = vsel %vm5808, %v5776, %v5840
  %v5873 = vsel %vm5809, %v5777, %v5841
  %v5874 = vsel %vm5810, %v5778, %v5842
  %v5875 = vsel %vm5811, %v5779, %v5843
  %v5876 = vsel %vm5812, %v5780, %v5844
  %v5877 = vsel %vm5813, %v5781, %v5845
  %v5878 = vsel %vm5814, %v5782, %v5846
  %v5879 = vsel %vm5815, %v5783, %v5847
  %v5880 = vsel %vm5816, %v5784, %v5848
  %v5881 = vsel %vm5817, %v5785, %v5849
  %v5882 = vsel %vm5818, %v5786, %v5850
  %v5883 = vsel %vm5819, %v5787, %v5851
  %v5884 = vsel %vm5820, %v5788, %v5852
  %v5885 = vsel %vm5821, %v5789, %v5853
  %v5886 = vsel %vm5822, %v5790, %v5854
  %v5887 = vsel %vm5823, %v5791, %v5855
  %v5888 = vsel %vm5824, %v5792, %v5856
  %v5889 = vsel %vm5825, %v5793, %v5857
  %v5890 = vsel %vm5826, %v5794, %v5858
  %v5891 = vsel %vm5827, %v5795, %v5859
  %v5892 = vsel %vm5828, %v5796, %v5860
  %v5893 = vsel %vm5829, %v5797, %v5861
  %v5894 = vsel %vm5830, %v5798, %v5862
  %v5895 = vsel %vm5831, %v5799, %v5863
  %v5896 = vsel %vm5832, %v5800, %v5864
  %v5897 = vsel %vm5833, %v5801, %v5865
  %v5898 = vsel %vm5834, %v5802, %v5866
  %vm5899 = vcmp.gt.f32.partialorder %v5369, 0.0
  %vm5900 = vcmp.gt.f32.partialorder %v5370, 0.0
  %vm5901 = vcmp.gt.f32.partialorder %v5371, 0.0
  %vm5902 = vcmp.gt.f32.partialorder %v5372, 0.0
  %vm5903 = vcmp.gt.f32.partialorder %v5373, 0.0
  %vm5904 = vcmp.gt.f32.partialorder %v5374, 0.0
  %vm5905 = vcmp.gt.f32.partialorder %v5375, 0.0
  %vm5906 = vcmp.gt.f32.partialorder %v5376, 0.0
  %v5907 = vsel %vm5899, 1, 0
  %v5908 = vsel %vm5900, 1, 0
  %v5909 = vsel %vm5901, 1, 0
  %v5910 = vsel %vm5902, 1, 0
  %v5911 = vsel %vm5903, 1, 0
  %v5912 = vsel %vm5904, 1, 0
  %v5913 = vsel %vm5905, 1, 0
  %v5914 = vsel %vm5906, 1, 0
  %vm5915 = vcmp.eq.s32.totalorder %v5907, 1
  %vm5916 = vcmp.eq.s32.totalorder %v5908, 1
  %vm5917 = vcmp.eq.s32.totalorder %v5909, 1
  %vm5918 = vcmp.eq.s32.totalorder %v5910, 1
  %vm5919 = vcmp.eq.s32.totalorder %v5911, 1
  %vm5920 = vcmp.eq.s32.totalorder %v5912, 1
  %vm5921 = vcmp.eq.s32.totalorder %v5913, 1
  %vm5922 = vcmp.eq.s32.totalorder %v5914, 1
  %v5923 = vsel %vm5915, %v5867, -1e+30
  %v5924 = vsel %vm5916, %v5868, -1e+30
  %v5925 = vsel %vm5917, %v5869, -1e+30
  %v5926 = vsel %vm5918, %v5870, -1e+30
  %v5927 = vsel %vm5919, %v5871, -1e+30
  %v5928 = vsel %vm5920, %v5872, -1e+30
  %v5929 = vsel %vm5921, %v5873, -1e+30
  %v5930 = vsel %vm5922, %v5874, -1e+30
  %v5931 = vsel %vm5915, %v5875, -1e+30
  %v5932 = vsel %vm5916, %v5876, -1e+30
  %v5933 = vsel %vm5917, %v5877, -1e+30
  %v5934 = vsel %vm5918, %v5878, -1e+30
  %v5935 = vsel %vm5919, %v5879, -1e+30
  %v5936 = vsel %vm5920, %v5880, -1e+30
  %v5937 = vsel %vm5921, %v5881, -1e+30
  %v5938 = vsel %vm5922, %v5882, -1e+30
  %v5939 = vsel %vm5915, %v5883, -1e+30
  %v5940 = vsel %vm5916, %v5884, -1e+30
  %v5941 = vsel %vm5917, %v5885, -1e+30
  %v5942 = vsel %vm5918, %v5886, -1e+30
  %v5943 = vsel %vm5919, %v5887, -1e+30
  %v5944 = vsel %vm5920, %v5888, -1e+30
  %v5945 = vsel %vm5921, %v5889, -1e+30
  %v5946 = vsel %vm5922, %v5890, -1e+30
  %v5947 = vsel %vm5915, %v5891, -1e+30
  %v5948 = vsel %vm5916, %v5892, -1e+30
  %v5949 = vsel %vm5917, %v5893, -1e+30
  %v5950 = vsel %vm5918, %v5894, -1e+30
  %v5951 = vsel %vm5919, %v5895, -1e+30
  %v5952 = vsel %vm5920, %v5896, -1e+30
  %v5953 = vsel %vm5921, %v5897, -1e+30
  %v5954 = vsel %vm5922, %v5898, -1e+30
  %v5955 = vsel %vm472, %v5923, -inf
  %5956 = vmax.xlane.f32.xlu0 %v5955
  %v5957 = vpop.xlane.xlu0 %5956
  %v5958 = vsel %vm472, %v5924, -inf
  %5959 = vmax.xlane.f32.xlu0 %v5958
  %v5960 = vpop.xlane.xlu0 %5959
  %v5961 = vsel %vm472, %v5925, -inf
  %5962 = vmax.xlane.f32.xlu0 %v5961
  %v5963 = vpop.xlane.xlu0 %5962
  %v5964 = vsel %vm472, %v5926, -inf
  %5965 = vmax.xlane.f32.xlu0 %v5964
  %v5966 = vpop.xlane.xlu0 %5965
  %v5967 = vsel %vm472, %v5927, -inf
  %5968 = vmax.xlane.f32.xlu0 %v5967
  %v5969 = vpop.xlane.xlu0 %5968
  %v5970 = vsel %vm472, %v5928, -inf
  %5971 = vmax.xlane.f32.xlu0 %v5970
  %v5972 = vpop.xlane.xlu0 %5971
  %v5973 = vsel %vm472, %v5929, -inf
  %5974 = vmax.xlane.f32.xlu0 %v5973
  %v5975 = vpop.xlane.xlu0 %5974
  %v5976 = vsel %vm472, %v5930, -inf
  %5977 = vmax.xlane.f32.xlu0 %v5976
  %v5978 = vpop.xlane.xlu0 %5977
  %v5979 = vsel %vm472, %v5931, -inf
  %5980 = vmax.xlane.f32.xlu0 %v5979
  %v5981 = vpop.xlane.xlu0 %5980
  %v5982 = vsel %vm472, %v5932, -inf
  %5983 = vmax.xlane.f32.xlu0 %v5982
  %v5984 = vpop.xlane.xlu0 %5983
  %v5985 = vsel %vm472, %v5933, -inf
  %5986 = vmax.xlane.f32.xlu0 %v5985
  %v5987 = vpop.xlane.xlu0 %5986
  %v5988 = vsel %vm472, %v5934, -inf
  %5989 = vmax.xlane.f32.xlu0 %v5988
  %v5990 = vpop.xlane.xlu0 %5989
  %v5991 = vsel %vm472, %v5935, -inf
  %5992 = vmax.xlane.f32.xlu0 %v5991
  %v5993 = vpop.xlane.xlu0 %5992
  %v5994 = vsel %vm472, %v5936, -inf
  %5995 = vmax.xlane.f32.xlu0 %v5994
  %v5996 = vpop.xlane.xlu0 %5995
  %v5997 = vsel %vm472, %v5937, -inf
  %5998 = vmax.xlane.f32.xlu0 %v5997
  %v5999 = vpop.xlane.xlu0 %5998
  %v6000 = vsel %vm472, %v5938, -inf
  %6001 = vmax.xlane.f32.xlu0 %v6000
  %v6002 = vpop.xlane.xlu0 %6001
  %v6003 = vsel %vm472, %v5939, -inf
  %6004 = vmax.xlane.f32.xlu0 %v6003
  %v6005 = vpop.xlane.xlu0 %6004
  %v6006 = vsel %vm472, %v5940, -inf
  %6007 = vmax.xlane.f32.xlu0 %v6006
  %v6008 = vpop.xlane.xlu0 %6007
  %v6009 = vsel %vm472, %v5941, -inf
  %6010 = vmax.xlane.f32.xlu0 %v6009
  %v6011 = vpop.xlane.xlu0 %6010
  %v6012 = vsel %vm472, %v5942, -inf
  %6013 = vmax.xlane.f32.xlu0 %v6012
  %v6014 = vpop.xlane.xlu0 %6013
  %v6015 = vsel %vm472, %v5943, -inf
  %6016 = vmax.xlane.f32.xlu0 %v6015
  %v6017 = vpop.xlane.xlu0 %6016
  %v6018 = vsel %vm472, %v5944, -inf
  %6019 = vmax.xlane.f32.xlu0 %v6018
  %v6020 = vpop.xlane.xlu0 %6019
  %v6021 = vsel %vm472, %v5945, -inf
  %6022 = vmax.xlane.f32.xlu0 %v6021
  %v6023 = vpop.xlane.xlu0 %6022
  %v6024 = vsel %vm472, %v5946, -inf
  %6025 = vmax.xlane.f32.xlu0 %v6024
  %v6026 = vpop.xlane.xlu0 %6025
  %v6027 = vsel %vm472, %v5947, -inf
  %6028 = vmax.xlane.f32.xlu0 %v6027
  %v6029 = vpop.xlane.xlu0 %6028
  %v6030 = vsel %vm472, %v5948, -inf
  %6031 = vmax.xlane.f32.xlu0 %v6030
  %v6032 = vpop.xlane.xlu0 %6031
  %v6033 = vsel %vm472, %v5949, -inf
  %6034 = vmax.xlane.f32.xlu0 %v6033
  %v6035 = vpop.xlane.xlu0 %6034
  %v6036 = vsel %vm472, %v5950, -inf
  %6037 = vmax.xlane.f32.xlu0 %v6036
  %v6038 = vpop.xlane.xlu0 %6037
  %v6039 = vsel %vm472, %v5951, -inf
  %6040 = vmax.xlane.f32.xlu0 %v6039
  %v6041 = vpop.xlane.xlu0 %6040
  %v6042 = vsel %vm472, %v5952, -inf
  %6043 = vmax.xlane.f32.xlu0 %v6042
  %v6044 = vpop.xlane.xlu0 %6043
  %v6045 = vsel %vm472, %v5953, -inf
  %6046 = vmax.xlane.f32.xlu0 %v6045
  %v6047 = vpop.xlane.xlu0 %6046
  %v6048 = vsel %vm472, %v5954, -inf
  %6049 = vmax.xlane.f32.xlu0 %v6048
  %v6050 = vpop.xlane.xlu0 %6049
  %v6051 = vsub.f32 %v5923, %v5957
  %v6052 = vsub.f32 %v5924, %v5960
  %v6053 = vsub.f32 %v5925, %v5963
  %v6054 = vsub.f32 %v5926, %v5966
  %v6055 = vsub.f32 %v5927, %v5969
  %v6056 = vsub.f32 %v5928, %v5972
  %v6057 = vsub.f32 %v5929, %v5975
  %v6058 = vsub.f32 %v5930, %v5978
  %v6059 = vsub.f32 %v5931, %v5981
  %v6060 = vsub.f32 %v5932, %v5984
  %v6061 = vsub.f32 %v5933, %v5987
  %v6062 = vsub.f32 %v5934, %v5990
  %v6063 = vsub.f32 %v5935, %v5993
  %v6064 = vsub.f32 %v5936, %v5996
  %v6065 = vsub.f32 %v5937, %v5999
  %v6066 = vsub.f32 %v5938, %v6002
  %v6067 = vsub.f32 %v5939, %v6005
  %v6068 = vsub.f32 %v5940, %v6008
  %v6069 = vsub.f32 %v5941, %v6011
  %v6070 = vsub.f32 %v5942, %v6014
  %v6071 = vsub.f32 %v5943, %v6017
  %v6072 = vsub.f32 %v5944, %v6020
  %v6073 = vsub.f32 %v5945, %v6023
  %v6074 = vsub.f32 %v5946, %v6026
  %v6075 = vsub.f32 %v5947, %v6029
  %v6076 = vsub.f32 %v5948, %v6032
  %v6077 = vsub.f32 %v5949, %v6035
  %v6078 = vsub.f32 %v5950, %v6038
  %v6079 = vsub.f32 %v5951, %v6041
  %v6080 = vsub.f32 %v5952, %v6044
  %v6081 = vsub.f32 %v5953, %v6047
  %v6082 = vsub.f32 %v5954, %v6050
  %v6083 = vmul.f32 %v6051, 1.442695
  %v6084 = vpow.pop %v6083
  %v6085 = vmul.f32 %v6052, 1.442695
  %v6086 = vpow.pop %v6085
  %v6087 = vmul.f32 %v6053, 1.442695
  %v6088 = vpow.pop %v6087
  %v6089 = vmul.f32 %v6054, 1.442695
  %v6090 = vpow.pop %v6089
  %v6091 = vmul.f32 %v6055, 1.442695
  %v6092 = vpow.pop %v6091
  %v6093 = vmul.f32 %v6056, 1.442695
  %v6094 = vpow.pop %v6093
  %v6095 = vmul.f32 %v6057, 1.442695
  %v6096 = vpow.pop %v6095
  %v6097 = vmul.f32 %v6058, 1.442695
  %v6098 = vpow.pop %v6097
  %v6099 = vmul.f32 %v6059, 1.442695
  %v6100 = vpow.pop %v6099
  %v6101 = vmul.f32 %v6060, 1.442695
  %v6102 = vpow.pop %v6101
  %v6103 = vmul.f32 %v6061, 1.442695
  %v6104 = vpow.pop %v6103
  %v6105 = vmul.f32 %v6062, 1.442695
  %v6106 = vpow.pop %v6105
  %v6107 = vmul.f32 %v6063, 1.442695
  %v6108 = vpow.pop %v6107
  %v6109 = vmul.f32 %v6064, 1.442695
  %v6110 = vpow.pop %v6109
  %v6111 = vmul.f32 %v6065, 1.442695
  %v6112 = vpow.pop %v6111
  %v6113 = vmul.f32 %v6066, 1.442695
  %v6114 = vpow.pop %v6113
  %v6115 = vmul.f32 %v6067, 1.442695
  %v6116 = vpow.pop %v6115
  %v6117 = vmul.f32 %v6068, 1.442695
  %v6118 = vpow.pop %v6117
  %v6119 = vmul.f32 %v6069, 1.442695
  %v6120 = vpow.pop %v6119
  %v6121 = vmul.f32 %v6070, 1.442695
  %v6122 = vpow.pop %v6121
  %v6123 = vmul.f32 %v6071, 1.442695
  %v6124 = vpow.pop %v6123
  %v6125 = vmul.f32 %v6072, 1.442695
  %v6126 = vpow.pop %v6125
  %v6127 = vmul.f32 %v6073, 1.442695
  %v6128 = vpow.pop %v6127
  %v6129 = vmul.f32 %v6074, 1.442695
  %v6130 = vpow.pop %v6129
  %v6131 = vmul.f32 %v6075, 1.442695
  %v6132 = vpow.pop %v6131
  %v6133 = vmul.f32 %v6076, 1.442695
  %v6134 = vpow.pop %v6133
  %v6135 = vmul.f32 %v6077, 1.442695
  %v6136 = vpow.pop %v6135
  %v6137 = vmul.f32 %v6078, 1.442695
  %v6138 = vpow.pop %v6137
  %v6139 = vmul.f32 %v6079, 1.442695
  %v6140 = vpow.pop %v6139
  %v6141 = vmul.f32 %v6080, 1.442695
  %v6142 = vpow.pop %v6141
  %v6143 = vmul.f32 %v6081, 1.442695
  %v6144 = vpow.pop %v6143
  %v6145 = vmul.f32 %v6082, 1.442695
  %v6146 = vpow.pop %v6145
  %v6147 = vsel %vm472, %v6084, 0.0
  %6148 = vadd.xlane.f32.xlu0 %v6147
  %v6149 = vpop.xlane.xlu0 %6148
  %v6150 = vsel %vm472, %v6086, 0.0
  %6151 = vadd.xlane.f32.xlu0 %v6150
  %v6152 = vpop.xlane.xlu0 %6151
  %v6153 = vsel %vm472, %v6088, 0.0
  %6154 = vadd.xlane.f32.xlu0 %v6153
  %v6155 = vpop.xlane.xlu0 %6154
  %v6156 = vsel %vm472, %v6090, 0.0
  %6157 = vadd.xlane.f32.xlu0 %v6156
  %v6158 = vpop.xlane.xlu0 %6157
  %v6159 = vsel %vm472, %v6092, 0.0
  %6160 = vadd.xlane.f32.xlu0 %v6159
  %v6161 = vpop.xlane.xlu0 %6160
  %v6162 = vsel %vm472, %v6094, 0.0
  %6163 = vadd.xlane.f32.xlu0 %v6162
  %v6164 = vpop.xlane.xlu0 %6163
  %v6165 = vsel %vm472, %v6096, 0.0
  %6166 = vadd.xlane.f32.xlu0 %v6165
  %v6167 = vpop.xlane.xlu0 %6166
  %v6168 = vsel %vm472, %v6098, 0.0
  %6169 = vadd.xlane.f32.xlu0 %v6168
  %v6170 = vpop.xlane.xlu0 %6169
  %v6171 = vsel %vm472, %v6100, 0.0
  %6172 = vadd.xlane.f32.xlu0 %v6171
  %v6173 = vpop.xlane.xlu0 %6172
  %v6174 = vsel %vm472, %v6102, 0.0
  %6175 = vadd.xlane.f32.xlu0 %v6174
  %v6176 = vpop.xlane.xlu0 %6175
  %v6177 = vsel %vm472, %v6104, 0.0
  %6178 = vadd.xlane.f32.xlu0 %v6177
  %v6179 = vpop.xlane.xlu0 %6178
  %v6180 = vsel %vm472, %v6106, 0.0
  %6181 = vadd.xlane.f32.xlu0 %v6180
  %v6182 = vpop.xlane.xlu0 %6181
  %v6183 = vsel %vm472, %v6108, 0.0
  %6184 = vadd.xlane.f32.xlu0 %v6183
  %v6185 = vpop.xlane.xlu0 %6184
  %v6186 = vsel %vm472, %v6110, 0.0
  %6187 = vadd.xlane.f32.xlu0 %v6186
  %v6188 = vpop.xlane.xlu0 %6187
  %v6189 = vsel %vm472, %v6112, 0.0
  %6190 = vadd.xlane.f32.xlu0 %v6189
  %v6191 = vpop.xlane.xlu0 %6190
  %v6192 = vsel %vm472, %v6114, 0.0
  %6193 = vadd.xlane.f32.xlu0 %v6192
  %v6194 = vpop.xlane.xlu0 %6193
  %v6195 = vsel %vm472, %v6116, 0.0
  %6196 = vadd.xlane.f32.xlu0 %v6195
  %v6197 = vpop.xlane.xlu0 %6196
  %v6198 = vsel %vm472, %v6118, 0.0
  %6199 = vadd.xlane.f32.xlu0 %v6198
  %v6200 = vpop.xlane.xlu0 %6199
  %v6201 = vsel %vm472, %v6120, 0.0
  %6202 = vadd.xlane.f32.xlu0 %v6201
  %v6203 = vpop.xlane.xlu0 %6202
  %v6204 = vsel %vm472, %v6122, 0.0
  %6205 = vadd.xlane.f32.xlu0 %v6204
  %v6206 = vpop.xlane.xlu0 %6205
  %v6207 = vsel %vm472, %v6124, 0.0
  %6208 = vadd.xlane.f32.xlu0 %v6207
  %v6209 = vpop.xlane.xlu0 %6208
  %v6210 = vsel %vm472, %v6126, 0.0
  %6211 = vadd.xlane.f32.xlu0 %v6210
  %v6212 = vpop.xlane.xlu0 %6211
  %v6213 = vsel %vm472, %v6128, 0.0
  %6214 = vadd.xlane.f32.xlu0 %v6213
  %v6215 = vpop.xlane.xlu0 %6214
  %v6216 = vsel %vm472, %v6130, 0.0
  %6217 = vadd.xlane.f32.xlu0 %v6216
  %v6218 = vpop.xlane.xlu0 %6217
  %v6219 = vsel %vm472, %v6132, 0.0
  %6220 = vadd.xlane.f32.xlu0 %v6219
  %v6221 = vpop.xlane.xlu0 %6220
  %v6222 = vsel %vm472, %v6134, 0.0
  %6223 = vadd.xlane.f32.xlu0 %v6222
  %v6224 = vpop.xlane.xlu0 %6223
  %v6225 = vsel %vm472, %v6136, 0.0
  %6226 = vadd.xlane.f32.xlu0 %v6225
  %v6227 = vpop.xlane.xlu0 %6226
  %v6228 = vsel %vm472, %v6138, 0.0
  %6229 = vadd.xlane.f32.xlu0 %v6228
  %v6230 = vpop.xlane.xlu0 %6229
  %v6231 = vsel %vm472, %v6140, 0.0
  %6232 = vadd.xlane.f32.xlu0 %v6231
  %v6233 = vpop.xlane.xlu0 %6232
  %v6234 = vsel %vm472, %v6142, 0.0
  %6235 = vadd.xlane.f32.xlu0 %v6234
  %v6236 = vpop.xlane.xlu0 %6235
  %v6237 = vsel %vm472, %v6144, 0.0
  %6238 = vadd.xlane.f32.xlu0 %v6237
  %v6239 = vpop.xlane.xlu0 %6238
  %v6240 = vsel %vm472, %v6146, 0.0
  %6241 = vadd.xlane.f32.xlu0 %v6240
  %v6242 = vpop.xlane.xlu0 %6241
  %v6243 = vrcp.pop %v6149
  %v6244 = vrcp.pop %v6152
  %v6245 = vrcp.pop %v6155
  %v6246 = vrcp.pop %v6158
  %v6247 = vrcp.pop %v6161
  %v6248 = vrcp.pop %v6164
  %v6249 = vrcp.pop %v6167
  %v6250 = vrcp.pop %v6170
  %v6251 = vrcp.pop %v6173
  %v6252 = vrcp.pop %v6176
  %v6253 = vrcp.pop %v6179
  %v6254 = vrcp.pop %v6182
  %v6255 = vrcp.pop %v6185
  %v6256 = vrcp.pop %v6188
  %v6257 = vrcp.pop %v6191
  %v6258 = vrcp.pop %v6194
  %v6259 = vrcp.pop %v6197
  %v6260 = vrcp.pop %v6200
  %v6261 = vrcp.pop %v6203
  %v6262 = vrcp.pop %v6206
  %v6263 = vrcp.pop %v6209
  %v6264 = vrcp.pop %v6212
  %v6265 = vrcp.pop %v6215
  %v6266 = vrcp.pop %v6218
  %v6267 = vrcp.pop %v6221
  %v6268 = vrcp.pop %v6224
  %v6269 = vrcp.pop %v6227
  %v6270 = vrcp.pop %v6230
  %v6271 = vrcp.pop %v6233
  %v6272 = vrcp.pop %v6236
  %v6273 = vrcp.pop %v6239
  %v6274 = vrcp.pop %v6242
  %v6275 = vmul.f32 %v6084, %v6243
  %v6276 = vmul.f32 %v6086, %v6244
  %v6277 = vmul.f32 %v6088, %v6245
  %v6278 = vmul.f32 %v6090, %v6246
  %v6279 = vmul.f32 %v6092, %v6247
  %v6280 = vmul.f32 %v6094, %v6248
  %v6281 = vmul.f32 %v6096, %v6249
  %v6282 = vmul.f32 %v6098, %v6250
  %v6283 = vmul.f32 %v6100, %v6251
  %v6284 = vmul.f32 %v6102, %v6252
  %v6285 = vmul.f32 %v6104, %v6253
  %v6286 = vmul.f32 %v6106, %v6254
  %v6287 = vmul.f32 %v6108, %v6255
  %v6288 = vmul.f32 %v6110, %v6256
  %v6289 = vmul.f32 %v6112, %v6257
  %v6290 = vmul.f32 %v6114, %v6258
  %v6291 = vmul.f32 %v6116, %v6259
  %v6292 = vmul.f32 %v6118, %v6260
  %v6293 = vmul.f32 %v6120, %v6261
  %v6294 = vmul.f32 %v6122, %v6262
  %v6295 = vmul.f32 %v6124, %v6263
  %v6296 = vmul.f32 %v6126, %v6264
  %v6297 = vmul.f32 %v6128, %v6265
  %v6298 = vmul.f32 %v6130, %v6266
  %v6299 = vmul.f32 %v6132, %v6267
  %v6300 = vmul.f32 %v6134, %v6268
  %v6301 = vmul.f32 %v6136, %v6269
  %v6302 = vmul.f32 %v6138, %v6270
  %v6303 = vmul.f32 %v6140, %v6271
  %v6304 = vmul.f32 %v6142, %v6272
  %v6305 = vmul.f32 %v6144, %v6273
  %v6306 = vmul.f32 %v6146, %v6274
  %v6307 = vpack.c.bf16 %v5456, %v5452
  %v6308 = vpack.c.bf16 %v5466, %v5462
  %v6309 = vpack.c.bf16 %v5476, %v5472
  %v6310 = vpack.c.bf16 %v5486, %v5482
  %v6311 = vpack.c.bf16 %v6276, %v6275
  %v6312 = vpack.c.bf16 %v6278, %v6277
  %v6313 = vpack.c.bf16 %v6280, %v6279
  %v6314 = vpack.c.bf16 %v6282, %v6281
  %v6316 = vsel %vm472, %v6311, 0
  %v6319 = vsel %vm472, %v6312, 0
  %v6322 = vsel %vm472, %v6313, 0
  %v6325 = vsel %vm472, %v6314, 0
  %6327 = vmatprep.subr.bf16.mxu0 0
  %6328 = vmatpush1.bf16.msra.mxu0 %v6307
  %6329 = vmatprep.subr.bf16.mxu0 0
  %6330 = vmatpush1.bf16.msra.mxu0 %v6308
  %6331 = vmatprep.subr.bf16.mxu0 0
  %6332 = vmatpush1.bf16.msra.mxu0 %v6309
  %6333 = vmatprep.subr.bf16.mxu0 0
  %6334 = vmatpush1.bf16.msra.mxu0 %v6310
  %6335 = vmatprep.subr.bf16.mxu0 0
  %6336 = vmatpush1.bf16.msra.mxu0 0
  %6337 = vmatprep.subr.bf16.mxu0 0
  %6338 = vmatpush1.bf16.msra.mxu0 0
  %6339 = vmatprep.subr.bf16.mxu0 0
  %6340 = vmatpush1.bf16.msra.mxu0 0
  %6341 = vmatprep.subr.bf16.mxu0 0
  %6342 = vmatpush1.bf16.msra.mxu0 0
  %6343 = vmatprep.subr.bf16.mxu0 0
  %6344 = vmatpush1.bf16.msra.mxu0 0
  %6345 = vmatprep.subr.bf16.mxu0 0
  %6346 = vmatpush1.bf16.msra.mxu0 0
  %6347 = vmatprep.subr.bf16.mxu0 0
  %6348 = vmatpush1.bf16.msra.mxu0 0
  %6349 = vmatprep.subr.bf16.mxu0 0
  %6350 = vmatpush1.bf16.msra.mxu0 0
  %6351 = vmatprep.subr.bf16.mxu0 0
  %6352 = vmatpush1.bf16.msra.mxu0 0
  %6353 = vmatprep.subr.bf16.mxu0 0
  %6354 = vmatpush1.bf16.msra.mxu0 0
  %6355 = vmatprep.subr.bf16.mxu0 0
  %6356 = vmatpush1.bf16.msra.mxu0 0
  %6357 = vmatprep.subr.bf16.mxu0 0
  %6358 = vmatpush1.bf16.msra.mxu0 0
  %6359 = vmatprep.mubr.bf16.mxu0 0
  %6360 = vmatmul.mubr.bf16.gmra.mrb[0].mxu0 %v6316
  %v6361 = vpop.f32.mrb[0].mxu0
  %v6362 = vadd.f32 0.0, %v6361
  %v6363 = vpop.f32.mrb[0].mxu0
  %v6364 = vpop.f32.mrb[0].mxu0
  %v6365 = vadd.f32 0.0, %v6364
  %v6366 = vpop.f32.mrb[0].mxu0
  %6367 = vmatprep.mubr.bf16.mxu0 0
  %6368 = vmatmul.mubr.bf16.gmra.mrb[0].mxu0 %v6319
  %v6369 = vpop.f32.mrb[0].mxu0
  %v6370 = vadd.f32 0.0, %v6369
  %v6371 = vpop.f32.mrb[0].mxu0
  %v6372 = vpop.f32.mrb[0].mxu0
  %v6373 = vadd.f32 0.0, %v6372
  %v6374 = vpop.f32.mrb[0].mxu0
  %6375 = vmatprep.mubr.bf16.mxu0 0
  %6376 = vmatmul.mubr.bf16.gmra.mrb[0].mxu0 %v6322
  %v6377 = vpop.f32.mrb[0].mxu0
  %v6378 = vadd.f32 0.0, %v6377
  %v6379 = vpop.f32.mrb[0].mxu0
  %v6380 = vpop.f32.mrb[0].mxu0
  %v6381 = vadd.f32 0.0, %v6380
  %v6382 = vpop.f32.mrb[0].mxu0
  %6383 = vmatprep.mubr.bf16.mxu0 0
  %6384 = vmatmul.mubr.bf16.gmra.mrb[0].mxu0 %v6325
  %v6385 = vpop.f32.mrb[0].mxu0
  %v6386 = vadd.f32 0.0, %v6385
  %v6387 = vpop.f32.mrb[0].mxu0
  %v6388 = vpop.f32.mrb[0].mxu0
  %v6389 = vadd.f32 0.0, %v6388
  %v6390 = vpop.f32.mrb[0].mxu0
  %6391 = vdwg.mxu0
  %v6392 = vpack.c.bf16 %v6284, %v6283
  %v6393 = vpack.c.bf16 %v6286, %v6285
  %v6394 = vpack.c.bf16 %v6288, %v6287
  %v6395 = vpack.c.bf16 %v6290, %v6289
  %6400 = vrot.lane.b32.xlu0 %v6307, 96
  %v6401 = vpop.permute.xlu0 %6400
  %6402 = vrot.lane.b32.xlu0 %v6308, 96
  %v6403 = vpop.permute.xlu0 %6402
  %6404 = vrot.lane.b32.xlu0 %v6309, 96
  %v6405 = vpop.permute.xlu0 %6404
  %6406 = vrot.lane.b32.xlu0 %v6310, 96
  %v6407 = vpop.permute.xlu0 %6406
  %v6413 = vsel %vm472, %v6392, 0
  %v6416 = vsel %vm472, %v6393, 0
  %v6419 = vsel %vm472, %v6394, 0
  %v6422 = vsel %vm472, %v6395, 0
  %6424 = vmatprep.subr.bf16.mxu0 0
  %6425 = vmatpush1.bf16.msra.mxu0 %v6401
  %6426 = vmatprep.subr.bf16.mxu0 0
  %6427 = vmatpush1.bf16.msra.mxu0 %v6403
  %6428 = vmatprep.subr.bf16.mxu0 0
  %6429 = vmatpush1.bf16.msra.mxu0 %v6405
  %6430 = vmatprep.subr.bf16.mxu0 0
  %6431 = vmatpush1.bf16.msra.mxu0 %v6407
  %6432 = vmatprep.subr.bf16.mxu0 0
  %6433 = vmatpush1.bf16.msra.mxu0 0
  %6434 = vmatprep.subr.bf16.mxu0 0
  %6435 = vmatpush1.bf16.msra.mxu0 0
  %6436 = vmatprep.subr.bf16.mxu0 0
  %6437 = vmatpush1.bf16.msra.mxu0 0
  %6438 = vmatprep.subr.bf16.mxu0 0
  %6439 = vmatpush1.bf16.msra.mxu0 0
  %6440 = vmatprep.subr.bf16.mxu0 0
  %6441 = vmatpush1.bf16.msra.mxu0 0
  %6442 = vmatprep.subr.bf16.mxu0 0
  %6443 = vmatpush1.bf16.msra.mxu0 0
  %6444 = vmatprep.subr.bf16.mxu0 0
  %6445 = vmatpush1.bf16.msra.mxu0 0
  %6446 = vmatprep.subr.bf16.mxu0 0
  %6447 = vmatpush1.bf16.msra.mxu0 0
  %6448 = vmatprep.subr.bf16.mxu0 0
  %6449 = vmatpush1.bf16.msra.mxu0 0
  %6450 = vmatprep.subr.bf16.mxu0 0
  %6451 = vmatpush1.bf16.msra.mxu0 0
  %6452 = vmatprep.subr.bf16.mxu0 0
  %6453 = vmatpush1.bf16.msra.mxu0 0
  %6454 = vmatprep.subr.bf16.mxu0 0
  %6455 = vmatpush1.bf16.msra.mxu0 0
  %6456 = vmatprep.mubr.bf16.mxu0 0
  %6457 = vmatmul.mubr.bf16.gmra.mrb[0].mxu0 %v6413
  %v6458 = vpop.f32.mrb[0].mxu0
  %v6459 = vadd.f32 0.0, %v6458
  %v6460 = vpop.f32.mrb[0].mxu0
  %v6461 = vpop.f32.mrb[0].mxu0
  %v6462 = vadd.f32 0.0, %v6461
  %v6463 = vpop.f32.mrb[0].mxu0
  %6464 = vmatprep.mubr.bf16.mxu0 0
  %6465 = vmatmul.mubr.bf16.gmra.mrb[0].mxu0 %v6416
  %v6466 = vpop.f32.mrb[0].mxu0
  %v6467 = vadd.f32 0.0, %v6466
  %v6468 = vpop.f32.mrb[0].mxu0
  %v6469 = vpop.f32.mrb[0].mxu0
  %v6470 = vadd.f32 0.0, %v6469
  %v6471 = vpop.f32.mrb[0].mxu0
  %6472 = vmatprep.mubr.bf16.mxu0 0
  %6473 = vmatmul.mubr.bf16.gmra.mrb[0].mxu0 %v6419
  %v6474 = vpop.f32.mrb[0].mxu0
  %v6475 = vadd.f32 0.0, %v6474
  %v6476 = vpop.f32.mrb[0].mxu0
  %v6477 = vpop.f32.mrb[0].mxu0
  %v6478 = vadd.f32 0.0, %v6477
  %v6479 = vpop.f32.mrb[0].mxu0
  %6480 = vmatprep.mubr.bf16.mxu0 0
  %6481 = vmatmul.mubr.bf16.gmra.mrb[0].mxu0 %v6422
  %v6482 = vpop.f32.mrb[0].mxu0
  %v6483 = vadd.f32 0.0, %v6482
  %v6484 = vpop.f32.mrb[0].mxu0
  %v6485 = vpop.f32.mrb[0].mxu0
  %v6486 = vadd.f32 0.0, %v6485
  %v6487 = vpop.f32.mrb[0].mxu0
  %6488 = vdwg.mxu0
  %v6489 = vpack.c.bf16 %v6292, %v6291
  %v6490 = vpack.c.bf16 %v6294, %v6293
  %v6491 = vpack.c.bf16 %v6296, %v6295
  %v6492 = vpack.c.bf16 %v6298, %v6297
  %6493 = vrot.lane.b32.xlu0 %v6307, 64
  %v6494 = vpop.permute.xlu0 %6493
  %6495 = vrot.lane.b32.xlu0 %v6308, 64
  %v6496 = vpop.permute.xlu0 %6495
  %6497 = vrot.lane.b32.xlu0 %v6309, 64
  %v6498 = vpop.permute.xlu0 %6497
  %6499 = vrot.lane.b32.xlu0 %v6310, 64
  %v6500 = vpop.permute.xlu0 %6499
  %v6506 = vsel %vm472, %v6489, 0
  %v6509 = vsel %vm472, %v6490, 0
  %v6512 = vsel %vm472, %v6491, 0
  %v6515 = vsel %vm472, %v6492, 0
  %6517 = vmatprep.subr.bf16.mxu0 0
  %6518 = vmatpush1.bf16.msra.mxu0 %v6494
  %6519 = vmatprep.subr.bf16.mxu0 0
  %6520 = vmatpush1.bf16.msra.mxu0 %v6496
  %6521 = vmatprep.subr.bf16.mxu0 0
  %6522 = vmatpush1.bf16.msra.mxu0 %v6498
  %6523 = vmatprep.subr.bf16.mxu0 0
  %6524 = vmatpush1.bf16.msra.mxu0 %v6500
  %6525 = vmatprep.subr.bf16.mxu0 0
  %6526 = vmatpush1.bf16.msra.mxu0 0
  %6527 = vmatprep.subr.bf16.mxu0 0
  %6528 = vmatpush1.bf16.msra.mxu0 0
  %6529 = vmatprep.subr.bf16.mxu0 0
  %6530 = vmatpush1.bf16.msra.mxu0 0
  %6531 = vmatprep.subr.bf16.mxu0 0
  %6532 = vmatpush1.bf16.msra.mxu0 0
  %6533 = vmatprep.subr.bf16.mxu0 0
  %6534 = vmatpush1.bf16.msra.mxu0 0
  %6535 = vmatprep.subr.bf16.mxu0 0
  %6536 = vmatpush1.bf16.msra.mxu0 0
  %6537 = vmatprep.subr.bf16.mxu0 0
  %6538 = vmatpush1.bf16.msra.mxu0 0
  %6539 = vmatprep.subr.bf16.mxu0 0
  %6540 = vmatpush1.bf16.msra.mxu0 0
  %6541 = vmatprep.subr.bf16.mxu0 0
  %6542 = vmatpush1.bf16.msra.mxu0 0
  %6543 = vmatprep.subr.bf16.mxu0 0
  %6544 = vmatpush1.bf16.msra.mxu0 0
  %6545 = vmatprep.subr.bf16.mxu0 0
  %6546 = vmatpush1.bf16.msra.mxu0 0
  %6547 = vmatprep.subr.bf16.mxu0 0
  %6548 = vmatpush1.bf16.msra.mxu0 0
  %6549 = vmatprep.mubr.bf16.mxu0 0
  %6550 = vmatmul.mubr.bf16.gmra.mrb[0].mxu0 %v6506
  %v6551 = vpop.f32.mrb[0].mxu0
  %v6552 = vadd.f32 0.0, %v6551
  %v6553 = vpop.f32.mrb[0].mxu0
  %v6554 = vpop.f32.mrb[0].mxu0
  %v6555 = vadd.f32 0.0, %v6554
  %v6556 = vpop.f32.mrb[0].mxu0
  %6557 = vmatprep.mubr.bf16.mxu0 0
  %6558 = vmatmul.mubr.bf16.gmra.mrb[0].mxu0 %v6509
  %v6559 = vpop.f32.mrb[0].mxu0
  %v6560 = vadd.f32 0.0, %v6559
  %v6561 = vpop.f32.mrb[0].mxu0
  %v6562 = vpop.f32.mrb[0].mxu0
  %v6563 = vadd.f32 0.0, %v6562
  %v6564 = vpop.f32.mrb[0].mxu0
  %6565 = vmatprep.mubr.bf16.mxu0 0
  %6566 = vmatmul.mubr.bf16.gmra.mrb[0].mxu0 %v6512
  %v6567 = vpop.f32.mrb[0].mxu0
  %v6568 = vadd.f32 0.0, %v6567
  %v6569 = vpop.f32.mrb[0].mxu0
  %v6570 = vpop.f32.mrb[0].mxu0
  %v6571 = vadd.f32 0.0, %v6570
  %v6572 = vpop.f32.mrb[0].mxu0
  %6573 = vmatprep.mubr.bf16.mxu0 0
  %6574 = vmatmul.mubr.bf16.gmra.mrb[0].mxu0 %v6515
  %v6575 = vpop.f32.mrb[0].mxu0
  %v6576 = vadd.f32 0.0, %v6575
  %v6577 = vpop.f32.mrb[0].mxu0
  %v6578 = vpop.f32.mrb[0].mxu0
  %v6579 = vadd.f32 0.0, %v6578
  %v6580 = vpop.f32.mrb[0].mxu0
  %6581 = vdwg.mxu0
  %v6582 = vpack.c.bf16 %v6300, %v6299
  %v6583 = vpack.c.bf16 %v6302, %v6301
  %v6584 = vpack.c.bf16 %v6304, %v6303
  %v6585 = vpack.c.bf16 %v6306, %v6305
  %6586 = vrot.lane.b32.xlu0 %v6307, 32
  %v6587 = vpop.permute.xlu0 %6586
  %6588 = vrot.lane.b32.xlu0 %v6308, 32
  %v6589 = vpop.permute.xlu0 %6588
  %6590 = vrot.lane.b32.xlu0 %v6309, 32
  %v6591 = vpop.permute.xlu0 %6590
  %6592 = vrot.lane.b32.xlu0 %v6310, 32
  %v6593 = vpop.permute.xlu0 %6592
  %v6599 = vsel %vm472, %v6582, 0
  %v6602 = vsel %vm472, %v6583, 0
  %v6605 = vsel %vm472, %v6584, 0
  %v6608 = vsel %vm472, %v6585, 0
  %6610 = vmatprep.subr.bf16.mxu0 0
  %6611 = vmatpush1.bf16.msra.mxu0 %v6587
  %6612 = vmatprep.subr.bf16.mxu0 0
  %6613 = vmatpush1.bf16.msra.mxu0 %v6589
  %6614 = vmatprep.subr.bf16.mxu0 0
  %6615 = vmatpush1.bf16.msra.mxu0 %v6591
  %6616 = vmatprep.subr.bf16.mxu0 0
  %6617 = vmatpush1.bf16.msra.mxu0 %v6593
  %6618 = vmatprep.subr.bf16.mxu0 0
  %6619 = vmatpush1.bf16.msra.mxu0 0
  %6620 = vmatprep.subr.bf16.mxu0 0
  %6621 = vmatpush1.bf16.msra.mxu0 0
  %6622 = vmatprep.subr.bf16.mxu0 0
  %6623 = vmatpush1.bf16.msra.mxu0 0
  %6624 = vmatprep.subr.bf16.mxu0 0
  %6625 = vmatpush1.bf16.msra.mxu0 0
  %6626 = vmatprep.subr.bf16.mxu0 0
  %6627 = vmatpush1.bf16.msra.mxu0 0
  %6628 = vmatprep.subr.bf16.mxu0 0
  %6629 = vmatpush1.bf16.msra.mxu0 0
  %6630 = vmatprep.subr.bf16.mxu0 0
  %6631 = vmatpush1.bf16.msra.mxu0 0
  %6632 = vmatprep.subr.bf16.mxu0 0
  %6633 = vmatpush1.bf16.msra.mxu0 0
  %6634 = vmatprep.subr.bf16.mxu0 0
  %6635 = vmatpush1.bf16.msra.mxu0 0
  %6636 = vmatprep.subr.bf16.mxu0 0
  %6637 = vmatpush1.bf16.msra.mxu0 0
  %6638 = vmatprep.subr.bf16.mxu0 0
  %6639 = vmatpush1.bf16.msra.mxu0 0
  %6640 = vmatprep.subr.bf16.mxu0 0
  %6641 = vmatpush1.bf16.msra.mxu0 0
  %6642 = vmatprep.mubr.bf16.mxu0 0
  %6643 = vmatmul.mubr.bf16.gmra.mrb[0].mxu0 %v6599
  %v6644 = vpop.f32.mrb[0].mxu0
  %v6645 = vadd.f32 0.0, %v6644
  %v6646 = vpop.f32.mrb[0].mxu0
  %v6647 = vpop.f32.mrb[0].mxu0
  %v6648 = vadd.f32 0.0, %v6647
  %v6649 = vpop.f32.mrb[0].mxu0
  %6650 = vmatprep.mubr.bf16.mxu0 0
  %6651 = vmatmul.mubr.bf16.gmra.mrb[0].mxu0 %v6602
  %v6652 = vpop.f32.mrb[0].mxu0
  %v6653 = vadd.f32 0.0, %v6652
  %v6654 = vpop.f32.mrb[0].mxu0
  %v6655 = vpop.f32.mrb[0].mxu0
  %v6656 = vadd.f32 0.0, %v6655
  %v6657 = vpop.f32.mrb[0].mxu0
  %6658 = vmatprep.mubr.bf16.mxu0 0
  %6659 = vmatmul.mubr.bf16.gmra.mrb[0].mxu0 %v6605
  %v6660 = vpop.f32.mrb[0].mxu0
  %v6661 = vadd.f32 0.0, %v6660
  %v6662 = vpop.f32.mrb[0].mxu0
  %v6663 = vpop.f32.mrb[0].mxu0
  %v6664 = vadd.f32 0.0, %v6663
  %v6665 = vpop.f32.mrb[0].mxu0
  %6666 = vmatprep.mubr.bf16.mxu0 0
  %6667 = vmatmul.mubr.bf16.gmra.mrb[0].mxu0 %v6608
  %v6668 = vpop.f32.mrb[0].mxu0
  %v6669 = vadd.f32 0.0, %v6668
  %v6670 = vpop.f32.mrb[0].mxu0
  %v6671 = vpop.f32.mrb[0].mxu0
  %v6672 = vadd.f32 0.0, %v6671
  %v6673 = vpop.f32.mrb[0].mxu0
  %6674 = vdwg.mxu0
  %6683 = vrot.lane.b32.xlu0 %v6459, 32
  %v6684 = vpop.permute.xlu0 %6683
  %6685 = vrot.lane.b32.xlu0 %v6462, 32
  %v6686 = vpop.permute.xlu0 %6685
  %6687 = vrot.lane.b32.xlu0 %v6467, 32
  %v6688 = vpop.permute.xlu0 %6687
  %6689 = vrot.lane.b32.xlu0 %v6470, 32
  %v6690 = vpop.permute.xlu0 %6689
  %6691 = vrot.lane.b32.xlu0 %v6475, 32
  %v6692 = vpop.permute.xlu0 %6691
  %6693 = vrot.lane.b32.xlu0 %v6478, 32
  %v6694 = vpop.permute.xlu0 %6693
  %6695 = vrot.lane.b32.xlu0 %v6483, 32
  %v6696 = vpop.permute.xlu0 %6695
  %6697 = vrot.lane.b32.xlu0 %v6486, 32
  %v6698 = vpop.permute.xlu0 %6697
  %6715 = vrot.lane.b32.xlu0 %v6552, 64
  %v6716 = vpop.permute.xlu0 %6715
  %6717 = vrot.lane.b32.xlu0 %v6555, 64
  %v6718 = vpop.permute.xlu0 %6717
  %6719 = vrot.lane.b32.xlu0 %v6560, 64
  %v6720 = vpop.permute.xlu0 %6719
  %6721 = vrot.lane.b32.xlu0 %v6563, 64
  %v6722 = vpop.permute.xlu0 %6721
  %6723 = vrot.lane.b32.xlu0 %v6568, 64
  %v6724 = vpop.permute.xlu0 %6723
  %6725 = vrot.lane.b32.xlu0 %v6571, 64
  %v6726 = vpop.permute.xlu0 %6725
  %6727 = vrot.lane.b32.xlu0 %v6576, 64
  %v6728 = vpop.permute.xlu0 %6727
  %6729 = vrot.lane.b32.xlu0 %v6579, 64
  %v6730 = vpop.permute.xlu0 %6729
  %6747 = vrot.lane.b32.xlu0 %v6645, 96
  %v6748 = vpop.permute.xlu0 %6747
  %6749 = vrot.lane.b32.xlu0 %v6648, 96
  %v6750 = vpop.permute.xlu0 %6749
  %6751 = vrot.lane.b32.xlu0 %v6653, 96
  %v6752 = vpop.permute.xlu0 %6751
  %6753 = vrot.lane.b32.xlu0 %v6656, 96
  %v6754 = vpop.permute.xlu0 %6753
  %6755 = vrot.lane.b32.xlu0 %v6661, 96
  %v6756 = vpop.permute.xlu0 %6755
  %6757 = vrot.lane.b32.xlu0 %v6664, 96
  %v6758 = vpop.permute.xlu0 %6757
  %6759 = vrot.lane.b32.xlu0 %v6669, 96
  %v6760 = vpop.permute.xlu0 %6759
  %6761 = vrot.lane.b32.xlu0 %v6672, 96
  %v6762 = vpop.permute.xlu0 %6761
  %v6771 = vsel %vm1583, %v6362, %v6684
  %v6772 = vsel %vm1583, %v6365, %v6686
  %v6773 = vsel %vm1583, %v6370, %v6688
  %v6774 = vsel %vm1583, %v6373, %v6690
  %v6775 = vsel %vm1583, %v6378, %v6692
  %v6776 = vsel %vm1583, %v6381, %v6694
  %v6777 = vsel %vm1583, %v6386, %v6696
  %v6778 = vsel %vm1583, %v6389, %v6698
  %v6779 = vsel %vm472, %v6771, %v6716
  %v6780 = vsel %vm472, %v6772, %v6718
  %v6781 = vsel %vm472, %v6773, %v6720
  %v6782 = vsel %vm472, %v6774, %v6722
  %v6783 = vsel %vm472, %v6775, %v6724
  %v6784 = vsel %vm472, %v6776, %v6726
  %v6785 = vsel %vm472, %v6777, %v6728
  %v6786 = vsel %vm472, %v6778, %v6730
  %vm6787 = vcmask 785408
  %v6788 = vsel %vm6787, %v6779, %v6748
  %v6789 = vsel %vm6787, %v6780, %v6750
  %v6790 = vsel %vm6787, %v6781, %v6752
  %v6791 = vsel %vm6787, %v6782, %v6754
  %v6792 = vsel %vm6787, %v6783, %v6756
  %v6793 = vsel %vm6787, %v6784, %v6758
  %v6794 = vsel %vm6787, %v6785, %v6760
  %v6795 = vsel %vm6787, %v6786, %v6762
  %v6796 = vlaneseq
  %v6797 = vshrl.u32 %v6796, 7
  %v6798 = vsub.s32 2, %v6797
  %v6799 = vrot.slane %v48, %v6798
  %v6800 = vadd.f32 %v6788, %v6799
  %v6801 = vadd.f32 %v6789, %v6799
  %v6802 = vadd.f32 %v6790, %v6799
  %v6803 = vadd.f32 %v6791, %v6799
  %v6804 = vadd.f32 %v6792, %v6799
  %v6805 = vadd.f32 %v6793, %v6799
  %v6806 = vadd.f32 %v6794, %v6799
  %v6807 = vadd.f32 %v6795, %v6799
  %vm6808 = vcmp.gt.f32.partialorder %v6800, 0.0
  %vm6809 = vcmp.gt.f32.partialorder %v6801, 0.0
  %vm6810 = vcmp.gt.f32.partialorder %v6802, 0.0
  %vm6811 = vcmp.gt.f32.partialorder %v6803, 0.0
  %vm6812 = vcmp.gt.f32.partialorder %v6804, 0.0
  %vm6813 = vcmp.gt.f32.partialorder %v6805, 0.0
  %vm6814 = vcmp.gt.f32.partialorder %v6806, 0.0
  %vm6815 = vcmp.gt.f32.partialorder %v6807, 0.0
  %v6816 = vmin.f32 %v6800, 0.0
  %v6817 = vmin.f32 %v6801, 0.0
  %v6818 = vmin.f32 %v6802, 0.0
  %v6819 = vmin.f32 %v6803, 0.0
  %v6820 = vmin.f32 %v6804, 0.0
  %v6821 = vmin.f32 %v6805, 0.0
  %v6822 = vmin.f32 %v6806, 0.0
  %v6823 = vmin.f32 %v6807, 0.0
  %v6824 = vmul.f32 %v6816, 1.442695
  %v6825 = vpow.pop %v6824
  %v6826 = vmul.f32 %v6817, 1.442695
  %v6827 = vpow.pop %v6826
  %v6828 = vmul.f32 %v6818, 1.442695
  %v6829 = vpow.pop %v6828
  %v6830 = vmul.f32 %v6819, 1.442695
  %v6831 = vpow.pop %v6830
  %v6832 = vmul.f32 %v6820, 1.442695
  %v6833 = vpow.pop %v6832
  %v6834 = vmul.f32 %v6821, 1.442695
  %v6835 = vpow.pop %v6834
  %v6836 = vmul.f32 %v6822, 1.442695
  %v6837 = vpow.pop %v6836
  %v6838 = vmul.f32 %v6823, 1.442695
  %v6839 = vpow.pop %v6838
  %v6840 = vsub.f32 %v6825, 1.0
  %v6841 = vsub.f32 %v6827, 1.0
  %v6842 = vsub.f32 %v6829, 1.0
  %v6843 = vsub.f32 %v6831, 1.0
  %v6844 = vsub.f32 %v6833, 1.0
  %v6845 = vsub.f32 %v6835, 1.0
  %v6846 = vsub.f32 %v6837, 1.0
  %v6847 = vsub.f32 %v6839, 1.0
  %v6848 = vsel %vm6808, %v6800, %v6840
  %v6849 = vsel %vm6809, %v6801, %v6841
  %v6850 = vsel %vm6810, %v6802, %v6842
  %v6851 = vsel %vm6811, %v6803, %v6843
  %v6852 = vsel %vm6812, %v6804, %v6844
  %v6853 = vsel %vm6813, %v6805, %v6845
  %v6854 = vsel %vm6814, %v6806, %v6846
  %v6855 = vsel %vm6815, %v6807, %v6847
  %v6856 = vld [vmem:[%s12] sm:$0xff]
  %v6857 = vld [vmem:[%s12 + $0x8] sm:$0xff]
  %v6858 = vld [vmem:[%s12 + $0x10] sm:$0xff]
  %v6859 = vld [vmem:[%s12 + $0x18] sm:$0xff]
  %v6860 = vld [vmem:[%s12 + $0x20] sm:$0xff]
  %v6861 = vld [vmem:[%s12 + $0x28] sm:$0xff]
  %v6862 = vld [vmem:[%s12 + $0x30] sm:$0xff]
  %v6863 = vld [vmem:[%s12 + $0x38] sm:$0xff]
  %v6864 = vld [vmem:[%s12 + $0x40] sm:$0xff]
  %v6865 = vld [vmem:[%s12 + $0x48] sm:$0xff]
  %v6866 = vld [vmem:[%s12 + $0x50] sm:$0xff]
  %v6867 = vld [vmem:[%s12 + $0x58] sm:$0xff]
  %v6868 = vld [vmem:[%s12 + $0x60] sm:$0xff]
  %v6869 = vld [vmem:[%s12 + $0x68] sm:$0xff]
  %v6870 = vld [vmem:[%s12 + $0x70] sm:$0xff]
  %v6871 = vld [vmem:[%s12 + $0x78] sm:$0xff]
  %v6872 = vpack.c.bf16 %v6849, %v6848
  %v6873 = vpack.c.bf16 %v6851, %v6850
  %v6874 = vpack.c.bf16 %v6853, %v6852
  %v6875 = vpack.c.bf16 %v6855, %v6854
  %v6892 = vunpack.c.l.b16 %v6856
  %v6893 = vunpack.c.h.b16 %v6856
  %v6894 = vunpack.c.l.b16 %v6857
  %v6895 = vunpack.c.h.b16 %v6857
  %v6896 = vunpack.c.l.b16 %v6858
  %v6897 = vunpack.c.h.b16 %v6858
  %v6898 = vunpack.c.l.b16 %v6859
  %v6899 = vunpack.c.h.b16 %v6859
  %v6900 = vunpack.c.l.b16 %v6860
  %v6901 = vunpack.c.h.b16 %v6860
  %v6902 = vunpack.c.l.b16 %v6861
  %v6903 = vunpack.c.h.b16 %v6861
  %v6904 = vunpack.c.l.b16 %v6862
  %v6905 = vunpack.c.h.b16 %v6862
  %v6906 = vunpack.c.l.b16 %v6863
  %v6907 = vunpack.c.h.b16 %v6863
  %v6908 = vunpack.c.l.b16 %v6864
  %v6909 = vunpack.c.h.b16 %v6864
  %v6910 = vunpack.c.l.b16 %v6865
  %v6911 = vunpack.c.h.b16 %v6865
  %v6912 = vunpack.c.l.b16 %v6866
  %v6913 = vunpack.c.h.b16 %v6866
  %v6914 = vunpack.c.l.b16 %v6867
  %v6915 = vunpack.c.h.b16 %v6867
  %v6916 = vunpack.c.l.b16 %v6868
  %v6917 = vunpack.c.h.b16 %v6868
  %v6918 = vunpack.c.l.b16 %v6869
  %v6919 = vunpack.c.h.b16 %v6869
  %v6920 = vunpack.c.l.b16 %v6870
  %v6921 = vunpack.c.h.b16 %v6870
  %v6922 = vunpack.c.l.b16 %v6871
  %v6923 = vunpack.c.h.b16 %v6871
  %v6924 = vpack.c.b16 %v6894, %v6892
  %v6925 = vpack.c.b16 %v6895, %v6893
  %v6926 = vpack.c.b16 %v6898, %v6896
  %v6927 = vpack.c.b16 %v6899, %v6897
  %v6928 = vpack.c.b16 %v6902, %v6900
  %v6929 = vpack.c.b16 %v6903, %v6901
  %v6930 = vpack.c.b16 %v6906, %v6904
  %v6931 = vpack.c.b16 %v6907, %v6905
  %v6932 = vpack.c.b16 %v6910, %v6908
  %v6933 = vpack.c.b16 %v6911, %v6909
  %v6934 = vpack.c.b16 %v6914, %v6912
  %v6935 = vpack.c.b16 %v6915, %v6913
  %v6936 = vpack.c.b16 %v6918, %v6916
  %v6937 = vpack.c.b16 %v6919, %v6917
  %v6938 = vpack.c.b16 %v6922, %v6920
  %v6939 = vpack.c.b16 %v6923, %v6921
  %6956 = vmatprep.subr.bf16.mxu0 %v6925
  %6957 = vmatpush1.bf16.msra.mxu0 %v6924
  %6958 = vmatprep.subr.bf16.mxu0 %v6927
  %6959 = vmatpush1.bf16.msra.mxu0 %v6926
  %6960 = vmatprep.subr.bf16.mxu0 %v6929
  %6961 = vmatpush1.bf16.msra.mxu0 %v6928
  %6962 = vmatprep.subr.bf16.mxu0 %v6931
  %6963 = vmatpush1.bf16.msra.mxu0 %v6930
  %6964 = vmatprep.subr.bf16.mxu0 %v6933
  %6965 = vmatpush1.bf16.msra.mxu0 %v6932
  %6966 = vmatprep.subr.bf16.mxu0 %v6935
  %6967 = vmatpush1.bf16.msra.mxu0 %v6934
  %6968 = vmatprep.subr.bf16.mxu0 %v6937
  %6969 = vmatpush1.bf16.msra.mxu0 %v6936
  %6970 = vmatprep.subr.bf16.mxu0 %v6939
  %6971 = vmatpush1.bf16.msra.mxu0 %v6938
  %6972 = vmatprep.subr.bf16.mxu0 0
  %6973 = vmatpush1.bf16.msra.mxu0 0
  %6974 = vmatprep.subr.bf16.mxu0 0
  %6975 = vmatpush1.bf16.msra.mxu0 0
  %6976 = vmatprep.subr.bf16.mxu0 0
  %6977 = vmatpush1.bf16.msra.mxu0 0
  %6978 = vmatprep.subr.bf16.mxu0 0
  %6979 = vmatpush1.bf16.msra.mxu0 0
  %6980 = vmatprep.subr.bf16.mxu0 0
  %6981 = vmatpush1.bf16.msra.mxu0 0
  %6982 = vmatprep.subr.bf16.mxu0 0
  %6983 = vmatpush1.bf16.msra.mxu0 0
  %6984 = vmatprep.subr.bf16.mxu0 0
  %6985 = vmatpush1.bf16.msra.mxu0 0
  %6986 = vmatprep.subr.bf16.mxu0 0
  %6987 = vmatpush1.bf16.msra.mxu0 0
  %6988 = vmatprep.mubr.bf16.mxu0 0
  %6989 = vmatmul.mubr.bf16.gmra.mrb[0].mxu0 %v6872
  %v6990 = vpop.f32.mrb[0].mxu0
  %v6991 = vadd.f32 0.0, %v6990
  %v6992 = vpop.f32.mrb[0].mxu0
  %v6993 = vadd.f32 0.0, %v6992
  %v6994 = vpop.f32.mrb[0].mxu0
  %v6995 = vadd.f32 0.0, %v6994
  %v6996 = vpop.f32.mrb[0].mxu0
  %v6997 = vadd.f32 0.0, %v6996
  %6998 = vmatprep.mubr.bf16.mxu0 0
  %6999 = vmatmul.mubr.bf16.gmra.mrb[0].mxu0 %v6873
  %v7000 = vpop.f32.mrb[0].mxu0
  %v7001 = vadd.f32 0.0, %v7000
  %v7002 = vpop.f32.mrb[0].mxu0
  %v7003 = vadd.f32 0.0, %v7002
  %v7004 = vpop.f32.mrb[0].mxu0
  %v7005 = vadd.f32 0.0, %v7004
  %v7006 = vpop.f32.mrb[0].mxu0
  %v7007 = vadd.f32 0.0, %v7006
  %7008 = vmatprep.mubr.bf16.mxu0 0
  %7009 = vmatmul.mubr.bf16.gmra.mrb[0].mxu0 %v6874
  %v7010 = vpop.f32.mrb[0].mxu0
  %v7011 = vadd.f32 0.0, %v7010
  %v7012 = vpop.f32.mrb[0].mxu0
  %v7013 = vadd.f32 0.0, %v7012
  %v7014 = vpop.f32.mrb[0].mxu0
  %v7015 = vadd.f32 0.0, %v7014
  %v7016 = vpop.f32.mrb[0].mxu0
  %v7017 = vadd.f32 0.0, %v7016
  %7018 = vmatprep.mubr.bf16.mxu0 0
  %7019 = vmatmul.mubr.bf16.gmra.mrb[0].mxu0 %v6875
  %v7020 = vpop.f32.mrb[0].mxu0
  %v7021 = vadd.f32 0.0, %v7020
  %v7022 = vpop.f32.mrb[0].mxu0
  %v7023 = vadd.f32 0.0, %v7022
  %v7024 = vpop.f32.mrb[0].mxu0
  %v7025 = vadd.f32 0.0, %v7024
  %v7026 = vpop.f32.mrb[0].mxu0
  %v7027 = vadd.f32 0.0, %v7026
  %7028 = vdwg.mxu0
  %7029 = vxpose.xlu0.b32.start [1/16] %v6993, 128
  %7030 = vxpose.xlu0.b32.cont [2/16] %v6997, 128
  %7031 = vxpose.xlu0.b32.cont [3/16] %v7003, 128
  %7032 = vxpose.xlu0.b32.cont [4/16] %v7007, 128
  %7033 = vxpose.xlu0.b32.cont [5/16] %v7013, 128
  %7034 = vxpose.xlu0.b32.cont [6/16] %v7017, 128
  %7035 = vxpose.xlu0.b32.cont [7/16] %v7023, 128
  %7036 = vxpose.xlu0.b32.cont [8/16] %v7027, 128
  %7037 = vxpose.xlu0.b32.cont [9/16] 0.0, 128
  %7038 = vxpose.xlu0.b32.cont [10/16] 0.0, 128
  %7039 = vxpose.xlu0.b32.cont [11/16] 0.0, 128
  %7040 = vxpose.xlu0.b32.cont [12/16] 0.0, 128
  %7041 = vxpose.xlu0.b32.cont [13/16] 0.0, 128
  %7042 = vxpose.xlu0.b32.cont [14/16] 0.0, 128
  %7043 = vxpose.xlu0.b32.cont [15/16] 0.0, 128
  %7044 = vxpose.xlu0.b32.end [16/16] 0.0, 128
  %v7045 = vpop.trf.xlu0
  %v7046 = vpop.trf.xlu0
  %v7047 = vpop.trf.xlu0
  %v7048 = vpop.trf.xlu0
  %v7049 = vpop.trf.xlu0
  %v7050 = vpop.trf.xlu0
  %v7051 = vpop.trf.xlu0
  %v7052 = vpop.trf.xlu0
  %v7053 = vpop.trf.xlu0
  %v7054 = vpop.trf.xlu0
  %v7055 = vpop.trf.xlu0
  %v7056 = vpop.trf.xlu0
  %v7057 = vpop.trf.xlu0
  %v7058 = vpop.trf.xlu0
  %v7059 = vpop.trf.xlu0
  %v7060 = vpop.trf.xlu0
  %7069 = vrot.lane.b32.xlu0 %v6993, 124
  %v7070 = vpop.permute.xlu0 %7069
  %7071 = vrot.lane.b32.xlu0 %v6997, 124
  %v7072 = vpop.permute.xlu0 %7071
  %7073 = vrot.lane.b32.xlu0 %v7003, 124
  %v7074 = vpop.permute.xlu0 %7073
  %7075 = vrot.lane.b32.xlu0 %v7007, 124
  %v7076 = vpop.permute.xlu0 %7075
  %7077 = vrot.lane.b32.xlu0 %v7013, 124
  %v7078 = vpop.permute.xlu0 %7077
  %7079 = vrot.lane.b32.xlu0 %v7017, 124
  %v7080 = vpop.permute.xlu0 %7079
  %7081 = vrot.lane.b32.xlu0 %v7023, 124
  %v7082 = vpop.permute.xlu0 %7081
  %7083 = vrot.lane.b32.xlu0 %v7027, 124
  %v7084 = vpop.permute.xlu0 %7083
  %7093 = vxpose.xlu0.b32.start [1/16] %v7070, 128
  %7094 = vxpose.xlu0.b32.cont [2/16] %v7072, 128
  %7095 = vxpose.xlu0.b32.cont [3/16] %v7074, 128
  %7096 = vxpose.xlu0.b32.cont [4/16] %v7076, 128
  %7097 = vxpose.xlu0.b32.cont [5/16] %v7078, 128
  %7098 = vxpose.xlu0.b32.cont [6/16] %v7080, 128
  %7099 = vxpose.xlu0.b32.cont [7/16] %v7082, 128
  %7100 = vxpose.xlu0.b32.cont [8/16] %v7084, 128
  %7101 = vxpose.xlu0.b32.cont [9/16] 0.0, 128
  %7102 = vxpose.xlu0.b32.cont [10/16] 0.0, 128
  %7103 = vxpose.xlu0.b32.cont [11/16] 0.0, 128
  %7104 = vxpose.xlu0.b32.cont [12/16] 0.0, 128
  %7105 = vxpose.xlu0.b32.cont [13/16] 0.0, 128
  %7106 = vxpose.xlu0.b32.cont [14/16] 0.0, 128
  %7107 = vxpose.xlu0.b32.cont [15/16] 0.0, 128
  %7108 = vxpose.xlu0.b32.end [16/16] 0.0, 128
  %v7109 = vpop.trf.xlu0
  %v7110 = vpop.trf.xlu0
  %v7111 = vpop.trf.xlu0
  %v7112 = vpop.trf.xlu0
  %v7113 = vpop.trf.xlu0
  %v7114 = vpop.trf.xlu0
  %v7115 = vpop.trf.xlu0
  %v7116 = vpop.trf.xlu0
  %v7117 = vpop.trf.xlu0
  %v7118 = vpop.trf.xlu0
  %v7119 = vpop.trf.xlu0
  %v7120 = vpop.trf.xlu0
  %v7121 = vpop.trf.xlu0
  %v7122 = vpop.trf.xlu0
  %v7123 = vpop.trf.xlu0
  %v7124 = vpop.trf.xlu0
  %v7125 = vlaneseq
  %v7126 = vshrl.u32 %v7125, 7
  %v7127 = vsub.s32 0, %v7126
  %v7128 = vrot.slane %v7109, %v7127
  %7130 = vbcast.lane.b32.xlu0 %v7128, 256
  %v7131 = vpop.permute.xlu0 %7130
  %s7133 = sor.u32 256, 8
  %7134 = vbcast.lane.b32.xlu0 %v7128, %s7133
  %v7135 = vpop.permute.xlu0 %7134
  %s7137 = sor.u32 256, 16
  %7138 = vbcast.lane.b32.xlu0 %v7128, %s7137
  %v7139 = vpop.permute.xlu0 %7138
  %s7141 = sor.u32 256, 24
  %7142 = vbcast.lane.b32.xlu0 %v7128, %s7141
  %v7143 = vpop.permute.xlu0 %7142
  %s7145 = sor.u32 256, 32
  %7146 = vbcast.lane.b32.xlu0 %v7128, %s7145
  %v7147 = vpop.permute.xlu0 %7146
  %s7149 = sor.u32 256, 40
  %7150 = vbcast.lane.b32.xlu0 %v7128, %s7149
  %v7151 = vpop.permute.xlu0 %7150
  %s7153 = sor.u32 256, 48
  %7154 = vbcast.lane.b32.xlu0 %v7128, %s7153
  %v7155 = vpop.permute.xlu0 %7154
  %s7157 = sor.u32 256, 56
  %7158 = vbcast.lane.b32.xlu0 %v7128, %s7157
  %v7159 = vpop.permute.xlu0 %7158
  %v7160 = vlaneseq
  %v7161 = vshrl.u32 %v7160, 7
  %v7162 = vsub.s32 1, %v7161
  %v7163 = vrot.slane %v7109, %v7162
  %7165 = vbcast.lane.b32.xlu0 %v7163, 256
  %v7166 = vpop.permute.xlu0 %7165
  %s7168 = sor.u32 256, 8
  %7169 = vbcast.lane.b32.xlu0 %v7163, %s7168
  %v7170 = vpop.permute.xlu0 %7169
  %s7172 = sor.u32 256, 16
  %7173 = vbcast.lane.b32.xlu0 %v7163, %s7172
  %v7174 = vpop.permute.xlu0 %7173
  %s7176 = sor.u32 256, 24
  %7177 = vbcast.lane.b32.xlu0 %v7163, %s7176
  %v7178 = vpop.permute.xlu0 %7177
  %s7180 = sor.u32 256, 32
  %7181 = vbcast.lane.b32.xlu0 %v7163, %s7180
  %v7182 = vpop.permute.xlu0 %7181
  %s7184 = sor.u32 256, 40
  %7185 = vbcast.lane.b32.xlu0 %v7163, %s7184
  %v7186 = vpop.permute.xlu0 %7185
  %s7188 = sor.u32 256, 48
  %7189 = vbcast.lane.b32.xlu0 %v7163, %s7188
  %v7190 = vpop.permute.xlu0 %7189
  %s7192 = sor.u32 256, 56
  %7193 = vbcast.lane.b32.xlu0 %v7163, %s7192
  %v7194 = vpop.permute.xlu0 %7193
  %v7195 = vlaneseq
  %v7196 = vshrl.u32 %v7195, 7
  %v7197 = vsub.s32 2, %v7196
  %v7198 = vrot.slane %v7109, %v7197
  %7200 = vbcast.lane.b32.xlu0 %v7198, 256
  %v7201 = vpop.permute.xlu0 %7200
  %s7203 = sor.u32 256, 8
  %7204 = vbcast.lane.b32.xlu0 %v7198, %s7203
  %v7205 = vpop.permute.xlu0 %7204
  %s7207 = sor.u32 256, 16
  %7208 = vbcast.lane.b32.xlu0 %v7198, %s7207
  %v7209 = vpop.permute.xlu0 %7208
  %s7211 = sor.u32 256, 24
  %7212 = vbcast.lane.b32.xlu0 %v7198, %s7211
  %v7213 = vpop.permute.xlu0 %7212
  %s7215 = sor.u32 256, 32
  %7216 = vbcast.lane.b32.xlu0 %v7198, %s7215
  %v7217 = vpop.permute.xlu0 %7216
  %s7219 = sor.u32 256, 40
  %7220 = vbcast.lane.b32.xlu0 %v7198, %s7219
  %v7221 = vpop.permute.xlu0 %7220
  %s7223 = sor.u32 256, 48
  %7224 = vbcast.lane.b32.xlu0 %v7198, %s7223
  %v7225 = vpop.permute.xlu0 %7224
  %s7227 = sor.u32 256, 56
  %7228 = vbcast.lane.b32.xlu0 %v7198, %s7227
  %v7229 = vpop.permute.xlu0 %7228
  %v7230 = vlaneseq
  %v7231 = vshrl.u32 %v7230, 7
  %v7232 = vsub.s32 3, %v7231
  %v7233 = vrot.slane %v7109, %v7232
  %7235 = vbcast.lane.b32.xlu0 %v7233, 256
  %v7236 = vpop.permute.xlu0 %7235
  %s7238 = sor.u32 256, 8
  %7239 = vbcast.lane.b32.xlu0 %v7233, %s7238
  %v7240 = vpop.permute.xlu0 %7239
  %s7242 = sor.u32 256, 16
  %7243 = vbcast.lane.b32.xlu0 %v7233, %s7242
  %v7244 = vpop.permute.xlu0 %7243
  %s7246 = sor.u32 256, 24
  %7247 = vbcast.lane.b32.xlu0 %v7233, %s7246
  %v7248 = vpop.permute.xlu0 %7247
  %s7250 = sor.u32 256, 32
  %7251 = vbcast.lane.b32.xlu0 %v7233, %s7250
  %v7252 = vpop.permute.xlu0 %7251
  %s7254 = sor.u32 256, 40
  %7255 = vbcast.lane.b32.xlu0 %v7233, %s7254
  %v7256 = vpop.permute.xlu0 %7255
  %s7258 = sor.u32 256, 48
  %7259 = vbcast.lane.b32.xlu0 %v7233, %s7258
  %v7260 = vpop.permute.xlu0 %7259
  %s7262 = sor.u32 256, 56
  %7263 = vbcast.lane.b32.xlu0 %v7233, %s7262
  %v7264 = vpop.permute.xlu0 %7263
  %v7267 = vunpack.c.l.s4 1966171168
  %v7268 = vunpack.c.0.s8 %v7267
  %v7269 = vlaneseq
  %v7270 = vshrl.u32 %v7269, 7
  %v7271 = vsub.s32 %v7268, %v7270
  %v7272 = vrot.slane %v7045, %v7271
  %v7273 = vcombine.high %v7272, %v7272
  %v7275 = vunpack.c.l.s4 1966171168
  %v7276 = vunpack.c.0.s8 %v7275
  %v7277 = vlaneseq
  %v7278 = vshrl.u32 %v7277, 7
  %v7279 = vsub.s32 %v7276, %v7278
  %v7280 = vrot.slane %v7272, %v7279
  %v7282 = vunpack.c.l.s4 1966171168
  %v7283 = vunpack.c.0.s8 %v7282
  %v7284 = vlaneseq
  %v7285 = vshrl.u32 %v7284, 7
  %v7286 = vsub.s32 %v7283, %v7285
  %v7287 = vrot.slane %v7273, %v7286
  %v7288 = vcombine.high %v7280, %v7280
  %v7289 = vcombine.high %v7287, %v7287
  %v7290 = vlaneseq
  %v7291 = vshrl.u32 %v7290, 7
  %v7292 = vsub.s32 0, %v7291
  %v7293 = vrot.slane %v7280, %v7292
  %v7294 = vlaneseq
  %v7295 = vshrl.u32 %v7294, 7
  %v7296 = vsub.s32 0, %v7295
  %v7297 = vrot.slane %v7287, %v7296
  %v7298 = vlaneseq
  %v7299 = vshrl.u32 %v7298, 7
  %v7300 = vsub.s32 0, %v7299
  %v7301 = vrot.slane %v7288, %v7300
  %v7302 = vlaneseq
  %v7303 = vshrl.u32 %v7302, 7
  %v7304 = vsub.s32 0, %v7303
  %v7305 = vrot.slane %v7289, %v7304
  %v7310 = vadd.f32 %v7131, %v7293
  %v7311 = vadd.f32 %v7135, %v7293
  %v7312 = vadd.f32 %v7139, %v7293
  %v7313 = vadd.f32 %v7143, %v7293
  %v7314 = vadd.f32 %v7147, %v7293
  %v7315 = vadd.f32 %v7151, %v7293
  %v7316 = vadd.f32 %v7155, %v7293
  %v7317 = vadd.f32 %v7159, %v7293
  %v7318 = vadd.f32 %v7166, %v7297
  %v7319 = vadd.f32 %v7170, %v7297
  %v7320 = vadd.f32 %v7174, %v7297
  %v7321 = vadd.f32 %v7178, %v7297
  %v7322 = vadd.f32 %v7182, %v7297
  %v7323 = vadd.f32 %v7186, %v7297
  %v7324 = vadd.f32 %v7190, %v7297
  %v7325 = vadd.f32 %v7194, %v7297
  %v7326 = vadd.f32 %v7201, %v7301
  %v7327 = vadd.f32 %v7205, %v7301
  %v7328 = vadd.f32 %v7209, %v7301
  %v7329 = vadd.f32 %v7213, %v7301
  %v7330 = vadd.f32 %v7217, %v7301
  %v7331 = vadd.f32 %v7221, %v7301
  %v7332 = vadd.f32 %v7225, %v7301
  %v7333 = vadd.f32 %v7229, %v7301
  %v7334 = vadd.f32 %v7236, %v7305
  %v7335 = vadd.f32 %v7240, %v7305
  %v7336 = vadd.f32 %v7244, %v7305
  %v7337 = vadd.f32 %v7248, %v7305
  %v7338 = vadd.f32 %v7252, %v7305
  %v7339 = vadd.f32 %v7256, %v7305
  %v7340 = vadd.f32 %v7260, %v7305
  %v7341 = vadd.f32 %v7264, %v7305
  %vm7342 = vcmp.gt.f32.partialorder %v7310, 0.0
  %vm7343 = vcmp.gt.f32.partialorder %v7311, 0.0
  %vm7344 = vcmp.gt.f32.partialorder %v7312, 0.0
  %vm7345 = vcmp.gt.f32.partialorder %v7313, 0.0
  %vm7346 = vcmp.gt.f32.partialorder %v7314, 0.0
  %vm7347 = vcmp.gt.f32.partialorder %v7315, 0.0
  %vm7348 = vcmp.gt.f32.partialorder %v7316, 0.0
  %vm7349 = vcmp.gt.f32.partialorder %v7317, 0.0
  %vm7350 = vcmp.gt.f32.partialorder %v7318, 0.0
  %vm7351 = vcmp.gt.f32.partialorder %v7319, 0.0
  %vm7352 = vcmp.gt.f32.partialorder %v7320, 0.0
  %vm7353 = vcmp.gt.f32.partialorder %v7321, 0.0
  %vm7354 = vcmp.gt.f32.partialorder %v7322, 0.0
  %vm7355 = vcmp.gt.f32.partialorder %v7323, 0.0
  %vm7356 = vcmp.gt.f32.partialorder %v7324, 0.0
  %vm7357 = vcmp.gt.f32.partialorder %v7325, 0.0
  %vm7358 = vcmp.gt.f32.partialorder %v7326, 0.0
  %vm7359 = vcmp.gt.f32.partialorder %v7327, 0.0
  %vm7360 = vcmp.gt.f32.partialorder %v7328, 0.0
  %vm7361 = vcmp.gt.f32.partialorder %v7329, 0.0
  %vm7362 = vcmp.gt.f32.partialorder %v7330, 0.0
  %vm7363 = vcmp.gt.f32.partialorder %v7331, 0.0
  %vm7364 = vcmp.gt.f32.partialorder %v7332, 0.0
  %vm7365 = vcmp.gt.f32.partialorder %v7333, 0.0
  %vm7366 = vcmp.gt.f32.partialorder %v7334, 0.0
  %vm7367 = vcmp.gt.f32.partialorder %v7335, 0.0
  %vm7368 = vcmp.gt.f32.partialorder %v7336, 0.0
  %vm7369 = vcmp.gt.f32.partialorder %v7337, 0.0
  %vm7370 = vcmp.gt.f32.partialorder %v7338, 0.0
  %vm7371 = vcmp.gt.f32.partialorder %v7339, 0.0
  %vm7372 = vcmp.gt.f32.partialorder %v7340, 0.0
  %vm7373 = vcmp.gt.f32.partialorder %v7341, 0.0
  %v7374 = vmul.f32 %v7310, 0.2
  %v7375 = vmul.f32 %v7311, 0.2
  %v7376 = vmul.f32 %v7312, 0.2
  %v7377 = vmul.f32 %v7313, 0.2
  %v7378 = vmul.f32 %v7314, 0.2
  %v7379 = vmul.f32 %v7315, 0.2
  %v7380 = vmul.f32 %v7316, 0.2
  %v7381 = vmul.f32 %v7317, 0.2
  %v7382 = vmul.f32 %v7318, 0.2
  %v7383 = vmul.f32 %v7319, 0.2
  %v7384 = vmul.f32 %v7320, 0.2
  %v7385 = vmul.f32 %v7321, 0.2
  %v7386 = vmul.f32 %v7322, 0.2
  %v7387 = vmul.f32 %v7323, 0.2
  %v7388 = vmul.f32 %v7324, 0.2
  %v7389 = vmul.f32 %v7325, 0.2
  %v7390 = vmul.f32 %v7326, 0.2
  %v7391 = vmul.f32 %v7327, 0.2
  %v7392 = vmul.f32 %v7328, 0.2
  %v7393 = vmul.f32 %v7329, 0.2
  %v7394 = vmul.f32 %v7330, 0.2
  %v7395 = vmul.f32 %v7331, 0.2
  %v7396 = vmul.f32 %v7332, 0.2
  %v7397 = vmul.f32 %v7333, 0.2
  %v7398 = vmul.f32 %v7334, 0.2
  %v7399 = vmul.f32 %v7335, 0.2
  %v7400 = vmul.f32 %v7336, 0.2
  %v7401 = vmul.f32 %v7337, 0.2
  %v7402 = vmul.f32 %v7338, 0.2
  %v7403 = vmul.f32 %v7339, 0.2
  %v7404 = vmul.f32 %v7340, 0.2
  %v7405 = vmul.f32 %v7341, 0.2
  %v7406 = vsel %vm7342, %v7310, %v7374
  %v7407 = vsel %vm7343, %v7311, %v7375
  %v7408 = vsel %vm7344, %v7312, %v7376
  %v7409 = vsel %vm7345, %v7313, %v7377
  %v7410 = vsel %vm7346, %v7314, %v7378
  %v7411 = vsel %vm7347, %v7315, %v7379
  %v7412 = vsel %vm7348, %v7316, %v7380
  %v7413 = vsel %vm7349, %v7317, %v7381
  %v7414 = vsel %vm7350, %v7318, %v7382
  %v7415 = vsel %vm7351, %v7319, %v7383
  %v7416 = vsel %vm7352, %v7320, %v7384
  %v7417 = vsel %vm7353, %v7321, %v7385
  %v7418 = vsel %vm7354, %v7322, %v7386
  %v7419 = vsel %vm7355, %v7323, %v7387
  %v7420 = vsel %vm7356, %v7324, %v7388
  %v7421 = vsel %vm7357, %v7325, %v7389
  %v7422 = vsel %vm7358, %v7326, %v7390
  %v7423 = vsel %vm7359, %v7327, %v7391
  %v7424 = vsel %vm7360, %v7328, %v7392
  %v7425 = vsel %vm7361, %v7329, %v7393
  %v7426 = vsel %vm7362, %v7330, %v7394
  %v7427 = vsel %vm7363, %v7331, %v7395
  %v7428 = vsel %vm7364, %v7332, %v7396
  %v7429 = vsel %vm7365, %v7333, %v7397
  %v7430 = vsel %vm7366, %v7334, %v7398
  %v7431 = vsel %vm7367, %v7335, %v7399
  %v7432 = vsel %vm7368, %v7336, %v7400
  %v7433 = vsel %vm7369, %v7337, %v7401
  %v7434 = vsel %vm7370, %v7338, %v7402
  %v7435 = vsel %vm7371, %v7339, %v7403
  %v7436 = vsel %vm7372, %v7340, %v7404
  %v7437 = vsel %vm7373, %v7341, %v7405
  %v7438 = vsel %vm5915, %v7406, -1e+30
  %v7439 = vsel %vm5916, %v7407, -1e+30
  %v7440 = vsel %vm5917, %v7408, -1e+30
  %v7441 = vsel %vm5918, %v7409, -1e+30
  %v7442 = vsel %vm5919, %v7410, -1e+30
  %v7443 = vsel %vm5920, %v7411, -1e+30
  %v7444 = vsel %vm5921, %v7412, -1e+30
  %v7445 = vsel %vm5922, %v7413, -1e+30
  %v7446 = vsel %vm5915, %v7414, -1e+30
  %v7447 = vsel %vm5916, %v7415, -1e+30
  %v7448 = vsel %vm5917, %v7416, -1e+30
  %v7449 = vsel %vm5918, %v7417, -1e+30
  %v7450 = vsel %vm5919, %v7418, -1e+30
  %v7451 = vsel %vm5920, %v7419, -1e+30
  %v7452 = vsel %vm5921, %v7420, -1e+30
  %v7453 = vsel %vm5922, %v7421, -1e+30
  %v7454 = vsel %vm5915, %v7422, -1e+30
  %v7455 = vsel %vm5916, %v7423, -1e+30
  %v7456 = vsel %vm5917, %v7424, -1e+30
  %v7457 = vsel %vm5918, %v7425, -1e+30
  %v7458 = vsel %vm5919, %v7426, -1e+30
  %v7459 = vsel %vm5920, %v7427, -1e+30
  %v7460 = vsel %vm5921, %v7428, -1e+30
  %v7461 = vsel %vm5922, %v7429, -1e+30
  %v7462 = vsel %vm5915, %v7430, -1e+30
  %v7463 = vsel %vm5916, %v7431, -1e+30
  %v7464 = vsel %vm5917, %v7432, -1e+30
  %v7465 = vsel %vm5918, %v7433, -1e+30
  %v7466 = vsel %vm5919, %v7434, -1e+30
  %v7467 = vsel %vm5920, %v7435, -1e+30
  %v7468 = vsel %vm5921, %v7436, -1e+30
  %v7469 = vsel %vm5922, %v7437, -1e+30
  %v7470 = vsel %vm472, %v7438, -inf
  %7471 = vmax.xlane.f32.xlu0 %v7470
  %v7472 = vpop.xlane.xlu0 %7471
  %v7473 = vsel %vm472, %v7439, -inf
  %7474 = vmax.xlane.f32.xlu0 %v7473
  %v7475 = vpop.xlane.xlu0 %7474
  %v7476 = vsel %vm472, %v7440, -inf
  %7477 = vmax.xlane.f32.xlu0 %v7476
  %v7478 = vpop.xlane.xlu0 %7477
  %v7479 = vsel %vm472, %v7441, -inf
  %7480 = vmax.xlane.f32.xlu0 %v7479
  %v7481 = vpop.xlane.xlu0 %7480
  %v7482 = vsel %vm472, %v7442, -inf
  %7483 = vmax.xlane.f32.xlu0 %v7482
  %v7484 = vpop.xlane.xlu0 %7483
  %v7485 = vsel %vm472, %v7443, -inf
  %7486 = vmax.xlane.f32.xlu0 %v7485
  %v7487 = vpop.xlane.xlu0 %7486
  %v7488 = vsel %vm472, %v7444, -inf
  %7489 = vmax.xlane.f32.xlu0 %v7488
  %v7490 = vpop.xlane.xlu0 %7489
  %v7491 = vsel %vm472, %v7445, -inf
  %7492 = vmax.xlane.f32.xlu0 %v7491
  %v7493 = vpop.xlane.xlu0 %7492
  %v7494 = vsel %vm472, %v7446, -inf
  %7495 = vmax.xlane.f32.xlu0 %v7494
  %v7496 = vpop.xlane.xlu0 %7495
  %v7497 = vsel %vm472, %v7447, -inf
  %7498 = vmax.xlane.f32.xlu0 %v7497
  %v7499 = vpop.xlane.xlu0 %7498
  %v7500 = vsel %vm472, %v7448, -inf
  %7501 = vmax.xlane.f32.xlu0 %v7500
  %v7502 = vpop.xlane.xlu0 %7501
  %v7503 = vsel %vm472, %v7449, -inf
  %7504 = vmax.xlane.f32.xlu0 %v7503
  %v7505 = vpop.xlane.xlu0 %7504
  %v7506 = vsel %vm472, %v7450, -inf
  %7507 = vmax.xlane.f32.xlu0 %v7506
  %v7508 = vpop.xlane.xlu0 %7507
  %v7509 = vsel %vm472, %v7451, -inf
  %7510 = vmax.xlane.f32.xlu0 %v7509
  %v7511 = vpop.xlane.xlu0 %7510
  %v7512 = vsel %vm472, %v7452, -inf
  %7513 = vmax.xlane.f32.xlu0 %v7512
  %v7514 = vpop.xlane.xlu0 %7513
  %v7515 = vsel %vm472, %v7453, -inf
  %7516 = vmax.xlane.f32.xlu0 %v7515
  %v7517 = vpop.xlane.xlu0 %7516
  %v7518 = vsel %vm472, %v7454, -inf
  %7519 = vmax.xlane.f32.xlu0 %v7518
  %v7520 = vpop.xlane.xlu0 %7519
  %v7521 = vsel %vm472, %v7455, -inf
  %7522 = vmax.xlane.f32.xlu0 %v7521
  %v7523 = vpop.xlane.xlu0 %7522
  %v7524 = vsel %vm472, %v7456, -inf
  %7525 = vmax.xlane.f32.xlu0 %v7524
  %v7526 = vpop.xlane.xlu0 %7525
  %v7527 = vsel %vm472, %v7457, -inf
  %7528 = vmax.xlane.f32.xlu0 %v7527
  %v7529 = vpop.xlane.xlu0 %7528
  %v7530 = vsel %vm472, %v7458, -inf
  %7531 = vmax.xlane.f32.xlu0 %v7530
  %v7532 = vpop.xlane.xlu0 %7531
  %v7533 = vsel %vm472, %v7459, -inf
  %7534 = vmax.xlane.f32.xlu0 %v7533
  %v7535 = vpop.xlane.xlu0 %7534
  %v7536 = vsel %vm472, %v7460, -inf
  %7537 = vmax.xlane.f32.xlu0 %v7536
  %v7538 = vpop.xlane.xlu0 %7537
  %v7539 = vsel %vm472, %v7461, -inf
  %7540 = vmax.xlane.f32.xlu0 %v7539
  %v7541 = vpop.xlane.xlu0 %7540
  %v7542 = vsel %vm472, %v7462, -inf
  %7543 = vmax.xlane.f32.xlu0 %v7542
  %v7544 = vpop.xlane.xlu0 %7543
  %v7545 = vsel %vm472, %v7463, -inf
  %7546 = vmax.xlane.f32.xlu0 %v7545
  %v7547 = vpop.xlane.xlu0 %7546
  %v7548 = vsel %vm472, %v7464, -inf
  %7549 = vmax.xlane.f32.xlu0 %v7548
  %v7550 = vpop.xlane.xlu0 %7549
  %v7551 = vsel %vm472, %v7465, -inf
  %7552 = vmax.xlane.f32.xlu0 %v7551
  %v7553 = vpop.xlane.xlu0 %7552
  %v7554 = vsel %vm472, %v7466, -inf
  %7555 = vmax.xlane.f32.xlu0 %v7554
  %v7556 = vpop.xlane.xlu0 %7555
  %v7557 = vsel %vm472, %v7467, -inf
  %7558 = vmax.xlane.f32.xlu0 %v7557
  %v7559 = vpop.xlane.xlu0 %7558
  %v7560 = vsel %vm472, %v7468, -inf
  %7561 = vmax.xlane.f32.xlu0 %v7560
  %v7562 = vpop.xlane.xlu0 %7561
  %v7563 = vsel %vm472, %v7469, -inf
  %7564 = vmax.xlane.f32.xlu0 %v7563
  %v7565 = vpop.xlane.xlu0 %7564
  %v7566 = vsub.f32 %v7438, %v7472
  %v7567 = vsub.f32 %v7439, %v7475
  %v7568 = vsub.f32 %v7440, %v7478
  %v7569 = vsub.f32 %v7441, %v7481
  %v7570 = vsub.f32 %v7442, %v7484
  %v7571 = vsub.f32 %v7443, %v7487
  %v7572 = vsub.f32 %v7444, %v7490
  %v7573 = vsub.f32 %v7445, %v7493
  %v7574 = vsub.f32 %v7446, %v7496
  %v7575 = vsub.f32 %v7447, %v7499
  %v7576 = vsub.f32 %v7448, %v7502
  %v7577 = vsub.f32 %v7449, %v7505
  %v7578 = vsub.f32 %v7450, %v7508
  %v7579 = vsub.f32 %v7451, %v7511
  %v7580 = vsub.f32 %v7452, %v7514
  %v7581 = vsub.f32 %v7453, %v7517
  %v7582 = vsub.f32 %v7454, %v7520
  %v7583 = vsub.f32 %v7455, %v7523
  %v7584 = vsub.f32 %v7456, %v7526
  %v7585 = vsub.f32 %v7457, %v7529
  %v7586 = vsub.f32 %v7458, %v7532
  %v7587 = vsub.f32 %v7459, %v7535
  %v7588 = vsub.f32 %v7460, %v7538
  %v7589 = vsub.f32 %v7461, %v7541
  %v7590 = vsub.f32 %v7462, %v7544
  %v7591 = vsub.f32 %v7463, %v7547
  %v7592 = vsub.f32 %v7464, %v7550
  %v7593 = vsub.f32 %v7465, %v7553
  %v7594 = vsub.f32 %v7466, %v7556
  %v7595 = vsub.f32 %v7467, %v7559
  %v7596 = vsub.f32 %v7468, %v7562
  %v7597 = vsub.f32 %v7469, %v7565
  %v7598 = vmul.f32 %v7566, 1.442695
  %v7599 = vpow.pop %v7598
  %v7600 = vmul.f32 %v7567, 1.442695
  %v7601 = vpow.pop %v7600
  %v7602 = vmul.f32 %v7568, 1.442695
  %v7603 = vpow.pop %v7602
  %v7604 = vmul.f32 %v7569, 1.442695
  %v7605 = vpow.pop %v7604
  %v7606 = vmul.f32 %v7570, 1.442695
  %v7607 = vpow.pop %v7606
  %v7608 = vmul.f32 %v7571, 1.442695
  %v7609 = vpow.pop %v7608
  %v7610 = vmul.f32 %v7572, 1.442695
  %v7611 = vpow.pop %v7610
  %v7612 = vmul.f32 %v7573, 1.442695
  %v7613 = vpow.pop %v7612
  %v7614 = vmul.f32 %v7574, 1.442695
  %v7615 = vpow.pop %v7614
  %v7616 = vmul.f32 %v7575, 1.442695
  %v7617 = vpow.pop %v7616
  %v7618 = vmul.f32 %v7576, 1.442695
  %v7619 = vpow.pop %v7618
  %v7620 = vmul.f32 %v7577, 1.442695
  %v7621 = vpow.pop %v7620
  %v7622 = vmul.f32 %v7578, 1.442695
  %v7623 = vpow.pop %v7622
  %v7624 = vmul.f32 %v7579, 1.442695
  %v7625 = vpow.pop %v7624
  %v7626 = vmul.f32 %v7580, 1.442695
  %v7627 = vpow.pop %v7626
  %v7628 = vmul.f32 %v7581, 1.442695
  %v7629 = vpow.pop %v7628
  %v7630 = vmul.f32 %v7582, 1.442695
  %v7631 = vpow.pop %v7630
  %v7632 = vmul.f32 %v7583, 1.442695
  %v7633 = vpow.pop %v7632
  %v7634 = vmul.f32 %v7584, 1.442695
  %v7635 = vpow.pop %v7634
  %v7636 = vmul.f32 %v7585, 1.442695
  %v7637 = vpow.pop %v7636
  %v7638 = vmul.f32 %v7586, 1.442695
  %v7639 = vpow.pop %v7638
  %v7640 = vmul.f32 %v7587, 1.442695
  %v7641 = vpow.pop %v7640
  %v7642 = vmul.f32 %v7588, 1.442695
  %v7643 = vpow.pop %v7642
  %v7644 = vmul.f32 %v7589, 1.442695
  %v7645 = vpow.pop %v7644
  %v7646 = vmul.f32 %v7590, 1.442695
  %v7647 = vpow.pop %v7646
  %v7648 = vmul.f32 %v7591, 1.442695
  %v7649 = vpow.pop %v7648
  %v7650 = vmul.f32 %v7592, 1.442695
  %v7651 = vpow.pop %v7650
  %v7652 = vmul.f32 %v7593, 1.442695
  %v7653 = vpow.pop %v7652
  %v7654 = vmul.f32 %v7594, 1.442695
  %v7655 = vpow.pop %v7654
  %v7656 = vmul.f32 %v7595, 1.442695
  %v7657 = vpow.pop %v7656
  %v7658 = vmul.f32 %v7596, 1.442695
  %v7659 = vpow.pop %v7658
  %v7660 = vmul.f32 %v7597, 1.442695
  %v7661 = vpow.pop %v7660
  %v7662 = vsel %vm472, %v7599, 0.0
  %7663 = vadd.xlane.f32.xlu0 %v7662
  %v7664 = vpop.xlane.xlu0 %7663
  %v7665 = vsel %vm472, %v7601, 0.0
  %7666 = vadd.xlane.f32.xlu0 %v7665
  %v7667 = vpop.xlane.xlu0 %7666
  %v7668 = vsel %vm472, %v7603, 0.0
  %7669 = vadd.xlane.f32.xlu0 %v7668
  %v7670 = vpop.xlane.xlu0 %7669
  %v7671 = vsel %vm472, %v7605, 0.0
  %7672 = vadd.xlane.f32.xlu0 %v7671
  %v7673 = vpop.xlane.xlu0 %7672
  %v7674 = vsel %vm472, %v7607, 0.0
  %7675 = vadd.xlane.f32.xlu0 %v7674
  %v7676 = vpop.xlane.xlu0 %7675
  %v7677 = vsel %vm472, %v7609, 0.0
  %7678 = vadd.xlane.f32.xlu0 %v7677
  %v7679 = vpop.xlane.xlu0 %7678
  %v7680 = vsel %vm472, %v7611, 0.0
  %7681 = vadd.xlane.f32.xlu0 %v7680
  %v7682 = vpop.xlane.xlu0 %7681
  %v7683 = vsel %vm472, %v7613, 0.0
  %7684 = vadd.xlane.f32.xlu0 %v7683
  %v7685 = vpop.xlane.xlu0 %7684
  %v7686 = vsel %vm472, %v7615, 0.0
  %7687 = vadd.xlane.f32.xlu0 %v7686
  %v7688 = vpop.xlane.xlu0 %7687
  %v7689 = vsel %vm472, %v7617, 0.0
  %7690 = vadd.xlane.f32.xlu0 %v7689
  %v7691 = vpop.xlane.xlu0 %7690
  %v7692 = vsel %vm472, %v7619, 0.0
  %7693 = vadd.xlane.f32.xlu0 %v7692
  %v7694 = vpop.xlane.xlu0 %7693
  %v7695 = vsel %vm472, %v7621, 0.0
  %7696 = vadd.xlane.f32.xlu0 %v7695
  %v7697 = vpop.xlane.xlu0 %7696
  %v7698 = vsel %vm472, %v7623, 0.0
  %7699 = vadd.xlane.f32.xlu0 %v7698
  %v7700 = vpop.xlane.xlu0 %7699
  %v7701 = vsel %vm472, %v7625, 0.0
  %7702 = vadd.xlane.f32.xlu0 %v7701
  %v7703 = vpop.xlane.xlu0 %7702
  %v7704 = vsel %vm472, %v7627, 0.0
  %7705 = vadd.xlane.f32.xlu0 %v7704
  %v7706 = vpop.xlane.xlu0 %7705
  %v7707 = vsel %vm472, %v7629, 0.0
  %7708 = vadd.xlane.f32.xlu0 %v7707
  %v7709 = vpop.xlane.xlu0 %7708
  %v7710 = vsel %vm472, %v7631, 0.0
  %7711 = vadd.xlane.f32.xlu0 %v7710
  %v7712 = vpop.xlane.xlu0 %7711
  %v7713 = vsel %vm472, %v7633, 0.0
  %7714 = vadd.xlane.f32.xlu0 %v7713
  %v7715 = vpop.xlane.xlu0 %7714
  %v7716 = vsel %vm472, %v7635, 0.0
  %7717 = vadd.xlane.f32.xlu0 %v7716
  %v7718 = vpop.xlane.xlu0 %7717
  %v7719 = vsel %vm472, %v7637, 0.0
  %7720 = vadd.xlane.f32.xlu0 %v7719
  %v7721 = vpop.xlane.xlu0 %7720
  %v7722 = vsel %vm472, %v7639, 0.0
  %7723 = vadd.xlane.f32.xlu0 %v7722
  %v7724 = vpop.xlane.xlu0 %7723
  %v7725 = vsel %vm472, %v7641, 0.0
  %7726 = vadd.xlane.f32.xlu0 %v7725
  %v7727 = vpop.xlane.xlu0 %7726
  %v7728 = vsel %vm472, %v7643, 0.0
  %7729 = vadd.xlane.f32.xlu0 %v7728
  %v7730 = vpop.xlane.xlu0 %7729
  %v7731 = vsel %vm472, %v7645, 0.0
  %7732 = vadd.xlane.f32.xlu0 %v7731
  %v7733 = vpop.xlane.xlu0 %7732
  %v7734 = vsel %vm472, %v7647, 0.0
  %7735 = vadd.xlane.f32.xlu0 %v7734
  %v7736 = vpop.xlane.xlu0 %7735
  %v7737 = vsel %vm472, %v7649, 0.0
  %7738 = vadd.xlane.f32.xlu0 %v7737
  %v7739 = vpop.xlane.xlu0 %7738
  %v7740 = vsel %vm472, %v7651, 0.0
  %7741 = vadd.xlane.f32.xlu0 %v7740
  %v7742 = vpop.xlane.xlu0 %7741
  %v7743 = vsel %vm472, %v7653, 0.0
  %7744 = vadd.xlane.f32.xlu0 %v7743
  %v7745 = vpop.xlane.xlu0 %7744
  %v7746 = vsel %vm472, %v7655, 0.0
  %7747 = vadd.xlane.f32.xlu0 %v7746
  %v7748 = vpop.xlane.xlu0 %7747
  %v7749 = vsel %vm472, %v7657, 0.0
  %7750 = vadd.xlane.f32.xlu0 %v7749
  %v7751 = vpop.xlane.xlu0 %7750
  %v7752 = vsel %vm472, %v7659, 0.0
  %7753 = vadd.xlane.f32.xlu0 %v7752
  %v7754 = vpop.xlane.xlu0 %7753
  %v7755 = vsel %vm472, %v7661, 0.0
  %7756 = vadd.xlane.f32.xlu0 %v7755
  %v7757 = vpop.xlane.xlu0 %7756
  %v7758 = vrcp.pop %v7664
  %v7759 = vrcp.pop %v7667
  %v7760 = vrcp.pop %v7670
  %v7761 = vrcp.pop %v7673
  %v7762 = vrcp.pop %v7676
  %v7763 = vrcp.pop %v7679
  %v7764 = vrcp.pop %v7682
  %v7765 = vrcp.pop %v7685
  %v7766 = vrcp.pop %v7688
  %v7767 = vrcp.pop %v7691
  %v7768 = vrcp.pop %v7694
  %v7769 = vrcp.pop %v7697
  %v7770 = vrcp.pop %v7700
  %v7771 = vrcp.pop %v7703
  %v7772 = vrcp.pop %v7706
  %v7773 = vrcp.pop %v7709
  %v7774 = vrcp.pop %v7712
  %v7775 = vrcp.pop %v7715
  %v7776 = vrcp.pop %v7718
  %v7777 = vrcp.pop %v7721
  %v7778 = vrcp.pop %v7724
  %v7779 = vrcp.pop %v7727
  %v7780 = vrcp.pop %v7730
  %v7781 = vrcp.pop %v7733
  %v7782 = vrcp.pop %v7736
  %v7783 = vrcp.pop %v7739
  %v7784 = vrcp.pop %v7742
  %v7785 = vrcp.pop %v7745
  %v7786 = vrcp.pop %v7748
  %v7787 = vrcp.pop %v7751
  %v7788 = vrcp.pop %v7754
  %v7789 = vrcp.pop %v7757
  %v7790 = vmul.f32 %v7599, %v7758
  %v7791 = vmul.f32 %v7601, %v7759
  %v7792 = vmul.f32 %v7603, %v7760
  %v7793 = vmul.f32 %v7605, %v7761
  %v7794 = vmul.f32 %v7607, %v7762
  %v7795 = vmul.f32 %v7609, %v7763
  %v7796 = vmul.f32 %v7611, %v7764
  %v7797 = vmul.f32 %v7613, %v7765
  %v7798 = vmul.f32 %v7615, %v7766
  %v7799 = vmul.f32 %v7617, %v7767
  %v7800 = vmul.f32 %v7619, %v7768
  %v7801 = vmul.f32 %v7621, %v7769
  %v7802 = vmul.f32 %v7623, %v7770
  %v7803 = vmul.f32 %v7625, %v7771
  %v7804 = vmul.f32 %v7627, %v7772
  %v7805 = vmul.f32 %v7629, %v7773
  %v7806 = vmul.f32 %v7631, %v7774
  %v7807 = vmul.f32 %v7633, %v7775
  %v7808 = vmul.f32 %v7635, %v7776
  %v7809 = vmul.f32 %v7637, %v7777
  %v7810 = vmul.f32 %v7639, %v7778
  %v7811 = vmul.f32 %v7641, %v7779
  %v7812 = vmul.f32 %v7643, %v7780
  %v7813 = vmul.f32 %v7645, %v7781
  %v7814 = vmul.f32 %v7647, %v7782
  %v7815 = vmul.f32 %v7649, %v7783
  %v7816 = vmul.f32 %v7651, %v7784
  %v7817 = vmul.f32 %v7653, %v7785
  %v7818 = vmul.f32 %v7655, %v7786
  %v7819 = vmul.f32 %v7657, %v7787
  %v7820 = vmul.f32 %v7659, %v7788
  %v7821 = vmul.f32 %v7661, %v7789
  %v7822 = vpack.c.bf16 %v6995, %v6991
  %v7823 = vpack.c.bf16 %v7005, %v7001
  %v7824 = vpack.c.bf16 %v7015, %v7011
  %v7825 = vpack.c.bf16 %v7025, %v7021
  %v7826 = vpack.c.bf16 %v7791, %v7790
  %v7827 = vpack.c.bf16 %v7793, %v7792
  %v7828 = vpack.c.bf16 %v7795, %v7794
  %v7829 = vpack.c.bf16 %v7797, %v7796
  %v7830 = vpack.c.bf16 %v7799, %v7798
  %v7831 = vpack.c.bf16 %v7801, %v7800
  %v7832 = vpack.c.bf16 %v7803, %v7802
  %v7833 = vpack.c.bf16 %v7805, %v7804
  %7838 = vrot.lane.b32.xlu0 %v7822, 96
  %v7839 = vpop.permute.xlu0 %7838
  %7840 = vrot.lane.b32.xlu0 %v7823, 96
  %v7841 = vpop.permute.xlu0 %7840
  %7842 = vrot.lane.b32.xlu0 %v7824, 96
  %v7843 = vpop.permute.xlu0 %7842
  %7844 = vrot.lane.b32.xlu0 %v7825, 96
  %v7845 = vpop.permute.xlu0 %7844
  %v7851 = vsel %vm472, %v7830, 0
  %v7854 = vsel %vm472, %v7831, 0
  %v7857 = vsel %vm472, %v7832, 0
  %v7860 = vsel %vm472, %v7833, 0
  %7862 = vmatprep.subr.bf16.mxu0 0
  %7863 = vmatpush1.bf16.msra.mxu0 %v7839
  %7864 = vmatprep.subr.bf16.mxu0 0
  %7865 = vmatpush1.bf16.msra.mxu0 %v7841
  %7866 = vmatprep.subr.bf16.mxu0 0
  %7867 = vmatpush1.bf16.msra.mxu0 %v7843
  %7868 = vmatprep.subr.bf16.mxu0 0
  %7869 = vmatpush1.bf16.msra.mxu0 %v7845
  %7870 = vmatprep.subr.bf16.mxu0 0
  %7871 = vmatpush1.bf16.msra.mxu0 0
  %7872 = vmatprep.subr.bf16.mxu0 0
  %7873 = vmatpush1.bf16.msra.mxu0 0
  %7874 = vmatprep.subr.bf16.mxu0 0
  %7875 = vmatpush1.bf16.msra.mxu0 0
  %7876 = vmatprep.subr.bf16.mxu0 0
  %7877 = vmatpush1.bf16.msra.mxu0 0
  %7878 = vmatprep.subr.bf16.mxu0 0
  %7879 = vmatpush1.bf16.msra.mxu0 0
  %7880 = vmatprep.subr.bf16.mxu0 0
  %7881 = vmatpush1.bf16.msra.mxu0 0
  %7882 = vmatprep.subr.bf16.mxu0 0
  %7883 = vmatpush1.bf16.msra.mxu0 0
  %7884 = vmatprep.subr.bf16.mxu0 0
  %7885 = vmatpush1.bf16.msra.mxu0 0
  %7886 = vmatprep.subr.bf16.mxu0 0
  %7887 = vmatpush1.bf16.msra.mxu0 0
  %7888 = vmatprep.subr.bf16.mxu0 0
  %7889 = vmatpush1.bf16.msra.mxu0 0
  %7890 = vmatprep.subr.bf16.mxu0 0
  %7891 = vmatpush1.bf16.msra.mxu0 0
  %7892 = vmatprep.subr.bf16.mxu0 0
  %7893 = vmatpush1.bf16.msra.mxu0 0
  %7894 = vmatprep.mubr.bf16.mxu0 0
  %7895 = vmatmul.mubr.bf16.gmra.mrb[0].mxu0 %v7851
  %v7896 = vpop.f32.mrb[0].mxu0
  %v7897 = vadd.f32 0.0, %v7896
  %v7898 = vpop.f32.mrb[0].mxu0
  %v7899 = vpop.f32.mrb[0].mxu0
  %v7900 = vadd.f32 0.0, %v7899
  %v7901 = vpop.f32.mrb[0].mxu0
  %7902 = vmatprep.mubr.bf16.mxu0 0
  %7903 = vmatmul.mubr.bf16.gmra.mrb[0].mxu0 %v7854
  %v7904 = vpop.f32.mrb[0].mxu0
  %v7905 = vadd.f32 0.0, %v7904
  %v7906 = vpop.f32.mrb[0].mxu0
  %v7907 = vpop.f32.mrb[0].mxu0
  %v7908 = vadd.f32 0.0, %v7907
  %v7909 = vpop.f32.mrb[0].mxu0
  %7910 = vmatprep.mubr.bf16.mxu0 0
  %7911 = vmatmul.mubr.bf16.gmra.mrb[0].mxu0 %v7857
  %v7912 = vpop.f32.mrb[0].mxu0
  %v7913 = vadd.f32 0.0, %v7912
  %v7914 = vpop.f32.mrb[0].mxu0
  %v7915 = vpop.f32.mrb[0].mxu0
  %v7916 = vadd.f32 0.0, %v7915
  %v7917 = vpop.f32.mrb[0].mxu0
  %7918 = vmatprep.mubr.bf16.mxu0 0
  %7919 = vmatmul.mubr.bf16.gmra.mrb[0].mxu0 %v7860
  %v7920 = vpop.f32.mrb[0].mxu0
  %v7921 = vadd.f32 0.0, %v7920
  %v7922 = vpop.f32.mrb[0].mxu0
  %v7923 = vpop.f32.mrb[0].mxu0
  %v7924 = vadd.f32 0.0, %v7923
  %v7925 = vpop.f32.mrb[0].mxu0
  %7926 = vdwg.mxu0
  %v7927 = vpack.c.bf16 %v7807, %v7806
  %v7928 = vpack.c.bf16 %v7809, %v7808
  %v7929 = vpack.c.bf16 %v7811, %v7810
  %v7930 = vpack.c.bf16 %v7813, %v7812
  %7931 = vrot.lane.b32.xlu0 %v7822, 64
  %v7932 = vpop.permute.xlu0 %7931
  %7933 = vrot.lane.b32.xlu0 %v7823, 64
  %v7934 = vpop.permute.xlu0 %7933
  %7935 = vrot.lane.b32.xlu0 %v7824, 64
  %v7936 = vpop.permute.xlu0 %7935
  %7937 = vrot.lane.b32.xlu0 %v7825, 64
  %v7938 = vpop.permute.xlu0 %7937
  %v7944 = vsel %vm472, %v7927, 0
  %v7947 = vsel %vm472, %v7928, 0
  %v7950 = vsel %vm472, %v7929, 0
  %v7953 = vsel %vm472, %v7930, 0
  %7955 = vmatprep.subr.bf16.mxu0 0
  %7956 = vmatpush1.bf16.msra.mxu0 %v7932
  %7957 = vmatprep.subr.bf16.mxu0 0
  %7958 = vmatpush1.bf16.msra.mxu0 %v7934
  %7959 = vmatprep.subr.bf16.mxu0 0
  %7960 = vmatpush1.bf16.msra.mxu0 %v7936
  %7961 = vmatprep.subr.bf16.mxu0 0
  %7962 = vmatpush1.bf16.msra.mxu0 %v7938
  %7963 = vmatprep.subr.bf16.mxu0 0
  %7964 = vmatpush1.bf16.msra.mxu0 0
  %7965 = vmatprep.subr.bf16.mxu0 0
  %7966 = vmatpush1.bf16.msra.mxu0 0
  %7967 = vmatprep.subr.bf16.mxu0 0
  %7968 = vmatpush1.bf16.msra.mxu0 0
  %7969 = vmatprep.subr.bf16.mxu0 0
  %7970 = vmatpush1.bf16.msra.mxu0 0
  %7971 = vmatprep.subr.bf16.mxu0 0
  %7972 = vmatpush1.bf16.msra.mxu0 0
  %7973 = vmatprep.subr.bf16.mxu0 0
  %7974 = vmatpush1.bf16.msra.mxu0 0
  %7975 = vmatprep.subr.bf16.mxu0 0
  %7976 = vmatpush1.bf16.msra.mxu0 0
  %7977 = vmatprep.subr.bf16.mxu0 0
  %7978 = vmatpush1.bf16.msra.mxu0 0
  %7979 = vmatprep.subr.bf16.mxu0 0
  %7980 = vmatpush1.bf16.msra.mxu0 0
  %7981 = vmatprep.subr.bf16.mxu0 0
  %7982 = vmatpush1.bf16.msra.mxu0 0
  %7983 = vmatprep.subr.bf16.mxu0 0
  %7984 = vmatpush1.bf16.msra.mxu0 0
  %7985 = vmatprep.subr.bf16.mxu0 0
  %7986 = vmatpush1.bf16.msra.mxu0 0
  %7987 = vmatprep.mubr.bf16.mxu0 0
  %7988 = vmatmul.mubr.bf16.gmra.mrb[0].mxu0 %v7944
  %v7989 = vpop.f32.mrb[0].mxu0
  %v7990 = vadd.f32 0.0, %v7989
  %v7991 = vpop.f32.mrb[0].mxu0
  %v7992 = vpop.f32.mrb[0].mxu0
  %v7993 = vadd.f32 0.0, %v7992
  %v7994 = vpop.f32.mrb[0].mxu0
  %7995 = vmatprep.mubr.bf16.mxu0 0
  %7996 = vmatmul.mubr.bf16.gmra.mrb[0].mxu0 %v7947
  %v7997 = vpop.f32.mrb[0].mxu0
  %v7998 = vadd.f32 0.0, %v7997
  %v7999 = vpop.f32.mrb[0].mxu0
  %v8000 = vpop.f32.mrb[0].mxu0
  %v8001 = vadd.f32 0.0, %v8000
  %v8002 = vpop.f32.mrb[0].mxu0
  %8003 = vmatprep.mubr.bf16.mxu0 0
  %8004 = vmatmul.mubr.bf16.gmra.mrb[0].mxu0 %v7950
  %v8005 = vpop.f32.mrb[0].mxu0
  %v8006 = vadd.f32 0.0, %v8005
  %v8007 = vpop.f32.mrb[0].mxu0
  %v8008 = vpop.f32.mrb[0].mxu0
  %v8009 = vadd.f32 0.0, %v8008
  %v8010 = vpop.f32.mrb[0].mxu0
  %8011 = vmatprep.mubr.bf16.mxu0 0
  %8012 = vmatmul.mubr.bf16.gmra.mrb[0].mxu0 %v7953
  %v8013 = vpop.f32.mrb[0].mxu0
  %v8014 = vadd.f32 0.0, %v8013
  %v8015 = vpop.f32.mrb[0].mxu0
  %v8016 = vpop.f32.mrb[0].mxu0
  %v8017 = vadd.f32 0.0, %v8016
  %v8018 = vpop.f32.mrb[0].mxu0
  %8019 = vdwg.mxu0
  %v8020 = vpack.c.bf16 %v7815, %v7814
  %v8021 = vpack.c.bf16 %v7817, %v7816
  %v8022 = vpack.c.bf16 %v7819, %v7818
  %v8023 = vpack.c.bf16 %v7821, %v7820
  %8024 = vrot.lane.b32.xlu0 %v7822, 32
  %v8025 = vpop.permute.xlu0 %8024
  %8026 = vrot.lane.b32.xlu0 %v7823, 32
  %v8027 = vpop.permute.xlu0 %8026
  %8028 = vrot.lane.b32.xlu0 %v7824, 32
  %v8029 = vpop.permute.xlu0 %8028
  %8030 = vrot.lane.b32.xlu0 %v7825, 32
  %v8031 = vpop.permute.xlu0 %8030
  %v8037 = vsel %vm472, %v8020, 0
  %v8040 = vsel %vm472, %v8021, 0
  %v8043 = vsel %vm472, %v8022, 0
  %v8046 = vsel %vm472, %v8023, 0
  %8048 = vmatprep.subr.bf16.mxu0 0
  %8049 = vmatpush1.bf16.msra.mxu0 %v8025
  %8050 = vmatprep.subr.bf16.mxu0 0
  %8051 = vmatpush1.bf16.msra.mxu0 %v8027
  %8052 = vmatprep.subr.bf16.mxu0 0
  %8053 = vmatpush1.bf16.msra.mxu0 %v8029
  %8054 = vmatprep.subr.bf16.mxu0 0
  %8055 = vmatpush1.bf16.msra.mxu0 %v8031
  %8056 = vmatprep.subr.bf16.mxu0 0
  %8057 = vmatpush1.bf16.msra.mxu0 0
  %8058 = vmatprep.subr.bf16.mxu0 0
  %8059 = vmatpush1.bf16.msra.mxu0 0
  %8060 = vmatprep.subr.bf16.mxu0 0
  %8061 = vmatpush1.bf16.msra.mxu0 0
  %8062 = vmatprep.subr.bf16.mxu0 0
  %8063 = vmatpush1.bf16.msra.mxu0 0
  %8064 = vmatprep.subr.bf16.mxu0 0
  %8065 = vmatpush1.bf16.msra.mxu0 0
  %8066 = vmatprep.subr.bf16.mxu0 0
  %8067 = vmatpush1.bf16.msra.mxu0 0
  %8068 = vmatprep.subr.bf16.mxu0 0
  %8069 = vmatpush1.bf16.msra.mxu0 0
  %8070 = vmatprep.subr.bf16.mxu0 0
  %8071 = vmatpush1.bf16.msra.mxu0 0
  %8072 = vmatprep.subr.bf16.mxu0 0
  %8073 = vmatpush1.bf16.msra.mxu0 0
  %8074 = vmatprep.subr.bf16.mxu0 0
  %8075 = vmatpush1.bf16.msra.mxu0 0
  %8076 = vmatprep.subr.bf16.mxu0 0
  %8077 = vmatpush1.bf16.msra.mxu0 0
  %8078 = vmatprep.subr.bf16.mxu0 0
  %8079 = vmatpush1.bf16.msra.mxu0 0
  %8080 = vmatprep.mubr.bf16.mxu0 0
  %8081 = vmatmul.mubr.bf16.gmra.mrb[0].mxu0 %v8037
  %v8082 = vpop.f32.mrb[0].mxu0
  %v8083 = vadd.f32 0.0, %v8082
  %v8084 = vpop.f32.mrb[0].mxu0
  %v8085 = vpop.f32.mrb[0].mxu0
  %v8086 = vadd.f32 0.0, %v8085
  %v8087 = vpop.f32.mrb[0].mxu0
  %8088 = vmatprep.mubr.bf16.mxu0 0
  %8089 = vmatmul.mubr.bf16.gmra.mrb[0].mxu0 %v8040
  %v8090 = vpop.f32.mrb[0].mxu0
  %v8091 = vadd.f32 0.0, %v8090
  %v8092 = vpop.f32.mrb[0].mxu0
  %v8093 = vpop.f32.mrb[0].mxu0
  %v8094 = vadd.f32 0.0, %v8093
  %v8095 = vpop.f32.mrb[0].mxu0
  %8096 = vmatprep.mubr.bf16.mxu0 0
  %8097 = vmatmul.mubr.bf16.gmra.mrb[0].mxu0 %v8043
  %v8098 = vpop.f32.mrb[0].mxu0
  %v8099 = vadd.f32 0.0, %v8098
  %v8100 = vpop.f32.mrb[0].mxu0
  %v8101 = vpop.f32.mrb[0].mxu0
  %v8102 = vadd.f32 0.0, %v8101
  %v8103 = vpop.f32.mrb[0].mxu0
  %8104 = vmatprep.mubr.bf16.mxu0 0
  %8105 = vmatmul.mubr.bf16.gmra.mrb[0].mxu0 %v8046
  %v8106 = vpop.f32.mrb[0].mxu0
  %v8107 = vadd.f32 0.0, %v8106
  %v8108 = vpop.f32.mrb[0].mxu0
  %v8109 = vpop.f32.mrb[0].mxu0
  %v8110 = vadd.f32 0.0, %v8109
  %v8111 = vpop.f32.mrb[0].mxu0
  %8112 = vdwg.mxu0
  %v8114 = vsel %vm472, %v7826, 0
  %v8117 = vsel %vm472, %v7827, 0
  %v8120 = vsel %vm472, %v7828, 0
  %v8123 = vsel %vm472, %v7829, 0
  %8125 = vmatprep.subr.bf16.mxu0 0
  %8126 = vmatpush1.bf16.msra.mxu0 %v7822
  %8127 = vmatprep.subr.bf16.mxu0 0
  %8128 = vmatpush1.bf16.msra.mxu0 %v7823
  %8129 = vmatprep.subr.bf16.mxu0 0
  %8130 = vmatpush1.bf16.msra.mxu0 %v7824
  %8131 = vmatprep.subr.bf16.mxu0 0
  %8132 = vmatpush1.bf16.msra.mxu0 %v7825
  %8133 = vmatprep.subr.bf16.mxu0 0
  %8134 = vmatpush1.bf16.msra.mxu0 0
  %8135 = vmatprep.subr.bf16.mxu0 0
  %8136 = vmatpush1.bf16.msra.mxu0 0
  %8137 = vmatprep.subr.bf16.mxu0 0
  %8138 = vmatpush1.bf16.msra.mxu0 0
  %8139 = vmatprep.subr.bf16.mxu0 0
  %8140 = vmatpush1.bf16.msra.mxu0 0
  %8141 = vmatprep.subr.bf16.mxu0 0
  %8142 = vmatpush1.bf16.msra.mxu0 0
  %8143 = vmatprep.subr.bf16.mxu0 0
  %8144 = vmatpush1.bf16.msra.mxu0 0
  %8145 = vmatprep.subr.bf16.mxu0 0
  %8146 = vmatpush1.bf16.msra.mxu0 0
  %8147 = vmatprep.subr.bf16.mxu0 0
  %8148 = vmatpush1.bf16.msra.mxu0 0
  %8149 = vmatprep.subr.bf16.mxu0 0
  %8150 = vmatpush1.bf16.msra.mxu0 0
  %8151 = vmatprep.subr.bf16.mxu0 0
  %8152 = vmatpush1.bf16.msra.mxu0 0
  %8153 = vmatprep.subr.bf16.mxu0 0
  %8154 = vmatpush1.bf16.msra.mxu0 0
  %8155 = vmatprep.subr.bf16.mxu0 0
  %8156 = vmatpush1.bf16.msra.mxu0 0
  %8157 = vmatprep.mubr.bf16.mxu0 0
  %8158 = vmatmul.mubr.bf16.gmra.mrb[0].mxu0 %v8114
  %v8159 = vpop.f32.mrb[0].mxu0
  %v8160 = vadd.f32 %v7897, %v8159
  %v8161 = vpop.f32.mrb[0].mxu0
  %v8162 = vpop.f32.mrb[0].mxu0
  %v8163 = vadd.f32 %v7900, %v8162
  %v8164 = vpop.f32.mrb[0].mxu0
  %8165 = vmatprep.mubr.bf16.mxu0 0
  %8166 = vmatmul.mubr.bf16.gmra.mrb[0].mxu0 %v8117
  %v8167 = vpop.f32.mrb[0].mxu0
  %v8168 = vadd.f32 %v7905, %v8167
  %v8169 = vpop.f32.mrb[0].mxu0
  %v8170 = vpop.f32.mrb[0].mxu0
  %v8171 = vadd.f32 %v7908, %v8170
  %v8172 = vpop.f32.mrb[0].mxu0
  %8173 = vmatprep.mubr.bf16.mxu0 0
  %8174 = vmatmul.mubr.bf16.gmra.mrb[0].mxu0 %v8120
  %v8175 = vpop.f32.mrb[0].mxu0
  %v8176 = vadd.f32 %v7913, %v8175
  %v8177 = vpop.f32.mrb[0].mxu0
  %v8178 = vpop.f32.mrb[0].mxu0
  %v8179 = vadd.f32 %v7916, %v8178
  %v8180 = vpop.f32.mrb[0].mxu0
  %8181 = vmatprep.mubr.bf16.mxu0 0
  %8182 = vmatmul.mubr.bf16.gmra.mrb[0].mxu0 %v8123
  %v8183 = vpop.f32.mrb[0].mxu0
  %v8184 = vadd.f32 %v7921, %v8183
  %v8185 = vpop.f32.mrb[0].mxu0
  %v8186 = vpop.f32.mrb[0].mxu0
  %v8187 = vadd.f32 %v7924, %v8186
  %v8188 = vpop.f32.mrb[0].mxu0
  %8189 = vdwg.mxu0
  %v8190 = vadd.f32 %v8160, %v7990
  %v8191 = vadd.f32 %v8163, %v7993
  %v8192 = vadd.f32 %v8168, %v7998
  %v8193 = vadd.f32 %v8171, %v8001
  %v8194 = vadd.f32 %v8176, %v8006
  %v8195 = vadd.f32 %v8179, %v8009
  %v8196 = vadd.f32 %v8184, %v8014
  %v8197 = vadd.f32 %v8187, %v8017
  %v8198 = vadd.f32 %v8190, %v8083
  %v8199 = vadd.f32 %v8191, %v8086
  %v8200 = vadd.f32 %v8192, %v8091
  %v8201 = vadd.f32 %v8193, %v8094
  %v8202 = vadd.f32 %v8194, %v8099
  %v8203 = vadd.f32 %v8195, %v8102
  %v8204 = vadd.f32 %v8196, %v8107
  %v8205 = vadd.f32 %v8197, %v8110
  %v8206 = vmul.f32 %v8198, 0.25
  %v8207 = vmul.f32 %v8199, 0.25
  %v8208 = vmul.f32 %v8200, 0.25
  %v8209 = vmul.f32 %v8201, 0.25
  %v8210 = vmul.f32 %v8202, 0.25
  %v8211 = vmul.f32 %v8203, 0.25
  %v8212 = vmul.f32 %v8204, 0.25
  %v8213 = vmul.f32 %v8205, 0.25
  %v8214 = vlaneseq
  %v8215 = vshrl.u32 %v8214, 7
  %v8216 = vsub.s32 3, %v8215
  %v8217 = vrot.slane %v48, %v8216
  %v8218 = vadd.f32 %v8206, %v8217
  %v8219 = vadd.f32 %v8207, %v8217
  %v8220 = vadd.f32 %v8208, %v8217
  %v8221 = vadd.f32 %v8209, %v8217
  %v8222 = vadd.f32 %v8210, %v8217
  %v8223 = vadd.f32 %v8211, %v8217
  %v8224 = vadd.f32 %v8212, %v8217
  %v8225 = vadd.f32 %v8213, %v8217
  %vm8226 = vcmp.gt.f32.partialorder %v8218, 0.0
  %vm8227 = vcmp.gt.f32.partialorder %v8219, 0.0
  %vm8228 = vcmp.gt.f32.partialorder %v8220, 0.0
  %vm8229 = vcmp.gt.f32.partialorder %v8221, 0.0
  %vm8230 = vcmp.gt.f32.partialorder %v8222, 0.0
  %vm8231 = vcmp.gt.f32.partialorder %v8223, 0.0
  %vm8232 = vcmp.gt.f32.partialorder %v8224, 0.0
  %vm8233 = vcmp.gt.f32.partialorder %v8225, 0.0
  %v8234 = vmin.f32 %v8218, 0.0
  %v8235 = vmin.f32 %v8219, 0.0
  %v8236 = vmin.f32 %v8220, 0.0
  %v8237 = vmin.f32 %v8221, 0.0
  %v8238 = vmin.f32 %v8222, 0.0
  %v8239 = vmin.f32 %v8223, 0.0
  %v8240 = vmin.f32 %v8224, 0.0
  %v8241 = vmin.f32 %v8225, 0.0
  %v8242 = vmul.f32 %v8234, 1.442695
  %v8243 = vpow.pop %v8242
  %v8244 = vmul.f32 %v8235, 1.442695
  %v8245 = vpow.pop %v8244
  %v8246 = vmul.f32 %v8236, 1.442695
  %v8247 = vpow.pop %v8246
  %v8248 = vmul.f32 %v8237, 1.442695
  %v8249 = vpow.pop %v8248
  %v8250 = vmul.f32 %v8238, 1.442695
  %v8251 = vpow.pop %v8250
  %v8252 = vmul.f32 %v8239, 1.442695
  %v8253 = vpow.pop %v8252
  %v8254 = vmul.f32 %v8240, 1.442695
  %v8255 = vpow.pop %v8254
  %v8256 = vmul.f32 %v8241, 1.442695
  %v8257 = vpow.pop %v8256
  %v8258 = vsub.f32 %v8243, 1.0
  %v8259 = vsub.f32 %v8245, 1.0
  %v8260 = vsub.f32 %v8247, 1.0
  %v8261 = vsub.f32 %v8249, 1.0
  %v8262 = vsub.f32 %v8251, 1.0
  %v8263 = vsub.f32 %v8253, 1.0
  %v8264 = vsub.f32 %v8255, 1.0
  %v8265 = vsub.f32 %v8257, 1.0
  %v8266 = vsel %vm8226, %v8218, %v8258
  %v8267 = vsel %vm8227, %v8219, %v8259
  %v8268 = vsel %vm8228, %v8220, %v8260
  %v8269 = vsel %vm8229, %v8221, %v8261
  %v8270 = vsel %vm8230, %v8222, %v8262
  %v8271 = vsel %vm8231, %v8223, %v8263
  %v8272 = vsel %vm8232, %v8224, %v8264
  %v8273 = vsel %vm8233, %v8225, %v8265
  %v8274 = vpack.c.bf16 %v8267, %v8266
  %v8275 = vpack.c.bf16 %v8269, %v8268
  %v8276 = vpack.c.bf16 %v8271, %v8270
  %v8277 = vpack.c.bf16 %v8273, %v8272
  %v8278 = vld [vmem:[%s13] sm:$0xf]
  %v8279 = vld [vmem:[%s13 + $0x4] sm:$0xf]
  %v8280 = vld [vmem:[%s13 + $0x8] sm:$0xf]
  %v8281 = vld [vmem:[%s13 + $0xc] sm:$0xf]
  %v8282 = vlaneseq
  %v8283 = vshrl.u32 %v8282, 7
  %v8284 = vsub.s32 4, %v8283
  %v8285 = vrot.slane %v48, %v8284
  %v8290 = vunpack.c.l.b16 %v8278
  %v8291 = vunpack.c.l.b16 %v8279
  %v8292 = vunpack.c.l.b16 %v8280
  %v8293 = vunpack.c.l.b16 %v8281
  %v8294 = vpack.c.b16 %v8291, %v8290
  %v8295 = vpack.c.b16 %v8293, %v8292
  %v8299 = vsel %vm1583, %v8274, 0
  %v8302 = vsel %vm1583, %v8275, 0
  %v8305 = vsel %vm1583, %v8276, 0
  %v8308 = vsel %vm1583, %v8277, 0
  %8310 = vmatprep.subr.bf16.mxu0 0
  %8311 = vmatpush1.bf16.msra.mxu0 %v8294
  %8312 = vmatprep.subr.bf16.mxu0 0
  %8313 = vmatpush1.bf16.msra.mxu0 %v8295
  %8314 = vmatprep.subr.bf16.mxu0 0
  %8315 = vmatpush1.bf16.msra.mxu0 0
  %8316 = vmatprep.subr.bf16.mxu0 0
  %8317 = vmatpush1.bf16.msra.mxu0 0
  %8318 = vmatprep.subr.bf16.mxu0 0
  %8319 = vmatpush1.bf16.msra.mxu0 0
  %8320 = vmatprep.subr.bf16.mxu0 0
  %8321 = vmatpush1.bf16.msra.mxu0 0
  %8322 = vmatprep.subr.bf16.mxu0 0
  %8323 = vmatpush1.bf16.msra.mxu0 0
  %8324 = vmatprep.subr.bf16.mxu0 0
  %8325 = vmatpush1.bf16.msra.mxu0 0
  %8326 = vmatprep.subr.bf16.mxu0 0
  %8327 = vmatpush1.bf16.msra.mxu0 0
  %8328 = vmatprep.subr.bf16.mxu0 0
  %8329 = vmatpush1.bf16.msra.mxu0 0
  %8330 = vmatprep.subr.bf16.mxu0 0
  %8331 = vmatpush1.bf16.msra.mxu0 0
  %8332 = vmatprep.subr.bf16.mxu0 0
  %8333 = vmatpush1.bf16.msra.mxu0 0
  %8334 = vmatprep.subr.bf16.mxu0 0
  %8335 = vmatpush1.bf16.msra.mxu0 0
  %8336 = vmatprep.subr.bf16.mxu0 0
  %8337 = vmatpush1.bf16.msra.mxu0 0
  %8338 = vmatprep.subr.bf16.mxu0 0
  %8339 = vmatpush1.bf16.msra.mxu0 0
  %8340 = vmatprep.subr.bf16.mxu0 0
  %8341 = vmatpush1.bf16.msra.mxu0 0
  %8342 = vmatprep.mubr.bf16.mxu0 0
  %8343 = vmatmul.mubr.bf16.gmra.mrb[0].mxu0 %v8299
  %v8344 = vpop.f32.mrb[0].mxu0
  %v8345 = vadd.f32 %v8285, %v8344
  %v8346 = vpop.f32.mrb[0].mxu0
  %v8347 = vpop.f32.mrb[0].mxu0
  %v8348 = vadd.f32 %v8285, %v8347
  %v8349 = vpop.f32.mrb[0].mxu0
  %8350 = vmatprep.mubr.bf16.mxu0 0
  %8351 = vmatmul.mubr.bf16.gmra.mrb[0].mxu0 %v8302
  %v8352 = vpop.f32.mrb[0].mxu0
  %v8353 = vadd.f32 %v8285, %v8352
  %v8354 = vpop.f32.mrb[0].mxu0
  %v8355 = vpop.f32.mrb[0].mxu0
  %v8356 = vadd.f32 %v8285, %v8355
  %v8357 = vpop.f32.mrb[0].mxu0
  %8358 = vmatprep.mubr.bf16.mxu0 0
  %8359 = vmatmul.mubr.bf16.gmra.mrb[0].mxu0 %v8305
  %v8360 = vpop.f32.mrb[0].mxu0
  %v8361 = vadd.f32 %v8285, %v8360
  %v8362 = vpop.f32.mrb[0].mxu0
  %v8363 = vpop.f32.mrb[0].mxu0
  %v8364 = vadd.f32 %v8285, %v8363
  %v8365 = vpop.f32.mrb[0].mxu0
  %8366 = vmatprep.mubr.bf16.mxu0 0
  %8367 = vmatmul.mubr.bf16.gmra.mrb[0].mxu0 %v8308
  %v8368 = vpop.f32.mrb[0].mxu0
  %v8369 = vadd.f32 %v8285, %v8368
  %v8370 = vpop.f32.mrb[0].mxu0
  %v8371 = vpop.f32.mrb[0].mxu0
  %v8372 = vadd.f32 %v8285, %v8371
  %v8373 = vpop.f32.mrb[0].mxu0
  %8374 = vdwg.mxu0
  %vm8375 = vcmask 39936
  %8376 = vst.msk [vmem:[%s14] sm:$0xff] %vm8375, %v8345
  %8377 = vst.msk [vmem:[%s14 + $0x8] sm:$0xff] %vm8375, %v8348
  %8378 = vst.msk [vmem:[%s14 + $0x10] sm:$0xff] %vm8375, %v8353
  %8379 = vst.msk [vmem:[%s14 + $0x18] sm:$0xff] %vm8375, %v8356
  %8380 = vst.msk [vmem:[%s14 + $0x20] sm:$0xff] %vm8375, %v8361
  %8381 = vst.msk [vmem:[%s14 + $0x28] sm:$0xff] %vm8375, %v8364
  %8382 = vst.msk [vmem:[%s14 + $0x30] sm:$0xff] %vm8375, %v8369
  %8383 = vst.msk [vmem:[%s14 + $0x38] sm:$0xff] %vm8375, %v8372
  // Predicated region
  $region58: #{gat_edgeconv_hybrid_forward.1} parent=0 // pred_check
    _
  $region59: #{gat_edgeconv_hybrid_forward.1} parent=0 // pred_check_branch
    %8385 = sbr.rel (0) target = $region61
  $region60: #{gat_edgeconv_hybrid_forward.1} parent=0 // pred_region
    _
  $region61: #{gat_edgeconv_hybrid_forward.1} parent=0 // pred_fallthru
    _
  // Predicated region
  $region62: #{gat_edgeconv_hybrid_forward.1} parent=0 // pred_check
    _
  $region63: #{gat_edgeconv_hybrid_forward.1} parent=0 // pred_check_branch
    %8387 = sbr.rel (0) target = $region65
  $region64: #{gat_edgeconv_hybrid_forward.1} parent=0 // pred_region
    _
  $region65: #{gat_edgeconv_hybrid_forward.1} parent=0 // pred_fallthru
    _

</llo_original>
